<compile_context>
chip_gen: v6e
topology: v6e:2x2x1
jax: 0.10.0
libtpu: 0.0.40
codegen_flags: <defaults>
</compile_context>

<pallas_src>
import functools

import jax
import jax.numpy as jnp
from jax import lax
from jax.experimental import pallas as pl
from jax.experimental.pallas import tpu as pltpu


# ------------------------------ fused kernel -------------------------------- #

def _make_reduction_b_kernel(B: int):
    """Kernel processing B images per grid step.

    Row layout inside the step is "spatial-major": row = spatial_index * B + b,
    so every copy below is a dense, sublane-aligned block copy (B == 8).

      x_ref : (36*B, 448) f32   input, row = (h*6+w)*B + b
      t_ref : (36*B, 384) f32   fused 1x1 outputs; ch [0:128|128:256|256:384]
      p2/p3 : ( 4*B,1152) f32   im2col slabs for the stride-2 3x3 convs
      p4b   : (16*B,1152) f32   im2col for branch4 conv#2 (6x6 -> 4x4)
      u     : (16*B, 128) f32   branch4 conv#2 output
      p4c   : ( 4*B,1152) f32   im2col for branch4 conv#3 (4x4 -> 2x2)
      o_ref : ( 4*B, 896)       fused output, row = (oh*2+ow)*B + b,
                                ch [0:448 | 448:640 | 640:768 | 768:896]
    """
    bf16 = jnp.bfloat16
    f32 = jnp.float32

    def kernel(x_ref, w1_ref, b1_ref, w2b_ref, b2b_ref, w3b_ref, b3b_ref,
               w4b_ref, b4b_ref, w4c_ref, b4c_ref,
               o_ref,
               t_ref, p2_ref, p3_ref, p4b_ref, u_ref, p4c_ref):
        # ---- branch1: MaxPool2d(3): (6,6,448) -> (2,2,448), batched over B --
        for ph in range(2):
            for pw in range(2):
                acc = None
                for kh in range(3):
                    for kw in range(3):
                        s = (3 * ph + kh) * 6 + (3 * pw + kw)
                        v = x_ref[pl.ds(s * B, B), :]            # (B, 448) dense
                        acc = v if acc is None else jnp.maximum(acc, v)
                o_ref[pl.ds((ph * 2 + pw) * B, B), 0:448] = acc

        # ---- fused 1x1 convs (branches 2/3/4): (36B,448)@(448,384), bf16 ----
        t_ref[...] = (jnp.dot(x_ref[...].astype(bf16), w1_ref[...],
                              preferred_element_type=f32) + b1_ref[...])

        # ---- branches 2 & 3: 3x3 stride-2 convs (6x6 -> 2x2) ----------------
        # Separate slabs (no zero-padded block-diagonal weight); dense copies.
        for oh in range(2):
            for ow in range(2):
                d = (oh * 2 + ow) * B
                for kh in range(3):
                    for kw in range(3):
                        k = kh * 3 + kw
                        s = ((2 * oh + kh) * 6 + (2 * ow + kw)) * B
                        blk = t_ref[pl.ds(s, B), 0:256]          # (B, 256)
                        p2_ref[pl.ds(d, B), k * 128:(k + 1) * 128] = blk[:, 0:128]
                        p3_ref[pl.ds(d, B), k * 128:(k + 1) * 128] = blk[:, 128:256]
        o_ref[:, 448:640] = (jnp.dot(p2_ref[...].astype(bf16), w2b_ref[...],
                                     preferred_element_type=f32)
                             + b2b_ref[...]).astype(o_ref.dtype)
        o_ref[:, 640:768] = (jnp.dot(p3_ref[...].astype(bf16), w3b_ref[...],
                                     preferred_element_type=f32)
                             + b3b_ref[...]).astype(o_ref.dtype)

        # ---- branch4 conv #2: 3x3 stride-1 (6x6 -> 4x4) ---------------------
        # The 4 output-width taps are contiguous in src and dst -> (4B,128) copies.
        for oh in range(4):
            for kh in range(3):
                for kw in range(3):
                    k = kh * 3 + kw
                    s = ((oh + kh) * 6 + kw) * B
                    p4b_ref[pl.ds(oh * 4 * B, 4 * B), k * 128:(k + 1) * 128] = (
                        t_ref[pl.ds(s, 4 * B), 256:384])
        u_ref[...] = (jnp.dot(p4b_ref[...].astype(bf16), w4b_ref[...],
                              preferred_element_type=f32) + b4b_ref[...])

        # ---- branch4 conv #3: 3x3 stride-1 (4x4 -> 2x2) ---------------------
        for oh in range(2):
            for kh in range(3):
                for kw in range(3):
                    k = kh * 3 + kw
                    s = ((oh + kh) * 4 + kw) * B
                    p4c_ref[pl.ds(oh * 2 * B, 2 * B), k * 128:(k + 1) * 128] = (
                        u_ref[pl.ds(s, 2 * B), :])
        o_ref[:, 768:896] = (jnp.dot(p4c_ref[...].astype(bf16), w4c_ref[...],
                                     preferred_element_type=f32)
                             + b4c_ref[...]).astype(o_ref.dtype)

    return kernel


# --------------------------- one-time weight packing -------------------------- #

def prepare_params(p, compute_dtype=jnp.bfloat16):
    """Pack / cast weights ONCE (outside the per-call forward)."""
    f32 = jnp.float32

    def wmat(w):  # HWIO (kh,kw,ci,co) -> ((kh*3+kw)*128 + ci, co)
        kh, kw, ci, co = w.shape
        return w.reshape(kh * kw * ci, co).astype(compute_dtype)

    return {
        "w1": jnp.concatenate([p["w2a"].reshape(448, 128),
                               p["w3a"].reshape(448, 128),
                               p["w4a"].reshape(448, 128)],
                              axis=1).astype(compute_dtype),           # (448,384)
        "b1": jnp.concatenate([p["b2a"], p["b3a"], p["b4a"]]
                              ).reshape(1, 384).astype(f32),
        "w2b": wmat(p["w2b"]), "b2b": p["b2b"].reshape(1, 192).astype(f32),
        "w3b": wmat(p["w3b"]), "b3b": p["b3b"].reshape(1, 128).astype(f32),
        "w4b": wmat(p["w4b"]), "b4b": p["b4b"].reshape(1, 128).astype(f32),
        "w4c": wmat(p["w4c"]), "b4c": p["b4c"].reshape(1, 128).astype(f32),
    }


# ------------------------------ wrapper -------------------------------------- #

def reduction_b(x_nchw, pp, *, block_images=8):
    """x_nchw: (N, 448, 6, 6); pp = prepare_params(params).  -> (N, 896, 2, 2)."""
    N = x_nchw.shape[0]
    dt = x_nchw.dtype
    B = block_images
    G = pl.cdiv(N, B)
    Np = G * B
    x = x_nchw
    if Np != N:
        x = jnp.pad(x, ((0, Np - N), (0, 0), (0, 0), (0, 0)))

    # HBM layout for the kernel: row = (g*36 + s)*B + b, s = h*6 + w.
    xp = x.reshape(G, B, 448, 36).transpose(0, 3, 1, 2).reshape(G * 36 * B, 448)

    kernel = _make_reduction_b_kernel(B)
    const = lambda g: (0, 0)

    out2d = pl.pallas_call(
        kernel,
        out_shape=jax.ShapeDtypeStruct((G * 4 * B, 896), dt),
        grid=(G,),
        in_specs=[
            pl.BlockSpec((36 * B, 448), lambda g: (g, 0)),    # x (B images)
            pl.BlockSpec((448, 384), const),                  # w1 (bf16)
            pl.BlockSpec((1, 384), const),                    # b1
            pl.BlockSpec((1152, 192), const),                 # w2b
            pl.BlockSpec((1, 192), const),                    # b2b
            pl.BlockSpec((1152, 128), const),                 # w3b
            pl.BlockSpec((1, 128), const),                    # b3b
            pl.BlockSpec((1152, 128), const),                 # w4b
            pl.BlockSpec((1, 128), const),                    # b4b
            pl.BlockSpec((1152, 128), const),                 # w4c
            pl.BlockSpec((1, 128), const),                    # b4c
        ],
        out_specs=pl.BlockSpec((4 * B, 896), lambda g: (g, 0)),
        scratch_shapes=[
            pltpu.VMEM((36 * B, 384), jnp.float32),   # t  : 1x1 conv outputs
            pltpu.VMEM((4 * B, 1152), jnp.float32),   # p2 : im2col branch2
            pltpu.VMEM((4 * B, 1152), jnp.float32),   # p3 : im2col branch3
            pltpu.VMEM((16 * B, 1152), jnp.float32),  # p4b: im2col branch4 conv#2
            pltpu.VMEM((16 * B, 128), jnp.float32),   # u  : branch4 conv#2 output
            pltpu.VMEM((4 * B, 1152), jnp.float32),   # p4c: im2col branch4 conv#3
        ],
        compiler_params=pltpu.CompilerParams(
            dimension_semantics=("parallel",)),       # batch axis -> both TCs on v7x
    )(xp, pp["w1"], pp["b1"], pp["w2b"], pp["b2b"], pp["w3b"], pp["b3b"],
      pp["w4b"], pp["b4b"], pp["w4c"], pp["b4c"])

    # (G*4*B, 896) -> (Np, 896, 2, 2); channel order already [b1|b2|b3|b4].
    y = out2d.reshape(G, 4, B, 896).transpose(0, 2, 3, 1).reshape(Np, 896, 2, 2)
    return y[:N]


# ------------------------------ pure-JAX reference --------------------------- #

def _ref_maxpool(x, k):
    return lax.reduce_window(
        x, -jnp.inf, lax.max, (1, k, k, 1), (1, k, k, 1), "VALID")


def reduction_b_ref(x_nchw, p, op_dtype=jnp.float32):
    """Reference. op_dtype=bfloat16 mirrors the kernel's MXU operand precision
    (f32 accumulation either way); op_dtype=float32 is the exact module."""
    prec = (lax.Precision.HIGHEST if op_dtype == jnp.float32
            else lax.Precision.DEFAULT)

    def conv(h, w, b, stride):
        y = lax.conv_general_dilated(
            h.astype(op_dtype), w.astype(op_dtype),
            window_strides=(stride, stride), padding="VALID",
            dimension_numbers=("NHWC", "HWIO", "NHWC"),
            preferred_element_type=jnp.float32, precision=prec)
        return y + b[None, None, None, :].astype(jnp.float32)

    x = jnp.transpose(x_nchw, (0, 2, 3, 1)).astype(jnp.float32)
    b1 = _ref_maxpool(x, 3)
    b2 = conv(conv(x, p["w2a"], p["b2a"], 1), p["w2b"], p["b2b"], 2)
    b3 = conv(conv(x, p["w3a"], p["b3a"], 1), p["w3b"], p["b3b"], 2)
    t = conv(conv(x, p["w4a"], p["b4a"], 1), p["w4b"], p["b4b"], 1)
    b4 = conv(t, p["w4c"], p["b4c"], 1)
    y = jnp.concatenate([b1, b2, b3, b4], axis=-1)
    return jnp.transpose(y, (0, 3, 1, 2)).astype(x_nchw.dtype)


# ----------------------------------- main ------------------------------------ #

if __name__ == "__main__":
    key = jax.random.PRNGKey(0)
    kx, *kp = jax.random.split(key, 16)

    def mkw(k, kh, kw, ci, co):
        return jax.random.normal(k, (kh, kw, ci, co), jnp.float32) * 0.05

    def mkb(k, co):
        return jax.random.normal(k, (co,), jnp.float32) * 0.05

    params = {
        "w2a": mkw(kp[0], 1, 1, 448, 128), "b2a": mkb(kp[1], 128),
        "w2b": mkw(kp[2], 3, 3, 128, 192), "b2b": mkb(kp[3], 192),
        "w3a": mkw(kp[4], 1, 1, 448, 128), "b3a": mkb(kp[5], 128),
        "w3b": mkw(kp[6], 3, 3, 128, 128), "b3b": mkb(kp[7], 128),
        "w4a": mkw(kp[8], 1, 1, 448, 128), "b4a": mkb(kp[9], 128),
        "w4b": mkw(kp[10], 3, 3, 128, 128), "b4b": mkb(kp[11], 128),
        "w4c": mkw(kp[12], 3, 3, 128, 128), "b4c": mkb(kp[13], 128),
    }

    # Input NCHW: (16, 448, 6, 6).  Spatial 6x6 is the only size at which all
    # four branch outputs share a 2x2 resolution, as torch.cat(dim=1) requires.
    # N=16 with B=8 images per grid step gives a length-2 "parallel" grid.
    x = jax.random.normal(kx, (16, 448, 6, 6), jnp.float32)

    packed = prepare_params(params)                 # one-time weight packing
    fwd = jax.jit(functools.partial(reduction_b, block_images=8))
    y = jax.block_until_ready(fwd(x, packed))
    assert y.shape == (16, 448 + 192 + 128 + 128, 2, 2), y.shape

    # Tight check vs a reference that matches the kernel numerics
    # (bf16 MXU operands, f32 accumulation).
    ref_bf = jax.jit(functools.partial(reduction_b_ref, op_dtype=jnp.bfloat16))
    y_bf = jax.block_until_ready(ref_bf(x, params))
    err_bf = float(jnp.max(jnp.abs(y - y_bf)))
    assert jnp.allclose(y, y_bf, atol=5e-3, rtol=5e-3), err_bf

    # Sanity check vs the full-f32 module semantics (bf16 operand rounding only).
    y_f32 = jax.block_until_ready(jax.jit(reduction_b_ref)(x, params))
    err_f32 = float(jnp.max(jnp.abs(y - y_f32)))
    assert jnp.allclose(y, y_f32, atol=1.5e-1, rtol=1e-1), err_f32

    print("KERNEL_OK")
</pallas_src>

<mosaic_0001>
module attributes {stable_mosaic.version = 11 : i64} {
  func.func @kernel(%arg0: i32, %arg1: memref<288x448xf32, #tpu.memory_space<vmem>>, %arg2: memref<448x384xbf16, #tpu.memory_space<vmem>>, %arg3: memref<1x384xf32, #tpu.memory_space<vmem>>, %arg4: memref<1152x192xbf16, #tpu.memory_space<vmem>>, %arg5: memref<1x192xf32, #tpu.memory_space<vmem>>, %arg6: memref<1152x128xbf16, #tpu.memory_space<vmem>>, %arg7: memref<1x128xf32, #tpu.memory_space<vmem>>, %arg8: memref<1152x128xbf16, #tpu.memory_space<vmem>>, %arg9: memref<1x128xf32, #tpu.memory_space<vmem>>, %arg10: memref<1152x128xbf16, #tpu.memory_space<vmem>>, %arg11: memref<1x128xf32, #tpu.memory_space<vmem>>, %arg12: memref<32x896xf32, #tpu.memory_space<vmem>>, %arg13: memref<288x384xf32, #tpu.memory_space<vmem>>, %arg14: memref<32x1152xf32, #tpu.memory_space<vmem>>, %arg15: memref<32x1152xf32, #tpu.memory_space<vmem>>, %arg16: memref<128x1152xf32, #tpu.memory_space<vmem>>, %arg17: memref<128x128xf32, #tpu.memory_space<vmem>>, %arg18: memref<32x1152xf32, #tpu.memory_space<vmem>>) attributes {dimension_semantics = [#tpu.dimension_semantics<parallel>], iteration_bounds = array<i64: 2>, scalar_prefetch = 0 : i64, scratch_operands = 6 : i64, tpu.core_type = #tpu.core_type<tc>, window_params = [{transform_indices = @transform_0, window_bounds = array<i64: 288, 448>}, {pipeline_mode = #tpu.pipeline_mode<synchronous>, transform_indices = @transform_1, window_bounds = array<i64: 448, 384>}, {pipeline_mode = #tpu.pipeline_mode<synchronous>, transform_indices = @transform_2, window_bounds = array<i64: 1, 384>}, {pipeline_mode = #tpu.pipeline_mode<synchronous>, transform_indices = @transform_3, window_bounds = array<i64: 1152, 192>}, {pipeline_mode = #tpu.pipeline_mode<synchronous>, transform_indices = @transform_4, window_bounds = array<i64: 1, 192>}, {pipeline_mode = #tpu.pipeline_mode<synchronous>, transform_indices = @transform_5, window_bounds = array<i64: 1152, 128>}, {pipeline_mode = #tpu.pipeline_mode<synchronous>, transform_indices = @transform_6, window_bounds = array<i64: 1, 128>}, {pipeline_mode = #tpu.pipeline_mode<synchronous>, transform_indices = @transform_7, window_bounds = array<i64: 1152, 128>}, {pipeline_mode = #tpu.pipeline_mode<synchronous>, transform_indices = @transform_8, window_bounds = array<i64: 1, 128>}, {pipeline_mode = #tpu.pipeline_mode<synchronous>, transform_indices = @transform_9, window_bounds = array<i64: 1152, 128>}, {pipeline_mode = #tpu.pipeline_mode<synchronous>, transform_indices = @transform_10, window_bounds = array<i64: 1, 128>}, {transform_indices = @transform_11, window_bounds = array<i64: 32, 896>}]} {
    %c0 = arith.constant 0 : index
    %c0_0 = arith.constant 0 : index
    %0 = vector.load %arg1[%c0, %c0_0] : memref<288x448xf32, #tpu.memory_space<vmem>>, vector<8x448xf32>
    %c8 = arith.constant 8 : index
    %c0_1 = arith.constant 0 : index
    %1 = vector.load %arg1[%c8, %c0_1] : memref<288x448xf32, #tpu.memory_space<vmem>>, vector<8x448xf32>
    %2 = arith.maximumf %0, %1 : vector<8x448xf32>
    %c16 = arith.constant 16 : index
    %c0_2 = arith.constant 0 : index
    %3 = vector.load %arg1[%c16, %c0_2] : memref<288x448xf32, #tpu.memory_space<vmem>>, vector<8x448xf32>
    %4 = arith.maximumf %2, %3 : vector<8x448xf32>
    %c48 = arith.constant 48 : index
    %c0_3 = arith.constant 0 : index
    %5 = vector.load %arg1[%c48, %c0_3] : memref<288x448xf32, #tpu.memory_space<vmem>>, vector<8x448xf32>
    %6 = arith.maximumf %4, %5 : vector<8x448xf32>
    %c56 = arith.constant 56 : index
    %c0_4 = arith.constant 0 : index
    %7 = vector.load %arg1[%c56, %c0_4] : memref<288x448xf32, #tpu.memory_space<vmem>>, vector<8x448xf32>
    %8 = arith.maximumf %6, %7 : vector<8x448xf32>
    %c64 = arith.constant 64 : index
    %c0_5 = arith.constant 0 : index
    %9 = vector.load %arg1[%c64, %c0_5] : memref<288x448xf32, #tpu.memory_space<vmem>>, vector<8x448xf32>
    %10 = arith.maximumf %8, %9 : vector<8x448xf32>
    %c96 = arith.constant 96 : index
    %c0_6 = arith.constant 0 : index
    %11 = vector.load %arg1[%c96, %c0_6] : memref<288x448xf32, #tpu.memory_space<vmem>>, vector<8x448xf32>
    %12 = arith.maximumf %10, %11 : vector<8x448xf32>
    %c104 = arith.constant 104 : index
    %c0_7 = arith.constant 0 : index
    %13 = vector.load %arg1[%c104, %c0_7] : memref<288x448xf32, #tpu.memory_space<vmem>>, vector<8x448xf32>
    %14 = arith.maximumf %12, %13 : vector<8x448xf32>
    %c112 = arith.constant 112 : index
    %c0_8 = arith.constant 0 : index
    %15 = vector.load %arg1[%c112, %c0_8] : memref<288x448xf32, #tpu.memory_space<vmem>>, vector<8x448xf32>
    %16 = arith.maximumf %14, %15 : vector<8x448xf32>
    %c0_9 = arith.constant 0 : index
    %c0_10 = arith.constant 0 : index
    %17 = vector.load %arg12[%c0_9, %c0_10] : memref<32x896xf32, #tpu.memory_space<vmem>>, vector<8x448xf32>
    tpu.vector_store %arg12[%c0_9, %c0_10], %16 {strides = array<i32>} : memref<32x896xf32, #tpu.memory_space<vmem>>, vector<8x448xf32>,
    %c24 = arith.constant 24 : index
    %c0_11 = arith.constant 0 : index
    %18 = vector.load %arg1[%c24, %c0_11] : memref<288x448xf32, #tpu.memory_space<vmem>>, vector<8x448xf32>
    %c32 = arith.constant 32 : index
    %c0_12 = arith.constant 0 : index
    %19 = vector.load %arg1[%c32, %c0_12] : memref<288x448xf32, #tpu.memory_space<vmem>>, vector<8x448xf32>
    %20 = arith.maximumf %18, %19 : vector<8x448xf32>
    %c40 = arith.constant 40 : index
    %c0_13 = arith.constant 0 : index
    %21 = vector.load %arg1[%c40, %c0_13] : memref<288x448xf32, #tpu.memory_space<vmem>>, vector<8x448xf32>
    %22 = arith.maximumf %20, %21 : vector<8x448xf32>
    %c72 = arith.constant 72 : index
    %c0_14 = arith.constant 0 : index
    %23 = vector.load %arg1[%c72, %c0_14] : memref<288x448xf32, #tpu.memory_space<vmem>>, vector<8x448xf32>
    %24 = arith.maximumf %22, %23 : vector<8x448xf32>
    %c80 = arith.constant 80 : index
    %c0_15 = arith.constant 0 : index
    %25 = vector.load %arg1[%c80, %c0_15] : memref<288x448xf32, #tpu.memory_space<vmem>>, vector<8x448xf32>
    %26 = arith.maximumf %24, %25 : vector<8x448xf32>
    %c88 = arith.constant 88 : index
    %c0_16 = arith.constant 0 : index
    %27 = vector.load %arg1[%c88, %c0_16] : memref<288x448xf32, #tpu.memory_space<vmem>>, vector<8x448xf32>
    %28 = arith.maximumf %26, %27 : vector<8x448xf32>
    %c120 = arith.constant 120 : index
    %c0_17 = arith.constant 0 : index
    %29 = vector.load %arg1[%c120, %c0_17] : memref<288x448xf32, #tpu.memory_space<vmem>>, vector<8x448xf32>
    %30 = arith.maximumf %28, %29 : vector<8x448xf32>
    %c128 = arith.constant 128 : index
    %c0_18 = arith.constant 0 : index
    %31 = vector.load %arg1[%c128, %c0_18] : memref<288x448xf32, #tpu.memory_space<vmem>>, vector<8x448xf32>
    %32 = arith.maximumf %30, %31 : vector<8x448xf32>
    %c136 = arith.constant 136 : index
    %c0_19 = arith.constant 0 : index
    %33 = vector.load %arg1[%c136, %c0_19] : memref<288x448xf32, #tpu.memory_space<vmem>>, vector<8x448xf32>
    %34 = arith.maximumf %32, %33 : vector<8x448xf32>
    %c8_20 = arith.constant 8 : index
    %c0_21 = arith.constant 0 : index
    %35 = vector.load %arg12[%c8_20, %c0_21] : memref<32x896xf32, #tpu.memory_space<vmem>>, vector<8x448xf32>
    tpu.vector_store %arg12[%c8_20, %c0_21], %34 {strides = array<i32>} : memref<32x896xf32, #tpu.memory_space<vmem>>, vector<8x448xf32>,
    %c144 = arith.constant 144 : index
    %c0_22 = arith.constant 0 : index
    %36 = vector.load %arg1[%c144, %c0_22] : memref<288x448xf32, #tpu.memory_space<vmem>>, vector<8x448xf32>
    %c152 = arith.constant 152 : index
    %c0_23 = arith.constant 0 : index
    %37 = vector.load %arg1[%c152, %c0_23] : memref<288x448xf32, #tpu.memory_space<vmem>>, vector<8x448xf32>
    %38 = arith.maximumf %36, %37 : vector<8x448xf32>
    %c160 = arith.constant 160 : index
    %c0_24 = arith.constant 0 : index
    %39 = vector.load %arg1[%c160, %c0_24] : memref<288x448xf32, #tpu.memory_space<vmem>>, vector<8x448xf32>
    %40 = arith.maximumf %38, %39 : vector<8x448xf32>
    %c192 = arith.constant 192 : index
    %c0_25 = arith.constant 0 : index
    %41 = vector.load %arg1[%c192, %c0_25] : memref<288x448xf32, #tpu.memory_space<vmem>>, vector<8x448xf32>
    %42 = arith.maximumf %40, %41 : vector<8x448xf32>
    %c200 = arith.constant 200 : index
    %c0_26 = arith.constant 0 : index
    %43 = vector.load %arg1[%c200, %c0_26] : memref<288x448xf32, #tpu.memory_space<vmem>>, vector<8x448xf32>
    %44 = arith.maximumf %42, %43 : vector<8x448xf32>
    %c208 = arith.constant 208 : index
    %c0_27 = arith.constant 0 : index
    %45 = vector.load %arg1[%c208, %c0_27] : memref<288x448xf32, #tpu.memory_space<vmem>>, vector<8x448xf32>
    %46 = arith.maximumf %44, %45 : vector<8x448xf32>
    %c240 = arith.constant 240 : index
    %c0_28 = arith.constant 0 : index
    %47 = vector.load %arg1[%c240, %c0_28] : memref<288x448xf32, #tpu.memory_space<vmem>>, vector<8x448xf32>
    %48 = arith.maximumf %46, %47 : vector<8x448xf32>
    %c248 = arith.constant 248 : index
    %c0_29 = arith.constant 0 : index
    %49 = vector.load %arg1[%c248, %c0_29] : memref<288x448xf32, #tpu.memory_space<vmem>>, vector<8x448xf32>
    %50 = arith.maximumf %48, %49 : vector<8x448xf32>
    %c256 = arith.constant 256 : index
    %c0_30 = arith.constant 0 : index
    %51 = vector.load %arg1[%c256, %c0_30] : memref<288x448xf32, #tpu.memory_space<vmem>>, vector<8x448xf32>
    %52 = arith.maximumf %50, %51 : vector<8x448xf32>
    %c16_31 = arith.constant 16 : index
    %c0_32 = arith.constant 0 : index
    %53 = vector.load %arg12[%c16_31, %c0_32] : memref<32x896xf32, #tpu.memory_space<vmem>>, vector<8x448xf32>
    tpu.vector_store %arg12[%c16_31, %c0_32], %52 {strides = array<i32>} : memref<32x896xf32, #tpu.memory_space<vmem>>, vector<8x448xf32>,
    %c168 = arith.constant 168 : index
    %c0_33 = arith.constant 0 : index
    %54 = vector.load %arg1[%c168, %c0_33] : memref<288x448xf32, #tpu.memory_space<vmem>>, vector<8x448xf32>
    %c176 = arith.constant 176 : index
    %c0_34 = arith.constant 0 : index
    %55 = vector.load %arg1[%c176, %c0_34] : memref<288x448xf32, #tpu.memory_space<vmem>>, vector<8x448xf32>
    %56 = arith.maximumf %54, %55 : vector<8x448xf32>
    %c184 = arith.constant 184 : index
    %c0_35 = arith.constant 0 : index
    %57 = vector.load %arg1[%c184, %c0_35] : memref<288x448xf32, #tpu.memory_space<vmem>>, vector<8x448xf32>
    %58 = arith.maximumf %56, %57 : vector<8x448xf32>
    %c216 = arith.constant 216 : index
    %c0_36 = arith.constant 0 : index
    %59 = vector.load %arg1[%c216, %c0_36] : memref<288x448xf32, #tpu.memory_space<vmem>>, vector<8x448xf32>
    %60 = arith.maximumf %58, %59 : vector<8x448xf32>
    %c224 = arith.constant 224 : index
    %c0_37 = arith.constant 0 : index
    %61 = vector.load %arg1[%c224, %c0_37] : memref<288x448xf32, #tpu.memory_space<vmem>>, vector<8x448xf32>
    %62 = arith.maximumf %60, %61 : vector<8x448xf32>
    %c232 = arith.constant 232 : index
    %c0_38 = arith.constant 0 : index
    %63 = vector.load %arg1[%c232, %c0_38] : memref<288x448xf32, #tpu.memory_space<vmem>>, vector<8x448xf32>
    %64 = arith.maximumf %62, %63 : vector<8x448xf32>
    %c264 = arith.constant 264 : index
    %c0_39 = arith.constant 0 : index
    %65 = vector.load %arg1[%c264, %c0_39] : memref<288x448xf32, #tpu.memory_space<vmem>>, vector<8x448xf32>
    %66 = arith.maximumf %64, %65 : vector<8x448xf32>
    %c272 = arith.constant 272 : index
    %c0_40 = arith.constant 0 : index
    %67 = vector.load %arg1[%c272, %c0_40] : memref<288x448xf32, #tpu.memory_space<vmem>>, vector<8x448xf32>
    %68 = arith.maximumf %66, %67 : vector<8x448xf32>
    %c280 = arith.constant 280 : index
    %c0_41 = arith.constant 0 : index
    %69 = vector.load %arg1[%c280, %c0_41] : memref<288x448xf32, #tpu.memory_space<vmem>>, vector<8x448xf32>
    %70 = arith.maximumf %68, %69 : vector<8x448xf32>
    %c24_42 = arith.constant 24 : index
    %c0_43 = arith.constant 0 : index
    %71 = vector.load %arg12[%c24_42, %c0_43] : memref<32x896xf32, #tpu.memory_space<vmem>>, vector<8x448xf32>
    tpu.vector_store %arg12[%c24_42, %c0_43], %70 {strides = array<i32>} : memref<32x896xf32, #tpu.memory_space<vmem>>, vector<8x448xf32>,
    %c0_44 = arith.constant 0 : index
    %c0_45 = arith.constant 0 : index
    %72 = vector.load %arg1[%c0_44, %c0_45] : memref<288x448xf32, #tpu.memory_space<vmem>>, vector<288x448xf32>
    %73 = arith.truncf %72 : vector<288x448xf32> to vector<288x448xbf16>
    %c0_46 = arith.constant 0 : index
    %c0_47 = arith.constant 0 : index
    %74 = vector.load %arg2[%c0_46, %c0_47] : memref<448x384xbf16, #tpu.memory_space<vmem>>, vector<448x384xbf16>
    %cst = arith.constant dense<0.000000e+00> : vector<288x384xf32>
    %75 = tpu.matmul %73, %74, %cst {dimension_numbers = #tpu.dot_dimension_numbers<[1], [0], [0], [1], [0, 0, 1, 1], [], []>} : vector<288x448xbf16>, vector<448x384xbf16>, vector<288x384xf32> -> vector<288x384xf32>
    %c0_48 = arith.constant 0 : index
    %c0_49 = arith.constant 0 : index
    %76 = vector.load %arg3[%c0_48, %c0_49] : memref<1x384xf32, #tpu.memory_space<vmem>>, vector<1x384xf32>
    %77 = vector.broadcast %76 : vector<1x384xf32> to vector<288x384xf32>
    %78 = arith.addf %75, %77 : vector<288x384xf32>
    %c0_50 = arith.constant 0 : index
    %c0_51 = arith.constant 0 : index
    %79 = vector.load %arg13[%c0_50, %c0_51] : memref<288x384xf32, #tpu.memory_space<vmem>>, vector<288x384xf32>
    tpu.vector_store %arg13[%c0_50, %c0_51], %78 {strides = array<i32>} : memref<288x384xf32, #tpu.memory_space<vmem>>, vector<288x384xf32>,
    %c0_52 = arith.constant 0 : index
    %c0_53 = arith.constant 0 : index
    %80 = vector.load %arg13[%c0_52, %c0_53] : memref<288x384xf32, #tpu.memory_space<vmem>>, vector<8x256xf32>
    %81 = vector.extract_strided_slice %80 {offsets = [0, 0], sizes = [8, 128], strides = [1, 1]} : vector<8x256xf32> to vector<8x128xf32>
    %c0_54 = arith.constant 0 : index
    %c0_55 = arith.constant 0 : index
    %82 = vector.load %arg14[%c0_54, %c0_55] : memref<32x1152xf32, #tpu.memory_space<vmem>>, vector<8x128xf32>
    tpu.vector_store %arg14[%c0_54, %c0_55], %81 {strides = array<i32>} : memref<32x1152xf32, #tpu.memory_space<vmem>>, vector<8x128xf32>,
    %83 = vector.extract_strided_slice %80 {offsets = [0, 128], sizes = [8, 128], strides = [1, 1]} : vector<8x256xf32> to vector<8x128xf32>
    %c0_56 = arith.constant 0 : index
    %c0_57 = arith.constant 0 : index
    %84 = vector.load %arg15[%c0_56, %c0_57] : memref<32x1152xf32, #tpu.memory_space<vmem>>, vector<8x128xf32>
    tpu.vector_store %arg15[%c0_56, %c0_57], %83 {strides = array<i32>} : memref<32x1152xf32, #tpu.memory_space<vmem>>, vector<8x128xf32>,
    %c8_58 = arith.constant 8 : index
    %c0_59 = arith.constant 0 : index
    %85 = vector.load %arg13[%c8_58, %c0_59] : memref<288x384xf32, #tpu.memory_space<vmem>>, vector<8x256xf32>
    %86 = vector.extract_strided_slice %85 {offsets = [0, 0], sizes = [8, 128], strides = [1, 1]} : vector<8x256xf32> to vector<8x128xf32>
    %c0_60 = arith.constant 0 : index
    %c128_61 = arith.constant 128 : index
    %87 = vector.load %arg14[%c0_60, %c128_61] : memref<32x1152xf32, #tpu.memory_space<vmem>>, vector<8x128xf32>
    tpu.vector_store %arg14[%c0_60, %c128_61], %86 {strides = array<i32>} : memref<32x1152xf32, #tpu.memory_space<vmem>>, vector<8x128xf32>,
    %88 = vector.extract_strided_slice %85 {offsets = [0, 128], sizes = [8, 128], strides = [1, 1]} : vector<8x256xf32> to vector<8x128xf32>
    %c0_62 = arith.constant 0 : index
    %c128_63 = arith.constant 128 : index
    %89 = vector.load %arg15[%c0_62, %c128_63] : memref<32x1152xf32, #tpu.memory_space<vmem>>, vector<8x128xf32>
    tpu.vector_store %arg15[%c0_62, %c128_63], %88 {strides = array<i32>} : memref<32x1152xf32, #tpu.memory_space<vmem>>, vector<8x128xf32>,
    %c16_64 = arith.constant 16 : index
    %c0_65 = arith.constant 0 : index
    %90 = vector.load %arg13[%c16_64, %c0_65] : memref<288x384xf32, #tpu.memory_space<vmem>>, vector<8x256xf32>
    %91 = vector.extract_strided_slice %90 {offsets = [0, 0], sizes = [8, 128], strides = [1, 1]} : vector<8x256xf32> to vector<8x128xf32>
    %c0_66 = arith.constant 0 : index
    %c256_67 = arith.constant 256 : index
    %92 = vector.load %arg14[%c0_66, %c256_67] : memref<32x1152xf32, #tpu.memory_space<vmem>>, vector<8x128xf32>
    tpu.vector_store %arg14[%c0_66, %c256_67], %91 {strides = array<i32>} : memref<32x1152xf32, #tpu.memory_space<vmem>>, vector<8x128xf32>,
    %93 = vector.extract_strided_slice %90 {offsets = [0, 128], sizes = [8, 128], strides = [1, 1]} : vector<8x256xf32> to vector<8x128xf32>
    %c0_68 = arith.constant 0 : index
    %c256_69 = arith.constant 256 : index
    %94 = vector.load %arg15[%c0_68, %c256_69] : memref<32x1152xf32, #tpu.memory_space<vmem>>, vector<8x128xf32>
    tpu.vector_store %arg15[%c0_68, %c256_69], %93 {strides = array<i32>} : memref<32x1152xf32, #tpu.memory_space<vmem>>, vector<8x128xf32>,
    %c48_70 = arith.constant 48 : index
    %c0_71 = arith.constant 0 : index
    %95 = vector.load %arg13[%c48_70, %c0_71] : memref<288x384xf32, #tpu.memory_space<vmem>>, vector<8x256xf32>
    %96 = vector.extract_strided_slice %95 {offsets = [0, 0], sizes = [8, 128], strides = [1, 1]} : vector<8x256xf32> to vector<8x128xf32>
    %c0_72 = arith.constant 0 : index
    %c384 = arith.constant 384 : index
    %97 = vector.load %arg14[%c0_72, %c384] : memref<32x1152xf32, #tpu.memory_space<vmem>>, vector<8x128xf32>
    tpu.vector_store %arg14[%c0_72, %c384], %96 {strides = array<i32>} : memref<32x1152xf32, #tpu.memory_space<vmem>>, vector<8x128xf32>,
    %98 = vector.extract_strided_slice %95 {offsets = [0, 128], sizes = [8, 128], strides = [1, 1]} : vector<8x256xf32> to vector<8x128xf32>
    %c0_73 = arith.constant 0 : index
    %c384_74 = arith.constant 384 : index
    %99 = vector.load %arg15[%c0_73, %c384_74] : memref<32x1152xf32, #tpu.memory_space<vmem>>, vector<8x128xf32>
    tpu.vector_store %arg15[%c0_73, %c384_74], %98 {strides = array<i32>} : memref<32x1152xf32, #tpu.memory_space<vmem>>, vector<8x128xf32>,
    %c56_75 = arith.constant 56 : index
    %c0_76 = arith.constant 0 : index
    %100 = vector.load %arg13[%c56_75, %c0_76] : memref<288x384xf32, #tpu.memory_space<vmem>>, vector<8x256xf32>
    %101 = vector.extract_strided_slice %100 {offsets = [0, 0], sizes = [8, 128], strides = [1, 1]} : vector<8x256xf32> to vector<8x128xf32>
    %c0_77 = arith.constant 0 : index
    %c512 = arith.constant 512 : index
    %102 = vector.load %arg14[%c0_77, %c512] : memref<32x1152xf32, #tpu.memory_space<vmem>>, vector<8x128xf32>
    tpu.vector_store %arg14[%c0_77, %c512], %101 {strides = array<i32>} : memref<32x1152xf32, #tpu.memory_space<vmem>>, vector<8x128xf32>,
    %103 = vector.extract_strided_slice %100 {offsets = [0, 128], sizes = [8, 128], strides = [1, 1]} : vector<8x256xf32> to vector<8x128xf32>
    %c0_78 = arith.constant 0 : index
    %c512_79 = arith.constant 512 : index
    %104 = vector.load %arg15[%c0_78, %c512_79] : memref<32x1152xf32, #tpu.memory_space<vmem>>, vector<8x128xf32>
    tpu.vector_store %arg15[%c0_78, %c512_79], %103 {strides = array<i32>} : memref<32x1152xf32, #tpu.memory_space<vmem>>, vector<8x128xf32>,
    %c64_80 = arith.constant 64 : index
    %c0_81 = arith.constant 0 : index
    %105 = vector.load %arg13[%c64_80, %c0_81] : memref<288x384xf32, #tpu.memory_space<vmem>>, vector<8x256xf32>
    %106 = vector.extract_strided_slice %105 {offsets = [0, 0], sizes = [8, 128], strides = [1, 1]} : vector<8x256xf32> to vector<8x128xf32>
    %c0_82 = arith.constant 0 : index
    %c640 = arith.constant 640 : index
    %107 = vector.load %arg14[%c0_82, %c640] : memref<32x1152xf32, #tpu.memory_space<vmem>>, vector<8x128xf32>
    tpu.vector_store %arg14[%c0_82, %c640], %106 {strides = array<i32>} : memref<32x1152xf32, #tpu.memory_space<vmem>>, vector<8x128xf32>,
    %108 = vector.extract_strided_slice %105 {offsets = [0, 128], sizes = [8, 128], strides = [1, 1]} : vector<8x256xf32> to vector<8x128xf32>
    %c0_83 = arith.constant 0 : index
    %c640_84 = arith.constant 640 : index
    %109 = vector.load %arg15[%c0_83, %c640_84] : memref<32x1152xf32, #tpu.memory_space<vmem>>, vector<8x128xf32>
    tpu.vector_store %arg15[%c0_83, %c640_84], %108 {strides = array<i32>} : memref<32x1152xf32, #tpu.memory_space<vmem>>, vector<8x128xf32>,
    %c96_85 = arith.constant 96 : index
    %c0_86 = arith.constant 0 : index
    %110 = vector.load %arg13[%c96_85, %c0_86] : memref<288x384xf32, #tpu.memory_space<vmem>>, vector<8x256xf32>
    %111 = vector.extract_strided_slice %110 {offsets = [0, 0], sizes = [8, 128], strides = [1, 1]} : vector<8x256xf32> to vector<8x128xf32>
    %c0_87 = arith.constant 0 : index
    %c768 = arith.constant 768 : index
    %112 = vector.load %arg14[%c0_87, %c768] : memref<32x1152xf32, #tpu.memory_space<vmem>>, vector<8x128xf32>
    tpu.vector_store %arg14[%c0_87, %c768], %111 {strides = array<i32>} : memref<32x1152xf32, #tpu.memory_space<vmem>>, vector<8x128xf32>,
    %113 = vector.extract_strided_slice %110 {offsets = [0, 128], sizes = [8, 128], strides = [1, 1]} : vector<8x256xf32> to vector<8x128xf32>
    %c0_88 = arith.constant 0 : index
    %c768_89 = arith.constant 768 : index
    %114 = vector.load %arg15[%c0_88, %c768_89] : memref<32x1152xf32, #tpu.memory_space<vmem>>, vector<8x128xf32>
    tpu.vector_store %arg15[%c0_88, %c768_89], %113 {strides = array<i32>} : memref<32x1152xf32, #tpu.memory_space<vmem>>, vector<8x128xf32>,
    %c104_90 = arith.constant 104 : index
    %c0_91 = arith.constant 0 : index
    %115 = vector.load %arg13[%c104_90, %c0_91] : memref<288x384xf32, #tpu.memory_space<vmem>>, vector<8x256xf32>
    %116 = vector.extract_strided_slice %115 {offsets = [0, 0], sizes = [8, 128], strides = [1, 1]} : vector<8x256xf32> to vector<8x128xf32>
    %c0_92 = arith.constant 0 : index
    %c896 = arith.constant 896 : index
    %117 = vector.load %arg14[%c0_92, %c896] : memref<32x1152xf32, #tpu.memory_space<vmem>>, vector<8x128xf32>
    tpu.vector_store %arg14[%c0_92, %c896], %116 {strides = array<i32>} : memref<32x1152xf32, #tpu.memory_space<vmem>>, vector<8x128xf32>,
    %118 = vector.extract_strided_slice %115 {offsets = [0, 128], sizes = [8, 128], strides = [1, 1]} : vector<8x256xf32> to vector<8x128xf32>
    %c0_93 = arith.constant 0 : index
    %c896_94 = arith.constant 896 : index
    %119 = vector.load %arg15[%c0_93, %c896_94] : memref<32x1152xf32, #tpu.memory_space<vmem>>, vector<8x128xf32>
    tpu.vector_store %arg15[%c0_93, %c896_94], %118 {strides = array<i32>} : memref<32x1152xf32, #tpu.memory_space<vmem>>, vector<8x128xf32>,
    %c112_95 = arith.constant 112 : index
    %c0_96 = arith.constant 0 : index
    %120 = vector.load %arg13[%c112_95, %c0_96] : memref<288x384xf32, #tpu.memory_space<vmem>>, vector<8x256xf32>
    %121 = vector.extract_strided_slice %120 {offsets = [0, 0], sizes = [8, 128], strides = [1, 1]} : vector<8x256xf32> to vector<8x128xf32>
    %c0_97 = arith.constant 0 : index
    %c1024 = arith.constant 1024 : index
    %122 = vector.load %arg14[%c0_97, %c1024] : memref<32x1152xf32, #tpu.memory_space<vmem>>, vector<8x128xf32>
    tpu.vector_store %arg14[%c0_97, %c1024], %121 {strides = array<i32>} : memref<32x1152xf32, #tpu.memory_space<vmem>>, vector<8x128xf32>,
    %123 = vector.extract_strided_slice %120 {offsets = [0, 128], sizes = [8, 128], strides = [1, 1]} : vector<8x256xf32> to vector<8x128xf32>
    %c0_98 = arith.constant 0 : index
    %c1024_99 = arith.constant 1024 : index
    %124 = vector.load %arg15[%c0_98, %c1024_99] : memref<32x1152xf32, #tpu.memory_space<vmem>>, vector<8x128xf32>
    tpu.vector_store %arg15[%c0_98, %c1024_99], %123 {strides = array<i32>} : memref<32x1152xf32, #tpu.memory_space<vmem>>, vector<8x128xf32>,
    %c16_100 = arith.constant 16 : index
    %c0_101 = arith.constant 0 : index
    %125 = vector.load %arg13[%c16_100, %c0_101] : memref<288x384xf32, #tpu.memory_space<vmem>>, vector<8x256xf32>
    %126 = vector.extract_strided_slice %125 {offsets = [0, 0], sizes = [8, 128], strides = [1, 1]} : vector<8x256xf32> to vector<8x128xf32>
    %c8_102 = arith.constant 8 : index
    %c0_103 = arith.constant 0 : index
    %127 = vector.load %arg14[%c8_102, %c0_103] : memref<32x1152xf32, #tpu.memory_space<vmem>>, vector<8x128xf32>
    tpu.vector_store %arg14[%c8_102, %c0_103], %126 {strides = array<i32>} : memref<32x1152xf32, #tpu.memory_space<vmem>>, vector<8x128xf32>,
    %128 = vector.extract_strided_slice %125 {offsets = [0, 128], sizes = [8, 128], strides = [1, 1]} : vector<8x256xf32> to vector<8x128xf32>
    %c8_104 = arith.constant 8 : index
    %c0_105 = arith.constant 0 : index
    %129 = vector.load %arg15[%c8_104, %c0_105] : memref<32x1152xf32, #tpu.memory_space<vmem>>, vector<8x128xf32>
    tpu.vector_store %arg15[%c8_104, %c0_105], %128 {strides = array<i32>} : memref<32x1152xf32, #tpu.memory_space<vmem>>, vector<8x128xf32>,
    %c24_106 = arith.constant 24 : index
    %c0_107 = arith.constant 0 : index
    %130 = vector.load %arg13[%c24_106, %c0_107] : memref<288x384xf32, #tpu.memory_space<vmem>>, vector<8x256xf32>
    %131 = vector.extract_strided_slice %130 {offsets = [0, 0], sizes = [8, 128], strides = [1, 1]} : vector<8x256xf32> to vector<8x128xf32>
    %c8_108 = arith.constant 8 : index
    %c128_109 = arith.constant 128 : index
    %132 = vector.load %arg14[%c8_108, %c128_109] : memref<32x1152xf32, #tpu.memory_space<vmem>>, vector<8x128xf32>
    tpu.vector_store %arg14[%c8_108, %c128_109], %131 {strides = array<i32>} : memref<32x1152xf32, #tpu.memory_space<vmem>>, vector<8x128xf32>,
    %133 = vector.extract_strided_slice %130 {offsets = [0, 128], sizes = [8, 128], strides = [1, 1]} : vector<8x256xf32> to vector<8x128xf32>
    %c8_110 = arith.constant 8 : index
    %c128_111 = arith.constant 128 : index
    %134 = vector.load %arg15[%c8_110, %c128_111] : memref<32x1152xf32, #tpu.memory_space<vmem>>, vector<8x128xf32>
    tpu.vector_store %arg15[%c8_110, %c128_111], %133 {strides = array<i32>} : memref<32x1152xf32, #tpu.memory_space<vmem>>, vector<8x128xf32>,
    %c32_112 = arith.constant 32 : index
    %c0_113 = arith.constant 0 : index
    %135 = vector.load %arg13[%c32_112, %c0_113] : memref<288x384xf32, #tpu.memory_space<vmem>>, vector<8x256xf32>
    %136 = vector.extract_strided_slice %135 {offsets = [0, 0], sizes = [8, 128], strides = [1, 1]} : vector<8x256xf32> to vector<8x128xf32>
    %c8_114 = arith.constant 8 : index
    %c256_115 = arith.constant 256 : index
    %137 = vector.load %arg14[%c8_114, %c256_115] : memref<32x1152xf32, #tpu.memory_space<vmem>>, vector<8x128xf32>
    tpu.vector_store %arg14[%c8_114, %c256_115], %136 {strides = array<i32>} : memref<32x1152xf32, #tpu.memory_space<vmem>>, vector<8x128xf32>,
    %138 = vector.extract_strided_slice %135 {offsets = [0, 128], sizes = [8, 128], strides = [1, 1]} : vector<8x256xf32> to vector<8x128xf32>
    %c8_116 = arith.constant 8 : index
    %c256_117 = arith.constant 256 : index
    %139 = vector.load %arg15[%c8_116, %c256_117] : memref<32x1152xf32, #tpu.memory_space<vmem>>, vector<8x128xf32>
    tpu.vector_store %arg15[%c8_116, %c256_117], %138 {strides = array<i32>} : memref<32x1152xf32, #tpu.memory_space<vmem>>, vector<8x128xf32>,
    %c64_118 = arith.constant 64 : index
    %c0_119 = arith.constant 0 : index
    %140 = vector.load %arg13[%c64_118, %c0_119] : memref<288x384xf32, #tpu.memory_space<vmem>>, vector<8x256xf32>
    %141 = vector.extract_strided_slice %140 {offsets = [0, 0], sizes = [8, 128], strides = [1, 1]} : vector<8x256xf32> to vector<8x128xf32>
    %c8_120 = arith.constant 8 : index
    %c384_121 = arith.constant 384 : index
    %142 = vector.load %arg14[%c8_120, %c384_121] : memref<32x1152xf32, #tpu.memory_space<vmem>>, vector<8x128xf32>
    tpu.vector_store %arg14[%c8_120, %c384_121], %141 {strides = array<i32>} : memref<32x1152xf32, #tpu.memory_space<vmem>>, vector<8x128xf32>,
    %143 = vector.extract_strided_slice %140 {offsets = [0, 128], sizes = [8, 128], strides = [1, 1]} : vector<8x256xf32> to vector<8x128xf32>
    %c8_122 = arith.constant 8 : index
    %c384_123 = arith.constant 384 : index
    %144 = vector.load %arg15[%c8_122, %c384_123] : memref<32x1152xf32, #tpu.memory_space<vmem>>, vector<8x128xf32>
    tpu.vector_store %arg15[%c8_122, %c384_123], %143 {strides = array<i32>} : memref<32x1152xf32, #tpu.memory_space<vmem>>, vector<8x128xf32>,
    %c72_124 = arith.constant 72 : index
    %c0_125 = arith.constant 0 : index
    %145 = vector.load %arg13[%c72_124, %c0_125] : memref<288x384xf32, #tpu.memory_space<vmem>>, vector<8x256xf32>
    %146 = vector.extract_strided_slice %145 {offsets = [0, 0], sizes = [8, 128], strides = [1, 1]} : vector<8x256xf32> to vector<8x128xf32>
    %c8_126 = arith.constant 8 : index
    %c512_127 = arith.constant 512 : index
    %147 = vector.load %arg14[%c8_126, %c512_127] : memref<32x1152xf32, #tpu.memory_space<vmem>>, vector<8x128xf32>
    tpu.vector_store %arg14[%c8_126, %c512_127], %146 {strides = array<i32>} : memref<32x1152xf32, #tpu.memory_space<vmem>>, vector<8x128xf32>,
    %148 = vector.extract_strided_slice %145 {offsets = [0, 128], sizes = [8, 128], strides = [1, 1]} : vector<8x256xf32> to vector<8x128xf32>
    %c8_128 = arith.constant 8 : index
    %c512_129 = arith.constant 512 : index
    %149 = vector.load %arg15[%c8_128, %c512_129] : memref<32x1152xf32, #tpu.memory_space<vmem>>, vector<8x128xf32>
    tpu.vector_store %arg15[%c8_128, %c512_129], %148 {strides = array<i32>} : memref<32x1152xf32, #tpu.memory_space<vmem>>, vector<8x128xf32>,
    %c80_130 = arith.constant 80 : index
    %c0_131 = arith.constant 0 : index
    %150 = vector.load %arg13[%c80_130, %c0_131] : memref<288x384xf32, #tpu.memory_space<vmem>>, vector<8x256xf32>
    %151 = vector.extract_strided_slice %150 {offsets = [0, 0], sizes = [8, 128], strides = [1, 1]} : vector<8x256xf32> to vector<8x128xf32>
    %c8_132 = arith.constant 8 : index
    %c640_133 = arith.constant 640 : index
    %152 = vector.load %arg14[%c8_132, %c640_133] : memref<32x1152xf32, #tpu.memory_space<vmem>>, vector<8x128xf32>
    tpu.vector_store %arg14[%c8_132, %c640_133], %151 {strides = array<i32>} : memref<32x1152xf32, #tpu.memory_space<vmem>>, vector<8x128xf32>,
    %153 = vector.extract_strided_slice %150 {offsets = [0, 128], sizes = [8, 128], strides = [1, 1]} : vector<8x256xf32> to vector<8x128xf32>
    %c8_134 = arith.constant 8 : index
    %c640_135 = arith.constant 640 : index
    %154 = vector.load %arg15[%c8_134, %c640_135] : memref<32x1152xf32, #tpu.memory_space<vmem>>, vector<8x128xf32>
    tpu.vector_store %arg15[%c8_134, %c640_135], %153 {strides = array<i32>} : memref<32x1152xf32, #tpu.memory_space<vmem>>, vector<8x128xf32>,
    %c112_136 = arith.constant 112 : index
    %c0_137 = arith.constant 0 : index
    %155 = vector.load %arg13[%c112_136, %c0_137] : memref<288x384xf32, #tpu.memory_space<vmem>>, vector<8x256xf32>
    %156 = vector.extract_strided_slice %155 {offsets = [0, 0], sizes = [8, 128], strides = [1, 1]} : vector<8x256xf32> to vector<8x128xf32>
    %c8_138 = arith.constant 8 : index
    %c768_139 = arith.constant 768 : index
    %157 = vector.load %arg14[%c8_138, %c768_139] : memref<32x1152xf32, #tpu.memory_space<vmem>>, vector<8x128xf32>
    tpu.vector_store %arg14[%c8_138, %c768_139], %156 {strides = array<i32>} : memref<32x1152xf32, #tpu.memory_space<vmem>>, vector<8x128xf32>,
    %158 = vector.extract_strided_slice %155 {offsets = [0, 128], sizes = [8, 128], strides = [1, 1]} : vector<8x256xf32> to vector<8x128xf32>
    %c8_140 = arith.constant 8 : index
    %c768_141 = arith.constant 768 : index
    %159 = vector.load %arg15[%c8_140, %c768_141] : memref<32x1152xf32, #tpu.memory_space<vmem>>, vector<8x128xf32>
    tpu.vector_store %arg15[%c8_140, %c768_141], %158 {strides = array<i32>} : memref<32x1152xf32, #tpu.memory_space<vmem>>, vector<8x128xf32>,
    %c120_142 = arith.constant 120 : index
    %c0_143 = arith.constant 0 : index
    %160 = vector.load %arg13[%c120_142, %c0_143] : memref<288x384xf32, #tpu.memory_space<vmem>>, vector<8x256xf32>
    %161 = vector.extract_strided_slice %160 {offsets = [0, 0], sizes = [8, 128], strides = [1, 1]} : vector<8x256xf32> to vector<8x128xf32>
    %c8_144 = arith.constant 8 : index
    %c896_145 = arith.constant 896 : index
    %162 = vector.load %arg14[%c8_144, %c896_145] : memref<32x1152xf32, #tpu.memory_space<vmem>>, vector<8x128xf32>
    tpu.vector_store %arg14[%c8_144, %c896_145], %161 {strides = array<i32>} : memref<32x1152xf32, #tpu.memory_space<vmem>>, vector<8x128xf32>,
    %163 = vector.extract_strided_slice %160 {offsets = [0, 128], sizes = [8, 128], strides = [1, 1]} : vector<8x256xf32> to vector<8x128xf32>
    %c8_146 = arith.constant 8 : index
    %c896_147 = arith.constant 896 : index
    %164 = vector.load %arg15[%c8_146, %c896_147] : memref<32x1152xf32, #tpu.memory_space<vmem>>, vector<8x128xf32>
    tpu.vector_store %arg15[%c8_146, %c896_147], %163 {strides = array<i32>} : memref<32x1152xf32, #tpu.memory_space<vmem>>, vector<8x128xf32>,
    %c128_148 = arith.constant 128 : index
    %c0_149 = arith.constant 0 : index
    %165 = vector.load %arg13[%c128_148, %c0_149] : memref<288x384xf32, #tpu.memory_space<vmem>>, vector<8x256xf32>
    %166 = vector.extract_strided_slice %165 {offsets = [0, 0], sizes = [8, 128], strides = [1, 1]} : vector<8x256xf32> to vector<8x128xf32>
    %c8_150 = arith.constant 8 : index
    %c1024_151 = arith.constant 1024 : index
    %167 = vector.load %arg14[%c8_150, %c1024_151] : memref<32x1152xf32, #tpu.memory_space<vmem>>, vector<8x128xf32>
    tpu.vector_store %arg14[%c8_150, %c1024_151], %166 {strides = array<i32>} : memref<32x1152xf32, #tpu.memory_space<vmem>>, vector<8x128xf32>,
    %168 = vector.extract_strided_slice %165 {offsets = [0, 128], sizes = [8, 128], strides = [1, 1]} : vector<8x256xf32> to vector<8x128xf32>
    %c8_152 = arith.constant 8 : index
    %c1024_153 = arith.constant 1024 : index
    %169 = vector.load %arg15[%c8_152, %c1024_153] : memref<32x1152xf32, #tpu.memory_space<vmem>>, vector<8x128xf32>
    tpu.vector_store %arg15[%c8_152, %c1024_153], %168 {strides = array<i32>} : memref<32x1152xf32, #tpu.memory_space<vmem>>, vector<8x128xf32>,
    %c96_154 = arith.constant 96 : index
    %c0_155 = arith.constant 0 : index
    %170 = vector.load %arg13[%c96_154, %c0_155] : memref<288x384xf32, #tpu.memory_space<vmem>>, vector<8x256xf32>
    %171 = vector.extract_strided_slice %170 {offsets = [0, 0], sizes = [8, 128], strides = [1, 1]} : vector<8x256xf32> to vector<8x128xf32>
    %c16_156 = arith.constant 16 : index
    %c0_157 = arith.constant 0 : index
    %172 = vector.load %arg14[%c16_156, %c0_157] : memref<32x1152xf32, #tpu.memory_space<vmem>>, vector<8x128xf32>
    tpu.vector_store %arg14[%c16_156, %c0_157], %171 {strides = array<i32>} : memref<32x1152xf32, #tpu.memory_space<vmem>>, vector<8x128xf32>,
    %173 = vector.extract_strided_slice %170 {offsets = [0, 128], sizes = [8, 128], strides = [1, 1]} : vector<8x256xf32> to vector<8x128xf32>
    %c16_158 = arith.constant 16 : index
    %c0_159 = arith.constant 0 : index
    %174 = vector.load %arg15[%c16_158, %c0_159] : memref<32x1152xf32, #tpu.memory_space<vmem>>, vector<8x128xf32>
    tpu.vector_store %arg15[%c16_158, %c0_159], %173 {strides = array<i32>} : memref<32x1152xf32, #tpu.memory_space<vmem>>, vector<8x128xf32>,
    %c104_160 = arith.constant 104 : index
    %c0_161 = arith.constant 0 : index
    %175 = vector.load %arg13[%c104_160, %c0_161] : memref<288x384xf32, #tpu.memory_space<vmem>>, vector<8x256xf32>
    %176 = vector.extract_strided_slice %175 {offsets = [0, 0], sizes = [8, 128], strides = [1, 1]} : vector<8x256xf32> to vector<8x128xf32>
    %c16_162 = arith.constant 16 : index
    %c128_163 = arith.constant 128 : index
    %177 = vector.load %arg14[%c16_162, %c128_163] : memref<32x1152xf32, #tpu.memory_space<vmem>>, vector<8x128xf32>
    tpu.vector_store %arg14[%c16_162, %c128_163], %176 {strides = array<i32>} : memref<32x1152xf32, #tpu.memory_space<vmem>>, vector<8x128xf32>,
    %178 = vector.extract_strided_slice %175 {offsets = [0, 128], sizes = [8, 128], strides = [1, 1]} : vector<8x256xf32> to vector<8x128xf32>
    %c16_164 = arith.constant 16 : index
    %c128_165 = arith.constant 128 : index
    %179 = vector.load %arg15[%c16_164, %c128_165] : memref<32x1152xf32, #tpu.memory_space<vmem>>, vector<8x128xf32>
    tpu.vector_store %arg15[%c16_164, %c128_165], %178 {strides = array<i32>} : memref<32x1152xf32, #tpu.memory_space<vmem>>, vector<8x128xf32>,
    %c112_166 = arith.constant 112 : index
    %c0_167 = arith.constant 0 : index
    %180 = vector.load %arg13[%c112_166, %c0_167] : memref<288x384xf32, #tpu.memory_space<vmem>>, vector<8x256xf32>
    %181 = vector.extract_strided_slice %180 {offsets = [0, 0], sizes = [8, 128], strides = [1, 1]} : vector<8x256xf32> to vector<8x128xf32>
    %c16_168 = arith.constant 16 : index
    %c256_169 = arith.constant 256 : index
    %182 = vector.load %arg14[%c16_168, %c256_169] : memref<32x1152xf32, #tpu.memory_space<vmem>>, vector<8x128xf32>
    tpu.vector_store %arg14[%c16_168, %c256_169], %181 {strides = array<i32>} : memref<32x1152xf32, #tpu.memory_space<vmem>>, vector<8x128xf32>,
    %183 = vector.extract_strided_slice %180 {offsets = [0, 128], sizes = [8, 128], strides = [1, 1]} : vector<8x256xf32> to vector<8x128xf32>
    %c16_170 = arith.constant 16 : index
    %c256_171 = arith.constant 256 : index
    %184 = vector.load %arg15[%c16_170, %c256_171] : memref<32x1152xf32, #tpu.memory_space<vmem>>, vector<8x128xf32>
    tpu.vector_store %arg15[%c16_170, %c256_171], %183 {strides = array<i32>} : memref<32x1152xf32, #tpu.memory_space<vmem>>, vector<8x128xf32>,
    %c144_172 = arith.constant 144 : index
    %c0_173 = arith.constant 0 : index
    %185 = vector.load %arg13[%c144_172, %c0_173] : memref<288x384xf32, #tpu.memory_space<vmem>>, vector<8x256xf32>
    %186 = vector.extract_strided_slice %185 {offsets = [0, 0], sizes = [8, 128], strides = [1, 1]} : vector<8x256xf32> to vector<8x128xf32>
    %c16_174 = arith.constant 16 : index
    %c384_175 = arith.constant 384 : index
    %187 = vector.load %arg14[%c16_174, %c384_175] : memref<32x1152xf32, #tpu.memory_space<vmem>>, vector<8x128xf32>
    tpu.vector_store %arg14[%c16_174, %c384_175], %186 {strides = array<i32>} : memref<32x1152xf32, #tpu.memory_space<vmem>>, vector<8x128xf32>,
    %188 = vector.extract_strided_slice %185 {offsets = [0, 128], sizes = [8, 128], strides = [1, 1]} : vector<8x256xf32> to vector<8x128xf32>
    %c16_176 = arith.constant 16 : index
    %c384_177 = arith.constant 384 : index
    %189 = vector.load %arg15[%c16_176, %c384_177] : memref<32x1152xf32, #tpu.memory_space<vmem>>, vector<8x128xf32>
    tpu.vector_store %arg15[%c16_176, %c384_177], %188 {strides = array<i32>} : memref<32x1152xf32, #tpu.memory_space<vmem>>, vector<8x128xf32>,
    %c152_178 = arith.constant 152 : index
    %c0_179 = arith.constant 0 : index
    %190 = vector.load %arg13[%c152_178, %c0_179] : memref<288x384xf32, #tpu.memory_space<vmem>>, vector<8x256xf32>
    %191 = vector.extract_strided_slice %190 {offsets = [0, 0], sizes = [8, 128], strides = [1, 1]} : vector<8x256xf32> to vector<8x128xf32>
    %c16_180 = arith.constant 16 : index
    %c512_181 = arith.constant 512 : index
    %192 = vector.load %arg14[%c16_180, %c512_181] : memref<32x1152xf32, #tpu.memory_space<vmem>>, vector<8x128xf32>
    tpu.vector_store %arg14[%c16_180, %c512_181], %191 {strides = array<i32>} : memref<32x1152xf32, #tpu.memory_space<vmem>>, vector<8x128xf32>,
    %193 = vector.extract_strided_slice %190 {offsets = [0, 128], sizes = [8, 128], strides = [1, 1]} : vector<8x256xf32> to vector<8x128xf32>
    %c16_182 = arith.constant 16 : index
    %c512_183 = arith.constant 512 : index
    %194 = vector.load %arg15[%c16_182, %c512_183] : memref<32x1152xf32, #tpu.memory_space<vmem>>, vector<8x128xf32>
    tpu.vector_store %arg15[%c16_182, %c512_183], %193 {strides = array<i32>} : memref<32x1152xf32, #tpu.memory_space<vmem>>, vector<8x128xf32>,
    %c160_184 = arith.constant 160 : index
    %c0_185 = arith.constant 0 : index
    %195 = vector.load %arg13[%c160_184, %c0_185] : memref<288x384xf32, #tpu.memory_space<vmem>>, vector<8x256xf32>
    %196 = vector.extract_strided_slice %195 {offsets = [0, 0], sizes = [8, 128], strides = [1, 1]} : vector<8x256xf32> to vector<8x128xf32>
    %c16_186 = arith.constant 16 : index
    %c640_187 = arith.constant 640 : index
    %197 = vector.load %arg14[%c16_186, %c640_187] : memref<32x1152xf32, #tpu.memory_space<vmem>>, vector<8x128xf32>
    tpu.vector_store %arg14[%c16_186, %c640_187], %196 {strides = array<i32>} : memref<32x1152xf32, #tpu.memory_space<vmem>>, vector<8x128xf32>,
    %198 = vector.extract_strided_slice %195 {offsets = [0, 128], sizes = [8, 128], strides = [1, 1]} : vector<8x256xf32> to vector<8x128xf32>
    %c16_188 = arith.constant 16 : index
    %c640_189 = arith.constant 640 : index
    %199 = vector.load %arg15[%c16_188, %c640_189] : memref<32x1152xf32, #tpu.memory_space<vmem>>, vector<8x128xf32>
    tpu.vector_store %arg15[%c16_188, %c640_189], %198 {strides = array<i32>} : memref<32x1152xf32, #tpu.memory_space<vmem>>, vector<8x128xf32>,
    %c192_190 = arith.constant 192 : index
    %c0_191 = arith.constant 0 : index
    %200 = vector.load %arg13[%c192_190, %c0_191] : memref<288x384xf32, #tpu.memory_space<vmem>>, vector<8x256xf32>
    %201 = vector.extract_strided_slice %200 {offsets = [0, 0], sizes = [8, 128], strides = [1, 1]} : vector<8x256xf32> to vector<8x128xf32>
    %c16_192 = arith.constant 16 : index
    %c768_193 = arith.constant 768 : index
    %202 = vector.load %arg14[%c16_192, %c768_193] : memref<32x1152xf32, #tpu.memory_space<vmem>>, vector<8x128xf32>
    tpu.vector_store %arg14[%c16_192, %c768_193], %201 {strides = array<i32>} : memref<32x1152xf32, #tpu.memory_space<vmem>>, vector<8x128xf32>,
    %203 = vector.extract_strided_slice %200 {offsets = [0, 128], sizes = [8, 128], strides = [1, 1]} : vector<8x256xf32> to vector<8x128xf32>
    %c16_194 = arith.constant 16 : index
    %c768_195 = arith.constant 768 : index
    %204 = vector.load %arg15[%c16_194, %c768_195] : memref<32x1152xf32, #tpu.memory_space<vmem>>, vector<8x128xf32>
    tpu.vector_store %arg15[%c16_194, %c768_195], %203 {strides = array<i32>} : memref<32x1152xf32, #tpu.memory_space<vmem>>, vector<8x128xf32>,
    %c200_196 = arith.constant 200 : index
    %c0_197 = arith.constant 0 : index
    %205 = vector.load %arg13[%c200_196, %c0_197] : memref<288x384xf32, #tpu.memory_space<vmem>>, vector<8x256xf32>
    %206 = vector.extract_strided_slice %205 {offsets = [0, 0], sizes = [8, 128], strides = [1, 1]} : vector<8x256xf32> to vector<8x128xf32>
    %c16_198 = arith.constant 16 : index
    %c896_199 = arith.constant 896 : index
    %207 = vector.load %arg14[%c16_198, %c896_199] : memref<32x1152xf32, #tpu.memory_space<vmem>>, vector<8x128xf32>
    tpu.vector_store %arg14[%c16_198, %c896_199], %206 {strides = array<i32>} : memref<32x1152xf32, #tpu.memory_space<vmem>>, vector<8x128xf32>,
    %208 = vector.extract_strided_slice %205 {offsets = [0, 128], sizes = [8, 128], strides = [1, 1]} : vector<8x256xf32> to vector<8x128xf32>
    %c16_200 = arith.constant 16 : index
    %c896_201 = arith.constant 896 : index
    %209 = vector.load %arg15[%c16_200, %c896_201] : memref<32x1152xf32, #tpu.memory_space<vmem>>, vector<8x128xf32>
    tpu.vector_store %arg15[%c16_200, %c896_201], %208 {strides = array<i32>} : memref<32x1152xf32, #tpu.memory_space<vmem>>, vector<8x128xf32>,
    %c208_202 = arith.constant 208 : index
    %c0_203 = arith.constant 0 : index
    %210 = vector.load %arg13[%c208_202, %c0_203] : memref<288x384xf32, #tpu.memory_space<vmem>>, vector<8x256xf32>
    %211 = vector.extract_strided_slice %210 {offsets = [0, 0], sizes = [8, 128], strides = [1, 1]} : vector<8x256xf32> to vector<8x128xf32>
    %c16_204 = arith.constant 16 : index
    %c1024_205 = arith.constant 1024 : index
    %212 = vector.load %arg14[%c16_204, %c1024_205] : memref<32x1152xf32, #tpu.memory_space<vmem>>, vector<8x128xf32>
    tpu.vector_store %arg14[%c16_204, %c1024_205], %211 {strides = array<i32>} : memref<32x1152xf32, #tpu.memory_space<vmem>>, vector<8x128xf32>,
    %213 = vector.extract_strided_slice %210 {offsets = [0, 128], sizes = [8, 128], strides = [1, 1]} : vector<8x256xf32> to vector<8x128xf32>
    %c16_206 = arith.constant 16 : index
    %c1024_207 = arith.constant 1024 : index
    %214 = vector.load %arg15[%c16_206, %c1024_207] : memref<32x1152xf32, #tpu.memory_space<vmem>>, vector<8x128xf32>
    tpu.vector_store %arg15[%c16_206, %c1024_207], %213 {strides = array<i32>} : memref<32x1152xf32, #tpu.memory_space<vmem>>, vector<8x128xf32>,
    %c112_208 = arith.constant 112 : index
    %c0_209 = arith.constant 0 : index
    %215 = vector.load %arg13[%c112_208, %c0_209] : memref<288x384xf32, #tpu.memory_space<vmem>>, vector<8x256xf32>
    %216 = vector.extract_strided_slice %215 {offsets = [0, 0], sizes = [8, 128], strides = [1, 1]} : vector<8x256xf32> to vector<8x128xf32>
    %c24_210 = arith.constant 24 : index
    %c0_211 = arith.constant 0 : index
    %217 = vector.load %arg14[%c24_210, %c0_211] : memref<32x1152xf32, #tpu.memory_space<vmem>>, vector<8x128xf32>
    tpu.vector_store %arg14[%c24_210, %c0_211], %216 {strides = array<i32>} : memref<32x1152xf32, #tpu.memory_space<vmem>>, vector<8x128xf32>,
    %218 = vector.extract_strided_slice %215 {offsets = [0, 128], sizes = [8, 128], strides = [1, 1]} : vector<8x256xf32> to vector<8x128xf32>
    %c24_212 = arith.constant 24 : index
    %c0_213 = arith.constant 0 : index
    %219 = vector.load %arg15[%c24_212, %c0_213] : memref<32x1152xf32, #tpu.memory_space<vmem>>, vector<8x128xf32>
    tpu.vector_store %arg15[%c24_212, %c0_213], %218 {strides = array<i32>} : memref<32x1152xf32, #tpu.memory_space<vmem>>, vector<8x128xf32>,
    %c120_214 = arith.constant 120 : index
    %c0_215 = arith.constant 0 : index
    %220 = vector.load %arg13[%c120_214, %c0_215] : memref<288x384xf32, #tpu.memory_space<vmem>>, vector<8x256xf32>
    %221 = vector.extract_strided_slice %220 {offsets = [0, 0], sizes = [8, 128], strides = [1, 1]} : vector<8x256xf32> to vector<8x128xf32>
    %c24_216 = arith.constant 24 : index
    %c128_217 = arith.constant 128 : index
    %222 = vector.load %arg14[%c24_216, %c128_217] : memref<32x1152xf32, #tpu.memory_space<vmem>>, vector<8x128xf32>
    tpu.vector_store %arg14[%c24_216, %c128_217], %221 {strides = array<i32>} : memref<32x1152xf32, #tpu.memory_space<vmem>>, vector<8x128xf32>,
    %223 = vector.extract_strided_slice %220 {offsets = [0, 128], sizes = [8, 128], strides = [1, 1]} : vector<8x256xf32> to vector<8x128xf32>
    %c24_218 = arith.constant 24 : index
    %c128_219 = arith.constant 128 : index
    %224 = vector.load %arg15[%c24_218, %c128_219] : memref<32x1152xf32, #tpu.memory_space<vmem>>, vector<8x128xf32>
    tpu.vector_store %arg15[%c24_218, %c128_219], %223 {strides = array<i32>} : memref<32x1152xf32, #tpu.memory_space<vmem>>, vector<8x128xf32>,
    %c128_220 = arith.constant 128 : index
    %c0_221 = arith.constant 0 : index
    %225 = vector.load %arg13[%c128_220, %c0_221] : memref<288x384xf32, #tpu.memory_space<vmem>>, vector<8x256xf32>
    %226 = vector.extract_strided_slice %225 {offsets = [0, 0], sizes = [8, 128], strides = [1, 1]} : vector<8x256xf32> to vector<8x128xf32>
    %c24_222 = arith.constant 24 : index
    %c256_223 = arith.constant 256 : index
    %227 = vector.load %arg14[%c24_222, %c256_223] : memref<32x1152xf32, #tpu.memory_space<vmem>>, vector<8x128xf32>
    tpu.vector_store %arg14[%c24_222, %c256_223], %226 {strides = array<i32>} : memref<32x1152xf32, #tpu.memory_space<vmem>>, vector<8x128xf32>,
    %228 = vector.extract_strided_slice %225 {offsets = [0, 128], sizes = [8, 128], strides = [1, 1]} : vector<8x256xf32> to vector<8x128xf32>
    %c24_224 = arith.constant 24 : index
    %c256_225 = arith.constant 256 : index
    %229 = vector.load %arg15[%c24_224, %c256_225] : memref<32x1152xf32, #tpu.memory_space<vmem>>, vector<8x128xf32>
    tpu.vector_store %arg15[%c24_224, %c256_225], %228 {strides = array<i32>} : memref<32x1152xf32, #tpu.memory_space<vmem>>, vector<8x128xf32>,
    %c160_226 = arith.constant 160 : index
    %c0_227 = arith.constant 0 : index
    %230 = vector.load %arg13[%c160_226, %c0_227] : memref<288x384xf32, #tpu.memory_space<vmem>>, vector<8x256xf32>
    %231 = vector.extract_strided_slice %230 {offsets = [0, 0], sizes = [8, 128], strides = [1, 1]} : vector<8x256xf32> to vector<8x128xf32>
    %c24_228 = arith.constant 24 : index
    %c384_229 = arith.constant 384 : index
    %232 = vector.load %arg14[%c24_228, %c384_229] : memref<32x1152xf32, #tpu.memory_space<vmem>>, vector<8x128xf32>
    tpu.vector_store %arg14[%c24_228, %c384_229], %231 {strides = array<i32>} : memref<32x1152xf32, #tpu.memory_space<vmem>>, vector<8x128xf32>,
    %233 = vector.extract_strided_slice %230 {offsets = [0, 128], sizes = [8, 128], strides = [1, 1]} : vector<8x256xf32> to vector<8x128xf32>
    %c24_230 = arith.constant 24 : index
    %c384_231 = arith.constant 384 : index
    %234 = vector.load %arg15[%c24_230, %c384_231] : memref<32x1152xf32, #tpu.memory_space<vmem>>, vector<8x128xf32>
    tpu.vector_store %arg15[%c24_230, %c384_231], %233 {strides = array<i32>} : memref<32x1152xf32, #tpu.memory_space<vmem>>, vector<8x128xf32>,
    %c168_232 = arith.constant 168 : index
    %c0_233 = arith.constant 0 : index
    %235 = vector.load %arg13[%c168_232, %c0_233] : memref<288x384xf32, #tpu.memory_space<vmem>>, vector<8x256xf32>
    %236 = vector.extract_strided_slice %235 {offsets = [0, 0], sizes = [8, 128], strides = [1, 1]} : vector<8x256xf32> to vector<8x128xf32>
    %c24_234 = arith.constant 24 : index
    %c512_235 = arith.constant 512 : index
    %237 = vector.load %arg14[%c24_234, %c512_235] : memref<32x1152xf32, #tpu.memory_space<vmem>>, vector<8x128xf32>
    tpu.vector_store %arg14[%c24_234, %c512_235], %236 {strides = array<i32>} : memref<32x1152xf32, #tpu.memory_space<vmem>>, vector<8x128xf32>,
    %238 = vector.extract_strided_slice %235 {offsets = [0, 128], sizes = [8, 128], strides = [1, 1]} : vector<8x256xf32> to vector<8x128xf32>
    %c24_236 = arith.constant 24 : index
    %c512_237 = arith.constant 512 : index
    %239 = vector.load %arg15[%c24_236, %c512_237] : memref<32x1152xf32, #tpu.memory_space<vmem>>, vector<8x128xf32>
    tpu.vector_store %arg15[%c24_236, %c512_237], %238 {strides = array<i32>} : memref<32x1152xf32, #tpu.memory_space<vmem>>, vector<8x128xf32>,
    %c176_238 = arith.constant 176 : index
    %c0_239 = arith.constant 0 : index
    %240 = vector.load %arg13[%c176_238, %c0_239] : memref<288x384xf32, #tpu.memory_space<vmem>>, vector<8x256xf32>
    %241 = vector.extract_strided_slice %240 {offsets = [0, 0], sizes = [8, 128], strides = [1, 1]} : vector<8x256xf32> to vector<8x128xf32>
    %c24_240 = arith.constant 24 : index
    %c640_241 = arith.constant 640 : index
    %242 = vector.load %arg14[%c24_240, %c640_241] : memref<32x1152xf32, #tpu.memory_space<vmem>>, vector<8x128xf32>
    tpu.vector_store %arg14[%c24_240, %c640_241], %241 {strides = array<i32>} : memref<32x1152xf32, #tpu.memory_space<vmem>>, vector<8x128xf32>,
    %243 = vector.extract_strided_slice %240 {offsets = [0, 128], sizes = [8, 128], strides = [1, 1]} : vector<8x256xf32> to vector<8x128xf32>
    %c24_242 = arith.constant 24 : index
    %c640_243 = arith.constant 640 : index
    %244 = vector.load %arg15[%c24_242, %c640_243] : memref<32x1152xf32, #tpu.memory_space<vmem>>, vector<8x128xf32>
    tpu.vector_store %arg15[%c24_242, %c640_243], %243 {strides = array<i32>} : memref<32x1152xf32, #tpu.memory_space<vmem>>, vector<8x128xf32>,
    %c208_244 = arith.constant 208 : index
    %c0_245 = arith.constant 0 : index
    %245 = vector.load %arg13[%c208_244, %c0_245] : memref<288x384xf32, #tpu.memory_space<vmem>>, vector<8x256xf32>
    %246 = vector.extract_strided_slice %245 {offsets = [0, 0], sizes = [8, 128], strides = [1, 1]} : vector<8x256xf32> to vector<8x128xf32>
    %c24_246 = arith.constant 24 : index
    %c768_247 = arith.constant 768 : index
    %247 = vector.load %arg14[%c24_246, %c768_247] : memref<32x1152xf32, #tpu.memory_space<vmem>>, vector<8x128xf32>
    tpu.vector_store %arg14[%c24_246, %c768_247], %246 {strides = array<i32>} : memref<32x1152xf32, #tpu.memory_space<vmem>>, vector<8x128xf32>,
    %248 = vector.extract_strided_slice %245 {offsets = [0, 128], sizes = [8, 128], strides = [1, 1]} : vector<8x256xf32> to vector<8x128xf32>
    %c24_248 = arith.constant 24 : index
    %c768_249 = arith.constant 768 : index
    %249 = vector.load %arg15[%c24_248, %c768_249] : memref<32x1152xf32, #tpu.memory_space<vmem>>, vector<8x128xf32>
    tpu.vector_store %arg15[%c24_248, %c768_249], %248 {strides = array<i32>} : memref<32x1152xf32, #tpu.memory_space<vmem>>, vector<8x128xf32>,
    %c216_250 = arith.constant 216 : index
    %c0_251 = arith.constant 0 : index
    %250 = vector.load %arg13[%c216_250, %c0_251] : memref<288x384xf32, #tpu.memory_space<vmem>>, vector<8x256xf32>
    %251 = vector.extract_strided_slice %250 {offsets = [0, 0], sizes = [8, 128], strides = [1, 1]} : vector<8x256xf32> to vector<8x128xf32>
    %c24_252 = arith.constant 24 : index
    %c896_253 = arith.constant 896 : index
    %252 = vector.load %arg14[%c24_252, %c896_253] : memref<32x1152xf32, #tpu.memory_space<vmem>>, vector<8x128xf32>
    tpu.vector_store %arg14[%c24_252, %c896_253], %251 {strides = array<i32>} : memref<32x1152xf32, #tpu.memory_space<vmem>>, vector<8x128xf32>,
    %253 = vector.extract_strided_slice %250 {offsets = [0, 128], sizes = [8, 128], strides = [1, 1]} : vector<8x256xf32> to vector<8x128xf32>
    %c24_254 = arith.constant 24 : index
    %c896_255 = arith.constant 896 : index
    %254 = vector.load %arg15[%c24_254, %c896_255] : memref<32x1152xf32, #tpu.memory_space<vmem>>, vector<8x128xf32>
    tpu.vector_store %arg15[%c24_254, %c896_255], %253 {strides = array<i32>} : memref<32x1152xf32, #tpu.memory_space<vmem>>, vector<8x128xf32>,
    %c224_256 = arith.constant 224 : index
    %c0_257 = arith.constant 0 : index
    %255 = vector.load %arg13[%c224_256, %c0_257] : memref<288x384xf32, #tpu.memory_space<vmem>>, vector<8x256xf32>
    %256 = vector.extract_strided_slice %255 {offsets = [0, 0], sizes = [8, 128], strides = [1, 1]} : vector<8x256xf32> to vector<8x128xf32>
    %c24_258 = arith.constant 24 : index
    %c1024_259 = arith.constant 1024 : index
    %257 = vector.load %arg14[%c24_258, %c1024_259] : memref<32x1152xf32, #tpu.memory_space<vmem>>, vector<8x128xf32>
    tpu.vector_store %arg14[%c24_258, %c1024_259], %256 {strides = array<i32>} : memref<32x1152xf32, #tpu.memory_space<vmem>>, vector<8x128xf32>,
    %258 = vector.extract_strided_slice %255 {offsets = [0, 128], sizes = [8, 128], strides = [1, 1]} : vector<8x256xf32> to vector<8x128xf32>
    %c24_260 = arith.constant 24 : index
    %c1024_261 = arith.constant 1024 : index
    %259 = vector.load %arg15[%c24_260, %c1024_261] : memref<32x1152xf32, #tpu.memory_space<vmem>>, vector<8x128xf32>
    tpu.vector_store %arg15[%c24_260, %c1024_261], %258 {strides = array<i32>} : memref<32x1152xf32, #tpu.memory_space<vmem>>, vector<8x128xf32>,
    %c0_262 = arith.constant 0 : index
    %c0_263 = arith.constant 0 : index
    %260 = vector.load %arg14[%c0_262, %c0_263] : memref<32x1152xf32, #tpu.memory_space<vmem>>, vector<32x1152xf32>
    %261 = arith.truncf %260 : vector<32x1152xf32> to vector<32x1152xbf16>
    %c0_264 = arith.constant 0 : index
    %c0_265 = arith.constant 0 : index
    %262 = vector.load %arg4[%c0_264, %c0_265] : memref<1152x192xbf16, #tpu.memory_space<vmem>>, vector<1152x192xbf16>
    %cst_266 = arith.constant dense<0.000000e+00> : vector<32x192xf32>
    %263 = tpu.matmul %261, %262, %cst_266 {dimension_numbers = #tpu.dot_dimension_numbers<[1], [0], [0], [1], [0, 0, 1, 1], [], []>} : vector<32x1152xbf16>, vector<1152x192xbf16>, vector<32x192xf32> -> vector<32x192xf32>
    %c0_267 = arith.constant 0 : index
    %c0_268 = arith.constant 0 : index
    %264 = vector.load %arg5[%c0_267, %c0_268] : memref<1x192xf32, #tpu.memory_space<vmem>>, vector<1x192xf32>
    %265 = vector.broadcast %264 : vector<1x192xf32> to vector<32x192xf32>
    %266 = arith.addf %263, %265 : vector<32x192xf32>
    %c0_269 = arith.constant 0 : index
    %c448 = arith.constant 448 : index
    %267 = vector.load %arg12[%c0_269, %c448] : memref<32x896xf32, #tpu.memory_space<vmem>>, vector<32x192xf32>
    tpu.vector_store %arg12[%c0_269, %c448], %266 {strides = array<i32>} : memref<32x896xf32, #tpu.memory_space<vmem>>, vector<32x192xf32>,
    %c0_270 = arith.constant 0 : index
    %c0_271 = arith.constant 0 : index
    %268 = vector.load %arg15[%c0_270, %c0_271] : memref<32x1152xf32, #tpu.memory_space<vmem>>, vector<32x1152xf32>
    %269 = arith.truncf %268 : vector<32x1152xf32> to vector<32x1152xbf16>
    %c0_272 = arith.constant 0 : index
    %c0_273 = arith.constant 0 : index
    %270 = vector.load %arg6[%c0_272, %c0_273] : memref<1152x128xbf16, #tpu.memory_space<vmem>>, vector<1152x128xbf16>
    %cst_274 = arith.constant dense<0.000000e+00> : vector<32x128xf32>
    %271 = tpu.matmul %269, %270, %cst_274 {dimension_numbers = #tpu.dot_dimension_numbers<[1], [0], [0], [1], [0, 0, 1, 1], [], []>} : vector<32x1152xbf16>, vector<1152x128xbf16>, vector<32x128xf32> -> vector<32x128xf32>
    %c0_275 = arith.constant 0 : index
    %c0_276 = arith.constant 0 : index
    %272 = vector.load %arg7[%c0_275, %c0_276] : memref<1x128xf32, #tpu.memory_space<vmem>>, vector<1x128xf32>
    %273 = vector.broadcast %272 : vector<1x128xf32> to vector<32x128xf32>
    %274 = arith.addf %271, %273 : vector<32x128xf32>
    %c0_277 = arith.constant 0 : index
    %c640_278 = arith.constant 640 : index
    %275 = vector.load %arg12[%c0_277, %c640_278] : memref<32x896xf32, #tpu.memory_space<vmem>>, vector<32x128xf32>
    tpu.vector_store %arg12[%c0_277, %c640_278], %274 {strides = array<i32>} : memref<32x896xf32, #tpu.memory_space<vmem>>, vector<32x128xf32>,
    %c0_279 = arith.constant 0 : index
    %c256_280 = arith.constant 256 : index
    %276 = vector.load %arg13[%c0_279, %c256_280] : memref<288x384xf32, #tpu.memory_space<vmem>>, vector<32x128xf32>
    %c0_281 = arith.constant 0 : index
    %c0_282 = arith.constant 0 : index
    %277 = vector.load %arg16[%c0_281, %c0_282] : memref<128x1152xf32, #tpu.memory_space<vmem>>, vector<32x128xf32>
    tpu.vector_store %arg16[%c0_281, %c0_282], %276 {strides = array<i32>} : memref<128x1152xf32, #tpu.memory_space<vmem>>, vector<32x128xf32>,
    %c8_283 = arith.constant 8 : index
    %c256_284 = arith.constant 256 : index
    %278 = vector.load %arg13[%c8_283, %c256_284] : memref<288x384xf32, #tpu.memory_space<vmem>>, vector<32x128xf32>
    %c0_285 = arith.constant 0 : index
    %c128_286 = arith.constant 128 : index
    %279 = vector.load %arg16[%c0_285, %c128_286] : memref<128x1152xf32, #tpu.memory_space<vmem>>, vector<32x128xf32>
    tpu.vector_store %arg16[%c0_285, %c128_286], %278 {strides = array<i32>} : memref<128x1152xf32, #tpu.memory_space<vmem>>, vector<32x128xf32>,
    %c16_287 = arith.constant 16 : index
    %c256_288 = arith.constant 256 : index
    %280 = vector.load %arg13[%c16_287, %c256_288] : memref<288x384xf32, #tpu.memory_space<vmem>>, vector<32x128xf32>
    %c0_289 = arith.constant 0 : index
    %c256_290 = arith.constant 256 : index
    %281 = vector.load %arg16[%c0_289, %c256_290] : memref<128x1152xf32, #tpu.memory_space<vmem>>, vector<32x128xf32>
    tpu.vector_store %arg16[%c0_289, %c256_290], %280 {strides = array<i32>} : memref<128x1152xf32, #tpu.memory_space<vmem>>, vector<32x128xf32>,
    %c48_291 = arith.constant 48 : index
    %c256_292 = arith.constant 256 : index
    %282 = vector.load %arg13[%c48_291, %c256_292] : memref<288x384xf32, #tpu.memory_space<vmem>>, vector<32x128xf32>
    %c0_293 = arith.constant 0 : index
    %c384_294 = arith.constant 384 : index
    %283 = vector.load %arg16[%c0_293, %c384_294] : memref<128x1152xf32, #tpu.memory_space<vmem>>, vector<32x128xf32>
    tpu.vector_store %arg16[%c0_293, %c384_294], %282 {strides = array<i32>} : memref<128x1152xf32, #tpu.memory_space<vmem>>, vector<32x128xf32>,
    %c56_295 = arith.constant 56 : index
    %c256_296 = arith.constant 256 : index
    %284 = vector.load %arg13[%c56_295, %c256_296] : memref<288x384xf32, #tpu.memory_space<vmem>>, vector<32x128xf32>
    %c0_297 = arith.constant 0 : index
    %c512_298 = arith.constant 512 : index
    %285 = vector.load %arg16[%c0_297, %c512_298] : memref<128x1152xf32, #tpu.memory_space<vmem>>, vector<32x128xf32>
    tpu.vector_store %arg16[%c0_297, %c512_298], %284 {strides = array<i32>} : memref<128x1152xf32, #tpu.memory_space<vmem>>, vector<32x128xf32>,
    %c64_299 = arith.constant 64 : index
    %c256_300 = arith.constant 256 : index
    %286 = vector.load %arg13[%c64_299, %c256_300] : memref<288x384xf32, #tpu.memory_space<vmem>>, vector<32x128xf32>
    %c0_301 = arith.constant 0 : index
    %c640_302 = arith.constant 640 : index
    %287 = vector.load %arg16[%c0_301, %c640_302] : memref<128x1152xf32, #tpu.memory_space<vmem>>, vector<32x128xf32>
    tpu.vector_store %arg16[%c0_301, %c640_302], %286 {strides = array<i32>} : memref<128x1152xf32, #tpu.memory_space<vmem>>, vector<32x128xf32>,
    %c96_303 = arith.constant 96 : index
    %c256_304 = arith.constant 256 : index
    %288 = vector.load %arg13[%c96_303, %c256_304] : memref<288x384xf32, #tpu.memory_space<vmem>>, vector<32x128xf32>
    %c0_305 = arith.constant 0 : index
    %c768_306 = arith.constant 768 : index
    %289 = vector.load %arg16[%c0_305, %c768_306] : memref<128x1152xf32, #tpu.memory_space<vmem>>, vector<32x128xf32>
    tpu.vector_store %arg16[%c0_305, %c768_306], %288 {strides = array<i32>} : memref<128x1152xf32, #tpu.memory_space<vmem>>, vector<32x128xf32>,
    %c104_307 = arith.constant 104 : index
    %c256_308 = arith.constant 256 : index
    %290 = vector.load %arg13[%c104_307, %c256_308] : memref<288x384xf32, #tpu.memory_space<vmem>>, vector<32x128xf32>
    %c0_309 = arith.constant 0 : index
    %c896_310 = arith.constant 896 : index
    %291 = vector.load %arg16[%c0_309, %c896_310] : memref<128x1152xf32, #tpu.memory_space<vmem>>, vector<32x128xf32>
    tpu.vector_store %arg16[%c0_309, %c896_310], %290 {strides = array<i32>} : memref<128x1152xf32, #tpu.memory_space<vmem>>, vector<32x128xf32>,
    %c112_311 = arith.constant 112 : index
    %c256_312 = arith.constant 256 : index
    %292 = vector.load %arg13[%c112_311, %c256_312] : memref<288x384xf32, #tpu.memory_space<vmem>>, vector<32x128xf32>
    %c0_313 = arith.constant 0 : index
    %c1024_314 = arith.constant 1024 : index
    %293 = vector.load %arg16[%c0_313, %c1024_314] : memref<128x1152xf32, #tpu.memory_space<vmem>>, vector<32x128xf32>
    tpu.vector_store %arg16[%c0_313, %c1024_314], %292 {strides = array<i32>} : memref<128x1152xf32, #tpu.memory_space<vmem>>, vector<32x128xf32>,
    %c48_315 = arith.constant 48 : index
    %c256_316 = arith.constant 256 : index
    %294 = vector.load %arg13[%c48_315, %c256_316] : memref<288x384xf32, #tpu.memory_space<vmem>>, vector<32x128xf32>
    %c32_317 = arith.constant 32 : index
    %c0_318 = arith.constant 0 : index
    %295 = vector.load %arg16[%c32_317, %c0_318] : memref<128x1152xf32, #tpu.memory_space<vmem>>, vector<32x128xf32>
    tpu.vector_store %arg16[%c32_317, %c0_318], %294 {strides = array<i32>} : memref<128x1152xf32, #tpu.memory_space<vmem>>, vector<32x128xf32>,
    %c56_319 = arith.constant 56 : index
    %c256_320 = arith.constant 256 : index
    %296 = vector.load %arg13[%c56_319, %c256_320] : memref<288x384xf32, #tpu.memory_space<vmem>>, vector<32x128xf32>
    %c32_321 = arith.constant 32 : index
    %c128_322 = arith.constant 128 : index
    %297 = vector.load %arg16[%c32_321, %c128_322] : memref<128x1152xf32, #tpu.memory_space<vmem>>, vector<32x128xf32>
    tpu.vector_store %arg16[%c32_321, %c128_322], %296 {strides = array<i32>} : memref<128x1152xf32, #tpu.memory_space<vmem>>, vector<32x128xf32>,
    %c64_323 = arith.constant 64 : index
    %c256_324 = arith.constant 256 : index
    %298 = vector.load %arg13[%c64_323, %c256_324] : memref<288x384xf32, #tpu.memory_space<vmem>>, vector<32x128xf32>
    %c32_325 = arith.constant 32 : index
    %c256_326 = arith.constant 256 : index
    %299 = vector.load %arg16[%c32_325, %c256_326] : memref<128x1152xf32, #tpu.memory_space<vmem>>, vector<32x128xf32>
    tpu.vector_store %arg16[%c32_325, %c256_326], %298 {strides = array<i32>} : memref<128x1152xf32, #tpu.memory_space<vmem>>, vector<32x128xf32>,
    %c96_327 = arith.constant 96 : index
    %c256_328 = arith.constant 256 : index
    %300 = vector.load %arg13[%c96_327, %c256_328] : memref<288x384xf32, #tpu.memory_space<vmem>>, vector<32x128xf32>
    %c32_329 = arith.constant 32 : index
    %c384_330 = arith.constant 384 : index
    %301 = vector.load %arg16[%c32_329, %c384_330] : memref<128x1152xf32, #tpu.memory_space<vmem>>, vector<32x128xf32>
    tpu.vector_store %arg16[%c32_329, %c384_330], %300 {strides = array<i32>} : memref<128x1152xf32, #tpu.memory_space<vmem>>, vector<32x128xf32>,
    %c104_331 = arith.constant 104 : index
    %c256_332 = arith.constant 256 : index
    %302 = vector.load %arg13[%c104_331, %c256_332] : memref<288x384xf32, #tpu.memory_space<vmem>>, vector<32x128xf32>
    %c32_333 = arith.constant 32 : index
    %c512_334 = arith.constant 512 : index
    %303 = vector.load %arg16[%c32_333, %c512_334] : memref<128x1152xf32, #tpu.memory_space<vmem>>, vector<32x128xf32>
    tpu.vector_store %arg16[%c32_333, %c512_334], %302 {strides = array<i32>} : memref<128x1152xf32, #tpu.memory_space<vmem>>, vector<32x128xf32>,
    %c112_335 = arith.constant 112 : index
    %c256_336 = arith.constant 256 : index
    %304 = vector.load %arg13[%c112_335, %c256_336] : memref<288x384xf32, #tpu.memory_space<vmem>>, vector<32x128xf32>
    %c32_337 = arith.constant 32 : index
    %c640_338 = arith.constant 640 : index
    %305 = vector.load %arg16[%c32_337, %c640_338] : memref<128x1152xf32, #tpu.memory_space<vmem>>, vector<32x128xf32>
    tpu.vector_store %arg16[%c32_337, %c640_338], %304 {strides = array<i32>} : memref<128x1152xf32, #tpu.memory_space<vmem>>, vector<32x128xf32>,
    %c144_339 = arith.constant 144 : index
    %c256_340 = arith.constant 256 : index
    %306 = vector.load %arg13[%c144_339, %c256_340] : memref<288x384xf32, #tpu.memory_space<vmem>>, vector<32x128xf32>
    %c32_341 = arith.constant 32 : index
    %c768_342 = arith.constant 768 : index
    %307 = vector.load %arg16[%c32_341, %c768_342] : memref<128x1152xf32, #tpu.memory_space<vmem>>, vector<32x128xf32>
    tpu.vector_store %arg16[%c32_341, %c768_342], %306 {strides = array<i32>} : memref<128x1152xf32, #tpu.memory_space<vmem>>, vector<32x128xf32>,
    %c152_343 = arith.constant 152 : index
    %c256_344 = arith.constant 256 : index
    %308 = vector.load %arg13[%c152_343, %c256_344] : memref<288x384xf32, #tpu.memory_space<vmem>>, vector<32x128xf32>
    %c32_345 = arith.constant 32 : index
    %c896_346 = arith.constant 896 : index
    %309 = vector.load %arg16[%c32_345, %c896_346] : memref<128x1152xf32, #tpu.memory_space<vmem>>, vector<32x128xf32>
    tpu.vector_store %arg16[%c32_345, %c896_346], %308 {strides = array<i32>} : memref<128x1152xf32, #tpu.memory_space<vmem>>, vector<32x128xf32>,
    %c160_347 = arith.constant 160 : index
    %c256_348 = arith.constant 256 : index
    %310 = vector.load %arg13[%c160_347, %c256_348] : memref<288x384xf32, #tpu.memory_space<vmem>>, vector<32x128xf32>
    %c32_349 = arith.constant 32 : index
    %c1024_350 = arith.constant 1024 : index
    %311 = vector.load %arg16[%c32_349, %c1024_350] : memref<128x1152xf32, #tpu.memory_space<vmem>>, vector<32x128xf32>
    tpu.vector_store %arg16[%c32_349, %c1024_350], %310 {strides = array<i32>} : memref<128x1152xf32, #tpu.memory_space<vmem>>, vector<32x128xf32>,
    %c96_351 = arith.constant 96 : index
    %c256_352 = arith.constant 256 : index
    %312 = vector.load %arg13[%c96_351, %c256_352] : memref<288x384xf32, #tpu.memory_space<vmem>>, vector<32x128xf32>
    %c64_353 = arith.constant 64 : index
    %c0_354 = arith.constant 0 : index
    %313 = vector.load %arg16[%c64_353, %c0_354] : memref<128x1152xf32, #tpu.memory_space<vmem>>, vector<32x128xf32>
    tpu.vector_store %arg16[%c64_353, %c0_354], %312 {strides = array<i32>} : memref<128x1152xf32, #tpu.memory_space<vmem>>, vector<32x128xf32>,
    %c104_355 = arith.constant 104 : index
    %c256_356 = arith.constant 256 : index
    %314 = vector.load %arg13[%c104_355, %c256_356] : memref<288x384xf32, #tpu.memory_space<vmem>>, vector<32x128xf32>
    %c64_357 = arith.constant 64 : index
    %c128_358 = arith.constant 128 : index
    %315 = vector.load %arg16[%c64_357, %c128_358] : memref<128x1152xf32, #tpu.memory_space<vmem>>, vector<32x128xf32>
    tpu.vector_store %arg16[%c64_357, %c128_358], %314 {strides = array<i32>} : memref<128x1152xf32, #tpu.memory_space<vmem>>, vector<32x128xf32>,
    %c112_359 = arith.constant 112 : index
    %c256_360 = arith.constant 256 : index
    %316 = vector.load %arg13[%c112_359, %c256_360] : memref<288x384xf32, #tpu.memory_space<vmem>>, vector<32x128xf32>
    %c64_361 = arith.constant 64 : index
    %c256_362 = arith.constant 256 : index
    %317 = vector.load %arg16[%c64_361, %c256_362] : memref<128x1152xf32, #tpu.memory_space<vmem>>, vector<32x128xf32>
    tpu.vector_store %arg16[%c64_361, %c256_362], %316 {strides = array<i32>} : memref<128x1152xf32, #tpu.memory_space<vmem>>, vector<32x128xf32>,
    %c144_363 = arith.constant 144 : index
    %c256_364 = arith.constant 256 : index
    %318 = vector.load %arg13[%c144_363, %c256_364] : memref<288x384xf32, #tpu.memory_space<vmem>>, vector<32x128xf32>
    %c64_365 = arith.constant 64 : index
    %c384_366 = arith.constant 384 : index
    %319 = vector.load %arg16[%c64_365, %c384_366] : memref<128x1152xf32, #tpu.memory_space<vmem>>, vector<32x128xf32>
    tpu.vector_store %arg16[%c64_365, %c384_366], %318 {strides = array<i32>} : memref<128x1152xf32, #tpu.memory_space<vmem>>, vector<32x128xf32>,
    %c152_367 = arith.constant 152 : index
    %c256_368 = arith.constant 256 : index
    %320 = vector.load %arg13[%c152_367, %c256_368] : memref<288x384xf32, #tpu.memory_space<vmem>>, vector<32x128xf32>
    %c64_369 = arith.constant 64 : index
    %c512_370 = arith.constant 512 : index
    %321 = vector.load %arg16[%c64_369, %c512_370] : memref<128x1152xf32, #tpu.memory_space<vmem>>, vector<32x128xf32>
    tpu.vector_store %arg16[%c64_369, %c512_370], %320 {strides = array<i32>} : memref<128x1152xf32, #tpu.memory_space<vmem>>, vector<32x128xf32>,
    %c160_371 = arith.constant 160 : index
    %c256_372 = arith.constant 256 : index
    %322 = vector.load %arg13[%c160_371, %c256_372] : memref<288x384xf32, #tpu.memory_space<vmem>>, vector<32x128xf32>
    %c64_373 = arith.constant 64 : index
    %c640_374 = arith.constant 640 : index
    %323 = vector.load %arg16[%c64_373, %c640_374] : memref<128x1152xf32, #tpu.memory_space<vmem>>, vector<32x128xf32>
    tpu.vector_store %arg16[%c64_373, %c640_374], %322 {strides = array<i32>} : memref<128x1152xf32, #tpu.memory_space<vmem>>, vector<32x128xf32>,
    %c192_375 = arith.constant 192 : index
    %c256_376 = arith.constant 256 : index
    %324 = vector.load %arg13[%c192_375, %c256_376] : memref<288x384xf32, #tpu.memory_space<vmem>>, vector<32x128xf32>
    %c64_377 = arith.constant 64 : index
    %c768_378 = arith.constant 768 : index
    %325 = vector.load %arg16[%c64_377, %c768_378] : memref<128x1152xf32, #tpu.memory_space<vmem>>, vector<32x128xf32>
    tpu.vector_store %arg16[%c64_377, %c768_378], %324 {strides = array<i32>} : memref<128x1152xf32, #tpu.memory_space<vmem>>, vector<32x128xf32>,
    %c200_379 = arith.constant 200 : index
    %c256_380 = arith.constant 256 : index
    %326 = vector.load %arg13[%c200_379, %c256_380] : memref<288x384xf32, #tpu.memory_space<vmem>>, vector<32x128xf32>
    %c64_381 = arith.constant 64 : index
    %c896_382 = arith.constant 896 : index
    %327 = vector.load %arg16[%c64_381, %c896_382] : memref<128x1152xf32, #tpu.memory_space<vmem>>, vector<32x128xf32>
    tpu.vector_store %arg16[%c64_381, %c896_382], %326 {strides = array<i32>} : memref<128x1152xf32, #tpu.memory_space<vmem>>, vector<32x128xf32>,
    %c208_383 = arith.constant 208 : index
    %c256_384 = arith.constant 256 : index
    %328 = vector.load %arg13[%c208_383, %c256_384] : memref<288x384xf32, #tpu.memory_space<vmem>>, vector<32x128xf32>
    %c64_385 = arith.constant 64 : index
    %c1024_386 = arith.constant 1024 : index
    %329 = vector.load %arg16[%c64_385, %c1024_386] : memref<128x1152xf32, #tpu.memory_space<vmem>>, vector<32x128xf32>
    tpu.vector_store %arg16[%c64_385, %c1024_386], %328 {strides = array<i32>} : memref<128x1152xf32, #tpu.memory_space<vmem>>, vector<32x128xf32>,
    %c144_387 = arith.constant 144 : index
    %c256_388 = arith.constant 256 : index
    %330 = vector.load %arg13[%c144_387, %c256_388] : memref<288x384xf32, #tpu.memory_space<vmem>>, vector<32x128xf32>
    %c96_389 = arith.constant 96 : index
    %c0_390 = arith.constant 0 : index
    %331 = vector.load %arg16[%c96_389, %c0_390] : memref<128x1152xf32, #tpu.memory_space<vmem>>, vector<32x128xf32>
    tpu.vector_store %arg16[%c96_389, %c0_390], %330 {strides = array<i32>} : memref<128x1152xf32, #tpu.memory_space<vmem>>, vector<32x128xf32>,
    %c152_391 = arith.constant 152 : index
    %c256_392 = arith.constant 256 : index
    %332 = vector.load %arg13[%c152_391, %c256_392] : memref<288x384xf32, #tpu.memory_space<vmem>>, vector<32x128xf32>
    %c96_393 = arith.constant 96 : index
    %c128_394 = arith.constant 128 : index
    %333 = vector.load %arg16[%c96_393, %c128_394] : memref<128x1152xf32, #tpu.memory_space<vmem>>, vector<32x128xf32>
    tpu.vector_store %arg16[%c96_393, %c128_394], %332 {strides = array<i32>} : memref<128x1152xf32, #tpu.memory_space<vmem>>, vector<32x128xf32>,
    %c160_395 = arith.constant 160 : index
    %c256_396 = arith.constant 256 : index
    %334 = vector.load %arg13[%c160_395, %c256_396] : memref<288x384xf32, #tpu.memory_space<vmem>>, vector<32x128xf32>
    %c96_397 = arith.constant 96 : index
    %c256_398 = arith.constant 256 : index
    %335 = vector.load %arg16[%c96_397, %c256_398] : memref<128x1152xf32, #tpu.memory_space<vmem>>, vector<32x128xf32>
    tpu.vector_store %arg16[%c96_397, %c256_398], %334 {strides = array<i32>} : memref<128x1152xf32, #tpu.memory_space<vmem>>, vector<32x128xf32>,
    %c192_399 = arith.constant 192 : index
    %c256_400 = arith.constant 256 : index
    %336 = vector.load %arg13[%c192_399, %c256_400] : memref<288x384xf32, #tpu.memory_space<vmem>>, vector<32x128xf32>
    %c96_401 = arith.constant 96 : index
    %c384_402 = arith.constant 384 : index
    %337 = vector.load %arg16[%c96_401, %c384_402] : memref<128x1152xf32, #tpu.memory_space<vmem>>, vector<32x128xf32>
    tpu.vector_store %arg16[%c96_401, %c384_402], %336 {strides = array<i32>} : memref<128x1152xf32, #tpu.memory_space<vmem>>, vector<32x128xf32>,
    %c200_403 = arith.constant 200 : index
    %c256_404 = arith.constant 256 : index
    %338 = vector.load %arg13[%c200_403, %c256_404] : memref<288x384xf32, #tpu.memory_space<vmem>>, vector<32x128xf32>
    %c96_405 = arith.constant 96 : index
    %c512_406 = arith.constant 512 : index
    %339 = vector.load %arg16[%c96_405, %c512_406] : memref<128x1152xf32, #tpu.memory_space<vmem>>, vector<32x128xf32>
    tpu.vector_store %arg16[%c96_405, %c512_406], %338 {strides = array<i32>} : memref<128x1152xf32, #tpu.memory_space<vmem>>, vector<32x128xf32>,
    %c208_407 = arith.constant 208 : index
    %c256_408 = arith.constant 256 : index
    %340 = vector.load %arg13[%c208_407, %c256_408] : memref<288x384xf32, #tpu.memory_space<vmem>>, vector<32x128xf32>
    %c96_409 = arith.constant 96 : index
    %c640_410 = arith.constant 640 : index
    %341 = vector.load %arg16[%c96_409, %c640_410] : memref<128x1152xf32, #tpu.memory_space<vmem>>, vector<32x128xf32>
    tpu.vector_store %arg16[%c96_409, %c640_410], %340 {strides = array<i32>} : memref<128x1152xf32, #tpu.memory_space<vmem>>, vector<32x128xf32>,
    %c240_411 = arith.constant 240 : index
    %c256_412 = arith.constant 256 : index
    %342 = vector.load %arg13[%c240_411, %c256_412] : memref<288x384xf32, #tpu.memory_space<vmem>>, vector<32x128xf32>
    %c96_413 = arith.constant 96 : index
    %c768_414 = arith.constant 768 : index
    %343 = vector.load %arg16[%c96_413, %c768_414] : memref<128x1152xf32, #tpu.memory_space<vmem>>, vector<32x128xf32>
    tpu.vector_store %arg16[%c96_413, %c768_414], %342 {strides = array<i32>} : memref<128x1152xf32, #tpu.memory_space<vmem>>, vector<32x128xf32>,
    %c248_415 = arith.constant 248 : index
    %c256_416 = arith.constant 256 : index
    %344 = vector.load %arg13[%c248_415, %c256_416] : memref<288x384xf32, #tpu.memory_space<vmem>>, vector<32x128xf32>
    %c96_417 = arith.constant 96 : index
    %c896_418 = arith.constant 896 : index
    %345 = vector.load %arg16[%c96_417, %c896_418] : memref<128x1152xf32, #tpu.memory_space<vmem>>, vector<32x128xf32>
    tpu.vector_store %arg16[%c96_417, %c896_418], %344 {strides = array<i32>} : memref<128x1152xf32, #tpu.memory_space<vmem>>, vector<32x128xf32>,
    %c256_419 = arith.constant 256 : index
    %c256_420 = arith.constant 256 : index
    %346 = vector.load %arg13[%c256_419, %c256_420] : memref<288x384xf32, #tpu.memory_space<vmem>>, vector<32x128xf32>
    %c96_421 = arith.constant 96 : index
    %c1024_422 = arith.constant 1024 : index
    %347 = vector.load %arg16[%c96_421, %c1024_422] : memref<128x1152xf32, #tpu.memory_space<vmem>>, vector<32x128xf32>
    tpu.vector_store %arg16[%c96_421, %c1024_422], %346 {strides = array<i32>} : memref<128x1152xf32, #tpu.memory_space<vmem>>, vector<32x128xf32>,
    %c0_423 = arith.constant 0 : index
    %c0_424 = arith.constant 0 : index
    %348 = vector.load %arg16[%c0_423, %c0_424] : memref<128x1152xf32, #tpu.memory_space<vmem>>, vector<128x1152xf32>
    %349 = arith.truncf %348 : vector<128x1152xf32> to vector<128x1152xbf16>
    %c0_425 = arith.constant 0 : index
    %c0_426 = arith.constant 0 : index
    %350 = vector.load %arg8[%c0_425, %c0_426] : memref<1152x128xbf16, #tpu.memory_space<vmem>>, vector<1152x128xbf16>
    %cst_427 = arith.constant dense<0.000000e+00> : vector<128x128xf32>
    %351 = tpu.matmul %349, %350, %cst_427 {dimension_numbers = #tpu.dot_dimension_numbers<[1], [0], [0], [1], [0, 0, 1, 1], [], []>} : vector<128x1152xbf16>, vector<1152x128xbf16>, vector<128x128xf32> -> vector<128x128xf32>
    %c0_428 = arith.constant 0 : index
    %c0_429 = arith.constant 0 : index
    %352 = vector.load %arg9[%c0_428, %c0_429] : memref<1x128xf32, #tpu.memory_space<vmem>>, vector<1x128xf32>
    %353 = vector.broadcast %352 : vector<1x128xf32> to vector<128x128xf32>
    %354 = arith.addf %351, %353 : vector<128x128xf32>
    %c0_430 = arith.constant 0 : index
    %c0_431 = arith.constant 0 : index
    %355 = vector.load %arg17[%c0_430, %c0_431] : memref<128x128xf32, #tpu.memory_space<vmem>>, vector<128x128xf32>
    tpu.vector_store %arg17[%c0_430, %c0_431], %354 {strides = array<i32>} : memref<128x128xf32, #tpu.memory_space<vmem>>, vector<128x128xf32>,
    %c0_432 = arith.constant 0 : index
    %c0_433 = arith.constant 0 : index
    %356 = vector.load %arg17[%c0_432, %c0_433] : memref<128x128xf32, #tpu.memory_space<vmem>>, vector<16x128xf32>
    %c0_434 = arith.constant 0 : index
    %c0_435 = arith.constant 0 : index
    %357 = vector.load %arg18[%c0_434, %c0_435] : memref<32x1152xf32, #tpu.memory_space<vmem>>, vector<16x128xf32>
    tpu.vector_store %arg18[%c0_434, %c0_435], %356 {strides = array<i32>} : memref<32x1152xf32, #tpu.memory_space<vmem>>, vector<16x128xf32>,
    %c8_436 = arith.constant 8 : index
    %c0_437 = arith.constant 0 : index
    %358 = vector.load %arg17[%c8_436, %c0_437] : memref<128x128xf32, #tpu.memory_space<vmem>>, vector<16x128xf32>
    %c0_438 = arith.constant 0 : index
    %c128_439 = arith.constant 128 : index
    %359 = vector.load %arg18[%c0_438, %c128_439] : memref<32x1152xf32, #tpu.memory_space<vmem>>, vector<16x128xf32>
    tpu.vector_store %arg18[%c0_438, %c128_439], %358 {strides = array<i32>} : memref<32x1152xf32, #tpu.memory_space<vmem>>, vector<16x128xf32>,
    %c16_440 = arith.constant 16 : index
    %c0_441 = arith.constant 0 : index
    %360 = vector.load %arg17[%c16_440, %c0_441] : memref<128x128xf32, #tpu.memory_space<vmem>>, vector<16x128xf32>
    %c0_442 = arith.constant 0 : index
    %c256_443 = arith.constant 256 : index
    %361 = vector.load %arg18[%c0_442, %c256_443] : memref<32x1152xf32, #tpu.memory_space<vmem>>, vector<16x128xf32>
    tpu.vector_store %arg18[%c0_442, %c256_443], %360 {strides = array<i32>} : memref<32x1152xf32, #tpu.memory_space<vmem>>, vector<16x128xf32>,
    %c32_444 = arith.constant 32 : index
    %c0_445 = arith.constant 0 : index
    %362 = vector.load %arg17[%c32_444, %c0_445] : memref<128x128xf32, #tpu.memory_space<vmem>>, vector<16x128xf32>
    %c0_446 = arith.constant 0 : index
    %c384_447 = arith.constant 384 : index
    %363 = vector.load %arg18[%c0_446, %c384_447] : memref<32x1152xf32, #tpu.memory_space<vmem>>, vector<16x128xf32>
    tpu.vector_store %arg18[%c0_446, %c384_447], %362 {strides = array<i32>} : memref<32x1152xf32, #tpu.memory_space<vmem>>, vector<16x128xf32>,
    %c40_448 = arith.constant 40 : index
    %c0_449 = arith.constant 0 : index
    %364 = vector.load %arg17[%c40_448, %c0_449] : memref<128x128xf32, #tpu.memory_space<vmem>>, vector<16x128xf32>
    %c0_450 = arith.constant 0 : index
    %c512_451 = arith.constant 512 : index
    %365 = vector.load %arg18[%c0_450, %c512_451] : memref<32x1152xf32, #tpu.memory_space<vmem>>, vector<16x128xf32>
    tpu.vector_store %arg18[%c0_450, %c512_451], %364 {strides = array<i32>} : memref<32x1152xf32, #tpu.memory_space<vmem>>, vector<16x128xf32>,
    %c48_452 = arith.constant 48 : index
    %c0_453 = arith.constant 0 : index
    %366 = vector.load %arg17[%c48_452, %c0_453] : memref<128x128xf32, #tpu.memory_space<vmem>>, vector<16x128xf32>
    %c0_454 = arith.constant 0 : index
    %c640_455 = arith.constant 640 : index
    %367 = vector.load %arg18[%c0_454, %c640_455] : memref<32x1152xf32, #tpu.memory_space<vmem>>, vector<16x128xf32>
    tpu.vector_store %arg18[%c0_454, %c640_455], %366 {strides = array<i32>} : memref<32x1152xf32, #tpu.memory_space<vmem>>, vector<16x128xf32>,
    %c64_456 = arith.constant 64 : index
    %c0_457 = arith.constant 0 : index
    %368 = vector.load %arg17[%c64_456, %c0_457] : memref<128x128xf32, #tpu.memory_space<vmem>>, vector<16x128xf32>
    %c0_458 = arith.constant 0 : index
    %c768_459 = arith.constant 768 : index
    %369 = vector.load %arg18[%c0_458, %c768_459] : memref<32x1152xf32, #tpu.memory_space<vmem>>, vector<16x128xf32>
    tpu.vector_store %arg18[%c0_458, %c768_459], %368 {strides = array<i32>} : memref<32x1152xf32, #tpu.memory_space<vmem>>, vector<16x128xf32>,
    %c72_460 = arith.constant 72 : index
    %c0_461 = arith.constant 0 : index
    %370 = vector.load %arg17[%c72_460, %c0_461] : memref<128x128xf32, #tpu.memory_space<vmem>>, vector<16x128xf32>
    %c0_462 = arith.constant 0 : index
    %c896_463 = arith.constant 896 : index
    %371 = vector.load %arg18[%c0_462, %c896_463] : memref<32x1152xf32, #tpu.memory_space<vmem>>, vector<16x128xf32>
    tpu.vector_store %arg18[%c0_462, %c896_463], %370 {strides = array<i32>} : memref<32x1152xf32, #tpu.memory_space<vmem>>, vector<16x128xf32>,
    %c80_464 = arith.constant 80 : index
    %c0_465 = arith.constant 0 : index
    %372 = vector.load %arg17[%c80_464, %c0_465] : memref<128x128xf32, #tpu.memory_space<vmem>>, vector<16x128xf32>
    %c0_466 = arith.constant 0 : index
    %c1024_467 = arith.constant 1024 : index
    %373 = vector.load %arg18[%c0_466, %c1024_467] : memref<32x1152xf32, #tpu.memory_space<vmem>>, vector<16x128xf32>
    tpu.vector_store %arg18[%c0_466, %c1024_467], %372 {strides = array<i32>} : memref<32x1152xf32, #tpu.memory_space<vmem>>, vector<16x128xf32>,
    %c32_468 = arith.constant 32 : index
    %c0_469 = arith.constant 0 : index
    %374 = vector.load %arg17[%c32_468, %c0_469] : memref<128x128xf32, #tpu.memory_space<vmem>>, vector<16x128xf32>
    %c16_470 = arith.constant 16 : index
    %c0_471 = arith.constant 0 : index
    %375 = vector.load %arg18[%c16_470, %c0_471] : memref<32x1152xf32, #tpu.memory_space<vmem>>, vector<16x128xf32>
    tpu.vector_store %arg18[%c16_470, %c0_471], %374 {strides = array<i32>} : memref<32x1152xf32, #tpu.memory_space<vmem>>, vector<16x128xf32>,
    %c40_472 = arith.constant 40 : index
    %c0_473 = arith.constant 0 : index
    %376 = vector.load %arg17[%c40_472, %c0_473] : memref<128x128xf32, #tpu.memory_space<vmem>>, vector<16x128xf32>
    %c16_474 = arith.constant 16 : index
    %c128_475 = arith.constant 128 : index
    %377 = vector.load %arg18[%c16_474, %c128_475] : memref<32x1152xf32, #tpu.memory_space<vmem>>, vector<16x128xf32>
    tpu.vector_store %arg18[%c16_474, %c128_475], %376 {strides = array<i32>} : memref<32x1152xf32, #tpu.memory_space<vmem>>, vector<16x128xf32>,
    %c48_476 = arith.constant 48 : index
    %c0_477 = arith.constant 0 : index
    %378 = vector.load %arg17[%c48_476, %c0_477] : memref<128x128xf32, #tpu.memory_space<vmem>>, vector<16x128xf32>
    %c16_478 = arith.constant 16 : index
    %c256_479 = arith.constant 256 : index
    %379 = vector.load %arg18[%c16_478, %c256_479] : memref<32x1152xf32, #tpu.memory_space<vmem>>, vector<16x128xf32>
    tpu.vector_store %arg18[%c16_478, %c256_479], %378 {strides = array<i32>} : memref<32x1152xf32, #tpu.memory_space<vmem>>, vector<16x128xf32>,
    %c64_480 = arith.constant 64 : index
    %c0_481 = arith.constant 0 : index
    %380 = vector.load %arg17[%c64_480, %c0_481] : memref<128x128xf32, #tpu.memory_space<vmem>>, vector<16x128xf32>
    %c16_482 = arith.constant 16 : index
    %c384_483 = arith.constant 384 : index
    %381 = vector.load %arg18[%c16_482, %c384_483] : memref<32x1152xf32, #tpu.memory_space<vmem>>, vector<16x128xf32>
    tpu.vector_store %arg18[%c16_482, %c384_483], %380 {strides = array<i32>} : memref<32x1152xf32, #tpu.memory_space<vmem>>, vector<16x128xf32>,
    %c72_484 = arith.constant 72 : index
    %c0_485 = arith.constant 0 : index
    %382 = vector.load %arg17[%c72_484, %c0_485] : memref<128x128xf32, #tpu.memory_space<vmem>>, vector<16x128xf32>
    %c16_486 = arith.constant 16 : index
    %c512_487 = arith.constant 512 : index
    %383 = vector.load %arg18[%c16_486, %c512_487] : memref<32x1152xf32, #tpu.memory_space<vmem>>, vector<16x128xf32>
    tpu.vector_store %arg18[%c16_486, %c512_487], %382 {strides = array<i32>} : memref<32x1152xf32, #tpu.memory_space<vmem>>, vector<16x128xf32>,
    %c80_488 = arith.constant 80 : index
    %c0_489 = arith.constant 0 : index
    %384 = vector.load %arg17[%c80_488, %c0_489] : memref<128x128xf32, #tpu.memory_space<vmem>>, vector<16x128xf32>
    %c16_490 = arith.constant 16 : index
    %c640_491 = arith.constant 640 : index
    %385 = vector.load %arg18[%c16_490, %c640_491] : memref<32x1152xf32, #tpu.memory_space<vmem>>, vector<16x128xf32>
    tpu.vector_store %arg18[%c16_490, %c640_491], %384 {strides = array<i32>} : memref<32x1152xf32, #tpu.memory_space<vmem>>, vector<16x128xf32>,
    %c96_492 = arith.constant 96 : index
    %c0_493 = arith.constant 0 : index
    %386 = vector.load %arg17[%c96_492, %c0_493] : memref<128x128xf32, #tpu.memory_space<vmem>>, vector<16x128xf32>
    %c16_494 = arith.constant 16 : index
    %c768_495 = arith.constant 768 : index
    %387 = vector.load %arg18[%c16_494, %c768_495] : memref<32x1152xf32, #tpu.memory_space<vmem>>, vector<16x128xf32>
    tpu.vector_store %arg18[%c16_494, %c768_495], %386 {strides = array<i32>} : memref<32x1152xf32, #tpu.memory_space<vmem>>, vector<16x128xf32>,
    %c104_496 = arith.constant 104 : index
    %c0_497 = arith.constant 0 : index
    %388 = vector.load %arg17[%c104_496, %c0_497] : memref<128x128xf32, #tpu.memory_space<vmem>>, vector<16x128xf32>
    %c16_498 = arith.constant 16 : index
    %c896_499 = arith.constant 896 : index
    %389 = vector.load %arg18[%c16_498, %c896_499] : memref<32x1152xf32, #tpu.memory_space<vmem>>, vector<16x128xf32>
    tpu.vector_store %arg18[%c16_498, %c896_499], %388 {strides = array<i32>} : memref<32x1152xf32, #tpu.memory_space<vmem>>, vector<16x128xf32>,
    %c112_500 = arith.constant 112 : index
    %c0_501 = arith.constant 0 : index
    %390 = vector.load %arg17[%c112_500, %c0_501] : memref<128x128xf32, #tpu.memory_space<vmem>>, vector<16x128xf32>
    %c16_502 = arith.constant 16 : index
    %c1024_503 = arith.constant 1024 : index
    %391 = vector.load %arg18[%c16_502, %c1024_503] : memref<32x1152xf32, #tpu.memory_space<vmem>>, vector<16x128xf32>
    tpu.vector_store %arg18[%c16_502, %c1024_503], %390 {strides = array<i32>} : memref<32x1152xf32, #tpu.memory_space<vmem>>, vector<16x128xf32>,
    %c0_504 = arith.constant 0 : index
    %c0_505 = arith.constant 0 : index
    %392 = vector.load %arg18[%c0_504, %c0_505] : memref<32x1152xf32, #tpu.memory_space<vmem>>, vector<32x1152xf32>
    %393 = arith.truncf %392 : vector<32x1152xf32> to vector<32x1152xbf16>
    %c0_506 = arith.constant 0 : index
    %c0_507 = arith.constant 0 : index
    %394 = vector.load %arg10[%c0_506, %c0_507] : memref<1152x128xbf16, #tpu.memory_space<vmem>>, vector<1152x128xbf16>
    %cst_508 = arith.constant dense<0.000000e+00> : vector<32x128xf32>
    %395 = tpu.matmul %393, %394, %cst_508 {dimension_numbers = #tpu.dot_dimension_numbers<[1], [0], [0], [1], [0, 0, 1, 1], [], []>} : vector<32x1152xbf16>, vector<1152x128xbf16>, vector<32x128xf32> -> vector<32x128xf32>
    %c0_509 = arith.constant 0 : index
    %c0_510 = arith.constant 0 : index
    %396 = vector.load %arg11[%c0_509, %c0_510] : memref<1x128xf32, #tpu.memory_space<vmem>>, vector<1x128xf32>
    %397 = vector.broadcast %396 : vector<1x128xf32> to vector<32x128xf32>
    %398 = arith.addf %395, %397 : vector<32x128xf32>
    %c0_511 = arith.constant 0 : index
    %c768_512 = arith.constant 768 : index
    %399 = vector.load %arg12[%c0_511, %c768_512] : memref<32x896xf32, #tpu.memory_space<vmem>>, vector<32x128xf32>
    tpu.vector_store %arg12[%c0_511, %c768_512], %398 {strides = array<i32>} : memref<32x896xf32, #tpu.memory_space<vmem>>, vector<32x128xf32>,
    return
  }
  func.func @transform_0(%arg0: i32) -> (i32, i32) {
    %c0_i32 = arith.constant 0 : i32
    %c0_i32_0 = arith.constant 0 : i32
    return %arg0, %c0_i32 : i32, i32
  }
  func.func @transform_1(%arg0: i32) -> (i32, i32) {
    %c0_i32 = arith.constant 0 : i32
    %c0_i32_0 = arith.constant 0 : i32
    %c0_i32_1 = arith.constant 0 : i32
    return %c0_i32, %c0_i32_0 : i32, i32
  }
  func.func @transform_2(%arg0: i32) -> (i32, i32) {
    %c0_i32 = arith.constant 0 : i32
    %c0_i32_0 = arith.constant 0 : i32
    %c0_i32_1 = arith.constant 0 : i32
    return %c0_i32, %c0_i32_0 : i32, i32
  }
  func.func @transform_3(%arg0: i32) -> (i32, i32) {
    %c0_i32 = arith.constant 0 : i32
    %c0_i32_0 = arith.constant 0 : i32
    %c0_i32_1 = arith.constant 0 : i32
    return %c0_i32, %c0_i32_0 : i32, i32
  }
  func.func @transform_4(%arg0: i32) -> (i32, i32) {
    %c0_i32 = arith.constant 0 : i32
    %c0_i32_0 = arith.constant 0 : i32
    %c0_i32_1 = arith.constant 0 : i32
    return %c0_i32, %c0_i32_0 : i32, i32
  }
  func.func @transform_5(%arg0: i32) -> (i32, i32) {
    %c0_i32 = arith.constant 0 : i32
    %c0_i32_0 = arith.constant 0 : i32
    %c0_i32_1 = arith.constant 0 : i32
    return %c0_i32, %c0_i32_0 : i32, i32
  }
  func.func @transform_6(%arg0: i32) -> (i32, i32) {
    %c0_i32 = arith.constant 0 : i32
    %c0_i32_0 = arith.constant 0 : i32
    %c0_i32_1 = arith.constant 0 : i32
    return %c0_i32, %c0_i32_0 : i32, i32
  }
  func.func @transform_7(%arg0: i32) -> (i32, i32) {
    %c0_i32 = arith.constant 0 : i32
    %c0_i32_0 = arith.constant 0 : i32
    %c0_i32_1 = arith.constant 0 : i32
    return %c0_i32, %c0_i32_0 : i32, i32
  }
  func.func @transform_8(%arg0: i32) -> (i32, i32) {
    %c0_i32 = arith.constant 0 : i32
    %c0_i32_0 = arith.constant 0 : i32
    %c0_i32_1 = arith.constant 0 : i32
    return %c0_i32, %c0_i32_0 : i32, i32
  }
  func.func @transform_9(%arg0: i32) -> (i32, i32) {
    %c0_i32 = arith.constant 0 : i32
    %c0_i32_0 = arith.constant 0 : i32
    %c0_i32_1 = arith.constant 0 : i32
    return %c0_i32, %c0_i32_0 : i32, i32
  }
  func.func @transform_10(%arg0: i32) -> (i32, i32) {
    %c0_i32 = arith.constant 0 : i32
    %c0_i32_0 = arith.constant 0 : i32
    %c0_i32_1 = arith.constant 0 : i32
    return %c0_i32, %c0_i32_0 : i32, i32
  }
  func.func @transform_11(%arg0: i32) -> (i32, i32) {
    %c0_i32 = arith.constant 0 : i32
    %c0_i32_0 = arith.constant 0 : i32
    return %arg0, %c0_i32 : i32, i32
  }
}

</mosaic_0001>

<llo_original>
// kernel: reduction_b.1
$region0: #{reduction_b.1}
  #allocation0 [shape = 'u32[]', space=smem, size = 0x4, offset = 0x4, fixed_abs, tag = 'smem constant byte address 0x4 - core index']
  #allocation1 [shape = 'u32[144,128]{1,0:T(1,128)}', space=vmem, size = 0x12000, scoped, tag = 'internal scratch']
  #allocation2 [shape = 'f32[288,384]{1,0:T(8,128)}', space=vmem, size = 0x6c000, scoped, tag = 'scratch operand']
  #allocation3 [shape = 'f32[32,1152]{1,0:T(8,128)}', space=vmem, size = 0x24000, scoped, tag = 'scratch operand']
  #allocation4 [shape = 'f32[32,1152]{1,0:T(8,128)}', space=vmem, size = 0x24000, scoped, tag = 'scratch operand']
  #allocation5 [shape = 'f32[128,1152]{1,0:T(8,128)}', space=vmem, size = 0x90000, scoped, tag = 'scratch operand']
  #allocation6 [shape = 'f32[128,128]{1,0:T(8,128)}', space=vmem, size = 0x10000, scoped, tag = 'scratch operand']
  #allocation7 [shape = 'f32[32,1152]{1,0:T(8,128)}', space=vmem, size = 0x24000, scoped, tag = 'scratch operand']
  %s0 = inlined_call_operand.vmem [shape: f32[576,448], index: 0, kind: input, shape index: {}]
  %s1 = inlined_call_operand.vmem [shape: bf16[448,384], index: 1, kind: input, shape index: {}]
  %s2 = inlined_call_operand.vmem [shape: f32[1,384], index: 2, kind: input, shape index: {}]
  %s3 = inlined_call_operand.vmem [shape: bf16[1152,192], index: 3, kind: input, shape index: {}]
  %s4 = inlined_call_operand.vmem [shape: f32[1,192], index: 4, kind: input, shape index: {}]
  %s5 = inlined_call_operand.vmem [shape: bf16[1152,128], index: 5, kind: input, shape index: {}]
  %s6 = inlined_call_operand.vmem [shape: f32[1,128], index: 6, kind: input, shape index: {}]
  %s7 = inlined_call_operand.vmem [shape: bf16[1152,128], index: 7, kind: input, shape index: {}]
  %s8 = inlined_call_operand.vmem [shape: f32[1,128], index: 8, kind: input, shape index: {}]
  %s9 = inlined_call_operand.vmem [shape: bf16[1152,128], index: 9, kind: input, shape index: {}]
  %s10 = inlined_call_operand.vmem [shape: f32[1,128], index: 10, kind: input, shape index: {}]
  %s11 = inlined_call_operand.vmem [shape: f32[64,896], index: 11, kind: output, shape index: {}]
  %s12 = sld [smem:[#allocation0]]
  $region77: #{reduction_b.1} parent=0
    _
  %s14 = ssub.s32 1, %s12
  %s15 = scalar_select 0, %s14, %s12
  loop: start=0, step=1, limit=4
  $region2: #{reduction_b.1} parent=0 // loop_pre_header
    _
  $region3: #{reduction_b.1} parent=0 // loop_header
    %s17 = sphi 0, %s21
    %p18 = scmp.ge.s32.totalorder %s17, 4
    %s27 = sphi 0, %s29
    %s30 = sphi 0, %s27
    %s31 = sphi 0, %s30
    %s47 = sphi 0, %s31
    %s51 = sphi 0, %s51
    %s53 = sphi 0, %s51
    %s54 = sphi 0, %s53
    %s68 = sphi 0, %s54
    %s72 = sphi 0, %s72
    %s74 = sphi 0, %s72
    %s75 = sphi 0, %s74
    %s89 = sphi 0, %s75
    %s93 = sphi 0, %s93
    %s95 = sphi 0, %s93
    %s96 = sphi 0, %s95
    %s110 = sphi 0, %s96
    %s114 = sphi 0, %s114
    %s116 = sphi 0, %s114
    %s117 = sphi 0, %s116
    %s131 = sphi 0, %s117
    %s135 = sphi 0, %s135
    %s137 = sphi 0, %s135
    %s138 = sphi 0, %s137
    %s152 = sphi 0, %s138
    %s156 = sphi 0, %s156
    %s158 = sphi 0, %s156
    %s159 = sphi 0, %s158
    %s173 = sphi 0, %s159
    %s177 = sphi 0, %s177
    %s179 = sphi 0, %s177
    %s180 = sphi 0, %s179
    %s194 = sphi 0, %s180
    %s198 = sphi 0, %s198
    %s200 = sphi 0, %s198
    %s201 = sphi 0, %s200
    %s215 = sphi 0, %s201
    %s219 = sphi 0, %s219
    %s221 = sphi 0, %s219
    %s222 = sphi 0, %s221
    %s236 = sphi 0, %s222
    %s240 = sphi 0, %s240
    %s242 = sphi 0, %s240
    %s243 = sphi 0, %s242
    %s257 = sphi 0, %s243
    %s263 = sphi 0, %s265
    %s266 = sphi 0, %s263
    %s267 = sphi 0, %s266
    %s283 = sphi 0, %s267
  $region4: #{reduction_b.1} parent=0 // loop_header_branch
    %20 = sbr.rel (%p18) target = $region8
  $region5: #{reduction_b.1} parent=0 // loop_body
    %s22 = ssub.s32 %s17, 1
    %s23 = ssub.s32 %s17, 2
    %s24 = sadd.s32 %s17, 1
    %s25 = ssub.s32 %s17, %s24
    %p26 = scmp.eq.s32.totalorder %s25, 0
    %s28 = sadd.s32 %s27, 1
    %s29 = scalar_select %p26, %s27, %s28
    %p32 = pneg %p26
    %p33 = scmp.eq.s32.totalorder %s17, 1
    %p34 = por %p32, %p33
    %p35 = scmp.ne.s32.totalorder %s27, %s30
    %p36 = scmp.eq.s32.totalorder %s17, 0
    %p37 = por %p35, %p36
    %p38 = scmp.ne.s32.totalorder %s27, %s30
    %p39 = scmp.eq.s32.totalorder %s22, 1
    %p40 = por %p38, %p39
    %p41 = scmp.ne.s32.totalorder %s30, %s31
    %p42 = scmp.eq.s32.totalorder %s22, 0
    %p43 = por %p41, %p42
    %p44 = scmp.ne.s32.totalorder %s30, %s31
    %p45 = scmp.eq.s32.totalorder %s23, 1
    %p46 = por %p44, %p45
    %p48 = scmp.ne.s32.totalorder %s31, %s47
    %p49 = scmp.eq.s32.totalorder %s23, 0
    %p50 = por %p48, %p49
    %s52 = sadd.s32 %s51, 1
    %p55 = scmp.eq.s32.totalorder %s17, 1
    %p56 = scmp.ne.s32.totalorder %s51, %s53
    %p57 = scmp.eq.s32.totalorder %s17, 0
    %p58 = por %p56, %p57
    %p59 = scmp.ne.s32.totalorder %s51, %s53
    %p60 = scmp.eq.s32.totalorder %s22, 1
    %p61 = por %p59, %p60
    %p62 = scmp.ne.s32.totalorder %s53, %s54
    %p63 = scmp.eq.s32.totalorder %s22, 0
    %p64 = por %p62, %p63
    %p65 = scmp.ne.s32.totalorder %s53, %s54
    %p66 = scmp.eq.s32.totalorder %s23, 1
    %p67 = por %p65, %p66
    %p69 = scmp.ne.s32.totalorder %s54, %s68
    %p70 = scmp.eq.s32.totalorder %s23, 0
    %p71 = por %p69, %p70
    %s73 = sadd.s32 %s72, 1
    %p76 = scmp.eq.s32.totalorder %s17, 1
    %p77 = scmp.ne.s32.totalorder %s72, %s74
    %p78 = scmp.eq.s32.totalorder %s17, 0
    %p79 = por %p77, %p78
    %p80 = scmp.ne.s32.totalorder %s72, %s74
    %p81 = scmp.eq.s32.totalorder %s22, 1
    %p82 = por %p80, %p81
    %p83 = scmp.ne.s32.totalorder %s74, %s75
    %p84 = scmp.eq.s32.totalorder %s22, 0
    %p85 = por %p83, %p84
    %p86 = scmp.ne.s32.totalorder %s74, %s75
    %p87 = scmp.eq.s32.totalorder %s23, 1
    %p88 = por %p86, %p87
    %p90 = scmp.ne.s32.totalorder %s75, %s89
    %p91 = scmp.eq.s32.totalorder %s23, 0
    %p92 = por %p90, %p91
    %s94 = sadd.s32 %s93, 1
    %p97 = scmp.eq.s32.totalorder %s17, 1
    %p98 = scmp.ne.s32.totalorder %s93, %s95
    %p99 = scmp.eq.s32.totalorder %s17, 0
    %p100 = por %p98, %p99
    %p101 = scmp.ne.s32.totalorder %s93, %s95
    %p102 = scmp.eq.s32.totalorder %s22, 1
    %p103 = por %p101, %p102
    %p104 = scmp.ne.s32.totalorder %s95, %s96
    %p105 = scmp.eq.s32.totalorder %s22, 0
    %p106 = por %p104, %p105
    %p107 = scmp.ne.s32.totalorder %s95, %s96
    %p108 = scmp.eq.s32.totalorder %s23, 1
    %p109 = por %p107, %p108
    %p111 = scmp.ne.s32.totalorder %s96, %s110
    %p112 = scmp.eq.s32.totalorder %s23, 0
    %p113 = por %p111, %p112
    %s115 = sadd.s32 %s114, 1
    %p118 = scmp.eq.s32.totalorder %s17, 1
    %p119 = scmp.ne.s32.totalorder %s114, %s116
    %p120 = scmp.eq.s32.totalorder %s17, 0
    %p121 = por %p119, %p120
    %p122 = scmp.ne.s32.totalorder %s114, %s116
    %p123 = scmp.eq.s32.totalorder %s22, 1
    %p124 = por %p122, %p123
    %p125 = scmp.ne.s32.totalorder %s116, %s117
    %p126 = scmp.eq.s32.totalorder %s22, 0
    %p127 = por %p125, %p126
    %p128 = scmp.ne.s32.totalorder %s116, %s117
    %p129 = scmp.eq.s32.totalorder %s23, 1
    %p130 = por %p128, %p129
    %p132 = scmp.ne.s32.totalorder %s117, %s131
    %p133 = scmp.eq.s32.totalorder %s23, 0
    %p134 = por %p132, %p133
    %s136 = sadd.s32 %s135, 1
    %p139 = scmp.eq.s32.totalorder %s17, 1
    %p140 = scmp.ne.s32.totalorder %s135, %s137
    %p141 = scmp.eq.s32.totalorder %s17, 0
    %p142 = por %p140, %p141
    %p143 = scmp.ne.s32.totalorder %s135, %s137
    %p144 = scmp.eq.s32.totalorder %s22, 1
    %p145 = por %p143, %p144
    %p146 = scmp.ne.s32.totalorder %s137, %s138
    %p147 = scmp.eq.s32.totalorder %s22, 0
    %p148 = por %p146, %p147
    %p149 = scmp.ne.s32.totalorder %s137, %s138
    %p150 = scmp.eq.s32.totalorder %s23, 1
    %p151 = por %p149, %p150
    %p153 = scmp.ne.s32.totalorder %s138, %s152
    %p154 = scmp.eq.s32.totalorder %s23, 0
    %p155 = por %p153, %p154
    %s157 = sadd.s32 %s156, 1
    %p160 = scmp.eq.s32.totalorder %s17, 1
    %p161 = scmp.ne.s32.totalorder %s156, %s158
    %p162 = scmp.eq.s32.totalorder %s17, 0
    %p163 = por %p161, %p162
    %p164 = scmp.ne.s32.totalorder %s156, %s158
    %p165 = scmp.eq.s32.totalorder %s22, 1
    %p166 = por %p164, %p165
    %p167 = scmp.ne.s32.totalorder %s158, %s159
    %p168 = scmp.eq.s32.totalorder %s22, 0
    %p169 = por %p167, %p168
    %p170 = scmp.ne.s32.totalorder %s158, %s159
    %p171 = scmp.eq.s32.totalorder %s23, 1
    %p172 = por %p170, %p171
    %p174 = scmp.ne.s32.totalorder %s159, %s173
    %p175 = scmp.eq.s32.totalorder %s23, 0
    %p176 = por %p174, %p175
    %s178 = sadd.s32 %s177, 1
    %p181 = scmp.eq.s32.totalorder %s17, 1
    %p182 = scmp.ne.s32.totalorder %s177, %s179
    %p183 = scmp.eq.s32.totalorder %s17, 0
    %p184 = por %p182, %p183
    %p185 = scmp.ne.s32.totalorder %s177, %s179
    %p186 = scmp.eq.s32.totalorder %s22, 1
    %p187 = por %p185, %p186
    %p188 = scmp.ne.s32.totalorder %s179, %s180
    %p189 = scmp.eq.s32.totalorder %s22, 0
    %p190 = por %p188, %p189
    %p191 = scmp.ne.s32.totalorder %s179, %s180
    %p192 = scmp.eq.s32.totalorder %s23, 1
    %p193 = por %p191, %p192
    %p195 = scmp.ne.s32.totalorder %s180, %s194
    %p196 = scmp.eq.s32.totalorder %s23, 0
    %p197 = por %p195, %p196
    %s199 = sadd.s32 %s198, 1
    %p202 = scmp.eq.s32.totalorder %s17, 1
    %p203 = scmp.ne.s32.totalorder %s198, %s200
    %p204 = scmp.eq.s32.totalorder %s17, 0
    %p205 = por %p203, %p204
    %p206 = scmp.ne.s32.totalorder %s198, %s200
    %p207 = scmp.eq.s32.totalorder %s22, 1
    %p208 = por %p206, %p207
    %p209 = scmp.ne.s32.totalorder %s200, %s201
    %p210 = scmp.eq.s32.totalorder %s22, 0
    %p211 = por %p209, %p210
    %p212 = scmp.ne.s32.totalorder %s200, %s201
    %p213 = scmp.eq.s32.totalorder %s23, 1
    %p214 = por %p212, %p213
    %p216 = scmp.ne.s32.totalorder %s201, %s215
    %p217 = scmp.eq.s32.totalorder %s23, 0
    %p218 = por %p216, %p217
    %s220 = sadd.s32 %s219, 1
    %p223 = scmp.eq.s32.totalorder %s17, 1
    %p224 = scmp.ne.s32.totalorder %s219, %s221
    %p225 = scmp.eq.s32.totalorder %s17, 0
    %p226 = por %p224, %p225
    %p227 = scmp.ne.s32.totalorder %s219, %s221
    %p228 = scmp.eq.s32.totalorder %s22, 1
    %p229 = por %p227, %p228
    %p230 = scmp.ne.s32.totalorder %s221, %s222
    %p231 = scmp.eq.s32.totalorder %s22, 0
    %p232 = por %p230, %p231
    %p233 = scmp.ne.s32.totalorder %s221, %s222
    %p234 = scmp.eq.s32.totalorder %s23, 1
    %p235 = por %p233, %p234
    %p237 = scmp.ne.s32.totalorder %s222, %s236
    %p238 = scmp.eq.s32.totalorder %s23, 0
    %p239 = por %p237, %p238
    %s241 = sadd.s32 %s240, 1
    %p244 = scmp.eq.s32.totalorder %s17, 1
    %p245 = scmp.ne.s32.totalorder %s240, %s242
    %p246 = scmp.eq.s32.totalorder %s17, 0
    %p247 = por %p245, %p246
    %p248 = scmp.ne.s32.totalorder %s240, %s242
    %p249 = scmp.eq.s32.totalorder %s22, 1
    %p250 = por %p248, %p249
    %p251 = scmp.ne.s32.totalorder %s242, %s243
    %p252 = scmp.eq.s32.totalorder %s22, 0
    %p253 = por %p251, %p252
    %p254 = scmp.ne.s32.totalorder %s242, %s243
    %p255 = scmp.eq.s32.totalorder %s23, 1
    %p256 = por %p254, %p255
    %p258 = scmp.ne.s32.totalorder %s243, %s257
    %p259 = scmp.eq.s32.totalorder %s23, 0
    %p260 = por %p258, %p259
    %s261 = ssub.s32 %s17, %s24
    %p262 = scmp.eq.s32.totalorder %s261, 0
    %s264 = sadd.s32 %s263, 1
    %s265 = scalar_select %p262, %s263, %s264
    %p268 = pneg %p262
    %p269 = scmp.eq.s32.totalorder %s17, 1
    %p270 = por %p268, %p269
    %p271 = scmp.ne.s32.totalorder %s263, %s266
    %p272 = scmp.eq.s32.totalorder %s17, 0
    %p273 = por %p271, %p272
    %p274 = scmp.ne.s32.totalorder %s263, %s266
    %p275 = scmp.eq.s32.totalorder %s22, 1
    %p276 = por %p274, %p275
    %p277 = scmp.ne.s32.totalorder %s266, %s267
    %p278 = scmp.eq.s32.totalorder %s22, 0
    %p279 = por %p277, %p278
    %p280 = scmp.ne.s32.totalorder %s266, %s267
    %p281 = scmp.eq.s32.totalorder %s23, 1
    %p282 = por %p280, %p281
    %p284 = scmp.ne.s32.totalorder %s267, %s283
    %p285 = scmp.eq.s32.totalorder %s23, 0
    %p286 = por %p284, %p285
    %p287 = scmp.le.s32.totalorder 1, %s17
    %p288 = scmp.lt.s32.totalorder %s17, 3
    %p289 = pnand %p287, %p288
    %p290 = pneg %p289
    // Predicated region
    $region9: #{reduction_b.1} parent=5 // pred_check
      _
    $region10: #{reduction_b.1} parent=5 // pred_check_branch
      %292 = sbr.rel (%p289) target = $region12
    $region11: #{reduction_b.1} parent=5 // pred_region
      %s293 = ssub.s32 %s17, 1
      // Predicated region
      $region13: #{reduction_b.1} parent=11 // pred_check
        %p294 = pneg %p64
      $region14: #{reduction_b.1} parent=11 // pred_check_branch
        %296 = sbr.rel (%p294) target = $region16
      $region15: #{reduction_b.1} parent=11 // pred_region
        _
      $region16: #{reduction_b.1} parent=11 // pred_fallthru
        _
      // Predicated region
      $region17: #{reduction_b.1} parent=11 // pred_check
        %p297 = pneg %p85
      $region18: #{reduction_b.1} parent=11 // pred_check_branch
        %299 = sbr.rel (%p297) target = $region20
      $region19: #{reduction_b.1} parent=11 // pred_region
        _
      $region20: #{reduction_b.1} parent=11 // pred_fallthru
        _
      // Predicated region
      $region21: #{reduction_b.1} parent=11 // pred_check
        %p300 = pneg %p106
      $region22: #{reduction_b.1} parent=11 // pred_check_branch
        %302 = sbr.rel (%p300) target = $region24
      $region23: #{reduction_b.1} parent=11 // pred_region
        _
      $region24: #{reduction_b.1} parent=11 // pred_fallthru
        _
      // Predicated region
      $region25: #{reduction_b.1} parent=11 // pred_check
        %p303 = pneg %p127
      $region26: #{reduction_b.1} parent=11 // pred_check_branch
        %305 = sbr.rel (%p303) target = $region28
      $region27: #{reduction_b.1} parent=11 // pred_region
        _
      $region28: #{reduction_b.1} parent=11 // pred_fallthru
        _
      // Predicated region
      $region29: #{reduction_b.1} parent=11 // pred_check
        %p306 = pneg %p148
      $region30: #{reduction_b.1} parent=11 // pred_check_branch
        %308 = sbr.rel (%p306) target = $region32
      $region31: #{reduction_b.1} parent=11 // pred_region
        _
      $region32: #{reduction_b.1} parent=11 // pred_fallthru
        _
      // Predicated region
      $region33: #{reduction_b.1} parent=11 // pred_check
        %p309 = pneg %p169
      $region34: #{reduction_b.1} parent=11 // pred_check_branch
        %311 = sbr.rel (%p309) target = $region36
      $region35: #{reduction_b.1} parent=11 // pred_region
        _
      $region36: #{reduction_b.1} parent=11 // pred_fallthru
        _
      // Predicated region
      $region37: #{reduction_b.1} parent=11 // pred_check
        %p312 = pneg %p190
      $region38: #{reduction_b.1} parent=11 // pred_check_branch
        %314 = sbr.rel (%p312) target = $region40
      $region39: #{reduction_b.1} parent=11 // pred_region
        _
      $region40: #{reduction_b.1} parent=11 // pred_fallthru
        _
      // Predicated region
      $region41: #{reduction_b.1} parent=11 // pred_check
        %p315 = pneg %p211
      $region42: #{reduction_b.1} parent=11 // pred_check_branch
        %317 = sbr.rel (%p315) target = $region44
      $region43: #{reduction_b.1} parent=11 // pred_region
        _
      $region44: #{reduction_b.1} parent=11 // pred_fallthru
        _
      // Predicated region
      $region45: #{reduction_b.1} parent=11 // pred_check
        %p318 = pneg %p232
      $region46: #{reduction_b.1} parent=11 // pred_check_branch
        %320 = sbr.rel (%p318) target = $region48
      $region47: #{reduction_b.1} parent=11 // pred_region
        _
      $region48: #{reduction_b.1} parent=11 // pred_fallthru
        _
      // Predicated region
      $region49: #{reduction_b.1} parent=11 // pred_check
        %p321 = pneg %p253
      $region50: #{reduction_b.1} parent=11 // pred_check_branch
        %323 = sbr.rel (%p321) target = $region52
      $region51: #{reduction_b.1} parent=11 // pred_region
        _
      $region52: #{reduction_b.1} parent=11 // pred_fallthru
        _
    $region12: #{reduction_b.1} parent=5 // pred_fallthru
      _
    %p324 = scmp.lt.s32.totalorder %s17, 2
    // Predicated region
    $region53: #{reduction_b.1} parent=5 // pred_check
      %p325 = pneg %p324
    $region54: #{reduction_b.1} parent=5 // pred_check_branch
      %327 = sbr.rel (%p325) target = $region56
    $region55: #{reduction_b.1} parent=5 // pred_region
      // Predicated region
      $region57: #{reduction_b.1} parent=55 // pred_check
        %p328 = pneg %p37
      $region58: #{reduction_b.1} parent=55 // pred_check_branch
        %330 = sbr.rel (%p328) target = $region60
      $region59: #{reduction_b.1} parent=55 // pred_region
        %s331 = smul.u32 36, %s17
        %p332 = scmp.lt.s32.totalorder %s331, 71
        %s333 = scalar_select %p332, %s331, 71
        %s334 = smul.addr %s333, 4
        %s335 = smul.addr %s334, 8
        %s336 = scalar_lea.vmem %s0, %s335
        %s337 = smul.u32 36, %s17
      $region60: #{reduction_b.1} parent=55 // pred_fallthru
        _
    $region56: #{reduction_b.1} parent=5 // pred_fallthru
      _
    %p338 = scmp.le.s32.totalorder 1, %s17
    %p339 = scmp.lt.s32.totalorder %s17, 3
    %p340 = pnand %p338, %p339
    %p341 = pneg %p340
    // Predicated region
    $region61: #{reduction_b.1} parent=5 // pred_check
      _
    $region62: #{reduction_b.1} parent=5 // pred_check_branch
      %343 = sbr.rel (%p340) target = $region64
    $region63: #{reduction_b.1} parent=5 // pred_region
      %s344 = ssub.s32 %s17, 1
      %s345 = smul.u32 36, %s22
      %p346 = scmp.lt.s32.totalorder %s345, 71
      %s347 = scalar_select %p346, %s345, 71
      %s348 = smul.addr %s347, 4
      %s349 = smul.addr %s348, 8
      %s350 = scalar_lea.vmem %s0, %s349
      %p351 = pneg %p43
      %p352 = pneg %p40
      %p353 = pneg %p64
      %p354 = pneg %p61
      %p355 = pneg %p85
      %p356 = pneg %p82
      %p357 = pneg %p106
      %p358 = pneg %p103
      %p359 = pneg %p127
      %p360 = pneg %p124
      %p361 = pneg %p148
      %p362 = pneg %p145
      %p363 = pneg %p169
      %p364 = pneg %p166
      %p365 = pneg %p190
      %p366 = pneg %p187
      %p367 = pneg %p211
      %p368 = pneg %p208
      %p369 = pneg %p232
      %p370 = pneg %p229
      %p371 = pneg %p253
      %p372 = pneg %p250
      %p373 = pneg %p279
      %p374 = pneg %p276
      %s375 = smul.u32 4, %s22
      %p376 = scmp.lt.s32.totalorder %s375, 7
      %s377 = scalar_select %p376, %s375, 7
      %s378 = smul.addr %s377, 7
      %s379 = smul.addr %s378, 8
      %s380 = scalar_lea.vmem %s11, %s379
      %s381 = smul.u32 36, %s22
      %p382 = scmp.lt.s32.totalorder %s381, 71
      %s383 = scalar_select %p382, %s381, 71
      %s384 = smul.addr %s383, 4
      %s385 = smul.addr %s384, 8
      %s386 = scalar_lea.vmem %s0, %s385
      %s387 = smul.u32 36, %s22
      %s388 = smul.u32 4, %s22
      %p389 = scmp.lt.s32.totalorder %s388, 7
      %s390 = scalar_select %p389, %s388, 7
      %s391 = smul.addr %s390, 7
      %s392 = smul.addr %s391, 8
      %s393 = scalar_lea.vmem %s11, %s392
      %s394 = smul.u32 4, %s22
      %v396 = vld [vmem:[%s386] sm:$0xff]
      %v397 = vld [vmem:[%s386 + $0x8] sm:$0xff]
      %v398 = vld [vmem:[%s386 + $0x10] sm:$0xff]
      %v399 = vld [vmem:[%s386 + $0x18] sm:$0xff]
      %v400 = vld [vmem:[%s386 + $0x20] sm:$0xff]
      %v401 = vld [vmem:[%s386 + $0x28] sm:$0xff]
      %v402 = vld [vmem:[%s386 + $0x30] sm:$0xff]
      %v403 = vld [vmem:[%s386 + $0x38] sm:$0xff]
      %v404 = vmax.f32 %v396, %v400
      %v405 = vmax.f32 %v397, %v401
      %v406 = vmax.f32 %v398, %v402
      %v407 = vmax.f32 %v399, %v403
      %v408 = vld [vmem:[%s386 + $0x40] sm:$0xff]
      %v409 = vld [vmem:[%s386 + $0x48] sm:$0xff]
      %v410 = vld [vmem:[%s386 + $0x50] sm:$0xff]
      %v411 = vld [vmem:[%s386 + $0x58] sm:$0xff]
      %v412 = vmax.f32 %v404, %v408
      %v413 = vmax.f32 %v405, %v409
      %v414 = vmax.f32 %v406, %v410
      %v415 = vmax.f32 %v407, %v411
      %v416 = vld [vmem:[%s386 + $0xc0] sm:$0xff]
      %v417 = vld [vmem:[%s386 + $0xc8] sm:$0xff]
      %v418 = vld [vmem:[%s386 + $0xd0] sm:$0xff]
      %v419 = vld [vmem:[%s386 + $0xd8] sm:$0xff]
      %v420 = vmax.f32 %v412, %v416
      %v421 = vmax.f32 %v413, %v417
      %v422 = vmax.f32 %v414, %v418
      %v423 = vmax.f32 %v415, %v419
      %v424 = vld [vmem:[%s386 + $0xe0] sm:$0xff]
      %v425 = vld [vmem:[%s386 + $0xe8] sm:$0xff]
      %v426 = vld [vmem:[%s386 + $0xf0] sm:$0xff]
      %v427 = vld [vmem:[%s386 + $0xf8] sm:$0xff]
      %v428 = vmax.f32 %v420, %v424
      %v429 = vmax.f32 %v421, %v425
      %v430 = vmax.f32 %v422, %v426
      %v431 = vmax.f32 %v423, %v427
      %v432 = vld [vmem:[%s386 + $0x100] sm:$0xff]
      %v433 = vld [vmem:[%s386 + $0x108] sm:$0xff]
      %v434 = vld [vmem:[%s386 + $0x110] sm:$0xff]
      %v435 = vld [vmem:[%s386 + $0x118] sm:$0xff]
      %v436 = vmax.f32 %v428, %v432
      %v437 = vmax.f32 %v429, %v433
      %v438 = vmax.f32 %v430, %v434
      %v439 = vmax.f32 %v431, %v435
      %v440 = vld [vmem:[%s386 + $0x180] sm:$0xff]
      %v441 = vld [vmem:[%s386 + $0x188] sm:$0xff]
      %v442 = vld [vmem:[%s386 + $0x190] sm:$0xff]
      %v443 = vld [vmem:[%s386 + $0x198] sm:$0xff]
      %v444 = vmax.f32 %v436, %v440
      %v445 = vmax.f32 %v437, %v441
      %v446 = vmax.f32 %v438, %v442
      %v447 = vmax.f32 %v439, %v443
      %v448 = vld [vmem:[%s386 + $0x1a0] sm:$0xff]
      %v449 = vld [vmem:[%s386 + $0x1a8] sm:$0xff]
      %v450 = vld [vmem:[%s386 + $0x1b0] sm:$0xff]
      %v451 = vld [vmem:[%s386 + $0x1b8] sm:$0xff]
      %v452 = vmax.f32 %v444, %v448
      %v453 = vmax.f32 %v445, %v449
      %v454 = vmax.f32 %v446, %v450
      %v455 = vmax.f32 %v447, %v451
      %v456 = vld [vmem:[%s386 + $0x1c0] sm:$0xff]
      %v457 = vld [vmem:[%s386 + $0x1c8] sm:$0xff]
      %v458 = vld [vmem:[%s386 + $0x1d0] sm:$0xff]
      %v459 = vld [vmem:[%s386 + $0x1d8] sm:$0xff]
      %v460 = vmax.f32 %v452, %v456
      %v461 = vmax.f32 %v453, %v457
      %v462 = vmax.f32 %v454, %v458
      %v463 = vmax.f32 %v455, %v459
      %464 = vst [vmem:[%s393] sm:$0xff] %v460
      %465 = vst [vmem:[%s393 + $0x8] sm:$0xff] %v461
      %466 = vst [vmem:[%s393 + $0x10] sm:$0xff] %v462
      %vm467 = vcmask 523264
      %468 = vst.msk [vmem:[%s393 + $0x18] sm:$0xff] %vm467, %v463
      %v469 = vld [vmem:[%s386 + $0x60] sm:$0xff]
      %v470 = vld [vmem:[%s386 + $0x68] sm:$0xff]
      %v471 = vld [vmem:[%s386 + $0x70] sm:$0xff]
      %v472 = vld [vmem:[%s386 + $0x78] sm:$0xff]
      %v473 = vld [vmem:[%s386 + $0x80] sm:$0xff]
      %v474 = vld [vmem:[%s386 + $0x88] sm:$0xff]
      %v475 = vld [vmem:[%s386 + $0x90] sm:$0xff]
      %v476 = vld [vmem:[%s386 + $0x98] sm:$0xff]
      %v477 = vmax.f32 %v469, %v473
      %v478 = vmax.f32 %v470, %v474
      %v479 = vmax.f32 %v471, %v475
      %v480 = vmax.f32 %v472, %v476
      %v481 = vld [vmem:[%s386 + $0xa0] sm:$0xff]
      %v482 = vld [vmem:[%s386 + $0xa8] sm:$0xff]
      %v483 = vld [vmem:[%s386 + $0xb0] sm:$0xff]
      %v484 = vld [vmem:[%s386 + $0xb8] sm:$0xff]
      %v485 = vmax.f32 %v477, %v481
      %v486 = vmax.f32 %v478, %v482
      %v487 = vmax.f32 %v479, %v483
      %v488 = vmax.f32 %v480, %v484
      %v489 = vld [vmem:[%s386 + $0x120] sm:$0xff]
      %v490 = vld [vmem:[%s386 + $0x128] sm:$0xff]
      %v491 = vld [vmem:[%s386 + $0x130] sm:$0xff]
      %v492 = vld [vmem:[%s386 + $0x138] sm:$0xff]
      %v493 = vmax.f32 %v485, %v489
      %v494 = vmax.f32 %v486, %v490
      %v495 = vmax.f32 %v487, %v491
      %v496 = vmax.f32 %v488, %v492
      %v497 = vld [vmem:[%s386 + $0x140] sm:$0xff]
      %v498 = vld [vmem:[%s386 + $0x148] sm:$0xff]
      %v499 = vld [vmem:[%s386 + $0x150] sm:$0xff]
      %v500 = vld [vmem:[%s386 + $0x158] sm:$0xff]
      %v501 = vmax.f32 %v493, %v497
      %v502 = vmax.f32 %v494, %v498
      %v503 = vmax.f32 %v495, %v499
      %v504 = vmax.f32 %v496, %v500
      %v505 = vld [vmem:[%s386 + $0x160] sm:$0xff]
      %v506 = vld [vmem:[%s386 + $0x168] sm:$0xff]
      %v507 = vld [vmem:[%s386 + $0x170] sm:$0xff]
      %v508 = vld [vmem:[%s386 + $0x178] sm:$0xff]
      %v509 = vmax.f32 %v501, %v505
      %v510 = vmax.f32 %v502, %v506
      %v511 = vmax.f32 %v503, %v507
      %v512 = vmax.f32 %v504, %v508
      %v513 = vld [vmem:[%s386 + $0x1e0] sm:$0xff]
      %v514 = vld [vmem:[%s386 + $0x1e8] sm:$0xff]
      %v515 = vld [vmem:[%s386 + $0x1f0] sm:$0xff]
      %v516 = vld [vmem:[%s386 + $0x1f8] sm:$0xff]
      %v517 = vmax.f32 %v509, %v513
      %v518 = vmax.f32 %v510, %v514
      %v519 = vmax.f32 %v511, %v515
      %v520 = vmax.f32 %v512, %v516
      %v521 = vld [vmem:[%s386 + $0x200] sm:$0xff]
      %v522 = vld [vmem:[%s386 + $0x208] sm:$0xff]
      %v523 = vld [vmem:[%s386 + $0x210] sm:$0xff]
      %v524 = vld [vmem:[%s386 + $0x218] sm:$0xff]
      %v525 = vmax.f32 %v517, %v521
      %v526 = vmax.f32 %v518, %v522
      %v527 = vmax.f32 %v519, %v523
      %v528 = vmax.f32 %v520, %v524
      %v529 = vld [vmem:[%s386 + $0x220] sm:$0xff]
      %v530 = vld [vmem:[%s386 + $0x228] sm:$0xff]
      %v531 = vld [vmem:[%s386 + $0x230] sm:$0xff]
      %v532 = vld [vmem:[%s386 + $0x238] sm:$0xff]
      %v533 = vmax.f32 %v525, %v529
      %v534 = vmax.f32 %v526, %v530
      %v535 = vmax.f32 %v527, %v531
      %v536 = vmax.f32 %v528, %v532
      %537 = vst [vmem:[%s393 + $0x38] sm:$0xff] %v533
      %538 = vst [vmem:[%s393 + $0x40] sm:$0xff] %v534
      %539 = vst [vmem:[%s393 + $0x48] sm:$0xff] %v535
      %540 = vst.msk [vmem:[%s393 + $0x50] sm:$0xff] %vm467, %v536
      %v541 = vld [vmem:[%s386 + $0x240] sm:$0xff]
      %v542 = vld [vmem:[%s386 + $0x248] sm:$0xff]
      %v543 = vld [vmem:[%s386 + $0x250] sm:$0xff]
      %v544 = vld [vmem:[%s386 + $0x258] sm:$0xff]
      %v545 = vld [vmem:[%s386 + $0x260] sm:$0xff]
      %v546 = vld [vmem:[%s386 + $0x268] sm:$0xff]
      %v547 = vld [vmem:[%s386 + $0x270] sm:$0xff]
      %v548 = vld [vmem:[%s386 + $0x278] sm:$0xff]
      %v549 = vmax.f32 %v541, %v545
      %v550 = vmax.f32 %v542, %v546
      %v551 = vmax.f32 %v543, %v547
      %v552 = vmax.f32 %v544, %v548
      %v553 = vld [vmem:[%s386 + $0x280] sm:$0xff]
      %v554 = vld [vmem:[%s386 + $0x288] sm:$0xff]
      %v555 = vld [vmem:[%s386 + $0x290] sm:$0xff]
      %v556 = vld [vmem:[%s386 + $0x298] sm:$0xff]
      %v557 = vmax.f32 %v549, %v553
      %v558 = vmax.f32 %v550, %v554
      %v559 = vmax.f32 %v551, %v555
      %v560 = vmax.f32 %v552, %v556
      %v561 = vld [vmem:[%s386 + $0x300] sm:$0xff]
      %v562 = vld [vmem:[%s386 + $0x308] sm:$0xff]
      %v563 = vld [vmem:[%s386 + $0x310] sm:$0xff]
      %v564 = vld [vmem:[%s386 + $0x318] sm:$0xff]
      %v565 = vmax.f32 %v557, %v561
      %v566 = vmax.f32 %v558, %v562
      %v567 = vmax.f32 %v559, %v563
      %v568 = vmax.f32 %v560, %v564
      %v569 = vld [vmem:[%s386 + $0x320] sm:$0xff]
      %v570 = vld [vmem:[%s386 + $0x328] sm:$0xff]
      %v571 = vld [vmem:[%s386 + $0x330] sm:$0xff]
      %v572 = vld [vmem:[%s386 + $0x338] sm:$0xff]
      %v573 = vmax.f32 %v565, %v569
      %v574 = vmax.f32 %v566, %v570
      %v575 = vmax.f32 %v567, %v571
      %v576 = vmax.f32 %v568, %v572
      %v577 = vld [vmem:[%s386 + $0x340] sm:$0xff]
      %v578 = vld [vmem:[%s386 + $0x348] sm:$0xff]
      %v579 = vld [vmem:[%s386 + $0x350] sm:$0xff]
      %v580 = vld [vmem:[%s386 + $0x358] sm:$0xff]
      %v581 = vmax.f32 %v573, %v577
      %v582 = vmax.f32 %v574, %v578
      %v583 = vmax.f32 %v575, %v579
      %v584 = vmax.f32 %v576, %v580
      %v585 = vld [vmem:[%s386 + $0x3c0] sm:$0xff]
      %v586 = vld [vmem:[%s386 + $0x3c8] sm:$0xff]
      %v587 = vld [vmem:[%s386 + $0x3d0] sm:$0xff]
      %v588 = vld [vmem:[%s386 + $0x3d8] sm:$0xff]
      %v589 = vmax.f32 %v581, %v585
      %v590 = vmax.f32 %v582, %v586
      %v591 = vmax.f32 %v583, %v587
      %v592 = vmax.f32 %v584, %v588
      %v593 = vld [vmem:[%s386 + $0x3e0] sm:$0xff]
      %v594 = vld [vmem:[%s386 + $0x3e8] sm:$0xff]
      %v595 = vld [vmem:[%s386 + $0x3f0] sm:$0xff]
      %v596 = vld [vmem:[%s386 + $0x3f8] sm:$0xff]
      %v597 = vmax.f32 %v589, %v593
      %v598 = vmax.f32 %v590, %v594
      %v599 = vmax.f32 %v591, %v595
      %v600 = vmax.f32 %v592, %v596
      %v601 = vld [vmem:[%s386 + $0x400] sm:$0xff]
      %v602 = vld [vmem:[%s386 + $0x408] sm:$0xff]
      %v603 = vld [vmem:[%s386 + $0x410] sm:$0xff]
      %v604 = vld [vmem:[%s386 + $0x418] sm:$0xff]
      %v605 = vmax.f32 %v597, %v601
      %v606 = vmax.f32 %v598, %v602
      %v607 = vmax.f32 %v599, %v603
      %v608 = vmax.f32 %v600, %v604
      %609 = vst [vmem:[%s393 + $0x70] sm:$0xff] %v605
      %610 = vst [vmem:[%s393 + $0x78] sm:$0xff] %v606
      %611 = vst [vmem:[%s393 + $0x80] sm:$0xff] %v607
      %612 = vst.msk [vmem:[%s393 + $0x88] sm:$0xff] %vm467, %v608
      %v613 = vld [vmem:[%s386 + $0x2a0] sm:$0xff]
      %v614 = vld [vmem:[%s386 + $0x2a8] sm:$0xff]
      %v615 = vld [vmem:[%s386 + $0x2b0] sm:$0xff]
      %v616 = vld [vmem:[%s386 + $0x2b8] sm:$0xff]
      %v617 = vld [vmem:[%s386 + $0x2c0] sm:$0xff]
      %v618 = vld [vmem:[%s386 + $0x2c8] sm:$0xff]
      %v619 = vld [vmem:[%s386 + $0x2d0] sm:$0xff]
      %v620 = vld [vmem:[%s386 + $0x2d8] sm:$0xff]
      %v621 = vmax.f32 %v613, %v617
      %v622 = vmax.f32 %v614, %v618
      %v623 = vmax.f32 %v615, %v619
      %v624 = vmax.f32 %v616, %v620
      %v625 = vld [vmem:[%s386 + $0x2e0] sm:$0xff]
      %v626 = vld [vmem:[%s386 + $0x2e8] sm:$0xff]
      %v627 = vld [vmem:[%s386 + $0x2f0] sm:$0xff]
      %v628 = vld [vmem:[%s386 + $0x2f8] sm:$0xff]
      %v629 = vmax.f32 %v621, %v625
      %v630 = vmax.f32 %v622, %v626
      %v631 = vmax.f32 %v623, %v627
      %v632 = vmax.f32 %v624, %v628
      %v633 = vld [vmem:[%s386 + $0x360] sm:$0xff]
      %v634 = vld [vmem:[%s386 + $0x368] sm:$0xff]
      %v635 = vld [vmem:[%s386 + $0x370] sm:$0xff]
      %v636 = vld [vmem:[%s386 + $0x378] sm:$0xff]
      %v637 = vmax.f32 %v629, %v633
      %v638 = vmax.f32 %v630, %v634
      %v639 = vmax.f32 %v631, %v635
      %v640 = vmax.f32 %v632, %v636
      %v641 = vld [vmem:[%s386 + $0x380] sm:$0xff]
      %v642 = vld [vmem:[%s386 + $0x388] sm:$0xff]
      %v643 = vld [vmem:[%s386 + $0x390] sm:$0xff]
      %v644 = vld [vmem:[%s386 + $0x398] sm:$0xff]
      %v645 = vmax.f32 %v637, %v641
      %v646 = vmax.f32 %v638, %v642
      %v647 = vmax.f32 %v639, %v643
      %v648 = vmax.f32 %v640, %v644
      %v649 = vld [vmem:[%s386 + $0x3a0] sm:$0xff]
      %v650 = vld [vmem:[%s386 + $0x3a8] sm:$0xff]
      %v651 = vld [vmem:[%s386 + $0x3b0] sm:$0xff]
      %v652 = vld [vmem:[%s386 + $0x3b8] sm:$0xff]
      %v653 = vmax.f32 %v645, %v649
      %v654 = vmax.f32 %v646, %v650
      %v655 = vmax.f32 %v647, %v651
      %v656 = vmax.f32 %v648, %v652
      %v657 = vld [vmem:[%s386 + $0x420] sm:$0xff]
      %v658 = vld [vmem:[%s386 + $0x428] sm:$0xff]
      %v659 = vld [vmem:[%s386 + $0x430] sm:$0xff]
      %v660 = vld [vmem:[%s386 + $0x438] sm:$0xff]
      %v661 = vmax.f32 %v653, %v657
      %v662 = vmax.f32 %v654, %v658
      %v663 = vmax.f32 %v655, %v659
      %v664 = vmax.f32 %v656, %v660
      %v665 = vld [vmem:[%s386 + $0x440] sm:$0xff]
      %v666 = vld [vmem:[%s386 + $0x448] sm:$0xff]
      %v667 = vld [vmem:[%s386 + $0x450] sm:$0xff]
      %v668 = vld [vmem:[%s386 + $0x458] sm:$0xff]
      %v669 = vmax.f32 %v661, %v665
      %v670 = vmax.f32 %v662, %v666
      %v671 = vmax.f32 %v663, %v667
      %v672 = vmax.f32 %v664, %v668
      %v673 = vld [vmem:[%s386 + $0x460] sm:$0xff]
      %v674 = vld [vmem:[%s386 + $0x468] sm:$0xff]
      %v675 = vld [vmem:[%s386 + $0x470] sm:$0xff]
      %v676 = vld [vmem:[%s386 + $0x478] sm:$0xff]
      %v677 = vmax.f32 %v669, %v673
      %v678 = vmax.f32 %v670, %v674
      %v679 = vmax.f32 %v671, %v675
      %v680 = vmax.f32 %v672, %v676
      %681 = vst [vmem:[%s393 + $0xa8] sm:$0xff] %v677
      %682 = vst [vmem:[%s393 + $0xb0] sm:$0xff] %v678
      %683 = vst [vmem:[%s393 + $0xb8] sm:$0xff] %v679
      %684 = vst.msk [vmem:[%s393 + $0xc0] sm:$0xff] %vm467, %v680
      %v685 = vld [vmem:[%s386] sm:$0xff]
      %v686 = vld [vmem:[%s386 + $0x8] sm:$0xff]
      %v687 = vld [vmem:[%s386 + $0x10] sm:$0xff]
      %v688 = vld [vmem:[%s386 + $0x18] sm:$0xff]
      %v689 = vld [vmem:[%s386 + $0x20] sm:$0xff]
      %v690 = vld [vmem:[%s386 + $0x28] sm:$0xff]
      %v691 = vld [vmem:[%s386 + $0x30] sm:$0xff]
      %v692 = vld [vmem:[%s386 + $0x38] sm:$0xff]
      %v693 = vld [vmem:[%s386 + $0x40] sm:$0xff]
      %v694 = vld [vmem:[%s386 + $0x48] sm:$0xff]
      %v695 = vld [vmem:[%s386 + $0x50] sm:$0xff]
      %v696 = vld [vmem:[%s386 + $0x58] sm:$0xff]
      %v697 = vld [vmem:[%s386 + $0x60] sm:$0xff]
      %v698 = vld [vmem:[%s386 + $0x68] sm:$0xff]
      %v699 = vld [vmem:[%s386 + $0x70] sm:$0xff]
      %v700 = vld [vmem:[%s386 + $0x78] sm:$0xff]
      %v701 = vld [vmem:[%s386 + $0x80] sm:$0xff]
      %v702 = vld [vmem:[%s386 + $0x88] sm:$0xff]
      %v703 = vld [vmem:[%s386 + $0x90] sm:$0xff]
      %v704 = vld [vmem:[%s386 + $0x98] sm:$0xff]
      %v705 = vld [vmem:[%s386 + $0xa0] sm:$0xff]
      %v706 = vld [vmem:[%s386 + $0xa8] sm:$0xff]
      %v707 = vld [vmem:[%s386 + $0xb0] sm:$0xff]
      %v708 = vld [vmem:[%s386 + $0xb8] sm:$0xff]
      %v709 = vld [vmem:[%s386 + $0xc0] sm:$0xff]
      %v710 = vld [vmem:[%s386 + $0xc8] sm:$0xff]
      %v711 = vld [vmem:[%s386 + $0xd0] sm:$0xff]
      %v712 = vld [vmem:[%s386 + $0xd8] sm:$0xff]
      %v713 = vld [vmem:[%s386 + $0xe0] sm:$0xff]
      %v714 = vld [vmem:[%s386 + $0xe8] sm:$0xff]
      %v715 = vld [vmem:[%s386 + $0xf0] sm:$0xff]
      %v716 = vld [vmem:[%s386 + $0xf8] sm:$0xff]
      %v717 = vld [vmem:[%s386 + $0x100] sm:$0xff]
      %v718 = vld [vmem:[%s386 + $0x108] sm:$0xff]
      %v719 = vld [vmem:[%s386 + $0x110] sm:$0xff]
      %v720 = vld [vmem:[%s386 + $0x118] sm:$0xff]
      %v721 = vld [vmem:[%s386 + $0x120] sm:$0xff]
      %v722 = vld [vmem:[%s386 + $0x128] sm:$0xff]
      %v723 = vld [vmem:[%s386 + $0x130] sm:$0xff]
      %v724 = vld [vmem:[%s386 + $0x138] sm:$0xff]
      %v725 = vld [vmem:[%s386 + $0x140] sm:$0xff]
      %v726 = vld [vmem:[%s386 + $0x148] sm:$0xff]
      %v727 = vld [vmem:[%s386 + $0x150] sm:$0xff]
      %v728 = vld [vmem:[%s386 + $0x158] sm:$0xff]
      %v729 = vld [vmem:[%s386 + $0x160] sm:$0xff]
      %v730 = vld [vmem:[%s386 + $0x168] sm:$0xff]
      %v731 = vld [vmem:[%s386 + $0x170] sm:$0xff]
      %v732 = vld [vmem:[%s386 + $0x178] sm:$0xff]
      %v733 = vld [vmem:[%s386 + $0x180] sm:$0xff]
      %v734 = vld [vmem:[%s386 + $0x188] sm:$0xff]
      %v735 = vld [vmem:[%s386 + $0x190] sm:$0xff]
      %v736 = vld [vmem:[%s386 + $0x198] sm:$0xff]
      %v737 = vld [vmem:[%s386 + $0x1a0] sm:$0xff]
      %v738 = vld [vmem:[%s386 + $0x1a8] sm:$0xff]
      %v739 = vld [vmem:[%s386 + $0x1b0] sm:$0xff]
      %v740 = vld [vmem:[%s386 + $0x1b8] sm:$0xff]
      %v741 = vld [vmem:[%s386 + $0x1c0] sm:$0xff]
      %v742 = vld [vmem:[%s386 + $0x1c8] sm:$0xff]
      %v743 = vld [vmem:[%s386 + $0x1d0] sm:$0xff]
      %v744 = vld [vmem:[%s386 + $0x1d8] sm:$0xff]
      %v745 = vld [vmem:[%s386 + $0x1e0] sm:$0xff]
      %v746 = vld [vmem:[%s386 + $0x1e8] sm:$0xff]
      %v747 = vld [vmem:[%s386 + $0x1f0] sm:$0xff]
      %v748 = vld [vmem:[%s386 + $0x1f8] sm:$0xff]
      %v749 = vld [vmem:[%s386 + $0x200] sm:$0xff]
      %v750 = vld [vmem:[%s386 + $0x208] sm:$0xff]
      %v751 = vld [vmem:[%s386 + $0x210] sm:$0xff]
      %v752 = vld [vmem:[%s386 + $0x218] sm:$0xff]
      %v753 = vld [vmem:[%s386 + $0x220] sm:$0xff]
      %v754 = vld [vmem:[%s386 + $0x228] sm:$0xff]
      %v755 = vld [vmem:[%s386 + $0x230] sm:$0xff]
      %v756 = vld [vmem:[%s386 + $0x238] sm:$0xff]
      %v757 = vld [vmem:[%s386 + $0x240] sm:$0xff]
      %v758 = vld [vmem:[%s386 + $0x248] sm:$0xff]
      %v759 = vld [vmem:[%s386 + $0x250] sm:$0xff]
      %v760 = vld [vmem:[%s386 + $0x258] sm:$0xff]
      %v761 = vld [vmem:[%s386 + $0x260] sm:$0xff]
      %v762 = vld [vmem:[%s386 + $0x268] sm:$0xff]
      %v763 = vld [vmem:[%s386 + $0x270] sm:$0xff]
      %v764 = vld [vmem:[%s386 + $0x278] sm:$0xff]
      %v765 = vld [vmem:[%s386 + $0x280] sm:$0xff]
      %v766 = vld [vmem:[%s386 + $0x288] sm:$0xff]
      %v767 = vld [vmem:[%s386 + $0x290] sm:$0xff]
      %v768 = vld [vmem:[%s386 + $0x298] sm:$0xff]
      %v769 = vld [vmem:[%s386 + $0x2a0] sm:$0xff]
      %v770 = vld [vmem:[%s386 + $0x2a8] sm:$0xff]
      %v771 = vld [vmem:[%s386 + $0x2b0] sm:$0xff]
      %v772 = vld [vmem:[%s386 + $0x2b8] sm:$0xff]
      %v773 = vld [vmem:[%s386 + $0x2c0] sm:$0xff]
      %v774 = vld [vmem:[%s386 + $0x2c8] sm:$0xff]
      %v775 = vld [vmem:[%s386 + $0x2d0] sm:$0xff]
      %v776 = vld [vmem:[%s386 + $0x2d8] sm:$0xff]
      %v777 = vld [vmem:[%s386 + $0x2e0] sm:$0xff]
      %v778 = vld [vmem:[%s386 + $0x2e8] sm:$0xff]
      %v779 = vld [vmem:[%s386 + $0x2f0] sm:$0xff]
      %v780 = vld [vmem:[%s386 + $0x2f8] sm:$0xff]
      %v781 = vld [vmem:[%s386 + $0x300] sm:$0xff]
      %v782 = vld [vmem:[%s386 + $0x308] sm:$0xff]
      %v783 = vld [vmem:[%s386 + $0x310] sm:$0xff]
      %v784 = vld [vmem:[%s386 + $0x318] sm:$0xff]
      %v785 = vld [vmem:[%s386 + $0x320] sm:$0xff]
      %v786 = vld [vmem:[%s386 + $0x328] sm:$0xff]
      %v787 = vld [vmem:[%s386 + $0x330] sm:$0xff]
      %v788 = vld [vmem:[%s386 + $0x338] sm:$0xff]
      %v789 = vld [vmem:[%s386 + $0x340] sm:$0xff]
      %v790 = vld [vmem:[%s386 + $0x348] sm:$0xff]
      %v791 = vld [vmem:[%s386 + $0x350] sm:$0xff]
      %v792 = vld [vmem:[%s386 + $0x358] sm:$0xff]
      %v793 = vld [vmem:[%s386 + $0x360] sm:$0xff]
      %v794 = vld [vmem:[%s386 + $0x368] sm:$0xff]
      %v795 = vld [vmem:[%s386 + $0x370] sm:$0xff]
      %v796 = vld [vmem:[%s386 + $0x378] sm:$0xff]
      %v797 = vld [vmem:[%s386 + $0x380] sm:$0xff]
      %v798 = vld [vmem:[%s386 + $0x388] sm:$0xff]
      %v799 = vld [vmem:[%s386 + $0x390] sm:$0xff]
      %v800 = vld [vmem:[%s386 + $0x398] sm:$0xff]
      %v801 = vld [vmem:[%s386 + $0x3a0] sm:$0xff]
      %v802 = vld [vmem:[%s386 + $0x3a8] sm:$0xff]
      %v803 = vld [vmem:[%s386 + $0x3b0] sm:$0xff]
      %v804 = vld [vmem:[%s386 + $0x3b8] sm:$0xff]
      %v805 = vld [vmem:[%s386 + $0x3c0] sm:$0xff]
      %v806 = vld [vmem:[%s386 + $0x3c8] sm:$0xff]
      %v807 = vld [vmem:[%s386 + $0x3d0] sm:$0xff]
      %v808 = vld [vmem:[%s386 + $0x3d8] sm:$0xff]
      %v809 = vld [vmem:[%s386 + $0x3e0] sm:$0xff]
      %v810 = vld [vmem:[%s386 + $0x3e8] sm:$0xff]
      %v811 = vld [vmem:[%s386 + $0x3f0] sm:$0xff]
      %v812 = vld [vmem:[%s386 + $0x3f8] sm:$0xff]
      %v813 = vld [vmem:[%s386 + $0x400] sm:$0xff]
      %v814 = vld [vmem:[%s386 + $0x408] sm:$0xff]
      %v815 = vld [vmem:[%s386 + $0x410] sm:$0xff]
      %v816 = vld [vmem:[%s386 + $0x418] sm:$0xff]
      %v817 = vld [vmem:[%s386 + $0x420] sm:$0xff]
      %v818 = vld [vmem:[%s386 + $0x428] sm:$0xff]
      %v819 = vld [vmem:[%s386 + $0x430] sm:$0xff]
      %v820 = vld [vmem:[%s386 + $0x438] sm:$0xff]
      %v821 = vld [vmem:[%s386 + $0x440] sm:$0xff]
      %v822 = vld [vmem:[%s386 + $0x448] sm:$0xff]
      %v823 = vld [vmem:[%s386 + $0x450] sm:$0xff]
      %v824 = vld [vmem:[%s386 + $0x458] sm:$0xff]
      %v825 = vld [vmem:[%s386 + $0x460] sm:$0xff]
      %v826 = vld [vmem:[%s386 + $0x468] sm:$0xff]
      %v827 = vld [vmem:[%s386 + $0x470] sm:$0xff]
      %v828 = vld [vmem:[%s386 + $0x478] sm:$0xff]
      %v829 = vpack.c.bf16 %v689, %v685
      %v830 = vpack.c.bf16 %v690, %v686
      %v831 = vpack.c.bf16 %v691, %v687
      %v832 = vpack.c.bf16 %v692, %v688
      %v833 = vpack.c.bf16 %v697, %v693
      %v834 = vpack.c.bf16 %v698, %v694
      %v835 = vpack.c.bf16 %v699, %v695
      %v836 = vpack.c.bf16 %v700, %v696
      %v837 = vpack.c.bf16 %v705, %v701
      %v838 = vpack.c.bf16 %v706, %v702
      %v839 = vpack.c.bf16 %v707, %v703
      %v840 = vpack.c.bf16 %v708, %v704
      %v841 = vpack.c.bf16 %v713, %v709
      %v842 = vpack.c.bf16 %v714, %v710
      %v843 = vpack.c.bf16 %v715, %v711
      %v844 = vpack.c.bf16 %v716, %v712
      %v845 = vpack.c.bf16 %v721, %v717
      %v846 = vpack.c.bf16 %v722, %v718
      %v847 = vpack.c.bf16 %v723, %v719
      %v848 = vpack.c.bf16 %v724, %v720
      %v849 = vpack.c.bf16 %v729, %v725
      %v850 = vpack.c.bf16 %v730, %v726
      %v851 = vpack.c.bf16 %v731, %v727
      %v852 = vpack.c.bf16 %v732, %v728
      %v853 = vpack.c.bf16 %v737, %v733
      %v854 = vpack.c.bf16 %v738, %v734
      %v855 = vpack.c.bf16 %v739, %v735
      %v856 = vpack.c.bf16 %v740, %v736
      %v857 = vpack.c.bf16 %v745, %v741
      %v858 = vpack.c.bf16 %v746, %v742
      %v859 = vpack.c.bf16 %v747, %v743
      %v860 = vpack.c.bf16 %v748, %v744
      %v861 = vpack.c.bf16 %v753, %v749
      %v862 = vpack.c.bf16 %v754, %v750
      %v863 = vpack.c.bf16 %v755, %v751
      %v864 = vpack.c.bf16 %v756, %v752
      %v865 = vpack.c.bf16 %v761, %v757
      %v866 = vpack.c.bf16 %v762, %v758
      %v867 = vpack.c.bf16 %v763, %v759
      %v868 = vpack.c.bf16 %v764, %v760
      %v869 = vpack.c.bf16 %v769, %v765
      %v870 = vpack.c.bf16 %v770, %v766
      %v871 = vpack.c.bf16 %v771, %v767
      %v872 = vpack.c.bf16 %v772, %v768
      %v873 = vpack.c.bf16 %v777, %v773
      %v874 = vpack.c.bf16 %v778, %v774
      %v875 = vpack.c.bf16 %v779, %v775
      %v876 = vpack.c.bf16 %v780, %v776
      %v877 = vpack.c.bf16 %v785, %v781
      %v878 = vpack.c.bf16 %v786, %v782
      %v879 = vpack.c.bf16 %v787, %v783
      %v880 = vpack.c.bf16 %v788, %v784
      %v881 = vpack.c.bf16 %v793, %v789
      %v882 = vpack.c.bf16 %v794, %v790
      %v883 = vpack.c.bf16 %v795, %v791
      %v884 = vpack.c.bf16 %v796, %v792
      %v885 = vpack.c.bf16 %v801, %v797
      %v886 = vpack.c.bf16 %v802, %v798
      %v887 = vpack.c.bf16 %v803, %v799
      %v888 = vpack.c.bf16 %v804, %v800
      %v889 = vpack.c.bf16 %v809, %v805
      %v890 = vpack.c.bf16 %v810, %v806
      %v891 = vpack.c.bf16 %v811, %v807
      %v892 = vpack.c.bf16 %v812, %v808
      %v893 = vpack.c.bf16 %v817, %v813
      %v894 = vpack.c.bf16 %v818, %v814
      %v895 = vpack.c.bf16 %v819, %v815
      %v896 = vpack.c.bf16 %v820, %v816
      %v897 = vpack.c.bf16 %v825, %v821
      %v898 = vpack.c.bf16 %v826, %v822
      %v899 = vpack.c.bf16 %v827, %v823
      %v900 = vpack.c.bf16 %v828, %v824
      %v901 = vld [vmem:[%s1] sm:$0xff]
      %v902 = vld [vmem:[%s1 + $0x8] sm:$0xf]
      %v903 = vld [vmem:[%s1 + $0xc] sm:$0xff]
      %v904 = vld [vmem:[%s1 + $0x14] sm:$0xf]
      %v905 = vld [vmem:[%s1 + $0x18] sm:$0xff]
      %v906 = vld [vmem:[%s1 + $0x20] sm:$0xf]
      %v907 = vld [vmem:[%s1 + $0x24] sm:$0xff]
      %v908 = vld [vmem:[%s1 + $0x2c] sm:$0xf]
      %v909 = vld [vmem:[%s1 + $0x30] sm:$0xff]
      %v910 = vld [vmem:[%s1 + $0x38] sm:$0xf]
      %v911 = vld [vmem:[%s1 + $0x3c] sm:$0xff]
      %v912 = vld [vmem:[%s1 + $0x44] sm:$0xf]
      %v913 = vld [vmem:[%s1 + $0x48] sm:$0xff]
      %v914 = vld [vmem:[%s1 + $0x50] sm:$0xf]
      %v915 = vld [vmem:[%s1 + $0x54] sm:$0xff]
      %v916 = vld [vmem:[%s1 + $0x5c] sm:$0xf]
      %v917 = vld [vmem:[%s1 + $0x60] sm:$0xff]
      %v918 = vld [vmem:[%s1 + $0x68] sm:$0xf]
      %v919 = vld [vmem:[%s1 + $0x6c] sm:$0xff]
      %v920 = vld [vmem:[%s1 + $0x74] sm:$0xf]
      %v921 = vld [vmem:[%s1 + $0x78] sm:$0xff]
      %v922 = vld [vmem:[%s1 + $0x80] sm:$0xf]
      %v923 = vld [vmem:[%s1 + $0x84] sm:$0xff]
      %v924 = vld [vmem:[%s1 + $0x8c] sm:$0xf]
      %v925 = vld [vmem:[%s1 + $0x90] sm:$0xff]
      %v926 = vld [vmem:[%s1 + $0x98] sm:$0xf]
      %v927 = vld [vmem:[%s1 + $0x9c] sm:$0xff]
      %v928 = vld [vmem:[%s1 + $0xa4] sm:$0xf]
      %v929 = vld [vmem:[%s1 + $0xa8] sm:$0xff]
      %v930 = vld [vmem:[%s1 + $0xb0] sm:$0xf]
      %v931 = vld [vmem:[%s1 + $0xb4] sm:$0xff]
      %v932 = vld [vmem:[%s1 + $0xbc] sm:$0xf]
      %v933 = vld [vmem:[%s1 + $0xc0] sm:$0xff]
      %v934 = vld [vmem:[%s1 + $0xc8] sm:$0xf]
      %v935 = vld [vmem:[%s1 + $0xcc] sm:$0xff]
      %v936 = vld [vmem:[%s1 + $0xd4] sm:$0xf]
      %v937 = vld [vmem:[%s1 + $0xd8] sm:$0xff]
      %v938 = vld [vmem:[%s1 + $0xe0] sm:$0xf]
      %v939 = vld [vmem:[%s1 + $0xe4] sm:$0xff]
      %v940 = vld [vmem:[%s1 + $0xec] sm:$0xf]
      %v941 = vld [vmem:[%s1 + $0xf0] sm:$0xff]
      %v942 = vld [vmem:[%s1 + $0xf8] sm:$0xf]
      %v943 = vld [vmem:[%s1 + $0xfc] sm:$0xff]
      %v944 = vld [vmem:[%s1 + $0x104] sm:$0xf]
      %v945 = vld [vmem:[%s1 + $0x108] sm:$0xff]
      %v946 = vld [vmem:[%s1 + $0x110] sm:$0xf]
      %v947 = vld [vmem:[%s1 + $0x114] sm:$0xff]
      %v948 = vld [vmem:[%s1 + $0x11c] sm:$0xf]
      %v949 = vld [vmem:[%s1 + $0x120] sm:$0xff]
      %v950 = vld [vmem:[%s1 + $0x128] sm:$0xf]
      %v951 = vld [vmem:[%s1 + $0x12c] sm:$0xff]
      %v952 = vld [vmem:[%s1 + $0x134] sm:$0xf]
      %v953 = vld [vmem:[%s1 + $0x138] sm:$0xff]
      %v954 = vld [vmem:[%s1 + $0x140] sm:$0xf]
      %v955 = vld [vmem:[%s1 + $0x144] sm:$0xff]
      %v956 = vld [vmem:[%s1 + $0x14c] sm:$0xf]
      %v957 = vld [vmem:[%s1 + $0x150] sm:$0xff]
      %v958 = vld [vmem:[%s1 + $0x158] sm:$0xf]
      %v959 = vld [vmem:[%s1 + $0x15c] sm:$0xff]
      %v960 = vld [vmem:[%s1 + $0x164] sm:$0xf]
      %v961 = vld [vmem:[%s1 + $0x168] sm:$0xff]
      %v962 = vld [vmem:[%s1 + $0x170] sm:$0xf]
      %v963 = vld [vmem:[%s1 + $0x174] sm:$0xff]
      %v964 = vld [vmem:[%s1 + $0x17c] sm:$0xf]
      %v965 = vld [vmem:[%s1 + $0x180] sm:$0xff]
      %v966 = vld [vmem:[%s1 + $0x188] sm:$0xf]
      %v967 = vld [vmem:[%s1 + $0x18c] sm:$0xff]
      %v968 = vld [vmem:[%s1 + $0x194] sm:$0xf]
      %v969 = vld [vmem:[%s1 + $0x198] sm:$0xff]
      %v970 = vld [vmem:[%s1 + $0x1a0] sm:$0xf]
      %v971 = vld [vmem:[%s1 + $0x1a4] sm:$0xff]
      %v972 = vld [vmem:[%s1 + $0x1ac] sm:$0xf]
      %v973 = vld [vmem:[%s1 + $0x1b0] sm:$0xff]
      %v974 = vld [vmem:[%s1 + $0x1b8] sm:$0xf]
      %v975 = vld [vmem:[%s1 + $0x1bc] sm:$0xff]
      %v976 = vld [vmem:[%s1 + $0x1c4] sm:$0xf]
      %v977 = vld [vmem:[%s1 + $0x1c8] sm:$0xff]
      %v978 = vld [vmem:[%s1 + $0x1d0] sm:$0xf]
      %v979 = vld [vmem:[%s1 + $0x1d4] sm:$0xff]
      %v980 = vld [vmem:[%s1 + $0x1dc] sm:$0xf]
      %v981 = vld [vmem:[%s1 + $0x1e0] sm:$0xff]
      %v982 = vld [vmem:[%s1 + $0x1e8] sm:$0xf]
      %v983 = vld [vmem:[%s1 + $0x1ec] sm:$0xff]
      %v984 = vld [vmem:[%s1 + $0x1f4] sm:$0xf]
      %v985 = vld [vmem:[%s1 + $0x1f8] sm:$0xff]
      %v986 = vld [vmem:[%s1 + $0x200] sm:$0xf]
      %v987 = vld [vmem:[%s1 + $0x204] sm:$0xff]
      %v988 = vld [vmem:[%s1 + $0x20c] sm:$0xf]
      %v989 = vld [vmem:[%s1 + $0x210] sm:$0xff]
      %v990 = vld [vmem:[%s1 + $0x218] sm:$0xf]
      %v991 = vld [vmem:[%s1 + $0x21c] sm:$0xff]
      %v992 = vld [vmem:[%s1 + $0x224] sm:$0xf]
      %v993 = vld [vmem:[%s1 + $0x228] sm:$0xff]
      %v994 = vld [vmem:[%s1 + $0x230] sm:$0xf]
      %v995 = vld [vmem:[%s1 + $0x234] sm:$0xff]
      %v996 = vld [vmem:[%s1 + $0x23c] sm:$0xf]
      %v997 = vld [vmem:[%s1 + $0x240] sm:$0xff]
      %v998 = vld [vmem:[%s1 + $0x248] sm:$0xf]
      %v999 = vld [vmem:[%s1 + $0x24c] sm:$0xff]
      %v1000 = vld [vmem:[%s1 + $0x254] sm:$0xf]
      %v1001 = vld [vmem:[%s1 + $0x258] sm:$0xff]
      %v1002 = vld [vmem:[%s1 + $0x260] sm:$0xf]
      %v1003 = vld [vmem:[%s1 + $0x264] sm:$0xff]
      %v1004 = vld [vmem:[%s1 + $0x26c] sm:$0xf]
      %v1005 = vld [vmem:[%s1 + $0x270] sm:$0xff]
      %v1006 = vld [vmem:[%s1 + $0x278] sm:$0xf]
      %v1007 = vld [vmem:[%s1 + $0x27c] sm:$0xff]
      %v1008 = vld [vmem:[%s1 + $0x284] sm:$0xf]
      %v1009 = vld [vmem:[%s1 + $0x288] sm:$0xff]
      %v1010 = vld [vmem:[%s1 + $0x290] sm:$0xf]
      %v1011 = vld [vmem:[%s1 + $0x294] sm:$0xff]
      %v1012 = vld [vmem:[%s1 + $0x29c] sm:$0xf]
      %v1013 = vld [vmem:[%s2] sm:$0x7]
      %v1015 = vlaneseq
      %v1016 = vshrl.u32 %v1015, 7
      %v1017 = vsub.s32 0, %v1016
      %v1018 = vrot.slane %v1013, %v1017
      %v1019 = vlaneseq
      %v1020 = vshrl.u32 %v1019, 7
      %v1021 = vsub.s32 1, %v1020
      %v1022 = vrot.slane %v1013, %v1021
      %v1023 = vlaneseq
      %v1024 = vshrl.u32 %v1023, 7
      %v1025 = vsub.s32 2, %v1024
      %v1026 = vrot.slane %v1013, %v1025
      %v1142 = vunpack.c.l.b16 %v901
      %v1143 = vunpack.c.h.b16 %v901
      %v1144 = vunpack.c.l.b16 %v902
      %v1145 = vunpack.c.l.b16 %v903
      %v1146 = vunpack.c.h.b16 %v903
      %v1147 = vunpack.c.l.b16 %v904
      %v1148 = vunpack.c.l.b16 %v905
      %v1149 = vunpack.c.h.b16 %v905
      %v1150 = vunpack.c.l.b16 %v906
      %v1151 = vunpack.c.l.b16 %v907
      %v1152 = vunpack.c.h.b16 %v907
      %v1153 = vunpack.c.l.b16 %v908
      %v1154 = vunpack.c.l.b16 %v909
      %v1155 = vunpack.c.h.b16 %v909
      %v1156 = vunpack.c.l.b16 %v910
      %v1157 = vunpack.c.l.b16 %v911
      %v1158 = vunpack.c.h.b16 %v911
      %v1159 = vunpack.c.l.b16 %v912
      %v1160 = vunpack.c.l.b16 %v913
      %v1161 = vunpack.c.h.b16 %v913
      %v1162 = vunpack.c.l.b16 %v914
      %v1163 = vunpack.c.l.b16 %v915
      %v1164 = vunpack.c.h.b16 %v915
      %v1165 = vunpack.c.l.b16 %v916
      %v1166 = vunpack.c.l.b16 %v917
      %v1167 = vunpack.c.h.b16 %v917
      %v1168 = vunpack.c.l.b16 %v918
      %v1169 = vunpack.c.l.b16 %v919
      %v1170 = vunpack.c.h.b16 %v919
      %v1171 = vunpack.c.l.b16 %v920
      %v1172 = vunpack.c.l.b16 %v921
      %v1173 = vunpack.c.h.b16 %v921
      %v1174 = vunpack.c.l.b16 %v922
      %v1175 = vunpack.c.l.b16 %v923
      %v1176 = vunpack.c.h.b16 %v923
      %v1177 = vunpack.c.l.b16 %v924
      %v1178 = vunpack.c.l.b16 %v925
      %v1179 = vunpack.c.h.b16 %v925
      %v1180 = vunpack.c.l.b16 %v926
      %v1181 = vunpack.c.l.b16 %v927
      %v1182 = vunpack.c.h.b16 %v927
      %v1183 = vunpack.c.l.b16 %v928
      %v1184 = vunpack.c.l.b16 %v929
      %v1185 = vunpack.c.h.b16 %v929
      %v1186 = vunpack.c.l.b16 %v930
      %v1187 = vunpack.c.l.b16 %v931
      %v1188 = vunpack.c.h.b16 %v931
      %v1189 = vunpack.c.l.b16 %v932
      %v1190 = vunpack.c.l.b16 %v933
      %v1191 = vunpack.c.h.b16 %v933
      %v1192 = vunpack.c.l.b16 %v934
      %v1193 = vunpack.c.l.b16 %v935
      %v1194 = vunpack.c.h.b16 %v935
      %v1195 = vunpack.c.l.b16 %v936
      %v1196 = vunpack.c.l.b16 %v937
      %v1197 = vunpack.c.h.b16 %v937
      %v1198 = vunpack.c.l.b16 %v938
      %v1199 = vunpack.c.l.b16 %v939
      %v1200 = vunpack.c.h.b16 %v939
      %v1201 = vunpack.c.l.b16 %v940
      %v1202 = vunpack.c.l.b16 %v941
      %v1203 = vunpack.c.h.b16 %v941
      %v1204 = vunpack.c.l.b16 %v942
      %v1205 = vunpack.c.l.b16 %v943
      %v1206 = vunpack.c.h.b16 %v943
      %v1207 = vunpack.c.l.b16 %v944
      %v1208 = vunpack.c.l.b16 %v945
      %v1209 = vunpack.c.h.b16 %v945
      %v1210 = vunpack.c.l.b16 %v946
      %v1211 = vunpack.c.l.b16 %v947
      %v1212 = vunpack.c.h.b16 %v947
      %v1213 = vunpack.c.l.b16 %v948
      %v1214 = vunpack.c.l.b16 %v949
      %v1215 = vunpack.c.h.b16 %v949
      %v1216 = vunpack.c.l.b16 %v950
      %v1217 = vunpack.c.l.b16 %v951
      %v1218 = vunpack.c.h.b16 %v951
      %v1219 = vunpack.c.l.b16 %v952
      %v1220 = vunpack.c.l.b16 %v953
      %v1221 = vunpack.c.h.b16 %v953
      %v1222 = vunpack.c.l.b16 %v954
      %v1223 = vunpack.c.l.b16 %v955
      %v1224 = vunpack.c.h.b16 %v955
      %v1225 = vunpack.c.l.b16 %v956
      %v1226 = vunpack.c.l.b16 %v957
      %v1227 = vunpack.c.h.b16 %v957
      %v1228 = vunpack.c.l.b16 %v958
      %v1229 = vunpack.c.l.b16 %v959
      %v1230 = vunpack.c.h.b16 %v959
      %v1231 = vunpack.c.l.b16 %v960
      %v1232 = vunpack.c.l.b16 %v961
      %v1233 = vunpack.c.h.b16 %v961
      %v1234 = vunpack.c.l.b16 %v962
      %v1235 = vunpack.c.l.b16 %v963
      %v1236 = vunpack.c.h.b16 %v963
      %v1237 = vunpack.c.l.b16 %v964
      %v1238 = vunpack.c.l.b16 %v965
      %v1239 = vunpack.c.h.b16 %v965
      %v1240 = vunpack.c.l.b16 %v966
      %v1241 = vunpack.c.l.b16 %v967
      %v1242 = vunpack.c.h.b16 %v967
      %v1243 = vunpack.c.l.b16 %v968
      %v1244 = vunpack.c.l.b16 %v969
      %v1245 = vunpack.c.h.b16 %v969
      %v1246 = vunpack.c.l.b16 %v970
      %v1247 = vunpack.c.l.b16 %v971
      %v1248 = vunpack.c.h.b16 %v971
      %v1249 = vunpack.c.l.b16 %v972
      %v1250 = vunpack.c.l.b16 %v973
      %v1251 = vunpack.c.h.b16 %v973
      %v1252 = vunpack.c.l.b16 %v974
      %v1253 = vunpack.c.l.b16 %v975
      %v1254 = vunpack.c.h.b16 %v975
      %v1255 = vunpack.c.l.b16 %v976
      %v1256 = vunpack.c.l.b16 %v977
      %v1257 = vunpack.c.h.b16 %v977
      %v1258 = vunpack.c.l.b16 %v978
      %v1259 = vunpack.c.l.b16 %v979
      %v1260 = vunpack.c.h.b16 %v979
      %v1261 = vunpack.c.l.b16 %v980
      %v1262 = vunpack.c.l.b16 %v981
      %v1263 = vunpack.c.h.b16 %v981
      %v1264 = vunpack.c.l.b16 %v982
      %v1265 = vunpack.c.l.b16 %v983
      %v1266 = vunpack.c.h.b16 %v983
      %v1267 = vunpack.c.l.b16 %v984
      %v1268 = vunpack.c.l.b16 %v985
      %v1269 = vunpack.c.h.b16 %v985
      %v1270 = vunpack.c.l.b16 %v986
      %v1271 = vunpack.c.l.b16 %v987
      %v1272 = vunpack.c.h.b16 %v987
      %v1273 = vunpack.c.l.b16 %v988
      %v1274 = vunpack.c.l.b16 %v989
      %v1275 = vunpack.c.h.b16 %v989
      %v1276 = vunpack.c.l.b16 %v990
      %v1277 = vunpack.c.l.b16 %v991
      %v1278 = vunpack.c.h.b16 %v991
      %v1279 = vunpack.c.l.b16 %v992
      %v1280 = vunpack.c.l.b16 %v993
      %v1281 = vunpack.c.h.b16 %v993
      %v1282 = vunpack.c.l.b16 %v994
      %v1283 = vunpack.c.l.b16 %v995
      %v1284 = vunpack.c.h.b16 %v995
      %v1285 = vunpack.c.l.b16 %v996
      %v1286 = vunpack.c.l.b16 %v997
      %v1287 = vunpack.c.h.b16 %v997
      %v1288 = vunpack.c.l.b16 %v998
      %v1289 = vunpack.c.l.b16 %v999
      %v1290 = vunpack.c.h.b16 %v999
      %v1291 = vunpack.c.l.b16 %v1000
      %v1292 = vunpack.c.l.b16 %v1001
      %v1293 = vunpack.c.h.b16 %v1001
      %v1294 = vunpack.c.l.b16 %v1002
      %v1295 = vunpack.c.l.b16 %v1003
      %v1296 = vunpack.c.h.b16 %v1003
      %v1297 = vunpack.c.l.b16 %v1004
      %v1298 = vunpack.c.l.b16 %v1005
      %v1299 = vunpack.c.h.b16 %v1005
      %v1300 = vunpack.c.l.b16 %v1006
      %v1301 = vunpack.c.l.b16 %v1007
      %v1302 = vunpack.c.h.b16 %v1007
      %v1303 = vunpack.c.l.b16 %v1008
      %v1304 = vunpack.c.l.b16 %v1009
      %v1305 = vunpack.c.h.b16 %v1009
      %v1306 = vunpack.c.l.b16 %v1010
      %v1307 = vunpack.c.l.b16 %v1011
      %v1308 = vunpack.c.h.b16 %v1011
      %v1309 = vunpack.c.l.b16 %v1012
      %v1310 = vpack.c.b16 %v1145, %v1142
      %v1311 = vpack.c.b16 %v1146, %v1143
      %v1312 = vpack.c.b16 %v1147, %v1144
      %v1313 = vpack.c.b16 %v1151, %v1148
      %v1314 = vpack.c.b16 %v1152, %v1149
      %v1315 = vpack.c.b16 %v1153, %v1150
      %v1316 = vpack.c.b16 %v1157, %v1154
      %v1317 = vpack.c.b16 %v1158, %v1155
      %v1318 = vpack.c.b16 %v1159, %v1156
      %v1319 = vpack.c.b16 %v1163, %v1160
      %v1320 = vpack.c.b16 %v1164, %v1161
      %v1321 = vpack.c.b16 %v1165, %v1162
      %v1322 = vpack.c.b16 %v1169, %v1166
      %v1323 = vpack.c.b16 %v1170, %v1167
      %v1324 = vpack.c.b16 %v1171, %v1168
      %v1325 = vpack.c.b16 %v1175, %v1172
      %v1326 = vpack.c.b16 %v1176, %v1173
      %v1327 = vpack.c.b16 %v1177, %v1174
      %v1328 = vpack.c.b16 %v1181, %v1178
      %v1329 = vpack.c.b16 %v1182, %v1179
      %v1330 = vpack.c.b16 %v1183, %v1180
      %v1331 = vpack.c.b16 %v1187, %v1184
      %v1332 = vpack.c.b16 %v1188, %v1185
      %v1333 = vpack.c.b16 %v1189, %v1186
      %v1334 = vpack.c.b16 %v1193, %v1190
      %v1335 = vpack.c.b16 %v1194, %v1191
      %v1336 = vpack.c.b16 %v1195, %v1192
      %v1337 = vpack.c.b16 %v1199, %v1196
      %v1338 = vpack.c.b16 %v1200, %v1197
      %v1339 = vpack.c.b16 %v1201, %v1198
      %v1340 = vpack.c.b16 %v1205, %v1202
      %v1341 = vpack.c.b16 %v1206, %v1203
      %v1342 = vpack.c.b16 %v1207, %v1204
      %v1343 = vpack.c.b16 %v1211, %v1208
      %v1344 = vpack.c.b16 %v1212, %v1209
      %v1345 = vpack.c.b16 %v1213, %v1210
      %v1346 = vpack.c.b16 %v1217, %v1214
      %v1347 = vpack.c.b16 %v1218, %v1215
      %v1348 = vpack.c.b16 %v1219, %v1216
      %v1349 = vpack.c.b16 %v1223, %v1220
      %v1350 = vpack.c.b16 %v1224, %v1221
      %v1351 = vpack.c.b16 %v1225, %v1222
      %v1352 = vpack.c.b16 %v1229, %v1226
      %v1353 = vpack.c.b16 %v1230, %v1227
      %v1354 = vpack.c.b16 %v1231, %v1228
      %v1355 = vpack.c.b16 %v1235, %v1232
      %v1356 = vpack.c.b16 %v1236, %v1233
      %v1357 = vpack.c.b16 %v1237, %v1234
      %v1358 = vpack.c.b16 %v1241, %v1238
      %v1359 = vpack.c.b16 %v1242, %v1239
      %v1360 = vpack.c.b16 %v1243, %v1240
      %v1361 = vpack.c.b16 %v1247, %v1244
      %v1362 = vpack.c.b16 %v1248, %v1245
      %v1363 = vpack.c.b16 %v1249, %v1246
      %v1364 = vpack.c.b16 %v1253, %v1250
      %v1365 = vpack.c.b16 %v1254, %v1251
      %v1366 = vpack.c.b16 %v1255, %v1252
      %v1367 = vpack.c.b16 %v1259, %v1256
      %v1368 = vpack.c.b16 %v1260, %v1257
      %v1369 = vpack.c.b16 %v1261, %v1258
      %v1370 = vpack.c.b16 %v1265, %v1262
      %v1371 = vpack.c.b16 %v1266, %v1263
      %v1372 = vpack.c.b16 %v1267, %v1264
      %v1373 = vpack.c.b16 %v1271, %v1268
      %v1374 = vpack.c.b16 %v1272, %v1269
      %v1375 = vpack.c.b16 %v1273, %v1270
      %v1376 = vpack.c.b16 %v1277, %v1274
      %v1377 = vpack.c.b16 %v1278, %v1275
      %v1378 = vpack.c.b16 %v1279, %v1276
      %v1379 = vpack.c.b16 %v1283, %v1280
      %v1380 = vpack.c.b16 %v1284, %v1281
      %v1381 = vpack.c.b16 %v1285, %v1282
      %v1382 = vpack.c.b16 %v1289, %v1286
      %v1383 = vpack.c.b16 %v1290, %v1287
      %v1384 = vpack.c.b16 %v1291, %v1288
      %v1385 = vpack.c.b16 %v1295, %v1292
      %v1386 = vpack.c.b16 %v1296, %v1293
      %v1387 = vpack.c.b16 %v1297, %v1294
      %v1388 = vpack.c.b16 %v1301, %v1298
      %v1389 = vpack.c.b16 %v1302, %v1299
      %v1390 = vpack.c.b16 %v1303, %v1300
      %v1391 = vpack.c.b16 %v1307, %v1304
      %v1392 = vpack.c.b16 %v1308, %v1305
      %v1393 = vpack.c.b16 %v1309, %v1306
      %v1479 = vsel %vm467, %v832, 0
      %v1482 = vsel %vm467, %v836, 0
      %v1485 = vsel %vm467, %v840, 0
      %v1488 = vsel %vm467, %v844, 0
      %v1491 = vsel %vm467, %v848, 0
      %v1494 = vsel %vm467, %v852, 0
      %v1497 = vsel %vm467, %v856, 0
      %v1500 = vsel %vm467, %v860, 0
      %v1503 = vsel %vm467, %v864, 0
      %v1506 = vsel %vm467, %v868, 0
      %v1509 = vsel %vm467, %v872, 0
      %v1512 = vsel %vm467, %v876, 0
      %v1515 = vsel %vm467, %v880, 0
      %v1518 = vsel %vm467, %v884, 0
      %v1521 = vsel %vm467, %v888, 0
      %v1524 = vsel %vm467, %v892, 0
      %v1527 = vsel %vm467, %v896, 0
      %v1530 = vsel %vm467, %v900, 0
      %1532 = vmatprep.subr.bf16.mxu0 %v1332
      %1533 = vmatpush1.bf16.msra.mxu0 %v1331
      %1534 = vmatprep.subr.bf16.mxu0 %v1329
      %1535 = vmatpush1.bf16.msra.mxu0 %v1328
      %1536 = vmatprep.subr.bf16.mxu0 %v1326
      %1537 = vmatpush1.bf16.msra.mxu0 %v1325
      %1538 = vmatprep.subr.bf16.mxu0 %v1323
      %1539 = vmatpush1.bf16.msra.mxu0 %v1322
      %1540 = vmatprep.subr.bf16.mxu0 %v1320
      %1541 = vmatpush1.bf16.msra.mxu0 %v1319
      %1542 = vmatprep.subr.bf16.mxu0 %v1317
      %1543 = vmatpush1.bf16.msra.mxu0 %v1316
      %1544 = vmatprep.subr.bf16.mxu0 %v1314
      %1545 = vmatpush1.bf16.msra.mxu0 %v1313
      %1546 = vmatprep.subr.bf16.mxu0 %v1311
      %1547 = vmatpush1.bf16.msra.mxu0 %v1310
      %1548 = vmatprep.subr.bf16.mxu0 %v1356
      %1549 = vmatpush2.bf16.msra.mxu0 %v1355
      %1550 = vmatprep.subr.bf16.mxu0 %v1353
      %1551 = vmatpush2.bf16.msra.mxu0 %v1352
      %1552 = vmatprep.subr.bf16.mxu0 %v1350
      %1553 = vmatpush2.bf16.msra.mxu0 %v1349
      %1554 = vmatprep.subr.bf16.mxu0 %v1347
      %1555 = vmatpush2.bf16.msra.mxu0 %v1346
      %1556 = vmatprep.subr.bf16.mxu0 %v1344
      %1557 = vmatpush2.bf16.msra.mxu0 %v1343
      %1558 = vmatprep.subr.bf16.mxu0 %v1341
      %1559 = vmatpush2.bf16.msra.mxu0 %v1340
      %1560 = vmatprep.subr.bf16.mxu0 %v1338
      %1561 = vmatpush2.bf16.msra.mxu0 %v1337
      %1562 = vmatprep.subr.bf16.mxu0 %v1335
      %1563 = vmatpush2.bf16.msra.mxu0 %v1334
      %1564 = vmatprep.mubr.bf16.mxu0 %v830
      %1565 = vmatmul.mubr.bf16.gmra.mxu0 %v829
      %v1566 = vpop.f32.mrf.mxu0
      %v1567 = vadd.f32 %v1018, %v1566
      %v1568 = vpop.f32.mrf.mxu0
      %v1569 = vadd.f32 %v1022, %v1568
      %v1570 = vpop.f32.mrf.mxu0
      %v1571 = vadd.f32 %v1018, %v1570
      %v1572 = vpop.f32.mrf.mxu0
      %v1573 = vadd.f32 %v1022, %v1572
      %1574 = vmatprep.mubr.bf16.mxu0 %v834
      %1575 = vmatmul.mubr.bf16.gmra.mxu0 %v833
      %v1576 = vpop.f32.mrf.mxu0
      %v1577 = vadd.f32 %v1018, %v1576
      %v1578 = vpop.f32.mrf.mxu0
      %v1579 = vadd.f32 %v1022, %v1578
      %v1580 = vpop.f32.mrf.mxu0
      %v1581 = vadd.f32 %v1018, %v1580
      %v1582 = vpop.f32.mrf.mxu0
      %v1583 = vadd.f32 %v1022, %v1582
      %1584 = vmatprep.mubr.bf16.mxu0 %v838
      %1585 = vmatmul.mubr.bf16.gmra.mxu0 %v837
      %v1586 = vpop.f32.mrf.mxu0
      %v1587 = vadd.f32 %v1018, %v1586
      %v1588 = vpop.f32.mrf.mxu0
      %v1589 = vadd.f32 %v1022, %v1588
      %v1590 = vpop.f32.mrf.mxu0
      %v1591 = vadd.f32 %v1018, %v1590
      %v1592 = vpop.f32.mrf.mxu0
      %v1593 = vadd.f32 %v1022, %v1592
      %1594 = vmatprep.mubr.bf16.mxu0 %v842
      %1595 = vmatmul.mubr.bf16.gmra.mxu0 %v841
      %v1596 = vpop.f32.mrf.mxu0
      %v1597 = vadd.f32 %v1018, %v1596
      %v1598 = vpop.f32.mrf.mxu0
      %v1599 = vadd.f32 %v1022, %v1598
      %v1600 = vpop.f32.mrf.mxu0
      %v1601 = vadd.f32 %v1018, %v1600
      %v1602 = vpop.f32.mrf.mxu0
      %v1603 = vadd.f32 %v1022, %v1602
      %1604 = vmatprep.mubr.bf16.mxu0 %v846
      %1605 = vmatmul.mubr.bf16.gmra.mxu0 %v845
      %v1606 = vpop.f32.mrf.mxu0
      %v1607 = vadd.f32 %v1018, %v1606
      %v1608 = vpop.f32.mrf.mxu0
      %v1609 = vadd.f32 %v1022, %v1608
      %v1610 = vpop.f32.mrf.mxu0
      %v1611 = vadd.f32 %v1018, %v1610
      %v1612 = vpop.f32.mrf.mxu0
      %v1613 = vadd.f32 %v1022, %v1612
      %1614 = vmatprep.mubr.bf16.mxu0 %v850
      %1615 = vmatmul.mubr.bf16.gmra.mxu0 %v849
      %v1616 = vpop.f32.mrf.mxu0
      %v1617 = vadd.f32 %v1018, %v1616
      %v1618 = vpop.f32.mrf.mxu0
      %v1619 = vadd.f32 %v1022, %v1618
      %v1620 = vpop.f32.mrf.mxu0
      %v1621 = vadd.f32 %v1018, %v1620
      %v1622 = vpop.f32.mrf.mxu0
      %v1623 = vadd.f32 %v1022, %v1622
      %1624 = vmatprep.mubr.bf16.mxu0 %v854
      %1625 = vmatmul.mubr.bf16.gmra.mxu0 %v853
      %v1626 = vpop.f32.mrf.mxu0
      %v1627 = vadd.f32 %v1018, %v1626
      %v1628 = vpop.f32.mrf.mxu0
      %v1629 = vadd.f32 %v1022, %v1628
      %v1630 = vpop.f32.mrf.mxu0
      %v1631 = vadd.f32 %v1018, %v1630
      %v1632 = vpop.f32.mrf.mxu0
      %v1633 = vadd.f32 %v1022, %v1632
      %1634 = vmatprep.mubr.bf16.mxu0 %v858
      %1635 = vmatmul.mubr.bf16.gmra.mxu0 %v857
      %v1636 = vpop.f32.mrf.mxu0
      %v1637 = vadd.f32 %v1018, %v1636
      %v1638 = vpop.f32.mrf.mxu0
      %v1639 = vadd.f32 %v1022, %v1638
      %v1640 = vpop.f32.mrf.mxu0
      %v1641 = vadd.f32 %v1018, %v1640
      %v1642 = vpop.f32.mrf.mxu0
      %v1643 = vadd.f32 %v1022, %v1642
      %1644 = vmatprep.mubr.bf16.mxu0 %v862
      %1645 = vmatmul.mubr.bf16.gmra.mxu0 %v861
      %v1646 = vpop.f32.mrf.mxu0
      %v1647 = vadd.f32 %v1018, %v1646
      %v1648 = vpop.f32.mrf.mxu0
      %v1649 = vadd.f32 %v1022, %v1648
      %v1650 = vpop.f32.mrf.mxu0
      %v1651 = vadd.f32 %v1018, %v1650
      %v1652 = vpop.f32.mrf.mxu0
      %v1653 = vadd.f32 %v1022, %v1652
      %1654 = vmatprep.mubr.bf16.mxu0 %v866
      %1655 = vmatmul.mubr.bf16.gmra.mxu0 %v865
      %v1656 = vpop.f32.mrf.mxu0
      %v1657 = vadd.f32 %v1018, %v1656
      %v1658 = vpop.f32.mrf.mxu0
      %v1659 = vadd.f32 %v1022, %v1658
      %v1660 = vpop.f32.mrf.mxu0
      %v1661 = vadd.f32 %v1018, %v1660
      %v1662 = vpop.f32.mrf.mxu0
      %v1663 = vadd.f32 %v1022, %v1662
      %1664 = vmatprep.mubr.bf16.mxu0 %v870
      %1665 = vmatmul.mubr.bf16.gmra.mxu0 %v869
      %v1666 = vpop.f32.mrf.mxu0
      %v1667 = vadd.f32 %v1018, %v1666
      %v1668 = vpop.f32.mrf.mxu0
      %v1669 = vadd.f32 %v1022, %v1668
      %v1670 = vpop.f32.mrf.mxu0
      %v1671 = vadd.f32 %v1018, %v1670
      %v1672 = vpop.f32.mrf.mxu0
      %v1673 = vadd.f32 %v1022, %v1672
      %1674 = vmatprep.mubr.bf16.mxu0 %v874
      %1675 = vmatmul.mubr.bf16.gmra.mxu0 %v873
      %v1676 = vpop.f32.mrf.mxu0
      %v1677 = vadd.f32 %v1018, %v1676
      %v1678 = vpop.f32.mrf.mxu0
      %v1679 = vadd.f32 %v1022, %v1678
      %v1680 = vpop.f32.mrf.mxu0
      %v1681 = vadd.f32 %v1018, %v1680
      %v1682 = vpop.f32.mrf.mxu0
      %v1683 = vadd.f32 %v1022, %v1682
      %1684 = vmatprep.mubr.bf16.mxu0 %v878
      %1685 = vmatmul.mubr.bf16.gmra.mxu0 %v877
      %v1686 = vpop.f32.mrf.mxu0
      %v1687 = vadd.f32 %v1018, %v1686
      %v1688 = vpop.f32.mrf.mxu0
      %v1689 = vadd.f32 %v1022, %v1688
      %v1690 = vpop.f32.mrf.mxu0
      %v1691 = vadd.f32 %v1018, %v1690
      %v1692 = vpop.f32.mrf.mxu0
      %v1693 = vadd.f32 %v1022, %v1692
      %1694 = vmatprep.mubr.bf16.mxu0 %v882
      %1695 = vmatmul.mubr.bf16.gmra.mxu0 %v881
      %v1696 = vpop.f32.mrf.mxu0
      %v1697 = vadd.f32 %v1018, %v1696
      %v1698 = vpop.f32.mrf.mxu0
      %v1699 = vadd.f32 %v1022, %v1698
      %v1700 = vpop.f32.mrf.mxu0
      %v1701 = vadd.f32 %v1018, %v1700
      %v1702 = vpop.f32.mrf.mxu0
      %v1703 = vadd.f32 %v1022, %v1702
      %1704 = vmatprep.mubr.bf16.mxu0 %v886
      %1705 = vmatmul.mubr.bf16.gmra.mxu0 %v885
      %v1706 = vpop.f32.mrf.mxu0
      %v1707 = vadd.f32 %v1018, %v1706
      %v1708 = vpop.f32.mrf.mxu0
      %v1709 = vadd.f32 %v1022, %v1708
      %v1710 = vpop.f32.mrf.mxu0
      %v1711 = vadd.f32 %v1018, %v1710
      %v1712 = vpop.f32.mrf.mxu0
      %v1713 = vadd.f32 %v1022, %v1712
      %1714 = vmatprep.mubr.bf16.mxu0 %v890
      %1715 = vmatmul.mubr.bf16.gmra.mxu0 %v889
      %v1716 = vpop.f32.mrf.mxu0
      %v1717 = vadd.f32 %v1018, %v1716
      %v1718 = vpop.f32.mrf.mxu0
      %v1719 = vadd.f32 %v1022, %v1718
      %v1720 = vpop.f32.mrf.mxu0
      %v1721 = vadd.f32 %v1018, %v1720
      %v1722 = vpop.f32.mrf.mxu0
      %v1723 = vadd.f32 %v1022, %v1722
      %1724 = vmatprep.mubr.bf16.mxu0 %v894
      %1725 = vmatmul.mubr.bf16.gmra.mxu0 %v893
      %v1726 = vpop.f32.mrf.mxu0
      %v1727 = vadd.f32 %v1018, %v1726
      %v1728 = vpop.f32.mrf.mxu0
      %v1729 = vadd.f32 %v1022, %v1728
      %v1730 = vpop.f32.mrf.mxu0
      %v1731 = vadd.f32 %v1018, %v1730
      %v1732 = vpop.f32.mrf.mxu0
      %v1733 = vadd.f32 %v1022, %v1732
      %1734 = vmatprep.mubr.bf16.mxu0 %v898
      %1735 = vmatmul.mubr.bf16.gmra.mxu0 %v897
      %v1736 = vpop.f32.mrf.mxu0
      %v1737 = vadd.f32 %v1018, %v1736
      %v1738 = vpop.f32.mrf.mxu0
      %v1739 = vadd.f32 %v1022, %v1738
      %v1740 = vpop.f32.mrf.mxu0
      %v1741 = vadd.f32 %v1018, %v1740
      %v1742 = vpop.f32.mrf.mxu0
      %v1743 = vadd.f32 %v1022, %v1742
      %1744 = vdwg.mxu0
      %1745 = vmatprep.subr.bf16.mxu0 %v1380
      %1746 = vmatpush1.bf16.msra.mxu0 %v1379
      %1747 = vmatprep.subr.bf16.mxu0 %v1377
      %1748 = vmatpush1.bf16.msra.mxu0 %v1376
      %1749 = vmatprep.subr.bf16.mxu0 %v1374
      %1750 = vmatpush1.bf16.msra.mxu0 %v1373
      %1751 = vmatprep.subr.bf16.mxu0 %v1371
      %1752 = vmatpush1.bf16.msra.mxu0 %v1370
      %1753 = vmatprep.subr.bf16.mxu0 %v1368
      %1754 = vmatpush1.bf16.msra.mxu0 %v1367
      %1755 = vmatprep.subr.bf16.mxu0 %v1365
      %1756 = vmatpush1.bf16.msra.mxu0 %v1364
      %1757 = vmatprep.subr.bf16.mxu0 %v1362
      %1758 = vmatpush1.bf16.msra.mxu0 %v1361
      %1759 = vmatprep.subr.bf16.mxu0 %v1359
      %1760 = vmatpush1.bf16.msra.mxu0 %v1358
      %1761 = vmatprep.subr.bf16.mxu0 0
      %1762 = vmatpush2.bf16.msra.mxu0 0
      %1763 = vmatprep.subr.bf16.mxu0 0
      %1764 = vmatpush2.bf16.msra.mxu0 0
      %1765 = vmatprep.subr.bf16.mxu0 0
      %1766 = vmatpush2.bf16.msra.mxu0 0
      %1767 = vmatprep.subr.bf16.mxu0 0
      %1768 = vmatpush2.bf16.msra.mxu0 0
      %1769 = vmatprep.subr.bf16.mxu0 %v1392
      %1770 = vmatpush2.bf16.msra.mxu0 %v1391
      %1771 = vmatprep.subr.bf16.mxu0 %v1389
      %1772 = vmatpush2.bf16.msra.mxu0 %v1388
      %1773 = vmatprep.subr.bf16.mxu0 %v1386
      %1774 = vmatpush2.bf16.msra.mxu0 %v1385
      %1775 = vmatprep.subr.bf16.mxu0 %v1383
      %1776 = vmatpush2.bf16.msra.mxu0 %v1382
      %1777 = vmatprep.mubr.bf16.mxu0 %v1479
      %1778 = vmatmul.mubr.bf16.gmra.mxu0 %v831
      %v1779 = vpop.f32.mrf.mxu0
      %v1780 = vadd.f32 %v1567, %v1779
      %v1781 = vpop.f32.mrf.mxu0
      %v1782 = vadd.f32 %v1569, %v1781
      %v1783 = vpop.f32.mrf.mxu0
      %v1784 = vadd.f32 %v1571, %v1783
      %v1785 = vpop.f32.mrf.mxu0
      %v1786 = vadd.f32 %v1573, %v1785
      %1787 = vmatprep.mubr.bf16.mxu0 %v1482
      %1788 = vmatmul.mubr.bf16.gmra.mxu0 %v835
      %v1789 = vpop.f32.mrf.mxu0
      %v1790 = vadd.f32 %v1577, %v1789
      %v1791 = vpop.f32.mrf.mxu0
      %v1792 = vadd.f32 %v1579, %v1791
      %v1793 = vpop.f32.mrf.mxu0
      %v1794 = vadd.f32 %v1581, %v1793
      %v1795 = vpop.f32.mrf.mxu0
      %v1796 = vadd.f32 %v1583, %v1795
      %1797 = vmatprep.mubr.bf16.mxu0 %v1485
      %1798 = vmatmul.mubr.bf16.gmra.mxu0 %v839
      %v1799 = vpop.f32.mrf.mxu0
      %v1800 = vadd.f32 %v1587, %v1799
      %v1801 = vpop.f32.mrf.mxu0
      %v1802 = vadd.f32 %v1589, %v1801
      %v1803 = vpop.f32.mrf.mxu0
      %v1804 = vadd.f32 %v1591, %v1803
      %v1805 = vpop.f32.mrf.mxu0
      %v1806 = vadd.f32 %v1593, %v1805
      %1807 = vmatprep.mubr.bf16.mxu0 %v1488
      %1808 = vmatmul.mubr.bf16.gmra.mxu0 %v843
      %v1809 = vpop.f32.mrf.mxu0
      %v1810 = vadd.f32 %v1597, %v1809
      %v1811 = vpop.f32.mrf.mxu0
      %v1812 = vadd.f32 %v1599, %v1811
      %v1813 = vpop.f32.mrf.mxu0
      %v1814 = vadd.f32 %v1601, %v1813
      %v1815 = vpop.f32.mrf.mxu0
      %v1816 = vadd.f32 %v1603, %v1815
      %1817 = vmatprep.mubr.bf16.mxu0 %v1491
      %1818 = vmatmul.mubr.bf16.gmra.mxu0 %v847
      %v1819 = vpop.f32.mrf.mxu0
      %v1820 = vadd.f32 %v1607, %v1819
      %v1821 = vpop.f32.mrf.mxu0
      %v1822 = vadd.f32 %v1609, %v1821
      %v1823 = vpop.f32.mrf.mxu0
      %v1824 = vadd.f32 %v1611, %v1823
      %v1825 = vpop.f32.mrf.mxu0
      %v1826 = vadd.f32 %v1613, %v1825
      %1827 = vmatprep.mubr.bf16.mxu0 %v1494
      %1828 = vmatmul.mubr.bf16.gmra.mxu0 %v851
      %v1829 = vpop.f32.mrf.mxu0
      %v1830 = vadd.f32 %v1617, %v1829
      %v1831 = vpop.f32.mrf.mxu0
      %v1832 = vadd.f32 %v1619, %v1831
      %v1833 = vpop.f32.mrf.mxu0
      %v1834 = vadd.f32 %v1621, %v1833
      %v1835 = vpop.f32.mrf.mxu0
      %v1836 = vadd.f32 %v1623, %v1835
      %1837 = vmatprep.mubr.bf16.mxu0 %v1497
      %1838 = vmatmul.mubr.bf16.gmra.mxu0 %v855
      %v1839 = vpop.f32.mrf.mxu0
      %v1840 = vadd.f32 %v1627, %v1839
      %v1841 = vpop.f32.mrf.mxu0
      %v1842 = vadd.f32 %v1629, %v1841
      %v1843 = vpop.f32.mrf.mxu0
      %v1844 = vadd.f32 %v1631, %v1843
      %v1845 = vpop.f32.mrf.mxu0
      %v1846 = vadd.f32 %v1633, %v1845
      %1847 = vmatprep.mubr.bf16.mxu0 %v1500
      %1848 = vmatmul.mubr.bf16.gmra.mxu0 %v859
      %v1849 = vpop.f32.mrf.mxu0
      %v1850 = vadd.f32 %v1637, %v1849
      %v1851 = vpop.f32.mrf.mxu0
      %v1852 = vadd.f32 %v1639, %v1851
      %v1853 = vpop.f32.mrf.mxu0
      %v1854 = vadd.f32 %v1641, %v1853
      %v1855 = vpop.f32.mrf.mxu0
      %v1856 = vadd.f32 %v1643, %v1855
      %1857 = vmatprep.mubr.bf16.mxu0 %v1503
      %1858 = vmatmul.mubr.bf16.gmra.mxu0 %v863
      %v1859 = vpop.f32.mrf.mxu0
      %v1860 = vadd.f32 %v1647, %v1859
      %v1861 = vpop.f32.mrf.mxu0
      %v1862 = vadd.f32 %v1649, %v1861
      %v1863 = vpop.f32.mrf.mxu0
      %v1864 = vadd.f32 %v1651, %v1863
      %v1865 = vpop.f32.mrf.mxu0
      %v1866 = vadd.f32 %v1653, %v1865
      %1867 = vmatprep.mubr.bf16.mxu0 %v1506
      %1868 = vmatmul.mubr.bf16.gmra.mxu0 %v867
      %v1869 = vpop.f32.mrf.mxu0
      %v1870 = vadd.f32 %v1657, %v1869
      %v1871 = vpop.f32.mrf.mxu0
      %v1872 = vadd.f32 %v1659, %v1871
      %v1873 = vpop.f32.mrf.mxu0
      %v1874 = vadd.f32 %v1661, %v1873
      %v1875 = vpop.f32.mrf.mxu0
      %v1876 = vadd.f32 %v1663, %v1875
      %1877 = vmatprep.mubr.bf16.mxu0 %v1509
      %1878 = vmatmul.mubr.bf16.gmra.mxu0 %v871
      %v1879 = vpop.f32.mrf.mxu0
      %v1880 = vadd.f32 %v1667, %v1879
      %v1881 = vpop.f32.mrf.mxu0
      %v1882 = vadd.f32 %v1669, %v1881
      %v1883 = vpop.f32.mrf.mxu0
      %v1884 = vadd.f32 %v1671, %v1883
      %v1885 = vpop.f32.mrf.mxu0
      %v1886 = vadd.f32 %v1673, %v1885
      %1887 = vmatprep.mubr.bf16.mxu0 %v1512
      %1888 = vmatmul.mubr.bf16.gmra.mxu0 %v875
      %v1889 = vpop.f32.mrf.mxu0
      %v1890 = vadd.f32 %v1677, %v1889
      %v1891 = vpop.f32.mrf.mxu0
      %v1892 = vadd.f32 %v1679, %v1891
      %v1893 = vpop.f32.mrf.mxu0
      %v1894 = vadd.f32 %v1681, %v1893
      %v1895 = vpop.f32.mrf.mxu0
      %v1896 = vadd.f32 %v1683, %v1895
      %1897 = vmatprep.mubr.bf16.mxu0 %v1515
      %1898 = vmatmul.mubr.bf16.gmra.mxu0 %v879
      %v1899 = vpop.f32.mrf.mxu0
      %v1900 = vadd.f32 %v1687, %v1899
      %v1901 = vpop.f32.mrf.mxu0
      %v1902 = vadd.f32 %v1689, %v1901
      %v1903 = vpop.f32.mrf.mxu0
      %v1904 = vadd.f32 %v1691, %v1903
      %v1905 = vpop.f32.mrf.mxu0
      %v1906 = vadd.f32 %v1693, %v1905
      %1907 = vmatprep.mubr.bf16.mxu0 %v1518
      %1908 = vmatmul.mubr.bf16.gmra.mxu0 %v883
      %v1909 = vpop.f32.mrf.mxu0
      %v1910 = vadd.f32 %v1697, %v1909
      %v1911 = vpop.f32.mrf.mxu0
      %v1912 = vadd.f32 %v1699, %v1911
      %v1913 = vpop.f32.mrf.mxu0
      %v1914 = vadd.f32 %v1701, %v1913
      %v1915 = vpop.f32.mrf.mxu0
      %v1916 = vadd.f32 %v1703, %v1915
      %1917 = vmatprep.mubr.bf16.mxu0 %v1521
      %1918 = vmatmul.mubr.bf16.gmra.mxu0 %v887
      %v1919 = vpop.f32.mrf.mxu0
      %v1920 = vadd.f32 %v1707, %v1919
      %v1921 = vpop.f32.mrf.mxu0
      %v1922 = vadd.f32 %v1709, %v1921
      %v1923 = vpop.f32.mrf.mxu0
      %v1924 = vadd.f32 %v1711, %v1923
      %v1925 = vpop.f32.mrf.mxu0
      %v1926 = vadd.f32 %v1713, %v1925
      %1927 = vmatprep.mubr.bf16.mxu0 %v1524
      %1928 = vmatmul.mubr.bf16.gmra.mxu0 %v891
      %v1929 = vpop.f32.mrf.mxu0
      %v1930 = vadd.f32 %v1717, %v1929
      %v1931 = vpop.f32.mrf.mxu0
      %v1932 = vadd.f32 %v1719, %v1931
      %v1933 = vpop.f32.mrf.mxu0
      %v1934 = vadd.f32 %v1721, %v1933
      %v1935 = vpop.f32.mrf.mxu0
      %v1936 = vadd.f32 %v1723, %v1935
      %1937 = vmatprep.mubr.bf16.mxu0 %v1527
      %1938 = vmatmul.mubr.bf16.gmra.mxu0 %v895
      %v1939 = vpop.f32.mrf.mxu0
      %v1940 = vadd.f32 %v1727, %v1939
      %v1941 = vpop.f32.mrf.mxu0
      %v1942 = vadd.f32 %v1729, %v1941
      %v1943 = vpop.f32.mrf.mxu0
      %v1944 = vadd.f32 %v1731, %v1943
      %v1945 = vpop.f32.mrf.mxu0
      %v1946 = vadd.f32 %v1733, %v1945
      %1947 = vmatprep.mubr.bf16.mxu0 %v1530
      %1948 = vmatmul.mubr.bf16.gmra.mxu0 %v899
      %v1949 = vpop.f32.mrf.mxu0
      %v1950 = vadd.f32 %v1737, %v1949
      %v1951 = vpop.f32.mrf.mxu0
      %v1952 = vadd.f32 %v1739, %v1951
      %v1953 = vpop.f32.mrf.mxu0
      %v1954 = vadd.f32 %v1741, %v1953
      %v1955 = vpop.f32.mrf.mxu0
      %v1956 = vadd.f32 %v1743, %v1955
      %1957 = vdwg.mxu0
      %1958 = vmatprep.subr.bf16.mxu0 0
      %1959 = vmatpush1.bf16.msra.mxu0 %v1333
      %1960 = vmatprep.subr.bf16.mxu0 0
      %1961 = vmatpush1.bf16.msra.mxu0 %v1330
      %1962 = vmatprep.subr.bf16.mxu0 0
      %1963 = vmatpush1.bf16.msra.mxu0 %v1327
      %1964 = vmatprep.subr.bf16.mxu0 0
      %1965 = vmatpush1.bf16.msra.mxu0 %v1324
      %1966 = vmatprep.subr.bf16.mxu0 0
      %1967 = vmatpush1.bf16.msra.mxu0 %v1321
      %1968 = vmatprep.subr.bf16.mxu0 0
      %1969 = vmatpush1.bf16.msra.mxu0 %v1318
      %1970 = vmatprep.subr.bf16.mxu0 0
      %1971 = vmatpush1.bf16.msra.mxu0 %v1315
      %1972 = vmatprep.subr.bf16.mxu0 0
      %1973 = vmatpush1.bf16.msra.mxu0 %v1312
      %1974 = vmatprep.subr.bf16.mxu0 0
      %1975 = vmatpush2.bf16.msra.mxu0 %v1357
      %1976 = vmatprep.subr.bf16.mxu0 0
      %1977 = vmatpush2.bf16.msra.mxu0 %v1354
      %1978 = vmatprep.subr.bf16.mxu0 0
      %1979 = vmatpush2.bf16.msra.mxu0 %v1351
      %1980 = vmatprep.subr.bf16.mxu0 0
      %1981 = vmatpush2.bf16.msra.mxu0 %v1348
      %1982 = vmatprep.subr.bf16.mxu0 0
      %1983 = vmatpush2.bf16.msra.mxu0 %v1345
      %1984 = vmatprep.subr.bf16.mxu0 0
      %1985 = vmatpush2.bf16.msra.mxu0 %v1342
      %1986 = vmatprep.subr.bf16.mxu0 0
      %1987 = vmatpush2.bf16.msra.mxu0 %v1339
      %1988 = vmatprep.subr.bf16.mxu0 0
      %1989 = vmatpush2.bf16.msra.mxu0 %v1336
      %1990 = vmatprep.mubr.bf16.mxu0 %v830
      %1991 = vmatmul.mubr.bf16.gmra.mxu0 %v829
      %v1992 = vpop.f32.mrf.mxu0
      %v1993 = vadd.f32 %v1026, %v1992
      %v1994 = vpop.f32.mrf.mxu0
      %v1995 = vpop.f32.mrf.mxu0
      %v1996 = vadd.f32 %v1026, %v1995
      %v1997 = vpop.f32.mrf.mxu0
      %1998 = vmatprep.mubr.bf16.mxu0 %v834
      %1999 = vmatmul.mubr.bf16.gmra.mxu0 %v833
      %v2000 = vpop.f32.mrf.mxu0
      %v2001 = vadd.f32 %v1026, %v2000
      %v2002 = vpop.f32.mrf.mxu0
      %v2003 = vpop.f32.mrf.mxu0
      %v2004 = vadd.f32 %v1026, %v2003
      %v2005 = vpop.f32.mrf.mxu0
      %2006 = vmatprep.mubr.bf16.mxu0 %v838
      %2007 = vmatmul.mubr.bf16.gmra.mxu0 %v837
      %v2008 = vpop.f32.mrf.mxu0
      %v2009 = vadd.f32 %v1026, %v2008
      %v2010 = vpop.f32.mrf.mxu0
      %v2011 = vpop.f32.mrf.mxu0
      %v2012 = vadd.f32 %v1026, %v2011
      %v2013 = vpop.f32.mrf.mxu0
      %2014 = vmatprep.mubr.bf16.mxu0 %v842
      %2015 = vmatmul.mubr.bf16.gmra.mxu0 %v841
      %v2016 = vpop.f32.mrf.mxu0
      %v2017 = vadd.f32 %v1026, %v2016
      %v2018 = vpop.f32.mrf.mxu0
      %v2019 = vpop.f32.mrf.mxu0
      %v2020 = vadd.f32 %v1026, %v2019
      %v2021 = vpop.f32.mrf.mxu0
      %2022 = vmatprep.mubr.bf16.mxu0 %v846
      %2023 = vmatmul.mubr.bf16.gmra.mxu0 %v845
      %v2024 = vpop.f32.mrf.mxu0
      %v2025 = vadd.f32 %v1026, %v2024
      %v2026 = vpop.f32.mrf.mxu0
      %v2027 = vpop.f32.mrf.mxu0
      %v2028 = vadd.f32 %v1026, %v2027
      %v2029 = vpop.f32.mrf.mxu0
      %2030 = vmatprep.mubr.bf16.mxu0 %v850
      %2031 = vmatmul.mubr.bf16.gmra.mxu0 %v849
      %v2032 = vpop.f32.mrf.mxu0
      %v2033 = vadd.f32 %v1026, %v2032
      %v2034 = vpop.f32.mrf.mxu0
      %v2035 = vpop.f32.mrf.mxu0
      %v2036 = vadd.f32 %v1026, %v2035
      %v2037 = vpop.f32.mrf.mxu0
      %2038 = vmatprep.mubr.bf16.mxu0 %v854
      %2039 = vmatmul.mubr.bf16.gmra.mxu0 %v853
      %v2040 = vpop.f32.mrf.mxu0
      %v2041 = vadd.f32 %v1026, %v2040
      %v2042 = vpop.f32.mrf.mxu0
      %v2043 = vpop.f32.mrf.mxu0
      %v2044 = vadd.f32 %v1026, %v2043
      %v2045 = vpop.f32.mrf.mxu0
      %2046 = vmatprep.mubr.bf16.mxu0 %v858
      %2047 = vmatmul.mubr.bf16.gmra.mxu0 %v857
      %v2048 = vpop.f32.mrf.mxu0
      %v2049 = vadd.f32 %v1026, %v2048
      %v2050 = vpop.f32.mrf.mxu0
      %v2051 = vpop.f32.mrf.mxu0
      %v2052 = vadd.f32 %v1026, %v2051
      %v2053 = vpop.f32.mrf.mxu0
      %2054 = vmatprep.mubr.bf16.mxu0 %v862
      %2055 = vmatmul.mubr.bf16.gmra.mxu0 %v861
      %v2056 = vpop.f32.mrf.mxu0
      %v2057 = vadd.f32 %v1026, %v2056
      %v2058 = vpop.f32.mrf.mxu0
      %v2059 = vpop.f32.mrf.mxu0
      %v2060 = vadd.f32 %v1026, %v2059
      %v2061 = vpop.f32.mrf.mxu0
      %2062 = vmatprep.mubr.bf16.mxu0 %v866
      %2063 = vmatmul.mubr.bf16.gmra.mxu0 %v865
      %v2064 = vpop.f32.mrf.mxu0
      %v2065 = vadd.f32 %v1026, %v2064
      %v2066 = vpop.f32.mrf.mxu0
      %v2067 = vpop.f32.mrf.mxu0
      %v2068 = vadd.f32 %v1026, %v2067
      %v2069 = vpop.f32.mrf.mxu0
      %2070 = vmatprep.mubr.bf16.mxu0 %v870
      %2071 = vmatmul.mubr.bf16.gmra.mxu0 %v869
      %v2072 = vpop.f32.mrf.mxu0
      %v2073 = vadd.f32 %v1026, %v2072
      %v2074 = vpop.f32.mrf.mxu0
      %v2075 = vpop.f32.mrf.mxu0
      %v2076 = vadd.f32 %v1026, %v2075
      %v2077 = vpop.f32.mrf.mxu0
      %2078 = vmatprep.mubr.bf16.mxu0 %v874
      %2079 = vmatmul.mubr.bf16.gmra.mxu0 %v873
      %v2080 = vpop.f32.mrf.mxu0
      %v2081 = vadd.f32 %v1026, %v2080
      %v2082 = vpop.f32.mrf.mxu0
      %v2083 = vpop.f32.mrf.mxu0
      %v2084 = vadd.f32 %v1026, %v2083
      %v2085 = vpop.f32.mrf.mxu0
      %2086 = vmatprep.mubr.bf16.mxu0 %v878
      %2087 = vmatmul.mubr.bf16.gmra.mxu0 %v877
      %v2088 = vpop.f32.mrf.mxu0
      %v2089 = vadd.f32 %v1026, %v2088
      %v2090 = vpop.f32.mrf.mxu0
      %v2091 = vpop.f32.mrf.mxu0
      %v2092 = vadd.f32 %v1026, %v2091
      %v2093 = vpop.f32.mrf.mxu0
      %2094 = vmatprep.mubr.bf16.mxu0 %v882
      %2095 = vmatmul.mubr.bf16.gmra.mxu0 %v881
      %v2096 = vpop.f32.mrf.mxu0
      %v2097 = vadd.f32 %v1026, %v2096
      %v2098 = vpop.f32.mrf.mxu0
      %v2099 = vpop.f32.mrf.mxu0
      %v2100 = vadd.f32 %v1026, %v2099
      %v2101 = vpop.f32.mrf.mxu0
      %2102 = vmatprep.mubr.bf16.mxu0 %v886
      %2103 = vmatmul.mubr.bf16.gmra.mxu0 %v885
      %v2104 = vpop.f32.mrf.mxu0
      %v2105 = vadd.f32 %v1026, %v2104
      %v2106 = vpop.f32.mrf.mxu0
      %v2107 = vpop.f32.mrf.mxu0
      %v2108 = vadd.f32 %v1026, %v2107
      %v2109 = vpop.f32.mrf.mxu0
      %2110 = vmatprep.mubr.bf16.mxu0 %v890
      %2111 = vmatmul.mubr.bf16.gmra.mxu0 %v889
      %v2112 = vpop.f32.mrf.mxu0
      %v2113 = vadd.f32 %v1026, %v2112
      %v2114 = vpop.f32.mrf.mxu0
      %v2115 = vpop.f32.mrf.mxu0
      %v2116 = vadd.f32 %v1026, %v2115
      %v2117 = vpop.f32.mrf.mxu0
      %2118 = vmatprep.mubr.bf16.mxu0 %v894
      %2119 = vmatmul.mubr.bf16.gmra.mxu0 %v893
      %v2120 = vpop.f32.mrf.mxu0
      %v2121 = vadd.f32 %v1026, %v2120
      %v2122 = vpop.f32.mrf.mxu0
      %v2123 = vpop.f32.mrf.mxu0
      %v2124 = vadd.f32 %v1026, %v2123
      %v2125 = vpop.f32.mrf.mxu0
      %2126 = vmatprep.mubr.bf16.mxu0 %v898
      %2127 = vmatmul.mubr.bf16.gmra.mxu0 %v897
      %v2128 = vpop.f32.mrf.mxu0
      %v2129 = vadd.f32 %v1026, %v2128
      %v2130 = vpop.f32.mrf.mxu0
      %v2131 = vpop.f32.mrf.mxu0
      %v2132 = vadd.f32 %v1026, %v2131
      %v2133 = vpop.f32.mrf.mxu0
      %2134 = vdwg.mxu0
      %2135 = vmatprep.subr.bf16.mxu0 0
      %2136 = vmatpush1.bf16.msra.mxu0 %v1381
      %2137 = vmatprep.subr.bf16.mxu0 0
      %2138 = vmatpush1.bf16.msra.mxu0 %v1378
      %2139 = vmatprep.subr.bf16.mxu0 0
      %2140 = vmatpush1.bf16.msra.mxu0 %v1375
      %2141 = vmatprep.subr.bf16.mxu0 0
      %2142 = vmatpush1.bf16.msra.mxu0 %v1372
      %2143 = vmatprep.subr.bf16.mxu0 0
      %2144 = vmatpush1.bf16.msra.mxu0 %v1369
      %2145 = vmatprep.subr.bf16.mxu0 0
      %2146 = vmatpush1.bf16.msra.mxu0 %v1366
      %2147 = vmatprep.subr.bf16.mxu0 0
      %2148 = vmatpush1.bf16.msra.mxu0 %v1363
      %2149 = vmatprep.subr.bf16.mxu0 0
      %2150 = vmatpush1.bf16.msra.mxu0 %v1360
      %2151 = vmatprep.subr.bf16.mxu0 0
      %2152 = vmatpush2.bf16.msra.mxu0 0
      %2153 = vmatprep.subr.bf16.mxu0 0
      %2154 = vmatpush2.bf16.msra.mxu0 0
      %2155 = vmatprep.subr.bf16.mxu0 0
      %2156 = vmatpush2.bf16.msra.mxu0 0
      %2157 = vmatprep.subr.bf16.mxu0 0
      %2158 = vmatpush2.bf16.msra.mxu0 0
      %2159 = vmatprep.subr.bf16.mxu0 0
      %2160 = vmatpush2.bf16.msra.mxu0 %v1393
      %2161 = vmatprep.subr.bf16.mxu0 0
      %2162 = vmatpush2.bf16.msra.mxu0 %v1390
      %2163 = vmatprep.subr.bf16.mxu0 0
      %2164 = vmatpush2.bf16.msra.mxu0 %v1387
      %2165 = vmatprep.subr.bf16.mxu0 0
      %2166 = vmatpush2.bf16.msra.mxu0 %v1384
      %2167 = vmatprep.mubr.bf16.mxu0 %v1479
      %2168 = vmatmul.mubr.bf16.gmra.mxu0 %v831
      %v2169 = vpop.f32.mrf.mxu0
      %v2170 = vadd.f32 %v1993, %v2169
      %v2171 = vpop.f32.mrf.mxu0
      %v2172 = vpop.f32.mrf.mxu0
      %v2173 = vadd.f32 %v1996, %v2172
      %v2174 = vpop.f32.mrf.mxu0
      %2175 = vmatprep.mubr.bf16.mxu0 %v1482
      %2176 = vmatmul.mubr.bf16.gmra.mxu0 %v835
      %v2177 = vpop.f32.mrf.mxu0
      %v2178 = vadd.f32 %v2001, %v2177
      %v2179 = vpop.f32.mrf.mxu0
      %v2180 = vpop.f32.mrf.mxu0
      %v2181 = vadd.f32 %v2004, %v2180
      %v2182 = vpop.f32.mrf.mxu0
      %2183 = vmatprep.mubr.bf16.mxu0 %v1485
      %2184 = vmatmul.mubr.bf16.gmra.mxu0 %v839
      %v2185 = vpop.f32.mrf.mxu0
      %v2186 = vadd.f32 %v2009, %v2185
      %v2187 = vpop.f32.mrf.mxu0
      %v2188 = vpop.f32.mrf.mxu0
      %v2189 = vadd.f32 %v2012, %v2188
      %v2190 = vpop.f32.mrf.mxu0
      %2191 = vmatprep.mubr.bf16.mxu0 %v1488
      %2192 = vmatmul.mubr.bf16.gmra.mxu0 %v843
      %v2193 = vpop.f32.mrf.mxu0
      %v2194 = vadd.f32 %v2017, %v2193
      %v2195 = vpop.f32.mrf.mxu0
      %v2196 = vpop.f32.mrf.mxu0
      %v2197 = vadd.f32 %v2020, %v2196
      %v2198 = vpop.f32.mrf.mxu0
      %2199 = vmatprep.mubr.bf16.mxu0 %v1491
      %2200 = vmatmul.mubr.bf16.gmra.mxu0 %v847
      %v2201 = vpop.f32.mrf.mxu0
      %v2202 = vadd.f32 %v2025, %v2201
      %v2203 = vpop.f32.mrf.mxu0
      %v2204 = vpop.f32.mrf.mxu0
      %v2205 = vadd.f32 %v2028, %v2204
      %v2206 = vpop.f32.mrf.mxu0
      %2207 = vmatprep.mubr.bf16.mxu0 %v1494
      %2208 = vmatmul.mubr.bf16.gmra.mxu0 %v851
      %v2209 = vpop.f32.mrf.mxu0
      %v2210 = vadd.f32 %v2033, %v2209
      %v2211 = vpop.f32.mrf.mxu0
      %v2212 = vpop.f32.mrf.mxu0
      %v2213 = vadd.f32 %v2036, %v2212
      %v2214 = vpop.f32.mrf.mxu0
      %2215 = vmatprep.mubr.bf16.mxu0 %v1497
      %2216 = vmatmul.mubr.bf16.gmra.mxu0 %v855
      %v2217 = vpop.f32.mrf.mxu0
      %v2218 = vadd.f32 %v2041, %v2217
      %v2219 = vpop.f32.mrf.mxu0
      %v2220 = vpop.f32.mrf.mxu0
      %v2221 = vadd.f32 %v2044, %v2220
      %v2222 = vpop.f32.mrf.mxu0
      %2223 = vmatprep.mubr.bf16.mxu0 %v1500
      %2224 = vmatmul.mubr.bf16.gmra.mxu0 %v859
      %v2225 = vpop.f32.mrf.mxu0
      %v2226 = vadd.f32 %v2049, %v2225
      %v2227 = vpop.f32.mrf.mxu0
      %v2228 = vpop.f32.mrf.mxu0
      %v2229 = vadd.f32 %v2052, %v2228
      %v2230 = vpop.f32.mrf.mxu0
      %2231 = vmatprep.mubr.bf16.mxu0 %v1503
      %2232 = vmatmul.mubr.bf16.gmra.mxu0 %v863
      %v2233 = vpop.f32.mrf.mxu0
      %v2234 = vadd.f32 %v2057, %v2233
      %v2235 = vpop.f32.mrf.mxu0
      %v2236 = vpop.f32.mrf.mxu0
      %v2237 = vadd.f32 %v2060, %v2236
      %v2238 = vpop.f32.mrf.mxu0
      %2239 = vmatprep.mubr.bf16.mxu0 %v1506
      %2240 = vmatmul.mubr.bf16.gmra.mxu0 %v867
      %v2241 = vpop.f32.mrf.mxu0
      %v2242 = vadd.f32 %v2065, %v2241
      %v2243 = vpop.f32.mrf.mxu0
      %v2244 = vpop.f32.mrf.mxu0
      %v2245 = vadd.f32 %v2068, %v2244
      %v2246 = vpop.f32.mrf.mxu0
      %2247 = vmatprep.mubr.bf16.mxu0 %v1509
      %2248 = vmatmul.mubr.bf16.gmra.mxu0 %v871
      %v2249 = vpop.f32.mrf.mxu0
      %v2250 = vadd.f32 %v2073, %v2249
      %v2251 = vpop.f32.mrf.mxu0
      %v2252 = vpop.f32.mrf.mxu0
      %v2253 = vadd.f32 %v2076, %v2252
      %v2254 = vpop.f32.mrf.mxu0
      %2255 = vmatprep.mubr.bf16.mxu0 %v1512
      %2256 = vmatmul.mubr.bf16.gmra.mxu0 %v875
      %v2257 = vpop.f32.mrf.mxu0
      %v2258 = vadd.f32 %v2081, %v2257
      %v2259 = vpop.f32.mrf.mxu0
      %v2260 = vpop.f32.mrf.mxu0
      %v2261 = vadd.f32 %v2084, %v2260
      %v2262 = vpop.f32.mrf.mxu0
      %2263 = vmatprep.mubr.bf16.mxu0 %v1515
      %2264 = vmatmul.mubr.bf16.gmra.mxu0 %v879
      %v2265 = vpop.f32.mrf.mxu0
      %v2266 = vadd.f32 %v2089, %v2265
      %v2267 = vpop.f32.mrf.mxu0
      %v2268 = vpop.f32.mrf.mxu0
      %v2269 = vadd.f32 %v2092, %v2268
      %v2270 = vpop.f32.mrf.mxu0
      %2271 = vmatprep.mubr.bf16.mxu0 %v1518
      %2272 = vmatmul.mubr.bf16.gmra.mxu0 %v883
      %v2273 = vpop.f32.mrf.mxu0
      %v2274 = vadd.f32 %v2097, %v2273
      %v2275 = vpop.f32.mrf.mxu0
      %v2276 = vpop.f32.mrf.mxu0
      %v2277 = vadd.f32 %v2100, %v2276
      %v2278 = vpop.f32.mrf.mxu0
      %2279 = vmatprep.mubr.bf16.mxu0 %v1521
      %2280 = vmatmul.mubr.bf16.gmra.mxu0 %v887
      %v2281 = vpop.f32.mrf.mxu0
      %v2282 = vadd.f32 %v2105, %v2281
      %v2283 = vpop.f32.mrf.mxu0
      %v2284 = vpop.f32.mrf.mxu0
      %v2285 = vadd.f32 %v2108, %v2284
      %v2286 = vpop.f32.mrf.mxu0
      %2287 = vmatprep.mubr.bf16.mxu0 %v1524
      %2288 = vmatmul.mubr.bf16.gmra.mxu0 %v891
      %v2289 = vpop.f32.mrf.mxu0
      %v2290 = vadd.f32 %v2113, %v2289
      %v2291 = vpop.f32.mrf.mxu0
      %v2292 = vpop.f32.mrf.mxu0
      %v2293 = vadd.f32 %v2116, %v2292
      %v2294 = vpop.f32.mrf.mxu0
      %2295 = vmatprep.mubr.bf16.mxu0 %v1527
      %2296 = vmatmul.mubr.bf16.gmra.mxu0 %v895
      %v2297 = vpop.f32.mrf.mxu0
      %v2298 = vadd.f32 %v2121, %v2297
      %v2299 = vpop.f32.mrf.mxu0
      %v2300 = vpop.f32.mrf.mxu0
      %v2301 = vadd.f32 %v2124, %v2300
      %v2302 = vpop.f32.mrf.mxu0
      %2303 = vmatprep.mubr.bf16.mxu0 %v1530
      %2304 = vmatmul.mubr.bf16.gmra.mxu0 %v899
      %v2305 = vpop.f32.mrf.mxu0
      %v2306 = vadd.f32 %v2129, %v2305
      %v2307 = vpop.f32.mrf.mxu0
      %v2308 = vpop.f32.mrf.mxu0
      %v2309 = vadd.f32 %v2132, %v2308
      %v2310 = vpop.f32.mrf.mxu0
      %2311 = vdwg.mxu0
      %2312 = vst [vmem:[#allocation2] sm:$0xff] %v1780
      %2313 = vst [vmem:[#allocation2 + $0x8] sm:$0xff] %v1782
      %2314 = vst [vmem:[#allocation2 + $0x10] sm:$0xff] %v2170
      %2315 = vst [vmem:[#allocation2 + $0x18] sm:$0xff] %v1784
      %2316 = vst [vmem:[#allocation2 + $0x20] sm:$0xff] %v1786
      %2317 = vst [vmem:[#allocation2 + $0x28] sm:$0xff] %v2173
      %2318 = vst [vmem:[#allocation2 + $0x30] sm:$0xff] %v1790
      %2319 = vst [vmem:[#allocation2 + $0x38] sm:$0xff] %v1792
      %2320 = vst [vmem:[#allocation2 + $0x40] sm:$0xff] %v2178
      %2321 = vst [vmem:[#allocation2 + $0x48] sm:$0xff] %v1794
      %2322 = vst [vmem:[#allocation2 + $0x50] sm:$0xff] %v1796
      %2323 = vst [vmem:[#allocation2 + $0x58] sm:$0xff] %v2181
      %2324 = vst [vmem:[#allocation2 + $0x60] sm:$0xff] %v1800
      %2325 = vst [vmem:[#allocation2 + $0x68] sm:$0xff] %v1802
      %2326 = vst [vmem:[#allocation2 + $0x70] sm:$0xff] %v2186
      %2327 = vst [vmem:[#allocation2 + $0x78] sm:$0xff] %v1804
      %2328 = vst [vmem:[#allocation2 + $0x80] sm:$0xff] %v1806
      %2329 = vst [vmem:[#allocation2 + $0x88] sm:$0xff] %v2189
      %2330 = vst [vmem:[#allocation2 + $0x90] sm:$0xff] %v1810
      %2331 = vst [vmem:[#allocation2 + $0x98] sm:$0xff] %v1812
      %2332 = vst [vmem:[#allocation2 + $0xa0] sm:$0xff] %v2194
      %2333 = vst [vmem:[#allocation2 + $0xa8] sm:$0xff] %v1814
      %2334 = vst [vmem:[#allocation2 + $0xb0] sm:$0xff] %v1816
      %2335 = vst [vmem:[#allocation2 + $0xb8] sm:$0xff] %v2197
      %2336 = vst [vmem:[#allocation2 + $0xc0] sm:$0xff] %v1820
      %2337 = vst [vmem:[#allocation2 + $0xc8] sm:$0xff] %v1822
      %2338 = vst [vmem:[#allocation2 + $0xd0] sm:$0xff] %v2202
      %2339 = vst [vmem:[#allocation2 + $0xd8] sm:$0xff] %v1824
      %2340 = vst [vmem:[#allocation2 + $0xe0] sm:$0xff] %v1826
      %2341 = vst [vmem:[#allocation2 + $0xe8] sm:$0xff] %v2205
      %2342 = vst [vmem:[#allocation2 + $0xf0] sm:$0xff] %v1830
      %2343 = vst [vmem:[#allocation2 + $0xf8] sm:$0xff] %v1832
      %2344 = vst [vmem:[#allocation2 + $0x100] sm:$0xff] %v2210
      %2345 = vst [vmem:[#allocation2 + $0x108] sm:$0xff] %v1834
      %2346 = vst [vmem:[#allocation2 + $0x110] sm:$0xff] %v1836
      %2347 = vst [vmem:[#allocation2 + $0x118] sm:$0xff] %v2213
      %2348 = vst [vmem:[#allocation2 + $0x120] sm:$0xff] %v1840
      %2349 = vst [vmem:[#allocation2 + $0x128] sm:$0xff] %v1842
      %2350 = vst [vmem:[#allocation2 + $0x130] sm:$0xff] %v2218
      %2351 = vst [vmem:[#allocation2 + $0x138] sm:$0xff] %v1844
      %2352 = vst [vmem:[#allocation2 + $0x140] sm:$0xff] %v1846
      %2353 = vst [vmem:[#allocation2 + $0x148] sm:$0xff] %v2221
      %2354 = vst [vmem:[#allocation2 + $0x150] sm:$0xff] %v1850
      %2355 = vst [vmem:[#allocation2 + $0x158] sm:$0xff] %v1852
      %2356 = vst [vmem:[#allocation2 + $0x160] sm:$0xff] %v2226
      %2357 = vst [vmem:[#allocation2 + $0x168] sm:$0xff] %v1854
      %2358 = vst [vmem:[#allocation2 + $0x170] sm:$0xff] %v1856
      %2359 = vst [vmem:[#allocation2 + $0x178] sm:$0xff] %v2229
      %2360 = vst [vmem:[#allocation2 + $0x180] sm:$0xff] %v1860
      %2361 = vst [vmem:[#allocation2 + $0x188] sm:$0xff] %v1862
      %2362 = vst [vmem:[#allocation2 + $0x190] sm:$0xff] %v2234
      %2363 = vst [vmem:[#allocation2 + $0x198] sm:$0xff] %v1864
      %2364 = vst [vmem:[#allocation2 + $0x1a0] sm:$0xff] %v1866
      %2365 = vst [vmem:[#allocation2 + $0x1a8] sm:$0xff] %v2237
      %2366 = vst [vmem:[#allocation2 + $0x1b0] sm:$0xff] %v1870
      %2367 = vst [vmem:[#allocation2 + $0x1b8] sm:$0xff] %v1872
      %2368 = vst [vmem:[#allocation2 + $0x1c0] sm:$0xff] %v2242
      %2369 = vst [vmem:[#allocation2 + $0x1c8] sm:$0xff] %v1874
      %2370 = vst [vmem:[#allocation2 + $0x1d0] sm:$0xff] %v1876
      %2371 = vst [vmem:[#allocation2 + $0x1d8] sm:$0xff] %v2245
      %2372 = vst [vmem:[#allocation2 + $0x1e0] sm:$0xff] %v1880
      %2373 = vst [vmem:[#allocation2 + $0x1e8] sm:$0xff] %v1882
      %2374 = vst [vmem:[#allocation2 + $0x1f0] sm:$0xff] %v2250
      %2375 = vst [vmem:[#allocation2 + $0x1f8] sm:$0xff] %v1884
      %2376 = vst [vmem:[#allocation2 + $0x200] sm:$0xff] %v1886
      %2377 = vst [vmem:[#allocation2 + $0x208] sm:$0xff] %v2253
      %2378 = vst [vmem:[#allocation2 + $0x210] sm:$0xff] %v1890
      %2379 = vst [vmem:[#allocation2 + $0x218] sm:$0xff] %v1892
      %2380 = vst [vmem:[#allocation2 + $0x220] sm:$0xff] %v2258
      %2381 = vst [vmem:[#allocation2 + $0x228] sm:$0xff] %v1894
      %2382 = vst [vmem:[#allocation2 + $0x230] sm:$0xff] %v1896
      %2383 = vst [vmem:[#allocation2 + $0x238] sm:$0xff] %v2261
      %2384 = vst [vmem:[#allocation2 + $0x240] sm:$0xff] %v1900
      %2385 = vst [vmem:[#allocation2 + $0x248] sm:$0xff] %v1902
      %2386 = vst [vmem:[#allocation2 + $0x250] sm:$0xff] %v2266
      %2387 = vst [vmem:[#allocation2 + $0x258] sm:$0xff] %v1904
      %2388 = vst [vmem:[#allocation2 + $0x260] sm:$0xff] %v1906
      %2389 = vst [vmem:[#allocation2 + $0x268] sm:$0xff] %v2269
      %2390 = vst [vmem:[#allocation2 + $0x270] sm:$0xff] %v1910
      %2391 = vst [vmem:[#allocation2 + $0x278] sm:$0xff] %v1912
      %2392 = vst [vmem:[#allocation2 + $0x280] sm:$0xff] %v2274
      %2393 = vst [vmem:[#allocation2 + $0x288] sm:$0xff] %v1914
      %2394 = vst [vmem:[#allocation2 + $0x290] sm:$0xff] %v1916
      %2395 = vst [vmem:[#allocation2 + $0x298] sm:$0xff] %v2277
      %2396 = vst [vmem:[#allocation2 + $0x2a0] sm:$0xff] %v1920
      %2397 = vst [vmem:[#allocation2 + $0x2a8] sm:$0xff] %v1922
      %2398 = vst [vmem:[#allocation2 + $0x2b0] sm:$0xff] %v2282
      %2399 = vst [vmem:[#allocation2 + $0x2b8] sm:$0xff] %v1924
      %2400 = vst [vmem:[#allocation2 + $0x2c0] sm:$0xff] %v1926
      %2401 = vst [vmem:[#allocation2 + $0x2c8] sm:$0xff] %v2285
      %2402 = vst [vmem:[#allocation2 + $0x2d0] sm:$0xff] %v1930
      %2403 = vst [vmem:[#allocation2 + $0x2d8] sm:$0xff] %v1932
      %2404 = vst [vmem:[#allocation2 + $0x2e0] sm:$0xff] %v2290
      %2405 = vst [vmem:[#allocation2 + $0x2e8] sm:$0xff] %v1934
      %2406 = vst [vmem:[#allocation2 + $0x2f0] sm:$0xff] %v1936
      %2407 = vst [vmem:[#allocation2 + $0x2f8] sm:$0xff] %v2293
      %2408 = vst [vmem:[#allocation2 + $0x300] sm:$0xff] %v1940
      %2409 = vst [vmem:[#allocation2 + $0x308] sm:$0xff] %v1942
      %2410 = vst [vmem:[#allocation2 + $0x310] sm:$0xff] %v2298
      %2411 = vst [vmem:[#allocation2 + $0x318] sm:$0xff] %v1944
      %2412 = vst [vmem:[#allocation2 + $0x320] sm:$0xff] %v1946
      %2413 = vst [vmem:[#allocation2 + $0x328] sm:$0xff] %v2301
      %2414 = vst [vmem:[#allocation2 + $0x330] sm:$0xff] %v1950
      %2415 = vst [vmem:[#allocation2 + $0x338] sm:$0xff] %v1952
      %2416 = vst [vmem:[#allocation2 + $0x340] sm:$0xff] %v2306
      %2417 = vst [vmem:[#allocation2 + $0x348] sm:$0xff] %v1954
      %2418 = vst [vmem:[#allocation2 + $0x350] sm:$0xff] %v1956
      %2419 = vst [vmem:[#allocation2 + $0x358] sm:$0xff] %v2309
      %v2420 = vld [vmem:[#allocation2] sm:$0xff]
      %v2421 = vld [vmem:[#allocation2 + $0x8] sm:$0xff]
      %2422 = vst [vmem:[#allocation3] sm:$0xff] %v2420
      %2423 = vst [vmem:[#allocation4] sm:$0xff] %v2421
      %v2424 = vld [vmem:[#allocation2 + $0x18] sm:$0xff]
      %v2425 = vld [vmem:[#allocation2 + $0x20] sm:$0xff]
      %2426 = vst [vmem:[#allocation3 + $0x8] sm:$0xff] %v2424
      %2427 = vst [vmem:[#allocation4 + $0x8] sm:$0xff] %v2425
      %v2428 = vld [vmem:[#allocation2 + $0x30] sm:$0xff]
      %v2429 = vld [vmem:[#allocation2 + $0x38] sm:$0xff]
      %2430 = vst [vmem:[#allocation3 + $0x10] sm:$0xff] %v2428
      %2431 = vst [vmem:[#allocation4 + $0x10] sm:$0xff] %v2429
      %v2432 = vld [vmem:[#allocation2 + $0x90] sm:$0xff]
      %v2433 = vld [vmem:[#allocation2 + $0x98] sm:$0xff]
      %2434 = vst [vmem:[#allocation3 + $0x18] sm:$0xff] %v2432
      %2435 = vst [vmem:[#allocation4 + $0x18] sm:$0xff] %v2433
      %v2436 = vld [vmem:[#allocation2 + $0xa8] sm:$0xff]
      %v2437 = vld [vmem:[#allocation2 + $0xb0] sm:$0xff]
      %2438 = vst [vmem:[#allocation3 + $0x20] sm:$0xff] %v2436
      %2439 = vst [vmem:[#allocation4 + $0x20] sm:$0xff] %v2437
      %v2440 = vld [vmem:[#allocation2 + $0xc0] sm:$0xff]
      %v2441 = vld [vmem:[#allocation2 + $0xc8] sm:$0xff]
      %2442 = vst [vmem:[#allocation3 + $0x28] sm:$0xff] %v2440
      %2443 = vst [vmem:[#allocation4 + $0x28] sm:$0xff] %v2441
      %v2444 = vld [vmem:[#allocation2 + $0x120] sm:$0xff]
      %v2445 = vld [vmem:[#allocation2 + $0x128] sm:$0xff]
      %2446 = vst [vmem:[#allocation3 + $0x30] sm:$0xff] %v2444
      %2447 = vst [vmem:[#allocation4 + $0x30] sm:$0xff] %v2445
      %v2448 = vld [vmem:[#allocation2 + $0x138] sm:$0xff]
      %v2449 = vld [vmem:[#allocation2 + $0x140] sm:$0xff]
      %2450 = vst [vmem:[#allocation3 + $0x38] sm:$0xff] %v2448
      %2451 = vst [vmem:[#allocation4 + $0x38] sm:$0xff] %v2449
      %v2452 = vld [vmem:[#allocation2 + $0x150] sm:$0xff]
      %v2453 = vld [vmem:[#allocation2 + $0x158] sm:$0xff]
      %2454 = vst [vmem:[#allocation3 + $0x40] sm:$0xff] %v2452
      %2455 = vst [vmem:[#allocation4 + $0x40] sm:$0xff] %v2453
      %v2456 = vld [vmem:[#allocation2 + $0x30] sm:$0xff]
      %v2457 = vld [vmem:[#allocation2 + $0x38] sm:$0xff]
      %2458 = vst [vmem:[#allocation3 + $0x48] sm:$0xff] %v2456
      %2459 = vst [vmem:[#allocation4 + $0x48] sm:$0xff] %v2457
      %v2460 = vld [vmem:[#allocation2 + $0x48] sm:$0xff]
      %v2461 = vld [vmem:[#allocation2 + $0x50] sm:$0xff]
      %2462 = vst [vmem:[#allocation3 + $0x50] sm:$0xff] %v2460
      %2463 = vst [vmem:[#allocation4 + $0x50] sm:$0xff] %v2461
      %v2464 = vld [vmem:[#allocation2 + $0x60] sm:$0xff]
      %v2465 = vld [vmem:[#allocation2 + $0x68] sm:$0xff]
      %2466 = vst [vmem:[#allocation3 + $0x58] sm:$0xff] %v2464
      %2467 = vst [vmem:[#allocation4 + $0x58] sm:$0xff] %v2465
      %v2468 = vld [vmem:[#allocation2 + $0xc0] sm:$0xff]
      %v2469 = vld [vmem:[#allocation2 + $0xc8] sm:$0xff]
      %2470 = vst [vmem:[#allocation3 + $0x60] sm:$0xff] %v2468
      %2471 = vst [vmem:[#allocation4 + $0x60] sm:$0xff] %v2469
      %v2472 = vld [vmem:[#allocation2 + $0xd8] sm:$0xff]
      %v2473 = vld [vmem:[#allocation2 + $0xe0] sm:$0xff]
      %2474 = vst [vmem:[#allocation3 + $0x68] sm:$0xff] %v2472
      %2475 = vst [vmem:[#allocation4 + $0x68] sm:$0xff] %v2473
      %v2476 = vld [vmem:[#allocation2 + $0xf0] sm:$0xff]
      %v2477 = vld [vmem:[#allocation2 + $0xf8] sm:$0xff]
      %2478 = vst [vmem:[#allocation3 + $0x70] sm:$0xff] %v2476
      %2479 = vst [vmem:[#allocation4 + $0x70] sm:$0xff] %v2477
      %v2480 = vld [vmem:[#allocation2 + $0x150] sm:$0xff]
      %v2481 = vld [vmem:[#allocation2 + $0x158] sm:$0xff]
      %2482 = vst [vmem:[#allocation3 + $0x78] sm:$0xff] %v2480
      %2483 = vst [vmem:[#allocation4 + $0x78] sm:$0xff] %v2481
      %v2484 = vld [vmem:[#allocation2 + $0x168] sm:$0xff]
      %v2485 = vld [vmem:[#allocation2 + $0x170] sm:$0xff]
      %2486 = vst [vmem:[#allocation3 + $0x80] sm:$0xff] %v2484
      %2487 = vst [vmem:[#allocation4 + $0x80] sm:$0xff] %v2485
      %v2488 = vld [vmem:[#allocation2 + $0x180] sm:$0xff]
      %v2489 = vld [vmem:[#allocation2 + $0x188] sm:$0xff]
      %2490 = vst [vmem:[#allocation3 + $0x88] sm:$0xff] %v2488
      %2491 = vst [vmem:[#allocation4 + $0x88] sm:$0xff] %v2489
      %v2492 = vld [vmem:[#allocation2 + $0x120] sm:$0xff]
      %v2493 = vld [vmem:[#allocation2 + $0x128] sm:$0xff]
      %2494 = vst [vmem:[#allocation3 + $0x90] sm:$0xff] %v2492
      %2495 = vst [vmem:[#allocation4 + $0x90] sm:$0xff] %v2493
      %v2496 = vld [vmem:[#allocation2 + $0x138] sm:$0xff]
      %v2497 = vld [vmem:[#allocation2 + $0x140] sm:$0xff]
      %2498 = vst [vmem:[#allocation3 + $0x98] sm:$0xff] %v2496
      %2499 = vst [vmem:[#allocation4 + $0x98] sm:$0xff] %v2497
      %v2500 = vld [vmem:[#allocation2 + $0x150] sm:$0xff]
      %v2501 = vld [vmem:[#allocation2 + $0x158] sm:$0xff]
      %2502 = vst [vmem:[#allocation3 + $0xa0] sm:$0xff] %v2500
      %2503 = vst [vmem:[#allocation4 + $0xa0] sm:$0xff] %v2501
      %v2504 = vld [vmem:[#allocation2 + $0x1b0] sm:$0xff]
      %v2505 = vld [vmem:[#allocation2 + $0x1b8] sm:$0xff]
      %2506 = vst [vmem:[#allocation3 + $0xa8] sm:$0xff] %v2504
      %2507 = vst [vmem:[#allocation4 + $0xa8] sm:$0xff] %v2505
      %v2508 = vld [vmem:[#allocation2 + $0x1c8] sm:$0xff]
      %v2509 = vld [vmem:[#allocation2 + $0x1d0] sm:$0xff]
      %2510 = vst [vmem:[#allocation3 + $0xb0] sm:$0xff] %v2508
      %2511 = vst [vmem:[#allocation4 + $0xb0] sm:$0xff] %v2509
      %v2512 = vld [vmem:[#allocation2 + $0x1e0] sm:$0xff]
      %v2513 = vld [vmem:[#allocation2 + $0x1e8] sm:$0xff]
      %2514 = vst [vmem:[#allocation3 + $0xb8] sm:$0xff] %v2512
      %2515 = vst [vmem:[#allocation4 + $0xb8] sm:$0xff] %v2513
      %v2516 = vld [vmem:[#allocation2 + $0x240] sm:$0xff]
      %v2517 = vld [vmem:[#allocation2 + $0x248] sm:$0xff]
      %2518 = vst [vmem:[#allocation3 + $0xc0] sm:$0xff] %v2516
      %2519 = vst [vmem:[#allocation4 + $0xc0] sm:$0xff] %v2517
      %v2520 = vld [vmem:[#allocation2 + $0x258] sm:$0xff]
      %v2521 = vld [vmem:[#allocation2 + $0x260] sm:$0xff]
      %2522 = vst [vmem:[#allocation3 + $0xc8] sm:$0xff] %v2520
      %2523 = vst [vmem:[#allocation4 + $0xc8] sm:$0xff] %v2521
      %v2524 = vld [vmem:[#allocation2 + $0x270] sm:$0xff]
      %v2525 = vld [vmem:[#allocation2 + $0x278] sm:$0xff]
      %2526 = vst [vmem:[#allocation3 + $0xd0] sm:$0xff] %v2524
      %2527 = vst [vmem:[#allocation4 + $0xd0] sm:$0xff] %v2525
      %v2528 = vld [vmem:[#allocation2 + $0x150] sm:$0xff]
      %v2529 = vld [vmem:[#allocation2 + $0x158] sm:$0xff]
      %2530 = vst [vmem:[#allocation3 + $0xd8] sm:$0xff] %v2528
      %2531 = vst [vmem:[#allocation4 + $0xd8] sm:$0xff] %v2529
      %v2532 = vld [vmem:[#allocation2 + $0x168] sm:$0xff]
      %v2533 = vld [vmem:[#allocation2 + $0x170] sm:$0xff]
      %2534 = vst [vmem:[#allocation3 + $0xe0] sm:$0xff] %v2532
      %2535 = vst [vmem:[#allocation4 + $0xe0] sm:$0xff] %v2533
      %v2536 = vld [vmem:[#allocation2 + $0x180] sm:$0xff]
      %v2537 = vld [vmem:[#allocation2 + $0x188] sm:$0xff]
      %2538 = vst [vmem:[#allocation3 + $0xe8] sm:$0xff] %v2536
      %2539 = vst [vmem:[#allocation4 + $0xe8] sm:$0xff] %v2537
      %v2540 = vld [vmem:[#allocation2 + $0x1e0] sm:$0xff]
      %v2541 = vld [vmem:[#allocation2 + $0x1e8] sm:$0xff]
      %2542 = vst [vmem:[#allocation3 + $0xf0] sm:$0xff] %v2540
      %2543 = vst [vmem:[#allocation4 + $0xf0] sm:$0xff] %v2541
      %v2544 = vld [vmem:[#allocation2 + $0x1f8] sm:$0xff]
      %v2545 = vld [vmem:[#allocation2 + $0x200] sm:$0xff]
      %2546 = vst [vmem:[#allocation3 + $0xf8] sm:$0xff] %v2544
      %2547 = vst [vmem:[#allocation4 + $0xf8] sm:$0xff] %v2545
      %v2548 = vld [vmem:[#allocation2 + $0x210] sm:$0xff]
      %v2549 = vld [vmem:[#allocation2 + $0x218] sm:$0xff]
      %2550 = vst [vmem:[#allocation3 + $0x100] sm:$0xff] %v2548
      %2551 = vst [vmem:[#allocation4 + $0x100] sm:$0xff] %v2549
      %v2552 = vld [vmem:[#allocation2 + $0x270] sm:$0xff]
      %v2553 = vld [vmem:[#allocation2 + $0x278] sm:$0xff]
      %2554 = vst [vmem:[#allocation3 + $0x108] sm:$0xff] %v2552
      %2555 = vst [vmem:[#allocation4 + $0x108] sm:$0xff] %v2553
      %v2556 = vld [vmem:[#allocation2 + $0x288] sm:$0xff]
      %v2557 = vld [vmem:[#allocation2 + $0x290] sm:$0xff]
      %2558 = vst [vmem:[#allocation3 + $0x110] sm:$0xff] %v2556
      %2559 = vst [vmem:[#allocation4 + $0x110] sm:$0xff] %v2557
      %v2560 = vld [vmem:[#allocation2 + $0x2a0] sm:$0xff]
      %v2561 = vld [vmem:[#allocation2 + $0x2a8] sm:$0xff]
      %2562 = vst [vmem:[#allocation3 + $0x118] sm:$0xff] %v2560
      %2563 = vst [vmem:[#allocation4 + $0x118] sm:$0xff] %v2561
      %v2564 = vld [vmem:[#allocation3] sm:$0xff]
      %v2565 = vld [vmem:[#allocation3 + $0x8] sm:$0xff]
      %v2566 = vld [vmem:[#allocation3 + $0x10] sm:$0xff]
      %v2567 = vld [vmem:[#allocation3 + $0x18] sm:$0xff]
      %v2568 = vld [vmem:[#allocation3 + $0x20] sm:$0xff]
      %v2569 = vld [vmem:[#allocation3 + $0x28] sm:$0xff]
      %v2570 = vld [vmem:[#allocation3 + $0x30] sm:$0xff]
      %v2571 = vld [vmem:[#allocation3 + $0x38] sm:$0xff]
      %v2572 = vld [vmem:[#allocation3 + $0x40] sm:$0xff]
      %v2573 = vld [vmem:[#allocation3 + $0x48] sm:$0xff]
      %v2574 = vld [vmem:[#allocation3 + $0x50] sm:$0xff]
      %v2575 = vld [vmem:[#allocation3 + $0x58] sm:$0xff]
      %v2576 = vld [vmem:[#allocation3 + $0x60] sm:$0xff]
      %v2577 = vld [vmem:[#allocation3 + $0x68] sm:$0xff]
      %v2578 = vld [vmem:[#allocation3 + $0x70] sm:$0xff]
      %v2579 = vld [vmem:[#allocation3 + $0x78] sm:$0xff]
      %v2580 = vld [vmem:[#allocation3 + $0x80] sm:$0xff]
      %v2581 = vld [vmem:[#allocation3 + $0x88] sm:$0xff]
      %v2582 = vld [vmem:[#allocation3 + $0x90] sm:$0xff]
      %v2583 = vld [vmem:[#allocation3 + $0x98] sm:$0xff]
      %v2584 = vld [vmem:[#allocation3 + $0xa0] sm:$0xff]
      %v2585 = vld [vmem:[#allocation3 + $0xa8] sm:$0xff]
      %v2586 = vld [vmem:[#allocation3 + $0xb0] sm:$0xff]
      %v2587 = vld [vmem:[#allocation3 + $0xb8] sm:$0xff]
      %v2588 = vld [vmem:[#allocation3 + $0xc0] sm:$0xff]
      %v2589 = vld [vmem:[#allocation3 + $0xc8] sm:$0xff]
      %v2590 = vld [vmem:[#allocation3 + $0xd0] sm:$0xff]
      %v2591 = vld [vmem:[#allocation3 + $0xd8] sm:$0xff]
      %v2592 = vld [vmem:[#allocation3 + $0xe0] sm:$0xff]
      %v2593 = vld [vmem:[#allocation3 + $0xe8] sm:$0xff]
      %v2594 = vld [vmem:[#allocation3 + $0xf0] sm:$0xff]
      %v2595 = vld [vmem:[#allocation3 + $0xf8] sm:$0xff]
      %v2596 = vld [vmem:[#allocation3 + $0x100] sm:$0xff]
      %v2597 = vld [vmem:[#allocation3 + $0x108] sm:$0xff]
      %v2598 = vld [vmem:[#allocation3 + $0x110] sm:$0xff]
      %v2599 = vld [vmem:[#allocation3 + $0x118] sm:$0xff]
      %v2600 = vpack.c.bf16 %v2573, %v2564
      %v2601 = vpack.c.bf16 %v2574, %v2565
      %v2602 = vpack.c.bf16 %v2575, %v2566
      %v2603 = vpack.c.bf16 %v2576, %v2567
      %v2604 = vpack.c.bf16 %v2577, %v2568
      %v2605 = vpack.c.bf16 %v2578, %v2569
      %v2606 = vpack.c.bf16 %v2579, %v2570
      %v2607 = vpack.c.bf16 %v2580, %v2571
      %v2608 = vpack.c.bf16 %v2581, %v2572
      %v2609 = vpack.c.bf16 %v2591, %v2582
      %v2610 = vpack.c.bf16 %v2592, %v2583
      %v2611 = vpack.c.bf16 %v2593, %v2584
      %v2612 = vpack.c.bf16 %v2594, %v2585
      %v2613 = vpack.c.bf16 %v2595, %v2586
      %v2614 = vpack.c.bf16 %v2596, %v2587
      %v2615 = vpack.c.bf16 %v2597, %v2588
      %v2616 = vpack.c.bf16 %v2598, %v2589
      %v2617 = vpack.c.bf16 %v2599, %v2590
      %v2618 = vld [vmem:[%s3] sm:$0xff]
      %v2619 = vld [vmem:[%s3 + $0x8] sm:$0xff]
      %v2620 = vld [vmem:[%s3 + $0x10] sm:$0xff]
      %v2621 = vld [vmem:[%s3 + $0x18] sm:$0xff]
      %v2622 = vld [vmem:[%s3 + $0x20] sm:$0xff]
      %v2623 = vld [vmem:[%s3 + $0x28] sm:$0xff]
      %v2624 = vld [vmem:[%s3 + $0x30] sm:$0xff]
      %v2625 = vld [vmem:[%s3 + $0x38] sm:$0xff]
      %v2626 = vld [vmem:[%s3 + $0x40] sm:$0xff]
      %v2627 = vld [vmem:[%s3 + $0x48] sm:$0xff]
      %v2628 = vld [vmem:[%s3 + $0x50] sm:$0xff]
      %v2629 = vld [vmem:[%s3 + $0x58] sm:$0xff]
      %v2630 = vld [vmem:[%s3 + $0x60] sm:$0xff]
      %v2631 = vld [vmem:[%s3 + $0x68] sm:$0xff]
      %v2632 = vld [vmem:[%s3 + $0x70] sm:$0xff]
      %v2633 = vld [vmem:[%s3 + $0x78] sm:$0xff]
      %v2634 = vld [vmem:[%s3 + $0x80] sm:$0xff]
      %v2635 = vld [vmem:[%s3 + $0x88] sm:$0xff]
      %v2636 = vld [vmem:[%s3 + $0x90] sm:$0xff]
      %v2637 = vld [vmem:[%s3 + $0x98] sm:$0xff]
      %v2638 = vld [vmem:[%s3 + $0xa0] sm:$0xff]
      %v2639 = vld [vmem:[%s3 + $0xa8] sm:$0xff]
      %v2640 = vld [vmem:[%s3 + $0xb0] sm:$0xff]
      %v2641 = vld [vmem:[%s3 + $0xb8] sm:$0xff]
      %v2642 = vld [vmem:[%s3 + $0xc0] sm:$0xff]
      %v2643 = vld [vmem:[%s3 + $0xc8] sm:$0xff]
      %v2644 = vld [vmem:[%s3 + $0xd0] sm:$0xff]
      %v2645 = vld [vmem:[%s3 + $0xd8] sm:$0xff]
      %v2646 = vld [vmem:[%s3 + $0xe0] sm:$0xff]
      %v2647 = vld [vmem:[%s3 + $0xe8] sm:$0xff]
      %v2648 = vld [vmem:[%s3 + $0xf0] sm:$0xff]
      %v2649 = vld [vmem:[%s3 + $0xf8] sm:$0xff]
      %v2650 = vld [vmem:[%s3 + $0x100] sm:$0xff]
      %v2651 = vld [vmem:[%s3 + $0x108] sm:$0xff]
      %v2652 = vld [vmem:[%s3 + $0x110] sm:$0xff]
      %v2653 = vld [vmem:[%s3 + $0x118] sm:$0xff]
      %v2654 = vld [vmem:[%s3 + $0x120] sm:$0xff]
      %v2655 = vld [vmem:[%s3 + $0x128] sm:$0xff]
      %v2656 = vld [vmem:[%s3 + $0x130] sm:$0xff]
      %v2657 = vld [vmem:[%s3 + $0x138] sm:$0xff]
      %v2658 = vld [vmem:[%s3 + $0x140] sm:$0xff]
      %v2659 = vld [vmem:[%s3 + $0x148] sm:$0xff]
      %v2660 = vld [vmem:[%s3 + $0x150] sm:$0xff]
      %v2661 = vld [vmem:[%s3 + $0x158] sm:$0xff]
      %v2662 = vld [vmem:[%s3 + $0x160] sm:$0xff]
      %v2663 = vld [vmem:[%s3 + $0x168] sm:$0xff]
      %v2664 = vld [vmem:[%s3 + $0x170] sm:$0xff]
      %v2665 = vld [vmem:[%s3 + $0x178] sm:$0xff]
      %v2666 = vld [vmem:[%s3 + $0x180] sm:$0xff]
      %v2667 = vld [vmem:[%s3 + $0x188] sm:$0xff]
      %v2668 = vld [vmem:[%s3 + $0x190] sm:$0xff]
      %v2669 = vld [vmem:[%s3 + $0x198] sm:$0xff]
      %v2670 = vld [vmem:[%s3 + $0x1a0] sm:$0xff]
      %v2671 = vld [vmem:[%s3 + $0x1a8] sm:$0xff]
      %v2672 = vld [vmem:[%s3 + $0x1b0] sm:$0xff]
      %v2673 = vld [vmem:[%s3 + $0x1b8] sm:$0xff]
      %v2674 = vld [vmem:[%s3 + $0x1c0] sm:$0xff]
      %v2675 = vld [vmem:[%s3 + $0x1c8] sm:$0xff]
      %v2676 = vld [vmem:[%s3 + $0x1d0] sm:$0xff]
      %v2677 = vld [vmem:[%s3 + $0x1d8] sm:$0xff]
      %v2678 = vld [vmem:[%s3 + $0x1e0] sm:$0xff]
      %v2679 = vld [vmem:[%s3 + $0x1e8] sm:$0xff]
      %v2680 = vld [vmem:[%s3 + $0x1f0] sm:$0xff]
      %v2681 = vld [vmem:[%s3 + $0x1f8] sm:$0xff]
      %v2682 = vld [vmem:[%s3 + $0x200] sm:$0xff]
      %v2683 = vld [vmem:[%s3 + $0x208] sm:$0xff]
      %v2684 = vld [vmem:[%s3 + $0x210] sm:$0xff]
      %v2685 = vld [vmem:[%s3 + $0x218] sm:$0xff]
      %v2686 = vld [vmem:[%s3 + $0x220] sm:$0xff]
      %v2687 = vld [vmem:[%s3 + $0x228] sm:$0xff]
      %v2688 = vld [vmem:[%s3 + $0x230] sm:$0xff]
      %v2689 = vld [vmem:[%s3 + $0x238] sm:$0xff]
      %v2690 = vld [vmem:[%s3 + $0x240] sm:$0xff]
      %v2691 = vld [vmem:[%s3 + $0x248] sm:$0xff]
      %v2692 = vld [vmem:[%s3 + $0x250] sm:$0xff]
      %v2693 = vld [vmem:[%s3 + $0x258] sm:$0xff]
      %v2694 = vld [vmem:[%s3 + $0x260] sm:$0xff]
      %v2695 = vld [vmem:[%s3 + $0x268] sm:$0xff]
      %v2696 = vld [vmem:[%s3 + $0x270] sm:$0xff]
      %v2697 = vld [vmem:[%s3 + $0x278] sm:$0xff]
      %v2698 = vld [vmem:[%s3 + $0x280] sm:$0xff]
      %v2699 = vld [vmem:[%s3 + $0x288] sm:$0xff]
      %v2700 = vld [vmem:[%s3 + $0x290] sm:$0xff]
      %v2701 = vld [vmem:[%s3 + $0x298] sm:$0xff]
      %v2702 = vld [vmem:[%s3 + $0x2a0] sm:$0xff]
      %v2703 = vld [vmem:[%s3 + $0x2a8] sm:$0xff]
      %v2704 = vld [vmem:[%s3 + $0x2b0] sm:$0xff]
      %v2705 = vld [vmem:[%s3 + $0x2b8] sm:$0xff]
      %v2706 = vld [vmem:[%s3 + $0x2c0] sm:$0xff]
      %v2707 = vld [vmem:[%s3 + $0x2c8] sm:$0xff]
      %v2708 = vld [vmem:[%s3 + $0x2d0] sm:$0xff]
      %v2709 = vld [vmem:[%s3 + $0x2d8] sm:$0xff]
      %v2710 = vld [vmem:[%s3 + $0x2e0] sm:$0xff]
      %v2711 = vld [vmem:[%s3 + $0x2e8] sm:$0xff]
      %v2712 = vld [vmem:[%s3 + $0x2f0] sm:$0xff]
      %v2713 = vld [vmem:[%s3 + $0x2f8] sm:$0xff]
      %v2714 = vld [vmem:[%s3 + $0x300] sm:$0xff]
      %v2715 = vld [vmem:[%s3 + $0x308] sm:$0xff]
      %v2716 = vld [vmem:[%s3 + $0x310] sm:$0xff]
      %v2717 = vld [vmem:[%s3 + $0x318] sm:$0xff]
      %v2718 = vld [vmem:[%s3 + $0x320] sm:$0xff]
      %v2719 = vld [vmem:[%s3 + $0x328] sm:$0xff]
      %v2720 = vld [vmem:[%s3 + $0x330] sm:$0xff]
      %v2721 = vld [vmem:[%s3 + $0x338] sm:$0xff]
      %v2722 = vld [vmem:[%s3 + $0x340] sm:$0xff]
      %v2723 = vld [vmem:[%s3 + $0x348] sm:$0xff]
      %v2724 = vld [vmem:[%s3 + $0x350] sm:$0xff]
      %v2725 = vld [vmem:[%s3 + $0x358] sm:$0xff]
      %v2726 = vld [vmem:[%s3 + $0x360] sm:$0xff]
      %v2727 = vld [vmem:[%s3 + $0x368] sm:$0xff]
      %v2728 = vld [vmem:[%s3 + $0x370] sm:$0xff]
      %v2729 = vld [vmem:[%s3 + $0x378] sm:$0xff]
      %v2730 = vld [vmem:[%s3 + $0x380] sm:$0xff]
      %v2731 = vld [vmem:[%s3 + $0x388] sm:$0xff]
      %v2732 = vld [vmem:[%s3 + $0x390] sm:$0xff]
      %v2733 = vld [vmem:[%s3 + $0x398] sm:$0xff]
      %v2734 = vld [vmem:[%s3 + $0x3a0] sm:$0xff]
      %v2735 = vld [vmem:[%s3 + $0x3a8] sm:$0xff]
      %v2736 = vld [vmem:[%s3 + $0x3b0] sm:$0xff]
      %v2737 = vld [vmem:[%s3 + $0x3b8] sm:$0xff]
      %v2738 = vld [vmem:[%s3 + $0x3c0] sm:$0xff]
      %v2739 = vld [vmem:[%s3 + $0x3c8] sm:$0xff]
      %v2740 = vld [vmem:[%s3 + $0x3d0] sm:$0xff]
      %v2741 = vld [vmem:[%s3 + $0x3d8] sm:$0xff]
      %v2742 = vld [vmem:[%s3 + $0x3e0] sm:$0xff]
      %v2743 = vld [vmem:[%s3 + $0x3e8] sm:$0xff]
      %v2744 = vld [vmem:[%s3 + $0x3f0] sm:$0xff]
      %v2745 = vld [vmem:[%s3 + $0x3f8] sm:$0xff]
      %v2746 = vld [vmem:[%s3 + $0x400] sm:$0xff]
      %v2747 = vld [vmem:[%s3 + $0x408] sm:$0xff]
      %v2748 = vld [vmem:[%s3 + $0x410] sm:$0xff]
      %v2749 = vld [vmem:[%s3 + $0x418] sm:$0xff]
      %v2750 = vld [vmem:[%s3 + $0x420] sm:$0xff]
      %v2751 = vld [vmem:[%s3 + $0x428] sm:$0xff]
      %v2752 = vld [vmem:[%s3 + $0x430] sm:$0xff]
      %v2753 = vld [vmem:[%s3 + $0x438] sm:$0xff]
      %v2754 = vld [vmem:[%s3 + $0x440] sm:$0xff]
      %v2755 = vld [vmem:[%s3 + $0x448] sm:$0xff]
      %v2756 = vld [vmem:[%s3 + $0x450] sm:$0xff]
      %v2757 = vld [vmem:[%s3 + $0x458] sm:$0xff]
      %v2758 = vld [vmem:[%s3 + $0x460] sm:$0xff]
      %v2759 = vld [vmem:[%s3 + $0x468] sm:$0xff]
      %v2760 = vld [vmem:[%s3 + $0x470] sm:$0xff]
      %v2761 = vld [vmem:[%s3 + $0x478] sm:$0xff]
      %v2762 = vld [vmem:[%s4] sm:$0x3]
      %v2764 = vlaneseq
      %v2765 = vshrl.u32 %v2764, 7
      %v2766 = vsub.s32 0, %v2765
      %v2767 = vrot.slane %v2762, %v2766
      %v2768 = vlaneseq
      %v2769 = vshrl.u32 %v2768, 7
      %v2770 = vsub.s32 1, %v2769
      %v2771 = vrot.slane %v2762, %v2770
      %v2918 = vunpack.c.l.b16 %v2618
      %v2919 = vunpack.c.h.b16 %v2618
      %v2920 = vunpack.c.l.b16 %v2619
      %v2921 = vunpack.c.h.b16 %v2619
      %v2922 = vunpack.c.l.b16 %v2620
      %v2923 = vunpack.c.h.b16 %v2620
      %v2924 = vunpack.c.l.b16 %v2621
      %v2925 = vunpack.c.h.b16 %v2621
      %v2926 = vunpack.c.l.b16 %v2622
      %v2927 = vunpack.c.h.b16 %v2622
      %v2928 = vunpack.c.l.b16 %v2623
      %v2929 = vunpack.c.h.b16 %v2623
      %v2930 = vunpack.c.l.b16 %v2624
      %v2931 = vunpack.c.h.b16 %v2624
      %v2932 = vunpack.c.l.b16 %v2625
      %v2933 = vunpack.c.h.b16 %v2625
      %v2934 = vunpack.c.l.b16 %v2626
      %v2935 = vunpack.c.h.b16 %v2626
      %v2936 = vunpack.c.l.b16 %v2627
      %v2937 = vunpack.c.h.b16 %v2627
      %v2938 = vunpack.c.l.b16 %v2628
      %v2939 = vunpack.c.h.b16 %v2628
      %v2940 = vunpack.c.l.b16 %v2629
      %v2941 = vunpack.c.h.b16 %v2629
      %v2942 = vunpack.c.l.b16 %v2630
      %v2943 = vunpack.c.h.b16 %v2630
      %v2944 = vunpack.c.l.b16 %v2631
      %v2945 = vunpack.c.h.b16 %v2631
      %v2946 = vunpack.c.l.b16 %v2632
      %v2947 = vunpack.c.h.b16 %v2632
      %v2948 = vunpack.c.l.b16 %v2633
      %v2949 = vunpack.c.h.b16 %v2633
      %v2950 = vunpack.c.l.b16 %v2634
      %v2951 = vunpack.c.h.b16 %v2634
      %v2952 = vunpack.c.l.b16 %v2635
      %v2953 = vunpack.c.h.b16 %v2635
      %v2954 = vunpack.c.l.b16 %v2636
      %v2955 = vunpack.c.h.b16 %v2636
      %v2956 = vunpack.c.l.b16 %v2637
      %v2957 = vunpack.c.h.b16 %v2637
      %v2958 = vunpack.c.l.b16 %v2638
      %v2959 = vunpack.c.h.b16 %v2638
      %v2960 = vunpack.c.l.b16 %v2639
      %v2961 = vunpack.c.h.b16 %v2639
      %v2962 = vunpack.c.l.b16 %v2640
      %v2963 = vunpack.c.h.b16 %v2640
      %v2964 = vunpack.c.l.b16 %v2641
      %v2965 = vunpack.c.h.b16 %v2641
      %v2966 = vunpack.c.l.b16 %v2642
      %v2967 = vunpack.c.h.b16 %v2642
      %v2968 = vunpack.c.l.b16 %v2643
      %v2969 = vunpack.c.h.b16 %v2643
      %v2970 = vunpack.c.l.b16 %v2644
      %v2971 = vunpack.c.h.b16 %v2644
      %v2972 = vunpack.c.l.b16 %v2645
      %v2973 = vunpack.c.h.b16 %v2645
      %v2974 = vunpack.c.l.b16 %v2646
      %v2975 = vunpack.c.h.b16 %v2646
      %v2976 = vunpack.c.l.b16 %v2647
      %v2977 = vunpack.c.h.b16 %v2647
      %v2978 = vunpack.c.l.b16 %v2648
      %v2979 = vunpack.c.h.b16 %v2648
      %v2980 = vunpack.c.l.b16 %v2649
      %v2981 = vunpack.c.h.b16 %v2649
      %v2982 = vunpack.c.l.b16 %v2650
      %v2983 = vunpack.c.h.b16 %v2650
      %v2984 = vunpack.c.l.b16 %v2651
      %v2985 = vunpack.c.h.b16 %v2651
      %v2986 = vunpack.c.l.b16 %v2652
      %v2987 = vunpack.c.h.b16 %v2652
      %v2988 = vunpack.c.l.b16 %v2653
      %v2989 = vunpack.c.h.b16 %v2653
      %v2990 = vunpack.c.l.b16 %v2654
      %v2991 = vunpack.c.h.b16 %v2654
      %v2992 = vunpack.c.l.b16 %v2655
      %v2993 = vunpack.c.h.b16 %v2655
      %v2994 = vunpack.c.l.b16 %v2656
      %v2995 = vunpack.c.h.b16 %v2656
      %v2996 = vunpack.c.l.b16 %v2657
      %v2997 = vunpack.c.h.b16 %v2657
      %v2998 = vunpack.c.l.b16 %v2658
      %v2999 = vunpack.c.h.b16 %v2658
      %v3000 = vunpack.c.l.b16 %v2659
      %v3001 = vunpack.c.h.b16 %v2659
      %v3002 = vunpack.c.l.b16 %v2660
      %v3003 = vunpack.c.h.b16 %v2660
      %v3004 = vunpack.c.l.b16 %v2661
      %v3005 = vunpack.c.h.b16 %v2661
      %v3006 = vunpack.c.l.b16 %v2662
      %v3007 = vunpack.c.h.b16 %v2662
      %v3008 = vunpack.c.l.b16 %v2663
      %v3009 = vunpack.c.h.b16 %v2663
      %v3010 = vunpack.c.l.b16 %v2664
      %v3011 = vunpack.c.h.b16 %v2664
      %v3012 = vunpack.c.l.b16 %v2665
      %v3013 = vunpack.c.h.b16 %v2665
      %v3014 = vunpack.c.l.b16 %v2666
      %v3015 = vunpack.c.h.b16 %v2666
      %v3016 = vunpack.c.l.b16 %v2667
      %v3017 = vunpack.c.h.b16 %v2667
      %v3018 = vunpack.c.l.b16 %v2668
      %v3019 = vunpack.c.h.b16 %v2668
      %v3020 = vunpack.c.l.b16 %v2669
      %v3021 = vunpack.c.h.b16 %v2669
      %v3022 = vunpack.c.l.b16 %v2670
      %v3023 = vunpack.c.h.b16 %v2670
      %v3024 = vunpack.c.l.b16 %v2671
      %v3025 = vunpack.c.h.b16 %v2671
      %v3026 = vunpack.c.l.b16 %v2672
      %v3027 = vunpack.c.h.b16 %v2672
      %v3028 = vunpack.c.l.b16 %v2673
      %v3029 = vunpack.c.h.b16 %v2673
      %v3030 = vunpack.c.l.b16 %v2674
      %v3031 = vunpack.c.h.b16 %v2674
      %v3032 = vunpack.c.l.b16 %v2675
      %v3033 = vunpack.c.h.b16 %v2675
      %v3034 = vunpack.c.l.b16 %v2676
      %v3035 = vunpack.c.h.b16 %v2676
      %v3036 = vunpack.c.l.b16 %v2677
      %v3037 = vunpack.c.h.b16 %v2677
      %v3038 = vunpack.c.l.b16 %v2678
      %v3039 = vunpack.c.h.b16 %v2678
      %v3040 = vunpack.c.l.b16 %v2679
      %v3041 = vunpack.c.h.b16 %v2679
      %v3042 = vunpack.c.l.b16 %v2680
      %v3043 = vunpack.c.h.b16 %v2680
      %v3044 = vunpack.c.l.b16 %v2681
      %v3045 = vunpack.c.h.b16 %v2681
      %v3046 = vunpack.c.l.b16 %v2682
      %v3047 = vunpack.c.h.b16 %v2682
      %v3048 = vunpack.c.l.b16 %v2683
      %v3049 = vunpack.c.h.b16 %v2683
      %v3050 = vunpack.c.l.b16 %v2684
      %v3051 = vunpack.c.h.b16 %v2684
      %v3052 = vunpack.c.l.b16 %v2685
      %v3053 = vunpack.c.h.b16 %v2685
      %v3054 = vunpack.c.l.b16 %v2686
      %v3055 = vunpack.c.h.b16 %v2686
      %v3056 = vunpack.c.l.b16 %v2687
      %v3057 = vunpack.c.h.b16 %v2687
      %v3058 = vunpack.c.l.b16 %v2688
      %v3059 = vunpack.c.h.b16 %v2688
      %v3060 = vunpack.c.l.b16 %v2689
      %v3061 = vunpack.c.h.b16 %v2689
      %v3062 = vunpack.c.l.b16 %v2690
      %v3063 = vunpack.c.h.b16 %v2690
      %v3064 = vunpack.c.l.b16 %v2691
      %v3065 = vunpack.c.h.b16 %v2691
      %v3066 = vunpack.c.l.b16 %v2692
      %v3067 = vunpack.c.h.b16 %v2692
      %v3068 = vunpack.c.l.b16 %v2693
      %v3069 = vunpack.c.h.b16 %v2693
      %v3070 = vunpack.c.l.b16 %v2694
      %v3071 = vunpack.c.h.b16 %v2694
      %v3072 = vunpack.c.l.b16 %v2695
      %v3073 = vunpack.c.h.b16 %v2695
      %v3074 = vunpack.c.l.b16 %v2696
      %v3075 = vunpack.c.h.b16 %v2696
      %v3076 = vunpack.c.l.b16 %v2697
      %v3077 = vunpack.c.h.b16 %v2697
      %v3078 = vunpack.c.l.b16 %v2698
      %v3079 = vunpack.c.h.b16 %v2698
      %v3080 = vunpack.c.l.b16 %v2699
      %v3081 = vunpack.c.h.b16 %v2699
      %v3082 = vunpack.c.l.b16 %v2700
      %v3083 = vunpack.c.h.b16 %v2700
      %v3084 = vunpack.c.l.b16 %v2701
      %v3085 = vunpack.c.h.b16 %v2701
      %v3086 = vunpack.c.l.b16 %v2702
      %v3087 = vunpack.c.h.b16 %v2702
      %v3088 = vunpack.c.l.b16 %v2703
      %v3089 = vunpack.c.h.b16 %v2703
      %v3090 = vunpack.c.l.b16 %v2704
      %v3091 = vunpack.c.h.b16 %v2704
      %v3092 = vunpack.c.l.b16 %v2705
      %v3093 = vunpack.c.h.b16 %v2705
      %v3094 = vunpack.c.l.b16 %v2706
      %v3095 = vunpack.c.h.b16 %v2706
      %v3096 = vunpack.c.l.b16 %v2707
      %v3097 = vunpack.c.h.b16 %v2707
      %v3098 = vunpack.c.l.b16 %v2708
      %v3099 = vunpack.c.h.b16 %v2708
      %v3100 = vunpack.c.l.b16 %v2709
      %v3101 = vunpack.c.h.b16 %v2709
      %v3102 = vunpack.c.l.b16 %v2710
      %v3103 = vunpack.c.h.b16 %v2710
      %v3104 = vunpack.c.l.b16 %v2711
      %v3105 = vunpack.c.h.b16 %v2711
      %v3106 = vunpack.c.l.b16 %v2712
      %v3107 = vunpack.c.h.b16 %v2712
      %v3108 = vunpack.c.l.b16 %v2713
      %v3109 = vunpack.c.h.b16 %v2713
      %v3110 = vunpack.c.l.b16 %v2714
      %v3111 = vunpack.c.h.b16 %v2714
      %v3112 = vunpack.c.l.b16 %v2715
      %v3113 = vunpack.c.h.b16 %v2715
      %v3114 = vunpack.c.l.b16 %v2716
      %v3115 = vunpack.c.h.b16 %v2716
      %v3116 = vunpack.c.l.b16 %v2717
      %v3117 = vunpack.c.h.b16 %v2717
      %v3118 = vunpack.c.l.b16 %v2718
      %v3119 = vunpack.c.h.b16 %v2718
      %v3120 = vunpack.c.l.b16 %v2719
      %v3121 = vunpack.c.h.b16 %v2719
      %v3122 = vunpack.c.l.b16 %v2720
      %v3123 = vunpack.c.h.b16 %v2720
      %v3124 = vunpack.c.l.b16 %v2721
      %v3125 = vunpack.c.h.b16 %v2721
      %v3126 = vunpack.c.l.b16 %v2722
      %v3127 = vunpack.c.h.b16 %v2722
      %v3128 = vunpack.c.l.b16 %v2723
      %v3129 = vunpack.c.h.b16 %v2723
      %v3130 = vunpack.c.l.b16 %v2724
      %v3131 = vunpack.c.h.b16 %v2724
      %v3132 = vunpack.c.l.b16 %v2725
      %v3133 = vunpack.c.h.b16 %v2725
      %v3134 = vunpack.c.l.b16 %v2726
      %v3135 = vunpack.c.h.b16 %v2726
      %v3136 = vunpack.c.l.b16 %v2727
      %v3137 = vunpack.c.h.b16 %v2727
      %v3138 = vunpack.c.l.b16 %v2728
      %v3139 = vunpack.c.h.b16 %v2728
      %v3140 = vunpack.c.l.b16 %v2729
      %v3141 = vunpack.c.h.b16 %v2729
      %v3142 = vunpack.c.l.b16 %v2730
      %v3143 = vunpack.c.h.b16 %v2730
      %v3144 = vunpack.c.l.b16 %v2731
      %v3145 = vunpack.c.h.b16 %v2731
      %v3146 = vunpack.c.l.b16 %v2732
      %v3147 = vunpack.c.h.b16 %v2732
      %v3148 = vunpack.c.l.b16 %v2733
      %v3149 = vunpack.c.h.b16 %v2733
      %v3150 = vunpack.c.l.b16 %v2734
      %v3151 = vunpack.c.h.b16 %v2734
      %v3152 = vunpack.c.l.b16 %v2735
      %v3153 = vunpack.c.h.b16 %v2735
      %v3154 = vunpack.c.l.b16 %v2736
      %v3155 = vunpack.c.h.b16 %v2736
      %v3156 = vunpack.c.l.b16 %v2737
      %v3157 = vunpack.c.h.b16 %v2737
      %v3158 = vunpack.c.l.b16 %v2738
      %v3159 = vunpack.c.h.b16 %v2738
      %v3160 = vunpack.c.l.b16 %v2739
      %v3161 = vunpack.c.h.b16 %v2739
      %v3162 = vunpack.c.l.b16 %v2740
      %v3163 = vunpack.c.h.b16 %v2740
      %v3164 = vunpack.c.l.b16 %v2741
      %v3165 = vunpack.c.h.b16 %v2741
      %v3166 = vunpack.c.l.b16 %v2742
      %v3167 = vunpack.c.h.b16 %v2742
      %v3168 = vunpack.c.l.b16 %v2743
      %v3169 = vunpack.c.h.b16 %v2743
      %v3170 = vunpack.c.l.b16 %v2744
      %v3171 = vunpack.c.h.b16 %v2744
      %v3172 = vunpack.c.l.b16 %v2745
      %v3173 = vunpack.c.h.b16 %v2745
      %v3174 = vunpack.c.l.b16 %v2746
      %v3175 = vunpack.c.h.b16 %v2746
      %v3176 = vunpack.c.l.b16 %v2747
      %v3177 = vunpack.c.h.b16 %v2747
      %v3178 = vunpack.c.l.b16 %v2748
      %v3179 = vunpack.c.h.b16 %v2748
      %v3180 = vunpack.c.l.b16 %v2749
      %v3181 = vunpack.c.h.b16 %v2749
      %v3182 = vunpack.c.l.b16 %v2750
      %v3183 = vunpack.c.h.b16 %v2750
      %v3184 = vunpack.c.l.b16 %v2751
      %v3185 = vunpack.c.h.b16 %v2751
      %v3186 = vunpack.c.l.b16 %v2752
      %v3187 = vunpack.c.h.b16 %v2752
      %v3188 = vunpack.c.l.b16 %v2753
      %v3189 = vunpack.c.h.b16 %v2753
      %v3190 = vunpack.c.l.b16 %v2754
      %v3191 = vunpack.c.h.b16 %v2754
      %v3192 = vunpack.c.l.b16 %v2755
      %v3193 = vunpack.c.h.b16 %v2755
      %v3194 = vunpack.c.l.b16 %v2756
      %v3195 = vunpack.c.h.b16 %v2756
      %v3196 = vunpack.c.l.b16 %v2757
      %v3197 = vunpack.c.h.b16 %v2757
      %v3198 = vunpack.c.l.b16 %v2758
      %v3199 = vunpack.c.h.b16 %v2758
      %v3200 = vunpack.c.l.b16 %v2759
      %v3201 = vunpack.c.h.b16 %v2759
      %v3202 = vunpack.c.l.b16 %v2760
      %v3203 = vunpack.c.h.b16 %v2760
      %v3204 = vunpack.c.l.b16 %v2761
      %v3205 = vunpack.c.h.b16 %v2761
      %v3206 = vpack.c.b16 %v2920, %v2918
      %v3207 = vpack.c.b16 %v2921, %v2919
      %v3208 = vpack.c.b16 %v2924, %v2922
      %v3209 = vpack.c.b16 %v2925, %v2923
      %v3210 = vpack.c.b16 %v2928, %v2926
      %v3211 = vpack.c.b16 %v2929, %v2927
      %v3212 = vpack.c.b16 %v2932, %v2930
      %v3213 = vpack.c.b16 %v2933, %v2931
      %v3214 = vpack.c.b16 %v2936, %v2934
      %v3215 = vpack.c.b16 %v2937, %v2935
      %v3216 = vpack.c.b16 %v2940, %v2938
      %v3217 = vpack.c.b16 %v2941, %v2939
      %v3218 = vpack.c.b16 %v2944, %v2942
      %v3219 = vpack.c.b16 %v2945, %v2943
      %v3220 = vpack.c.b16 %v2948, %v2946
      %v3221 = vpack.c.b16 %v2949, %v2947
      %v3222 = vpack.c.b16 %v2952, %v2950
      %v3223 = vpack.c.b16 %v2953, %v2951
      %v3224 = vpack.c.b16 %v2956, %v2954
      %v3225 = vpack.c.b16 %v2957, %v2955
      %v3226 = vpack.c.b16 %v2960, %v2958
      %v3227 = vpack.c.b16 %v2961, %v2959
      %v3228 = vpack.c.b16 %v2964, %v2962
      %v3229 = vpack.c.b16 %v2965, %v2963
      %v3230 = vpack.c.b16 %v2968, %v2966
      %v3231 = vpack.c.b16 %v2969, %v2967
      %v3232 = vpack.c.b16 %v2972, %v2970
      %v3233 = vpack.c.b16 %v2973, %v2971
      %v3234 = vpack.c.b16 %v2976, %v2974
      %v3235 = vpack.c.b16 %v2977, %v2975
      %v3236 = vpack.c.b16 %v2980, %v2978
      %v3237 = vpack.c.b16 %v2981, %v2979
      %v3238 = vpack.c.b16 %v2984, %v2982
      %v3239 = vpack.c.b16 %v2985, %v2983
      %v3240 = vpack.c.b16 %v2988, %v2986
      %v3241 = vpack.c.b16 %v2989, %v2987
      %v3242 = vpack.c.b16 %v2992, %v2990
      %v3243 = vpack.c.b16 %v2993, %v2991
      %v3244 = vpack.c.b16 %v2996, %v2994
      %v3245 = vpack.c.b16 %v2997, %v2995
      %v3246 = vpack.c.b16 %v3000, %v2998
      %v3247 = vpack.c.b16 %v3001, %v2999
      %v3248 = vpack.c.b16 %v3004, %v3002
      %v3249 = vpack.c.b16 %v3005, %v3003
      %v3250 = vpack.c.b16 %v3008, %v3006
      %v3251 = vpack.c.b16 %v3009, %v3007
      %v3252 = vpack.c.b16 %v3012, %v3010
      %v3253 = vpack.c.b16 %v3013, %v3011
      %v3254 = vpack.c.b16 %v3016, %v3014
      %v3255 = vpack.c.b16 %v3017, %v3015
      %v3256 = vpack.c.b16 %v3020, %v3018
      %v3257 = vpack.c.b16 %v3021, %v3019
      %v3258 = vpack.c.b16 %v3024, %v3022
      %v3259 = vpack.c.b16 %v3025, %v3023
      %v3260 = vpack.c.b16 %v3028, %v3026
      %v3261 = vpack.c.b16 %v3029, %v3027
      %v3262 = vpack.c.b16 %v3032, %v3030
      %v3263 = vpack.c.b16 %v3033, %v3031
      %v3264 = vpack.c.b16 %v3036, %v3034
      %v3265 = vpack.c.b16 %v3037, %v3035
      %v3266 = vpack.c.b16 %v3040, %v3038
      %v3267 = vpack.c.b16 %v3041, %v3039
      %v3268 = vpack.c.b16 %v3044, %v3042
      %v3269 = vpack.c.b16 %v3045, %v3043
      %v3270 = vpack.c.b16 %v3048, %v3046
      %v3271 = vpack.c.b16 %v3049, %v3047
      %v3272 = vpack.c.b16 %v3052, %v3050
      %v3273 = vpack.c.b16 %v3053, %v3051
      %v3274 = vpack.c.b16 %v3056, %v3054
      %v3275 = vpack.c.b16 %v3057, %v3055
      %v3276 = vpack.c.b16 %v3060, %v3058
      %v3277 = vpack.c.b16 %v3061, %v3059
      %v3278 = vpack.c.b16 %v3064, %v3062
      %v3279 = vpack.c.b16 %v3065, %v3063
      %v3280 = vpack.c.b16 %v3068, %v3066
      %v3281 = vpack.c.b16 %v3069, %v3067
      %v3282 = vpack.c.b16 %v3072, %v3070
      %v3283 = vpack.c.b16 %v3073, %v3071
      %v3284 = vpack.c.b16 %v3076, %v3074
      %v3285 = vpack.c.b16 %v3077, %v3075
      %v3286 = vpack.c.b16 %v3080, %v3078
      %v3287 = vpack.c.b16 %v3081, %v3079
      %v3288 = vpack.c.b16 %v3084, %v3082
      %v3289 = vpack.c.b16 %v3085, %v3083
      %v3290 = vpack.c.b16 %v3088, %v3086
      %v3291 = vpack.c.b16 %v3089, %v3087
      %v3292 = vpack.c.b16 %v3092, %v3090
      %v3293 = vpack.c.b16 %v3093, %v3091
      %v3294 = vpack.c.b16 %v3096, %v3094
      %v3295 = vpack.c.b16 %v3097, %v3095
      %v3296 = vpack.c.b16 %v3100, %v3098
      %v3297 = vpack.c.b16 %v3101, %v3099
      %v3298 = vpack.c.b16 %v3104, %v3102
      %v3299 = vpack.c.b16 %v3105, %v3103
      %v3300 = vpack.c.b16 %v3108, %v3106
      %v3301 = vpack.c.b16 %v3109, %v3107
      %v3302 = vpack.c.b16 %v3112, %v3110
      %v3303 = vpack.c.b16 %v3113, %v3111
      %v3304 = vpack.c.b16 %v3116, %v3114
      %v3305 = vpack.c.b16 %v3117, %v3115
      %v3306 = vpack.c.b16 %v3120, %v3118
      %v3307 = vpack.c.b16 %v3121, %v3119
      %v3308 = vpack.c.b16 %v3124, %v3122
      %v3309 = vpack.c.b16 %v3125, %v3123
      %v3310 = vpack.c.b16 %v3128, %v3126
      %v3311 = vpack.c.b16 %v3129, %v3127
      %v3312 = vpack.c.b16 %v3132, %v3130
      %v3313 = vpack.c.b16 %v3133, %v3131
      %v3314 = vpack.c.b16 %v3136, %v3134
      %v3315 = vpack.c.b16 %v3137, %v3135
      %v3316 = vpack.c.b16 %v3140, %v3138
      %v3317 = vpack.c.b16 %v3141, %v3139
      %v3318 = vpack.c.b16 %v3144, %v3142
      %v3319 = vpack.c.b16 %v3145, %v3143
      %v3320 = vpack.c.b16 %v3148, %v3146
      %v3321 = vpack.c.b16 %v3149, %v3147
      %v3322 = vpack.c.b16 %v3152, %v3150
      %v3323 = vpack.c.b16 %v3153, %v3151
      %v3324 = vpack.c.b16 %v3156, %v3154
      %v3325 = vpack.c.b16 %v3157, %v3155
      %v3326 = vpack.c.b16 %v3160, %v3158
      %v3327 = vpack.c.b16 %v3161, %v3159
      %v3328 = vpack.c.b16 %v3164, %v3162
      %v3329 = vpack.c.b16 %v3165, %v3163
      %v3330 = vpack.c.b16 %v3168, %v3166
      %v3331 = vpack.c.b16 %v3169, %v3167
      %v3332 = vpack.c.b16 %v3172, %v3170
      %v3333 = vpack.c.b16 %v3173, %v3171
      %v3334 = vpack.c.b16 %v3176, %v3174
      %v3335 = vpack.c.b16 %v3177, %v3175
      %v3336 = vpack.c.b16 %v3180, %v3178
      %v3337 = vpack.c.b16 %v3181, %v3179
      %v3338 = vpack.c.b16 %v3184, %v3182
      %v3339 = vpack.c.b16 %v3185, %v3183
      %v3340 = vpack.c.b16 %v3188, %v3186
      %v3341 = vpack.c.b16 %v3189, %v3187
      %v3342 = vpack.c.b16 %v3192, %v3190
      %v3343 = vpack.c.b16 %v3193, %v3191
      %v3344 = vpack.c.b16 %v3196, %v3194
      %v3345 = vpack.c.b16 %v3197, %v3195
      %v3346 = vpack.c.b16 %v3200, %v3198
      %v3347 = vpack.c.b16 %v3201, %v3199
      %v3348 = vpack.c.b16 %v3204, %v3202
      %v3349 = vpack.c.b16 %v3205, %v3203
      %3494 = vmatprep.subr.bf16.mxu0 %v3221
      %3495 = vmatpush1.bf16.msra.mxu0 %v3220
      %3496 = vmatprep.subr.bf16.mxu0 %v3219
      %3497 = vmatpush1.bf16.msra.mxu0 %v3218
      %3498 = vmatprep.subr.bf16.mxu0 %v3217
      %3499 = vmatpush1.bf16.msra.mxu0 %v3216
      %3500 = vmatprep.subr.bf16.mxu0 %v3215
      %3501 = vmatpush1.bf16.msra.mxu0 %v3214
      %3502 = vmatprep.subr.bf16.mxu0 %v3213
      %3503 = vmatpush1.bf16.msra.mxu0 %v3212
      %3504 = vmatprep.subr.bf16.mxu0 %v3211
      %3505 = vmatpush1.bf16.msra.mxu0 %v3210
      %3506 = vmatprep.subr.bf16.mxu0 %v3209
      %3507 = vmatpush1.bf16.msra.mxu0 %v3208
      %3508 = vmatprep.subr.bf16.mxu0 %v3207
      %3509 = vmatpush1.bf16.msra.mxu0 %v3206
      %3510 = vmatprep.subr.bf16.mxu0 %v3237
      %3511 = vmatpush2.bf16.msra.mxu0 %v3236
      %3512 = vmatprep.subr.bf16.mxu0 %v3235
      %3513 = vmatpush2.bf16.msra.mxu0 %v3234
      %3514 = vmatprep.subr.bf16.mxu0 %v3233
      %3515 = vmatpush2.bf16.msra.mxu0 %v3232
      %3516 = vmatprep.subr.bf16.mxu0 %v3231
      %3517 = vmatpush2.bf16.msra.mxu0 %v3230
      %3518 = vmatprep.subr.bf16.mxu0 %v3229
      %3519 = vmatpush2.bf16.msra.mxu0 %v3228
      %3520 = vmatprep.subr.bf16.mxu0 %v3227
      %3521 = vmatpush2.bf16.msra.mxu0 %v3226
      %3522 = vmatprep.subr.bf16.mxu0 %v3225
      %3523 = vmatpush2.bf16.msra.mxu0 %v3224
      %3524 = vmatprep.subr.bf16.mxu0 %v3223
      %3525 = vmatpush2.bf16.msra.mxu0 %v3222
      %3526 = vmatprep.mubr.bf16.mxu0 %v2601
      %3527 = vmatmul.mubr.bf16.gmra.mxu0 %v2600
      %v3528 = vpop.f32.mrf.mxu0
      %v3529 = vadd.f32 %v2767, %v3528
      %v3530 = vpop.f32.mrf.mxu0
      %v3531 = vadd.f32 %v2771, %v3530
      %v3532 = vpop.f32.mrf.mxu0
      %v3533 = vadd.f32 %v2767, %v3532
      %v3534 = vpop.f32.mrf.mxu0
      %v3535 = vadd.f32 %v2771, %v3534
      %3536 = vmatprep.mubr.bf16.mxu0 %v2610
      %3537 = vmatmul.mubr.bf16.gmra.mxu0 %v2609
      %v3538 = vpop.f32.mrf.mxu0
      %v3539 = vadd.f32 %v2767, %v3538
      %v3540 = vpop.f32.mrf.mxu0
      %v3541 = vadd.f32 %v2771, %v3540
      %v3542 = vpop.f32.mrf.mxu0
      %v3543 = vadd.f32 %v2767, %v3542
      %v3544 = vpop.f32.mrf.mxu0
      %v3545 = vadd.f32 %v2771, %v3544
      %3546 = vdwg.mxu0
      %3547 = vmatprep.subr.bf16.mxu0 %v3253
      %3548 = vmatpush1.bf16.msra.mxu0 %v3252
      %3549 = vmatprep.subr.bf16.mxu0 %v3251
      %3550 = vmatpush1.bf16.msra.mxu0 %v3250
      %3551 = vmatprep.subr.bf16.mxu0 %v3249
      %3552 = vmatpush1.bf16.msra.mxu0 %v3248
      %3553 = vmatprep.subr.bf16.mxu0 %v3247
      %3554 = vmatpush1.bf16.msra.mxu0 %v3246
      %3555 = vmatprep.subr.bf16.mxu0 %v3245
      %3556 = vmatpush1.bf16.msra.mxu0 %v3244
      %3557 = vmatprep.subr.bf16.mxu0 %v3243
      %3558 = vmatpush1.bf16.msra.mxu0 %v3242
      %3559 = vmatprep.subr.bf16.mxu0 %v3241
      %3560 = vmatpush1.bf16.msra.mxu0 %v3240
      %3561 = vmatprep.subr.bf16.mxu0 %v3239
      %3562 = vmatpush1.bf16.msra.mxu0 %v3238
      %3563 = vmatprep.subr.bf16.mxu0 %v3269
      %3564 = vmatpush2.bf16.msra.mxu0 %v3268
      %3565 = vmatprep.subr.bf16.mxu0 %v3267
      %3566 = vmatpush2.bf16.msra.mxu0 %v3266
      %3567 = vmatprep.subr.bf16.mxu0 %v3265
      %3568 = vmatpush2.bf16.msra.mxu0 %v3264
      %3569 = vmatprep.subr.bf16.mxu0 %v3263
      %3570 = vmatpush2.bf16.msra.mxu0 %v3262
      %3571 = vmatprep.subr.bf16.mxu0 %v3261
      %3572 = vmatpush2.bf16.msra.mxu0 %v3260
      %3573 = vmatprep.subr.bf16.mxu0 %v3259
      %3574 = vmatpush2.bf16.msra.mxu0 %v3258
      %3575 = vmatprep.subr.bf16.mxu0 %v3257
      %3576 = vmatpush2.bf16.msra.mxu0 %v3256
      %3577 = vmatprep.subr.bf16.mxu0 %v3255
      %3578 = vmatpush2.bf16.msra.mxu0 %v3254
      %3579 = vmatprep.mubr.bf16.mxu0 %v2603
      %3580 = vmatmul.mubr.bf16.gmra.mxu0 %v2602
      %v3581 = vpop.f32.mrf.mxu0
      %v3582 = vadd.f32 %v3529, %v3581
      %v3583 = vpop.f32.mrf.mxu0
      %v3584 = vadd.f32 %v3531, %v3583
      %v3585 = vpop.f32.mrf.mxu0
      %v3586 = vadd.f32 %v3533, %v3585
      %v3587 = vpop.f32.mrf.mxu0
      %v3588 = vadd.f32 %v3535, %v3587
      %3589 = vmatprep.mubr.bf16.mxu0 %v2612
      %3590 = vmatmul.mubr.bf16.gmra.mxu0 %v2611
      %v3591 = vpop.f32.mrf.mxu0
      %v3592 = vadd.f32 %v3539, %v3591
      %v3593 = vpop.f32.mrf.mxu0
      %v3594 = vadd.f32 %v3541, %v3593
      %v3595 = vpop.f32.mrf.mxu0
      %v3596 = vadd.f32 %v3543, %v3595
      %v3597 = vpop.f32.mrf.mxu0
      %v3598 = vadd.f32 %v3545, %v3597
      %3599 = vdwg.mxu0
      %3600 = vmatprep.subr.bf16.mxu0 %v3285
      %3601 = vmatpush1.bf16.msra.mxu0 %v3284
      %3602 = vmatprep.subr.bf16.mxu0 %v3283
      %3603 = vmatpush1.bf16.msra.mxu0 %v3282
      %3604 = vmatprep.subr.bf16.mxu0 %v3281
      %3605 = vmatpush1.bf16.msra.mxu0 %v3280
      %3606 = vmatprep.subr.bf16.mxu0 %v3279
      %3607 = vmatpush1.bf16.msra.mxu0 %v3278
      %3608 = vmatprep.subr.bf16.mxu0 %v3277
      %3609 = vmatpush1.bf16.msra.mxu0 %v3276
      %3610 = vmatprep.subr.bf16.mxu0 %v3275
      %3611 = vmatpush1.bf16.msra.mxu0 %v3274
      %3612 = vmatprep.subr.bf16.mxu0 %v3273
      %3613 = vmatpush1.bf16.msra.mxu0 %v3272
      %3614 = vmatprep.subr.bf16.mxu0 %v3271
      %3615 = vmatpush1.bf16.msra.mxu0 %v3270
      %3616 = vmatprep.subr.bf16.mxu0 %v3301
      %3617 = vmatpush2.bf16.msra.mxu0 %v3300
      %3618 = vmatprep.subr.bf16.mxu0 %v3299
      %3619 = vmatpush2.bf16.msra.mxu0 %v3298
      %3620 = vmatprep.subr.bf16.mxu0 %v3297
      %3621 = vmatpush2.bf16.msra.mxu0 %v3296
      %3622 = vmatprep.subr.bf16.mxu0 %v3295
      %3623 = vmatpush2.bf16.msra.mxu0 %v3294
      %3624 = vmatprep.subr.bf16.mxu0 %v3293
      %3625 = vmatpush2.bf16.msra.mxu0 %v3292
      %3626 = vmatprep.subr.bf16.mxu0 %v3291
      %3627 = vmatpush2.bf16.msra.mxu0 %v3290
      %3628 = vmatprep.subr.bf16.mxu0 %v3289
      %3629 = vmatpush2.bf16.msra.mxu0 %v3288
      %3630 = vmatprep.subr.bf16.mxu0 %v3287
      %3631 = vmatpush2.bf16.msra.mxu0 %v3286
      %3632 = vmatprep.mubr.bf16.mxu0 %v2605
      %3633 = vmatmul.mubr.bf16.gmra.mxu0 %v2604
      %v3634 = vpop.f32.mrf.mxu0
      %v3635 = vadd.f32 %v3582, %v3634
      %v3636 = vpop.f32.mrf.mxu0
      %v3637 = vadd.f32 %v3584, %v3636
      %v3638 = vpop.f32.mrf.mxu0
      %v3639 = vadd.f32 %v3586, %v3638
      %v3640 = vpop.f32.mrf.mxu0
      %v3641 = vadd.f32 %v3588, %v3640
      %3642 = vmatprep.mubr.bf16.mxu0 %v2614
      %3643 = vmatmul.mubr.bf16.gmra.mxu0 %v2613
      %v3644 = vpop.f32.mrf.mxu0
      %v3645 = vadd.f32 %v3592, %v3644
      %v3646 = vpop.f32.mrf.mxu0
      %v3647 = vadd.f32 %v3594, %v3646
      %v3648 = vpop.f32.mrf.mxu0
      %v3649 = vadd.f32 %v3596, %v3648
      %v3650 = vpop.f32.mrf.mxu0
      %v3651 = vadd.f32 %v3598, %v3650
      %3652 = vdwg.mxu0
      %3653 = vmatprep.subr.bf16.mxu0 %v3317
      %3654 = vmatpush1.bf16.msra.mxu0 %v3316
      %3655 = vmatprep.subr.bf16.mxu0 %v3315
      %3656 = vmatpush1.bf16.msra.mxu0 %v3314
      %3657 = vmatprep.subr.bf16.mxu0 %v3313
      %3658 = vmatpush1.bf16.msra.mxu0 %v3312
      %3659 = vmatprep.subr.bf16.mxu0 %v3311
      %3660 = vmatpush1.bf16.msra.mxu0 %v3310
      %3661 = vmatprep.subr.bf16.mxu0 %v3309
      %3662 = vmatpush1.bf16.msra.mxu0 %v3308
      %3663 = vmatprep.subr.bf16.mxu0 %v3307
      %3664 = vmatpush1.bf16.msra.mxu0 %v3306
      %3665 = vmatprep.subr.bf16.mxu0 %v3305
      %3666 = vmatpush1.bf16.msra.mxu0 %v3304
      %3667 = vmatprep.subr.bf16.mxu0 %v3303
      %3668 = vmatpush1.bf16.msra.mxu0 %v3302
      %3669 = vmatprep.subr.bf16.mxu0 %v3333
      %3670 = vmatpush2.bf16.msra.mxu0 %v3332
      %3671 = vmatprep.subr.bf16.mxu0 %v3331
      %3672 = vmatpush2.bf16.msra.mxu0 %v3330
      %3673 = vmatprep.subr.bf16.mxu0 %v3329
      %3674 = vmatpush2.bf16.msra.mxu0 %v3328
      %3675 = vmatprep.subr.bf16.mxu0 %v3327
      %3676 = vmatpush2.bf16.msra.mxu0 %v3326
      %3677 = vmatprep.subr.bf16.mxu0 %v3325
      %3678 = vmatpush2.bf16.msra.mxu0 %v3324
      %3679 = vmatprep.subr.bf16.mxu0 %v3323
      %3680 = vmatpush2.bf16.msra.mxu0 %v3322
      %3681 = vmatprep.subr.bf16.mxu0 %v3321
      %3682 = vmatpush2.bf16.msra.mxu0 %v3320
      %3683 = vmatprep.subr.bf16.mxu0 %v3319
      %3684 = vmatpush2.bf16.msra.mxu0 %v3318
      %3685 = vmatprep.mubr.bf16.mxu0 %v2607
      %3686 = vmatmul.mubr.bf16.gmra.mxu0 %v2606
      %v3687 = vpop.f32.mrf.mxu0
      %v3688 = vadd.f32 %v3635, %v3687
      %v3689 = vpop.f32.mrf.mxu0
      %v3690 = vadd.f32 %v3637, %v3689
      %v3691 = vpop.f32.mrf.mxu0
      %v3692 = vadd.f32 %v3639, %v3691
      %v3693 = vpop.f32.mrf.mxu0
      %v3694 = vadd.f32 %v3641, %v3693
      %3695 = vmatprep.mubr.bf16.mxu0 %v2616
      %3696 = vmatmul.mubr.bf16.gmra.mxu0 %v2615
      %v3697 = vpop.f32.mrf.mxu0
      %v3698 = vadd.f32 %v3645, %v3697
      %v3699 = vpop.f32.mrf.mxu0
      %v3700 = vadd.f32 %v3647, %v3699
      %v3701 = vpop.f32.mrf.mxu0
      %v3702 = vadd.f32 %v3649, %v3701
      %v3703 = vpop.f32.mrf.mxu0
      %v3704 = vadd.f32 %v3651, %v3703
      %3705 = vdwg.mxu0
      %3706 = vmatprep.subr.bf16.mxu0 %v3349
      %3707 = vmatpush1.bf16.msra.mxu0 %v3348
      %3708 = vmatprep.subr.bf16.mxu0 %v3347
      %3709 = vmatpush1.bf16.msra.mxu0 %v3346
      %3710 = vmatprep.subr.bf16.mxu0 %v3345
      %3711 = vmatpush1.bf16.msra.mxu0 %v3344
      %3712 = vmatprep.subr.bf16.mxu0 %v3343
      %3713 = vmatpush1.bf16.msra.mxu0 %v3342
      %3714 = vmatprep.subr.bf16.mxu0 %v3341
      %3715 = vmatpush1.bf16.msra.mxu0 %v3340
      %3716 = vmatprep.subr.bf16.mxu0 %v3339
      %3717 = vmatpush1.bf16.msra.mxu0 %v3338
      %3718 = vmatprep.subr.bf16.mxu0 %v3337
      %3719 = vmatpush1.bf16.msra.mxu0 %v3336
      %3720 = vmatprep.subr.bf16.mxu0 %v3335
      %3721 = vmatpush1.bf16.msra.mxu0 %v3334
      %3722 = vmatprep.subr.bf16.mxu0 0
      %3723 = vmatpush2.bf16.msra.mxu0 0
      %3724 = vmatprep.subr.bf16.mxu0 0
      %3725 = vmatpush2.bf16.msra.mxu0 0
      %3726 = vmatprep.subr.bf16.mxu0 0
      %3727 = vmatpush2.bf16.msra.mxu0 0
      %3728 = vmatprep.subr.bf16.mxu0 0
      %3729 = vmatpush2.bf16.msra.mxu0 0
      %3730 = vmatprep.subr.bf16.mxu0 0
      %3731 = vmatpush2.bf16.msra.mxu0 0
      %3732 = vmatprep.subr.bf16.mxu0 0
      %3733 = vmatpush2.bf16.msra.mxu0 0
      %3734 = vmatprep.subr.bf16.mxu0 0
      %3735 = vmatpush2.bf16.msra.mxu0 0
      %3736 = vmatprep.subr.bf16.mxu0 0
      %3737 = vmatpush2.bf16.msra.mxu0 0
      %3738 = vmatprep.mubr.bf16.mxu0 0
      %3739 = vmatmul.mubr.bf16.gmra.mxu0 %v2608
      %v3740 = vpop.f32.mrf.mxu0
      %v3741 = vadd.f32 %v3688, %v3740
      %v3742 = vpop.f32.mrf.mxu0
      %v3743 = vadd.f32 %v3690, %v3742
      %v3744 = vpop.f32.mrf.mxu0
      %v3745 = vadd.f32 %v3692, %v3744
      %v3746 = vpop.f32.mrf.mxu0
      %v3747 = vadd.f32 %v3694, %v3746
      %3748 = vmatprep.mubr.bf16.mxu0 0
      %3749 = vmatmul.mubr.bf16.gmra.mxu0 %v2617
      %v3750 = vpop.f32.mrf.mxu0
      %v3751 = vadd.f32 %v3698, %v3750
      %v3752 = vpop.f32.mrf.mxu0
      %v3753 = vadd.f32 %v3700, %v3752
      %v3754 = vpop.f32.mrf.mxu0
      %v3755 = vadd.f32 %v3702, %v3754
      %v3756 = vpop.f32.mrf.mxu0
      %v3757 = vadd.f32 %v3704, %v3756
      %3758 = vdwg.mxu0
      %3767 = vrot.lane.b32.xlu0 %v3741, 64
      %v3768 = vpop.permute.xlu0 %3767
      %3769 = vrot.lane.b32.xlu0 %v3743, 64
      %v3770 = vpop.permute.xlu0 %3769
      %3771 = vrot.lane.b32.xlu0 %v3745, 64
      %v3772 = vpop.permute.xlu0 %3771
      %3773 = vrot.lane.b32.xlu0 %v3747, 64
      %v3774 = vpop.permute.xlu0 %3773
      %3775 = vrot.lane.b32.xlu0 %v3751, 64
      %v3776 = vpop.permute.xlu0 %3775
      %3777 = vrot.lane.b32.xlu0 %v3753, 64
      %v3778 = vpop.permute.xlu0 %3777
      %3779 = vrot.lane.b32.xlu0 %v3755, 64
      %v3780 = vpop.permute.xlu0 %3779
      %3781 = vrot.lane.b32.xlu0 %v3757, 64
      %v3782 = vpop.permute.xlu0 %3781
      %v3783 = vsel %vm467, %v3768, %v3770
      %v3784 = vsel %vm467, %v3772, %v3774
      %v3785 = vsel %vm467, %v3776, %v3778
      %v3786 = vsel %vm467, %v3780, %v3782
      %vm3795 = vcmask 1048064
      %3796 = vst.msk [vmem:[%s393 + $0x18] sm:$0xff] %vm3795, %v3768
      %3797 = vst [vmem:[%s393 + $0x20] sm:$0xff] %v3783
      %3798 = vst.msk [vmem:[%s393 + $0x50] sm:$0xff] %vm3795, %v3772
      %3799 = vst [vmem:[%s393 + $0x58] sm:$0xff] %v3784
      %3800 = vst.msk [vmem:[%s393 + $0x88] sm:$0xff] %vm3795, %v3776
      %3801 = vst [vmem:[%s393 + $0x90] sm:$0xff] %v3785
      %3802 = vst.msk [vmem:[%s393 + $0xc0] sm:$0xff] %vm3795, %v3780
      %3803 = vst [vmem:[%s393 + $0xc8] sm:$0xff] %v3786
      %v3804 = vld [vmem:[#allocation4] sm:$0xff]
      %v3805 = vld [vmem:[#allocation4 + $0x8] sm:$0xff]
      %v3806 = vld [vmem:[#allocation4 + $0x10] sm:$0xff]
      %v3807 = vld [vmem:[#allocation4 + $0x18] sm:$0xff]
      %v3808 = vld [vmem:[#allocation4 + $0x20] sm:$0xff]
      %v3809 = vld [vmem:[#allocation4 + $0x28] sm:$0xff]
      %v3810 = vld [vmem:[#allocation4 + $0x30] sm:$0xff]
      %v3811 = vld [vmem:[#allocation4 + $0x38] sm:$0xff]
      %v3812 = vld [vmem:[#allocation4 + $0x40] sm:$0xff]
      %v3813 = vld [vmem:[#allocation4 + $0x48] sm:$0xff]
      %v3814 = vld [vmem:[#allocation4 + $0x50] sm:$0xff]
      %v3815 = vld [vmem:[#allocation4 + $0x58] sm:$0xff]
      %v3816 = vld [vmem:[#allocation4 + $0x60] sm:$0xff]
      %v3817 = vld [vmem:[#allocation4 + $0x68] sm:$0xff]
      %v3818 = vld [vmem:[#allocation4 + $0x70] sm:$0xff]
      %v3819 = vld [vmem:[#allocation4 + $0x78] sm:$0xff]
      %v3820 = vld [vmem:[#allocation4 + $0x80] sm:$0xff]
      %v3821 = vld [vmem:[#allocation4 + $0x88] sm:$0xff]
      %v3822 = vld [vmem:[#allocation4 + $0x90] sm:$0xff]
      %v3823 = vld [vmem:[#allocation4 + $0x98] sm:$0xff]
      %v3824 = vld [vmem:[#allocation4 + $0xa0] sm:$0xff]
      %v3825 = vld [vmem:[#allocation4 + $0xa8] sm:$0xff]
      %v3826 = vld [vmem:[#allocation4 + $0xb0] sm:$0xff]
      %v3827 = vld [vmem:[#allocation4 + $0xb8] sm:$0xff]
      %v3828 = vld [vmem:[#allocation4 + $0xc0] sm:$0xff]
      %v3829 = vld [vmem:[#allocation4 + $0xc8] sm:$0xff]
      %v3830 = vld [vmem:[#allocation4 + $0xd0] sm:$0xff]
      %v3831 = vld [vmem:[#allocation4 + $0xd8] sm:$0xff]
      %v3832 = vld [vmem:[#allocation4 + $0xe0] sm:$0xff]
      %v3833 = vld [vmem:[#allocation4 + $0xe8] sm:$0xff]
      %v3834 = vld [vmem:[#allocation4 + $0xf0] sm:$0xff]
      %v3835 = vld [vmem:[#allocation4 + $0xf8] sm:$0xff]
      %v3836 = vld [vmem:[#allocation4 + $0x100] sm:$0xff]
      %v3837 = vld [vmem:[#allocation4 + $0x108] sm:$0xff]
      %v3838 = vld [vmem:[#allocation4 + $0x110] sm:$0xff]
      %v3839 = vld [vmem:[#allocation4 + $0x118] sm:$0xff]
      %v3840 = vpack.c.bf16 %v3813, %v3804
      %v3841 = vpack.c.bf16 %v3814, %v3805
      %v3842 = vpack.c.bf16 %v3815, %v3806
      %v3843 = vpack.c.bf16 %v3816, %v3807
      %v3844 = vpack.c.bf16 %v3817, %v3808
      %v3845 = vpack.c.bf16 %v3818, %v3809
      %v3846 = vpack.c.bf16 %v3819, %v3810
      %v3847 = vpack.c.bf16 %v3820, %v3811
      %v3848 = vpack.c.bf16 %v3821, %v3812
      %v3849 = vpack.c.bf16 %v3831, %v3822
      %v3850 = vpack.c.bf16 %v3832, %v3823
      %v3851 = vpack.c.bf16 %v3833, %v3824
      %v3852 = vpack.c.bf16 %v3834, %v3825
      %v3853 = vpack.c.bf16 %v3835, %v3826
      %v3854 = vpack.c.bf16 %v3836, %v3827
      %v3855 = vpack.c.bf16 %v3837, %v3828
      %v3856 = vpack.c.bf16 %v3838, %v3829
      %v3857 = vpack.c.bf16 %v3839, %v3830
      %v3858 = vld [vmem:[%s5] sm:$0xf]
      %v3859 = vld [vmem:[%s5 + $0x4] sm:$0xf]
      %v3860 = vld [vmem:[%s5 + $0x8] sm:$0xf]
      %v3861 = vld [vmem:[%s5 + $0xc] sm:$0xf]
      %v3862 = vld [vmem:[%s5 + $0x10] sm:$0xf]
      %v3863 = vld [vmem:[%s5 + $0x14] sm:$0xf]
      %v3864 = vld [vmem:[%s5 + $0x18] sm:$0xf]
      %v3865 = vld [vmem:[%s5 + $0x1c] sm:$0xf]
      %v3866 = vld [vmem:[%s5 + $0x20] sm:$0xf]
      %v3867 = vld [vmem:[%s5 + $0x24] sm:$0xf]
      %v3868 = vld [vmem:[%s5 + $0x28] sm:$0xf]
      %v3869 = vld [vmem:[%s5 + $0x2c] sm:$0xf]
      %v3870 = vld [vmem:[%s5 + $0x30] sm:$0xf]
      %v3871 = vld [vmem:[%s5 + $0x34] sm:$0xf]
      %v3872 = vld [vmem:[%s5 + $0x38] sm:$0xf]
      %v3873 = vld [vmem:[%s5 + $0x3c] sm:$0xf]
      %v3874 = vld [vmem:[%s5 + $0x40] sm:$0xf]
      %v3875 = vld [vmem:[%s5 + $0x44] sm:$0xf]
      %v3876 = vld [vmem:[%s5 + $0x48] sm:$0xf]
      %v3877 = vld [vmem:[%s5 + $0x4c] sm:$0xf]
      %v3878 = vld [vmem:[%s5 + $0x50] sm:$0xf]
      %v3879 = vld [vmem:[%s5 + $0x54] sm:$0xf]
      %v3880 = vld [vmem:[%s5 + $0x58] sm:$0xf]
      %v3881 = vld [vmem:[%s5 + $0x5c] sm:$0xf]
      %v3882 = vld [vmem:[%s5 + $0x60] sm:$0xf]
      %v3883 = vld [vmem:[%s5 + $0x64] sm:$0xf]
      %v3884 = vld [vmem:[%s5 + $0x68] sm:$0xf]
      %v3885 = vld [vmem:[%s5 + $0x6c] sm:$0xf]
      %v3886 = vld [vmem:[%s5 + $0x70] sm:$0xf]
      %v3887 = vld [vmem:[%s5 + $0x74] sm:$0xf]
      %v3888 = vld [vmem:[%s5 + $0x78] sm:$0xf]
      %v3889 = vld [vmem:[%s5 + $0x7c] sm:$0xf]
      %v3890 = vld [vmem:[%s5 + $0x80] sm:$0xf]
      %v3891 = vld [vmem:[%s5 + $0x84] sm:$0xf]
      %v3892 = vld [vmem:[%s5 + $0x88] sm:$0xf]
      %v3893 = vld [vmem:[%s5 + $0x8c] sm:$0xf]
      %v3894 = vld [vmem:[%s5 + $0x90] sm:$0xf]
      %v3895 = vld [vmem:[%s5 + $0x94] sm:$0xf]
      %v3896 = vld [vmem:[%s5 + $0x98] sm:$0xf]
      %v3897 = vld [vmem:[%s5 + $0x9c] sm:$0xf]
      %v3898 = vld [vmem:[%s5 + $0xa0] sm:$0xf]
      %v3899 = vld [vmem:[%s5 + $0xa4] sm:$0xf]
      %v3900 = vld [vmem:[%s5 + $0xa8] sm:$0xf]
      %v3901 = vld [vmem:[%s5 + $0xac] sm:$0xf]
      %v3902 = vld [vmem:[%s5 + $0xb0] sm:$0xf]
      %v3903 = vld [vmem:[%s5 + $0xb4] sm:$0xf]
      %v3904 = vld [vmem:[%s5 + $0xb8] sm:$0xf]
      %v3905 = vld [vmem:[%s5 + $0xbc] sm:$0xf]
      %v3906 = vld [vmem:[%s5 + $0xc0] sm:$0xf]
      %v3907 = vld [vmem:[%s5 + $0xc4] sm:$0xf]
      %v3908 = vld [vmem:[%s5 + $0xc8] sm:$0xf]
      %v3909 = vld [vmem:[%s5 + $0xcc] sm:$0xf]
      %v3910 = vld [vmem:[%s5 + $0xd0] sm:$0xf]
      %v3911 = vld [vmem:[%s5 + $0xd4] sm:$0xf]
      %v3912 = vld [vmem:[%s5 + $0xd8] sm:$0xf]
      %v3913 = vld [vmem:[%s5 + $0xdc] sm:$0xf]
      %v3914 = vld [vmem:[%s5 + $0xe0] sm:$0xf]
      %v3915 = vld [vmem:[%s5 + $0xe4] sm:$0xf]
      %v3916 = vld [vmem:[%s5 + $0xe8] sm:$0xf]
      %v3917 = vld [vmem:[%s5 + $0xec] sm:$0xf]
      %v3918 = vld [vmem:[%s5 + $0xf0] sm:$0xf]
      %v3919 = vld [vmem:[%s5 + $0xf4] sm:$0xf]
      %v3920 = vld [vmem:[%s5 + $0xf8] sm:$0xf]
      %v3921 = vld [vmem:[%s5 + $0xfc] sm:$0xf]
      %v3922 = vld [vmem:[%s5 + $0x100] sm:$0xf]
      %v3923 = vld [vmem:[%s5 + $0x104] sm:$0xf]
      %v3924 = vld [vmem:[%s5 + $0x108] sm:$0xf]
      %v3925 = vld [vmem:[%s5 + $0x10c] sm:$0xf]
      %v3926 = vld [vmem:[%s5 + $0x110] sm:$0xf]
      %v3927 = vld [vmem:[%s5 + $0x114] sm:$0xf]
      %v3928 = vld [vmem:[%s5 + $0x118] sm:$0xf]
      %v3929 = vld [vmem:[%s5 + $0x11c] sm:$0xf]
      %v3930 = vld [vmem:[%s5 + $0x120] sm:$0xf]
      %v3931 = vld [vmem:[%s5 + $0x124] sm:$0xf]
      %v3932 = vld [vmem:[%s5 + $0x128] sm:$0xf]
      %v3933 = vld [vmem:[%s5 + $0x12c] sm:$0xf]
      %v3934 = vld [vmem:[%s5 + $0x130] sm:$0xf]
      %v3935 = vld [vmem:[%s5 + $0x134] sm:$0xf]
      %v3936 = vld [vmem:[%s5 + $0x138] sm:$0xf]
      %v3937 = vld [vmem:[%s5 + $0x13c] sm:$0xf]
      %v3938 = vld [vmem:[%s5 + $0x140] sm:$0xf]
      %v3939 = vld [vmem:[%s5 + $0x144] sm:$0xf]
      %v3940 = vld [vmem:[%s5 + $0x148] sm:$0xf]
      %v3941 = vld [vmem:[%s5 + $0x14c] sm:$0xf]
      %v3942 = vld [vmem:[%s5 + $0x150] sm:$0xf]
      %v3943 = vld [vmem:[%s5 + $0x154] sm:$0xf]
      %v3944 = vld [vmem:[%s5 + $0x158] sm:$0xf]
      %v3945 = vld [vmem:[%s5 + $0x15c] sm:$0xf]
      %v3946 = vld [vmem:[%s5 + $0x160] sm:$0xf]
      %v3947 = vld [vmem:[%s5 + $0x164] sm:$0xf]
      %v3948 = vld [vmem:[%s5 + $0x168] sm:$0xf]
      %v3949 = vld [vmem:[%s5 + $0x16c] sm:$0xf]
      %v3950 = vld [vmem:[%s5 + $0x170] sm:$0xf]
      %v3951 = vld [vmem:[%s5 + $0x174] sm:$0xf]
      %v3952 = vld [vmem:[%s5 + $0x178] sm:$0xf]
      %v3953 = vld [vmem:[%s5 + $0x17c] sm:$0xf]
      %v3954 = vld [vmem:[%s5 + $0x180] sm:$0xf]
      %v3955 = vld [vmem:[%s5 + $0x184] sm:$0xf]
      %v3956 = vld [vmem:[%s5 + $0x188] sm:$0xf]
      %v3957 = vld [vmem:[%s5 + $0x18c] sm:$0xf]
      %v3958 = vld [vmem:[%s5 + $0x190] sm:$0xf]
      %v3959 = vld [vmem:[%s5 + $0x194] sm:$0xf]
      %v3960 = vld [vmem:[%s5 + $0x198] sm:$0xf]
      %v3961 = vld [vmem:[%s5 + $0x19c] sm:$0xf]
      %v3962 = vld [vmem:[%s5 + $0x1a0] sm:$0xf]
      %v3963 = vld [vmem:[%s5 + $0x1a4] sm:$0xf]
      %v3964 = vld [vmem:[%s5 + $0x1a8] sm:$0xf]
      %v3965 = vld [vmem:[%s5 + $0x1ac] sm:$0xf]
      %v3966 = vld [vmem:[%s5 + $0x1b0] sm:$0xf]
      %v3967 = vld [vmem:[%s5 + $0x1b4] sm:$0xf]
      %v3968 = vld [vmem:[%s5 + $0x1b8] sm:$0xf]
      %v3969 = vld [vmem:[%s5 + $0x1bc] sm:$0xf]
      %v3970 = vld [vmem:[%s5 + $0x1c0] sm:$0xf]
      %v3971 = vld [vmem:[%s5 + $0x1c4] sm:$0xf]
      %v3972 = vld [vmem:[%s5 + $0x1c8] sm:$0xf]
      %v3973 = vld [vmem:[%s5 + $0x1cc] sm:$0xf]
      %v3974 = vld [vmem:[%s5 + $0x1d0] sm:$0xf]
      %v3975 = vld [vmem:[%s5 + $0x1d4] sm:$0xf]
      %v3976 = vld [vmem:[%s5 + $0x1d8] sm:$0xf]
      %v3977 = vld [vmem:[%s5 + $0x1dc] sm:$0xf]
      %v3978 = vld [vmem:[%s5 + $0x1e0] sm:$0xf]
      %v3979 = vld [vmem:[%s5 + $0x1e4] sm:$0xf]
      %v3980 = vld [vmem:[%s5 + $0x1e8] sm:$0xf]
      %v3981 = vld [vmem:[%s5 + $0x1ec] sm:$0xf]
      %v3982 = vld [vmem:[%s5 + $0x1f0] sm:$0xf]
      %v3983 = vld [vmem:[%s5 + $0x1f4] sm:$0xf]
      %v3984 = vld [vmem:[%s5 + $0x1f8] sm:$0xf]
      %v3985 = vld [vmem:[%s5 + $0x1fc] sm:$0xf]
      %v3986 = vld [vmem:[%s5 + $0x200] sm:$0xf]
      %v3987 = vld [vmem:[%s5 + $0x204] sm:$0xf]
      %v3988 = vld [vmem:[%s5 + $0x208] sm:$0xf]
      %v3989 = vld [vmem:[%s5 + $0x20c] sm:$0xf]
      %v3990 = vld [vmem:[%s5 + $0x210] sm:$0xf]
      %v3991 = vld [vmem:[%s5 + $0x214] sm:$0xf]
      %v3992 = vld [vmem:[%s5 + $0x218] sm:$0xf]
      %v3993 = vld [vmem:[%s5 + $0x21c] sm:$0xf]
      %v3994 = vld [vmem:[%s5 + $0x220] sm:$0xf]
      %v3995 = vld [vmem:[%s5 + $0x224] sm:$0xf]
      %v3996 = vld [vmem:[%s5 + $0x228] sm:$0xf]
      %v3997 = vld [vmem:[%s5 + $0x22c] sm:$0xf]
      %v3998 = vld [vmem:[%s5 + $0x230] sm:$0xf]
      %v3999 = vld [vmem:[%s5 + $0x234] sm:$0xf]
      %v4000 = vld [vmem:[%s5 + $0x238] sm:$0xf]
      %v4001 = vld [vmem:[%s5 + $0x23c] sm:$0xf]
      %v4002 = vld [vmem:[%s6] sm:$0x1]
      %v4004 = vlaneseq
      %v4005 = vshrl.u32 %v4004, 7
      %v4006 = vsub.s32 0, %v4005
      %v4007 = vrot.slane %v4002, %v4006
      %v4153 = vunpack.c.l.b16 %v3858
      %v4154 = vunpack.c.l.b16 %v3859
      %v4155 = vunpack.c.l.b16 %v3860
      %v4156 = vunpack.c.l.b16 %v3861
      %v4157 = vunpack.c.l.b16 %v3862
      %v4158 = vunpack.c.l.b16 %v3863
      %v4159 = vunpack.c.l.b16 %v3864
      %v4160 = vunpack.c.l.b16 %v3865
      %v4161 = vunpack.c.l.b16 %v3866
      %v4162 = vunpack.c.l.b16 %v3867
      %v4163 = vunpack.c.l.b16 %v3868
      %v4164 = vunpack.c.l.b16 %v3869
      %v4165 = vunpack.c.l.b16 %v3870
      %v4166 = vunpack.c.l.b16 %v3871
      %v4167 = vunpack.c.l.b16 %v3872
      %v4168 = vunpack.c.l.b16 %v3873
      %v4169 = vunpack.c.l.b16 %v3874
      %v4170 = vunpack.c.l.b16 %v3875
      %v4171 = vunpack.c.l.b16 %v3876
      %v4172 = vunpack.c.l.b16 %v3877
      %v4173 = vunpack.c.l.b16 %v3878
      %v4174 = vunpack.c.l.b16 %v3879
      %v4175 = vunpack.c.l.b16 %v3880
      %v4176 = vunpack.c.l.b16 %v3881
      %v4177 = vunpack.c.l.b16 %v3882
      %v4178 = vunpack.c.l.b16 %v3883
      %v4179 = vunpack.c.l.b16 %v3884
      %v4180 = vunpack.c.l.b16 %v3885
      %v4181 = vunpack.c.l.b16 %v3886
      %v4182 = vunpack.c.l.b16 %v3887
      %v4183 = vunpack.c.l.b16 %v3888
      %v4184 = vunpack.c.l.b16 %v3889
      %v4185 = vunpack.c.l.b16 %v3890
      %v4186 = vunpack.c.l.b16 %v3891
      %v4187 = vunpack.c.l.b16 %v3892
      %v4188 = vunpack.c.l.b16 %v3893
      %v4189 = vunpack.c.l.b16 %v3894
      %v4190 = vunpack.c.l.b16 %v3895
      %v4191 = vunpack.c.l.b16 %v3896
      %v4192 = vunpack.c.l.b16 %v3897
      %v4193 = vunpack.c.l.b16 %v3898
      %v4194 = vunpack.c.l.b16 %v3899
      %v4195 = vunpack.c.l.b16 %v3900
      %v4196 = vunpack.c.l.b16 %v3901
      %v4197 = vunpack.c.l.b16 %v3902
      %v4198 = vunpack.c.l.b16 %v3903
      %v4199 = vunpack.c.l.b16 %v3904
      %v4200 = vunpack.c.l.b16 %v3905
      %v4201 = vunpack.c.l.b16 %v3906
      %v4202 = vunpack.c.l.b16 %v3907
      %v4203 = vunpack.c.l.b16 %v3908
      %v4204 = vunpack.c.l.b16 %v3909
      %v4205 = vunpack.c.l.b16 %v3910
      %v4206 = vunpack.c.l.b16 %v3911
      %v4207 = vunpack.c.l.b16 %v3912
      %v4208 = vunpack.c.l.b16 %v3913
      %v4209 = vunpack.c.l.b16 %v3914
      %v4210 = vunpack.c.l.b16 %v3915
      %v4211 = vunpack.c.l.b16 %v3916
      %v4212 = vunpack.c.l.b16 %v3917
      %v4213 = vunpack.c.l.b16 %v3918
      %v4214 = vunpack.c.l.b16 %v3919
      %v4215 = vunpack.c.l.b16 %v3920
      %v4216 = vunpack.c.l.b16 %v3921
      %v4217 = vunpack.c.l.b16 %v3922
      %v4218 = vunpack.c.l.b16 %v3923
      %v4219 = vunpack.c.l.b16 %v3924
      %v4220 = vunpack.c.l.b16 %v3925
      %v4221 = vunpack.c.l.b16 %v3926
      %v4222 = vunpack.c.l.b16 %v3927
      %v4223 = vunpack.c.l.b16 %v3928
      %v4224 = vunpack.c.l.b16 %v3929
      %v4225 = vunpack.c.l.b16 %v3930
      %v4226 = vunpack.c.l.b16 %v3931
      %v4227 = vunpack.c.l.b16 %v3932
      %v4228 = vunpack.c.l.b16 %v3933
      %v4229 = vunpack.c.l.b16 %v3934
      %v4230 = vunpack.c.l.b16 %v3935
      %v4231 = vunpack.c.l.b16 %v3936
      %v4232 = vunpack.c.l.b16 %v3937
      %v4233 = vunpack.c.l.b16 %v3938
      %v4234 = vunpack.c.l.b16 %v3939
      %v4235 = vunpack.c.l.b16 %v3940
      %v4236 = vunpack.c.l.b16 %v3941
      %v4237 = vunpack.c.l.b16 %v3942
      %v4238 = vunpack.c.l.b16 %v3943
      %v4239 = vunpack.c.l.b16 %v3944
      %v4240 = vunpack.c.l.b16 %v3945
      %v4241 = vunpack.c.l.b16 %v3946
      %v4242 = vunpack.c.l.b16 %v3947
      %v4243 = vunpack.c.l.b16 %v3948
      %v4244 = vunpack.c.l.b16 %v3949
      %v4245 = vunpack.c.l.b16 %v3950
      %v4246 = vunpack.c.l.b16 %v3951
      %v4247 = vunpack.c.l.b16 %v3952
      %v4248 = vunpack.c.l.b16 %v3953
      %v4249 = vunpack.c.l.b16 %v3954
      %v4250 = vunpack.c.l.b16 %v3955
      %v4251 = vunpack.c.l.b16 %v3956
      %v4252 = vunpack.c.l.b16 %v3957
      %v4253 = vunpack.c.l.b16 %v3958
      %v4254 = vunpack.c.l.b16 %v3959
      %v4255 = vunpack.c.l.b16 %v3960
      %v4256 = vunpack.c.l.b16 %v3961
      %v4257 = vunpack.c.l.b16 %v3962
      %v4258 = vunpack.c.l.b16 %v3963
      %v4259 = vunpack.c.l.b16 %v3964
      %v4260 = vunpack.c.l.b16 %v3965
      %v4261 = vunpack.c.l.b16 %v3966
      %v4262 = vunpack.c.l.b16 %v3967
      %v4263 = vunpack.c.l.b16 %v3968
      %v4264 = vunpack.c.l.b16 %v3969
      %v4265 = vunpack.c.l.b16 %v3970
      %v4266 = vunpack.c.l.b16 %v3971
      %v4267 = vunpack.c.l.b16 %v3972
      %v4268 = vunpack.c.l.b16 %v3973
      %v4269 = vunpack.c.l.b16 %v3974
      %v4270 = vunpack.c.l.b16 %v3975
      %v4271 = vunpack.c.l.b16 %v3976
      %v4272 = vunpack.c.l.b16 %v3977
      %v4273 = vunpack.c.l.b16 %v3978
      %v4274 = vunpack.c.l.b16 %v3979
      %v4275 = vunpack.c.l.b16 %v3980
      %v4276 = vunpack.c.l.b16 %v3981
      %v4277 = vunpack.c.l.b16 %v3982
      %v4278 = vunpack.c.l.b16 %v3983
      %v4279 = vunpack.c.l.b16 %v3984
      %v4280 = vunpack.c.l.b16 %v3985
      %v4281 = vunpack.c.l.b16 %v3986
      %v4282 = vunpack.c.l.b16 %v3987
      %v4283 = vunpack.c.l.b16 %v3988
      %v4284 = vunpack.c.l.b16 %v3989
      %v4285 = vunpack.c.l.b16 %v3990
      %v4286 = vunpack.c.l.b16 %v3991
      %v4287 = vunpack.c.l.b16 %v3992
      %v4288 = vunpack.c.l.b16 %v3993
      %v4289 = vunpack.c.l.b16 %v3994
      %v4290 = vunpack.c.l.b16 %v3995
      %v4291 = vunpack.c.l.b16 %v3996
      %v4292 = vunpack.c.l.b16 %v3997
      %v4293 = vunpack.c.l.b16 %v3998
      %v4294 = vunpack.c.l.b16 %v3999
      %v4295 = vunpack.c.l.b16 %v4000
      %v4296 = vunpack.c.l.b16 %v4001
      %v4297 = vpack.c.b16 %v4154, %v4153
      %v4298 = vpack.c.b16 %v4156, %v4155
      %v4299 = vpack.c.b16 %v4158, %v4157
      %v4300 = vpack.c.b16 %v4160, %v4159
      %v4301 = vpack.c.b16 %v4162, %v4161
      %v4302 = vpack.c.b16 %v4164, %v4163
      %v4303 = vpack.c.b16 %v4166, %v4165
      %v4304 = vpack.c.b16 %v4168, %v4167
      %v4305 = vpack.c.b16 %v4170, %v4169
      %v4306 = vpack.c.b16 %v4172, %v4171
      %v4307 = vpack.c.b16 %v4174, %v4173
      %v4308 = vpack.c.b16 %v4176, %v4175
      %v4309 = vpack.c.b16 %v4178, %v4177
      %v4310 = vpack.c.b16 %v4180, %v4179
      %v4311 = vpack.c.b16 %v4182, %v4181
      %v4312 = vpack.c.b16 %v4184, %v4183
      %v4313 = vpack.c.b16 %v4186, %v4185
      %v4314 = vpack.c.b16 %v4188, %v4187
      %v4315 = vpack.c.b16 %v4190, %v4189
      %v4316 = vpack.c.b16 %v4192, %v4191
      %v4317 = vpack.c.b16 %v4194, %v4193
      %v4318 = vpack.c.b16 %v4196, %v4195
      %v4319 = vpack.c.b16 %v4198, %v4197
      %v4320 = vpack.c.b16 %v4200, %v4199
      %v4321 = vpack.c.b16 %v4202, %v4201
      %v4322 = vpack.c.b16 %v4204, %v4203
      %v4323 = vpack.c.b16 %v4206, %v4205
      %v4324 = vpack.c.b16 %v4208, %v4207
      %v4325 = vpack.c.b16 %v4210, %v4209
      %v4326 = vpack.c.b16 %v4212, %v4211
      %v4327 = vpack.c.b16 %v4214, %v4213
      %v4328 = vpack.c.b16 %v4216, %v4215
      %v4329 = vpack.c.b16 %v4218, %v4217
      %v4330 = vpack.c.b16 %v4220, %v4219
      %v4331 = vpack.c.b16 %v4222, %v4221
      %v4332 = vpack.c.b16 %v4224, %v4223
      %v4333 = vpack.c.b16 %v4226, %v4225
      %v4334 = vpack.c.b16 %v4228, %v4227
      %v4335 = vpack.c.b16 %v4230, %v4229
      %v4336 = vpack.c.b16 %v4232, %v4231
      %v4337 = vpack.c.b16 %v4234, %v4233
      %v4338 = vpack.c.b16 %v4236, %v4235
      %v4339 = vpack.c.b16 %v4238, %v4237
      %v4340 = vpack.c.b16 %v4240, %v4239
      %v4341 = vpack.c.b16 %v4242, %v4241
      %v4342 = vpack.c.b16 %v4244, %v4243
      %v4343 = vpack.c.b16 %v4246, %v4245
      %v4344 = vpack.c.b16 %v4248, %v4247
      %v4345 = vpack.c.b16 %v4250, %v4249
      %v4346 = vpack.c.b16 %v4252, %v4251
      %v4347 = vpack.c.b16 %v4254, %v4253
      %v4348 = vpack.c.b16 %v4256, %v4255
      %v4349 = vpack.c.b16 %v4258, %v4257
      %v4350 = vpack.c.b16 %v4260, %v4259
      %v4351 = vpack.c.b16 %v4262, %v4261
      %v4352 = vpack.c.b16 %v4264, %v4263
      %v4353 = vpack.c.b16 %v4266, %v4265
      %v4354 = vpack.c.b16 %v4268, %v4267
      %v4355 = vpack.c.b16 %v4270, %v4269
      %v4356 = vpack.c.b16 %v4272, %v4271
      %v4357 = vpack.c.b16 %v4274, %v4273
      %v4358 = vpack.c.b16 %v4276, %v4275
      %v4359 = vpack.c.b16 %v4278, %v4277
      %v4360 = vpack.c.b16 %v4280, %v4279
      %v4361 = vpack.c.b16 %v4282, %v4281
      %v4362 = vpack.c.b16 %v4284, %v4283
      %v4363 = vpack.c.b16 %v4286, %v4285
      %v4364 = vpack.c.b16 %v4288, %v4287
      %v4365 = vpack.c.b16 %v4290, %v4289
      %v4366 = vpack.c.b16 %v4292, %v4291
      %v4367 = vpack.c.b16 %v4294, %v4293
      %v4368 = vpack.c.b16 %v4296, %v4295
      %4441 = vmatprep.subr.bf16.mxu0 0
      %4442 = vmatpush1.bf16.msra.mxu0 %v4304
      %4443 = vmatprep.subr.bf16.mxu0 0
      %4444 = vmatpush1.bf16.msra.mxu0 %v4303
      %4445 = vmatprep.subr.bf16.mxu0 0
      %4446 = vmatpush1.bf16.msra.mxu0 %v4302
      %4447 = vmatprep.subr.bf16.mxu0 0
      %4448 = vmatpush1.bf16.msra.mxu0 %v4301
      %4449 = vmatprep.subr.bf16.mxu0 0
      %4450 = vmatpush1.bf16.msra.mxu0 %v4300
      %4451 = vmatprep.subr.bf16.mxu0 0
      %4452 = vmatpush1.bf16.msra.mxu0 %v4299
      %4453 = vmatprep.subr.bf16.mxu0 0
      %4454 = vmatpush1.bf16.msra.mxu0 %v4298
      %4455 = vmatprep.subr.bf16.mxu0 0
      %4456 = vmatpush1.bf16.msra.mxu0 %v4297
      %4457 = vmatprep.subr.bf16.mxu0 0
      %4458 = vmatpush2.bf16.msra.mxu0 %v4312
      %4459 = vmatprep.subr.bf16.mxu0 0
      %4460 = vmatpush2.bf16.msra.mxu0 %v4311
      %4461 = vmatprep.subr.bf16.mxu0 0
      %4462 = vmatpush2.bf16.msra.mxu0 %v4310
      %4463 = vmatprep.subr.bf16.mxu0 0
      %4464 = vmatpush2.bf16.msra.mxu0 %v4309
      %4465 = vmatprep.subr.bf16.mxu0 0
      %4466 = vmatpush2.bf16.msra.mxu0 %v4308
      %4467 = vmatprep.subr.bf16.mxu0 0
      %4468 = vmatpush2.bf16.msra.mxu0 %v4307
      %4469 = vmatprep.subr.bf16.mxu0 0
      %4470 = vmatpush2.bf16.msra.mxu0 %v4306
      %4471 = vmatprep.subr.bf16.mxu0 0
      %4472 = vmatpush2.bf16.msra.mxu0 %v4305
      %4473 = vmatprep.mubr.bf16.mxu0 %v3841
      %4474 = vmatmul.mubr.bf16.gmra.mxu0 %v3840
      %v4475 = vpop.f32.mrf.mxu0
      %v4476 = vadd.f32 %v4007, %v4475
      %v4477 = vpop.f32.mrf.mxu0
      %v4478 = vpop.f32.mrf.mxu0
      %v4479 = vadd.f32 %v4007, %v4478
      %v4480 = vpop.f32.mrf.mxu0
      %4481 = vmatprep.mubr.bf16.mxu0 %v3850
      %4482 = vmatmul.mubr.bf16.gmra.mxu0 %v3849
      %v4483 = vpop.f32.mrf.mxu0
      %v4484 = vadd.f32 %v4007, %v4483
      %v4485 = vpop.f32.mrf.mxu0
      %v4486 = vpop.f32.mrf.mxu0
      %v4487 = vadd.f32 %v4007, %v4486
      %v4488 = vpop.f32.mrf.mxu0
      %4489 = vdwg.mxu0
      %4490 = vmatprep.subr.bf16.mxu0 0
      %4491 = vmatpush1.bf16.msra.mxu0 %v4320
      %4492 = vmatprep.subr.bf16.mxu0 0
      %4493 = vmatpush1.bf16.msra.mxu0 %v4319
      %4494 = vmatprep.subr.bf16.mxu0 0
      %4495 = vmatpush1.bf16.msra.mxu0 %v4318
      %4496 = vmatprep.subr.bf16.mxu0 0
      %4497 = vmatpush1.bf16.msra.mxu0 %v4317
      %4498 = vmatprep.subr.bf16.mxu0 0
      %4499 = vmatpush1.bf16.msra.mxu0 %v4316
      %4500 = vmatprep.subr.bf16.mxu0 0
      %4501 = vmatpush1.bf16.msra.mxu0 %v4315
      %4502 = vmatprep.subr.bf16.mxu0 0
      %4503 = vmatpush1.bf16.msra.mxu0 %v4314
      %4504 = vmatprep.subr.bf16.mxu0 0
      %4505 = vmatpush1.bf16.msra.mxu0 %v4313
      %4506 = vmatprep.subr.bf16.mxu0 0
      %4507 = vmatpush2.bf16.msra.mxu0 %v4328
      %4508 = vmatprep.subr.bf16.mxu0 0
      %4509 = vmatpush2.bf16.msra.mxu0 %v4327
      %4510 = vmatprep.subr.bf16.mxu0 0
      %4511 = vmatpush2.bf16.msra.mxu0 %v4326
      %4512 = vmatprep.subr.bf16.mxu0 0
      %4513 = vmatpush2.bf16.msra.mxu0 %v4325
      %4514 = vmatprep.subr.bf16.mxu0 0
      %4515 = vmatpush2.bf16.msra.mxu0 %v4324
      %4516 = vmatprep.subr.bf16.mxu0 0
      %4517 = vmatpush2.bf16.msra.mxu0 %v4323
      %4518 = vmatprep.subr.bf16.mxu0 0
      %4519 = vmatpush2.bf16.msra.mxu0 %v4322
      %4520 = vmatprep.subr.bf16.mxu0 0
      %4521 = vmatpush2.bf16.msra.mxu0 %v4321
      %4522 = vmatprep.mubr.bf16.mxu0 %v3843
      %4523 = vmatmul.mubr.bf16.gmra.mxu0 %v3842
      %v4524 = vpop.f32.mrf.mxu0
      %v4525 = vadd.f32 %v4476, %v4524
      %v4526 = vpop.f32.mrf.mxu0
      %v4527 = vpop.f32.mrf.mxu0
      %v4528 = vadd.f32 %v4479, %v4527
      %v4529 = vpop.f32.mrf.mxu0
      %4530 = vmatprep.mubr.bf16.mxu0 %v3852
      %4531 = vmatmul.mubr.bf16.gmra.mxu0 %v3851
      %v4532 = vpop.f32.mrf.mxu0
      %v4533 = vadd.f32 %v4484, %v4532
      %v4534 = vpop.f32.mrf.mxu0
      %v4535 = vpop.f32.mrf.mxu0
      %v4536 = vadd.f32 %v4487, %v4535
      %v4537 = vpop.f32.mrf.mxu0
      %4538 = vdwg.mxu0
      %4539 = vmatprep.subr.bf16.mxu0 0
      %4540 = vmatpush1.bf16.msra.mxu0 %v4336
      %4541 = vmatprep.subr.bf16.mxu0 0
      %4542 = vmatpush1.bf16.msra.mxu0 %v4335
      %4543 = vmatprep.subr.bf16.mxu0 0
      %4544 = vmatpush1.bf16.msra.mxu0 %v4334
      %4545 = vmatprep.subr.bf16.mxu0 0
      %4546 = vmatpush1.bf16.msra.mxu0 %v4333
      %4547 = vmatprep.subr.bf16.mxu0 0
      %4548 = vmatpush1.bf16.msra.mxu0 %v4332
      %4549 = vmatprep.subr.bf16.mxu0 0
      %4550 = vmatpush1.bf16.msra.mxu0 %v4331
      %4551 = vmatprep.subr.bf16.mxu0 0
      %4552 = vmatpush1.bf16.msra.mxu0 %v4330
      %4553 = vmatprep.subr.bf16.mxu0 0
      %4554 = vmatpush1.bf16.msra.mxu0 %v4329
      %4555 = vmatprep.subr.bf16.mxu0 0
      %4556 = vmatpush2.bf16.msra.mxu0 %v4344
      %4557 = vmatprep.subr.bf16.mxu0 0
      %4558 = vmatpush2.bf16.msra.mxu0 %v4343
      %4559 = vmatprep.subr.bf16.mxu0 0
      %4560 = vmatpush2.bf16.msra.mxu0 %v4342
      %4561 = vmatprep.subr.bf16.mxu0 0
      %4562 = vmatpush2.bf16.msra.mxu0 %v4341
      %4563 = vmatprep.subr.bf16.mxu0 0
      %4564 = vmatpush2.bf16.msra.mxu0 %v4340
      %4565 = vmatprep.subr.bf16.mxu0 0
      %4566 = vmatpush2.bf16.msra.mxu0 %v4339
      %4567 = vmatprep.subr.bf16.mxu0 0
      %4568 = vmatpush2.bf16.msra.mxu0 %v4338
      %4569 = vmatprep.subr.bf16.mxu0 0
      %4570 = vmatpush2.bf16.msra.mxu0 %v4337
      %4571 = vmatprep.mubr.bf16.mxu0 %v3845
      %4572 = vmatmul.mubr.bf16.gmra.mxu0 %v3844
      %v4573 = vpop.f32.mrf.mxu0
      %v4574 = vadd.f32 %v4525, %v4573
      %v4575 = vpop.f32.mrf.mxu0
      %v4576 = vpop.f32.mrf.mxu0
      %v4577 = vadd.f32 %v4528, %v4576
      %v4578 = vpop.f32.mrf.mxu0
      %4579 = vmatprep.mubr.bf16.mxu0 %v3854
      %4580 = vmatmul.mubr.bf16.gmra.mxu0 %v3853
      %v4581 = vpop.f32.mrf.mxu0
      %v4582 = vadd.f32 %v4533, %v4581
      %v4583 = vpop.f32.mrf.mxu0
      %v4584 = vpop.f32.mrf.mxu0
      %v4585 = vadd.f32 %v4536, %v4584
      %v4586 = vpop.f32.mrf.mxu0
      %4587 = vdwg.mxu0
      %4588 = vmatprep.subr.bf16.mxu0 0
      %4589 = vmatpush1.bf16.msra.mxu0 %v4352
      %4590 = vmatprep.subr.bf16.mxu0 0
      %4591 = vmatpush1.bf16.msra.mxu0 %v4351
      %4592 = vmatprep.subr.bf16.mxu0 0
      %4593 = vmatpush1.bf16.msra.mxu0 %v4350
      %4594 = vmatprep.subr.bf16.mxu0 0
      %4595 = vmatpush1.bf16.msra.mxu0 %v4349
      %4596 = vmatprep.subr.bf16.mxu0 0
      %4597 = vmatpush1.bf16.msra.mxu0 %v4348
      %4598 = vmatprep.subr.bf16.mxu0 0
      %4599 = vmatpush1.bf16.msra.mxu0 %v4347
      %4600 = vmatprep.subr.bf16.mxu0 0
      %4601 = vmatpush1.bf16.msra.mxu0 %v4346
      %4602 = vmatprep.subr.bf16.mxu0 0
      %4603 = vmatpush1.bf16.msra.mxu0 %v4345
      %4604 = vmatprep.subr.bf16.mxu0 0
      %4605 = vmatpush2.bf16.msra.mxu0 %v4360
      %4606 = vmatprep.subr.bf16.mxu0 0
      %4607 = vmatpush2.bf16.msra.mxu0 %v4359
      %4608 = vmatprep.subr.bf16.mxu0 0
      %4609 = vmatpush2.bf16.msra.mxu0 %v4358
      %4610 = vmatprep.subr.bf16.mxu0 0
      %4611 = vmatpush2.bf16.msra.mxu0 %v4357
      %4612 = vmatprep.subr.bf16.mxu0 0
      %4613 = vmatpush2.bf16.msra.mxu0 %v4356
      %4614 = vmatprep.subr.bf16.mxu0 0
      %4615 = vmatpush2.bf16.msra.mxu0 %v4355
      %4616 = vmatprep.subr.bf16.mxu0 0
      %4617 = vmatpush2.bf16.msra.mxu0 %v4354
      %4618 = vmatprep.subr.bf16.mxu0 0
      %4619 = vmatpush2.bf16.msra.mxu0 %v4353
      %4620 = vmatprep.mubr.bf16.mxu0 %v3847
      %4621 = vmatmul.mubr.bf16.gmra.mxu0 %v3846
      %v4622 = vpop.f32.mrf.mxu0
      %v4623 = vadd.f32 %v4574, %v4622
      %v4624 = vpop.f32.mrf.mxu0
      %v4625 = vpop.f32.mrf.mxu0
      %v4626 = vadd.f32 %v4577, %v4625
      %v4627 = vpop.f32.mrf.mxu0
      %4628 = vmatprep.mubr.bf16.mxu0 %v3856
      %4629 = vmatmul.mubr.bf16.gmra.mxu0 %v3855
      %v4630 = vpop.f32.mrf.mxu0
      %v4631 = vadd.f32 %v4582, %v4630
      %v4632 = vpop.f32.mrf.mxu0
      %v4633 = vpop.f32.mrf.mxu0
      %v4634 = vadd.f32 %v4585, %v4633
      %v4635 = vpop.f32.mrf.mxu0
      %4636 = vdwg.mxu0
      %4637 = vmatprep.subr.bf16.mxu0 0
      %4638 = vmatpush1.bf16.msra.mxu0 %v4368
      %4639 = vmatprep.subr.bf16.mxu0 0
      %4640 = vmatpush1.bf16.msra.mxu0 %v4367
      %4641 = vmatprep.subr.bf16.mxu0 0
      %4642 = vmatpush1.bf16.msra.mxu0 %v4366
      %4643 = vmatprep.subr.bf16.mxu0 0
      %4644 = vmatpush1.bf16.msra.mxu0 %v4365
      %4645 = vmatprep.subr.bf16.mxu0 0
      %4646 = vmatpush1.bf16.msra.mxu0 %v4364
      %4647 = vmatprep.subr.bf16.mxu0 0
      %4648 = vmatpush1.bf16.msra.mxu0 %v4363
      %4649 = vmatprep.subr.bf16.mxu0 0
      %4650 = vmatpush1.bf16.msra.mxu0 %v4362
      %4651 = vmatprep.subr.bf16.mxu0 0
      %4652 = vmatpush1.bf16.msra.mxu0 %v4361
      %4653 = vmatprep.subr.bf16.mxu0 0
      %4654 = vmatpush2.bf16.msra.mxu0 0
      %4655 = vmatprep.subr.bf16.mxu0 0
      %4656 = vmatpush2.bf16.msra.mxu0 0
      %4657 = vmatprep.subr.bf16.mxu0 0
      %4658 = vmatpush2.bf16.msra.mxu0 0
      %4659 = vmatprep.subr.bf16.mxu0 0
      %4660 = vmatpush2.bf16.msra.mxu0 0
      %4661 = vmatprep.subr.bf16.mxu0 0
      %4662 = vmatpush2.bf16.msra.mxu0 0
      %4663 = vmatprep.subr.bf16.mxu0 0
      %4664 = vmatpush2.bf16.msra.mxu0 0
      %4665 = vmatprep.subr.bf16.mxu0 0
      %4666 = vmatpush2.bf16.msra.mxu0 0
      %4667 = vmatprep.subr.bf16.mxu0 0
      %4668 = vmatpush2.bf16.msra.mxu0 0
      %4669 = vmatprep.mubr.bf16.mxu0 0
      %4670 = vmatmul.mubr.bf16.gmra.mxu0 %v3848
      %v4671 = vpop.f32.mrf.mxu0
      %v4672 = vadd.f32 %v4623, %v4671
      %v4673 = vpop.f32.mrf.mxu0
      %v4674 = vpop.f32.mrf.mxu0
      %v4675 = vadd.f32 %v4626, %v4674
      %v4676 = vpop.f32.mrf.mxu0
      %4677 = vmatprep.mubr.bf16.mxu0 0
      %4678 = vmatmul.mubr.bf16.gmra.mxu0 %v3857
      %v4679 = vpop.f32.mrf.mxu0
      %v4680 = vadd.f32 %v4631, %v4679
      %v4681 = vpop.f32.mrf.mxu0
      %v4682 = vpop.f32.mrf.mxu0
      %v4683 = vadd.f32 %v4634, %v4682
      %v4684 = vpop.f32.mrf.mxu0
      %4685 = vdwg.mxu0
      %4686 = vst [vmem:[%s393 + $0x28] sm:$0xff] %v4672
      %4687 = vst [vmem:[%s393 + $0x60] sm:$0xff] %v4675
      %4688 = vst [vmem:[%s393 + $0x98] sm:$0xff] %v4680
      %4689 = vst [vmem:[%s393 + $0xd0] sm:$0xff] %v4683
      %v4690 = vld [vmem:[#allocation2 + $0x10] sm:$0xff]
      %v4691 = vld [vmem:[#allocation2 + $0x28] sm:$0xff]
      %v4692 = vld [vmem:[#allocation2 + $0x40] sm:$0xff]
      %v4693 = vld [vmem:[#allocation2 + $0x58] sm:$0xff]
      %4694 = vst [vmem:[#allocation5] sm:$0xff] %v4690
      %4695 = vst [vmem:[#allocation5 + $0x48] sm:$0xff] %v4691
      %4696 = vst [vmem:[#allocation5 + $0x90] sm:$0xff] %v4692
      %4697 = vst [vmem:[#allocation5 + $0xd8] sm:$0xff] %v4693
      %v4698 = vld [vmem:[#allocation2 + $0x28] sm:$0xff]
      %v4699 = vld [vmem:[#allocation2 + $0x40] sm:$0xff]
      %v4700 = vld [vmem:[#allocation2 + $0x58] sm:$0xff]
      %v4701 = vld [vmem:[#allocation2 + $0x70] sm:$0xff]
      %4702 = vst [vmem:[#allocation5 + $0x8] sm:$0xff] %v4698
      %4703 = vst [vmem:[#allocation5 + $0x50] sm:$0xff] %v4699
      %4704 = vst [vmem:[#allocation5 + $0x98] sm:$0xff] %v4700
      %4705 = vst [vmem:[#allocation5 + $0xe0] sm:$0xff] %v4701
      %v4706 = vld [vmem:[#allocation2 + $0x40] sm:$0xff]
      %v4707 = vld [vmem:[#allocation2 + $0x58] sm:$0xff]
      %v4708 = vld [vmem:[#allocation2 + $0x70] sm:$0xff]
      %v4709 = vld [vmem:[#allocation2 + $0x88] sm:$0xff]
      %4710 = vst [vmem:[#allocation5 + $0x10] sm:$0xff] %v4706
      %4711 = vst [vmem:[#allocation5 + $0x58] sm:$0xff] %v4707
      %4712 = vst [vmem:[#allocation5 + $0xa0] sm:$0xff] %v4708
      %4713 = vst [vmem:[#allocation5 + $0xe8] sm:$0xff] %v4709
      %v4714 = vld [vmem:[#allocation2 + $0xa0] sm:$0xff]
      %v4715 = vld [vmem:[#allocation2 + $0xb8] sm:$0xff]
      %v4716 = vld [vmem:[#allocation2 + $0xd0] sm:$0xff]
      %v4717 = vld [vmem:[#allocation2 + $0xe8] sm:$0xff]
      %4718 = vst [vmem:[#allocation5 + $0x18] sm:$0xff] %v4714
      %4719 = vst [vmem:[#allocation5 + $0x60] sm:$0xff] %v4715
      %4720 = vst [vmem:[#allocation5 + $0xa8] sm:$0xff] %v4716
      %4721 = vst [vmem:[#allocation5 + $0xf0] sm:$0xff] %v4717
      %v4722 = vld [vmem:[#allocation2 + $0xb8] sm:$0xff]
      %v4723 = vld [vmem:[#allocation2 + $0xd0] sm:$0xff]
      %v4724 = vld [vmem:[#allocation2 + $0xe8] sm:$0xff]
      %v4725 = vld [vmem:[#allocation2 + $0x100] sm:$0xff]
      %4726 = vst [vmem:[#allocation5 + $0x20] sm:$0xff] %v4722
      %4727 = vst [vmem:[#allocation5 + $0x68] sm:$0xff] %v4723
      %4728 = vst [vmem:[#allocation5 + $0xb0] sm:$0xff] %v4724
      %4729 = vst [vmem:[#allocation5 + $0xf8] sm:$0xff] %v4725
      %v4730 = vld [vmem:[#allocation2 + $0xd0] sm:$0xff]
      %v4731 = vld [vmem:[#allocation2 + $0xe8] sm:$0xff]
      %v4732 = vld [vmem:[#allocation2 + $0x100] sm:$0xff]
      %v4733 = vld [vmem:[#allocation2 + $0x118] sm:$0xff]
      %4734 = vst [vmem:[#allocation5 + $0x28] sm:$0xff] %v4730
      %4735 = vst [vmem:[#allocation5 + $0x70] sm:$0xff] %v4731
      %4736 = vst [vmem:[#allocation5 + $0xb8] sm:$0xff] %v4732
      %4737 = vst [vmem:[#allocation5 + $0x100] sm:$0xff] %v4733
      %v4738 = vld [vmem:[#allocation2 + $0x130] sm:$0xff]
      %v4739 = vld [vmem:[#allocation2 + $0x148] sm:$0xff]
      %v4740 = vld [vmem:[#allocation2 + $0x160] sm:$0xff]
      %v4741 = vld [vmem:[#allocation2 + $0x178] sm:$0xff]
      %4742 = vst [vmem:[#allocation5 + $0x30] sm:$0xff] %v4738
      %4743 = vst [vmem:[#allocation5 + $0x78] sm:$0xff] %v4739
      %4744 = vst [vmem:[#allocation5 + $0xc0] sm:$0xff] %v4740
      %4745 = vst [vmem:[#allocation5 + $0x108] sm:$0xff] %v4741
      %v4746 = vld [vmem:[#allocation2 + $0x148] sm:$0xff]
      %v4747 = vld [vmem:[#allocation2 + $0x160] sm:$0xff]
      %v4748 = vld [vmem:[#allocation2 + $0x178] sm:$0xff]
      %v4749 = vld [vmem:[#allocation2 + $0x190] sm:$0xff]
      %4750 = vst [vmem:[#allocation5 + $0x38] sm:$0xff] %v4746
      %4751 = vst [vmem:[#allocation5 + $0x80] sm:$0xff] %v4747
      %4752 = vst [vmem:[#allocation5 + $0xc8] sm:$0xff] %v4748
      %4753 = vst [vmem:[#allocation5 + $0x110] sm:$0xff] %v4749
      %v4754 = vld [vmem:[#allocation2 + $0x160] sm:$0xff]
      %v4755 = vld [vmem:[#allocation2 + $0x178] sm:$0xff]
      %v4756 = vld [vmem:[#allocation2 + $0x190] sm:$0xff]
      %v4757 = vld [vmem:[#allocation2 + $0x1a8] sm:$0xff]
      %4758 = vst [vmem:[#allocation5 + $0x40] sm:$0xff] %v4754
      %4759 = vst [vmem:[#allocation5 + $0x88] sm:$0xff] %v4755
      %4760 = vst [vmem:[#allocation5 + $0xd0] sm:$0xff] %v4756
      %4761 = vst [vmem:[#allocation5 + $0x118] sm:$0xff] %v4757
      %v4762 = vld [vmem:[#allocation2 + $0xa0] sm:$0xff]
      %v4763 = vld [vmem:[#allocation2 + $0xb8] sm:$0xff]
      %v4764 = vld [vmem:[#allocation2 + $0xd0] sm:$0xff]
      %v4765 = vld [vmem:[#allocation2 + $0xe8] sm:$0xff]
      %4766 = vst [vmem:[#allocation5 + $0x120] sm:$0xff] %v4762
      %4767 = vst [vmem:[#allocation5 + $0x168] sm:$0xff] %v4763
      %4768 = vst [vmem:[#allocation5 + $0x1b0] sm:$0xff] %v4764
      %4769 = vst [vmem:[#allocation5 + $0x1f8] sm:$0xff] %v4765
      %v4770 = vld [vmem:[#allocation2 + $0xb8] sm:$0xff]
      %v4771 = vld [vmem:[#allocation2 + $0xd0] sm:$0xff]
      %v4772 = vld [vmem:[#allocation2 + $0xe8] sm:$0xff]
      %v4773 = vld [vmem:[#allocation2 + $0x100] sm:$0xff]
      %4774 = vst [vmem:[#allocation5 + $0x128] sm:$0xff] %v4770
      %4775 = vst [vmem:[#allocation5 + $0x170] sm:$0xff] %v4771
      %4776 = vst [vmem:[#allocation5 + $0x1b8] sm:$0xff] %v4772
      %4777 = vst [vmem:[#allocation5 + $0x200] sm:$0xff] %v4773
      %v4778 = vld [vmem:[#allocation2 + $0xd0] sm:$0xff]
      %v4779 = vld [vmem:[#allocation2 + $0xe8] sm:$0xff]
      %v4780 = vld [vmem:[#allocation2 + $0x100] sm:$0xff]
      %v4781 = vld [vmem:[#allocation2 + $0x118] sm:$0xff]
      %4782 = vst [vmem:[#allocation5 + $0x130] sm:$0xff] %v4778
      %4783 = vst [vmem:[#allocation5 + $0x178] sm:$0xff] %v4779
      %4784 = vst [vmem:[#allocation5 + $0x1c0] sm:$0xff] %v4780
      %4785 = vst [vmem:[#allocation5 + $0x208] sm:$0xff] %v4781
      %v4786 = vld [vmem:[#allocation2 + $0x130] sm:$0xff]
      %v4787 = vld [vmem:[#allocation2 + $0x148] sm:$0xff]
      %v4788 = vld [vmem:[#allocation2 + $0x160] sm:$0xff]
      %v4789 = vld [vmem:[#allocation2 + $0x178] sm:$0xff]
      %4790 = vst [vmem:[#allocation5 + $0x138] sm:$0xff] %v4786
      %4791 = vst [vmem:[#allocation5 + $0x180] sm:$0xff] %v4787
      %4792 = vst [vmem:[#allocation5 + $0x1c8] sm:$0xff] %v4788
      %4793 = vst [vmem:[#allocation5 + $0x210] sm:$0xff] %v4789
      %v4794 = vld [vmem:[#allocation2 + $0x148] sm:$0xff]
      %v4795 = vld [vmem:[#allocation2 + $0x160] sm:$0xff]
      %v4796 = vld [vmem:[#allocation2 + $0x178] sm:$0xff]
      %v4797 = vld [vmem:[#allocation2 + $0x190] sm:$0xff]
      %4798 = vst [vmem:[#allocation5 + $0x140] sm:$0xff] %v4794
      %4799 = vst [vmem:[#allocation5 + $0x188] sm:$0xff] %v4795
      %4800 = vst [vmem:[#allocation5 + $0x1d0] sm:$0xff] %v4796
      %4801 = vst [vmem:[#allocation5 + $0x218] sm:$0xff] %v4797
      %v4802 = vld [vmem:[#allocation2 + $0x160] sm:$0xff]
      %v4803 = vld [vmem:[#allocation2 + $0x178] sm:$0xff]
      %v4804 = vld [vmem:[#allocation2 + $0x190] sm:$0xff]
      %v4805 = vld [vmem:[#allocation2 + $0x1a8] sm:$0xff]
      %4806 = vst [vmem:[#allocation5 + $0x148] sm:$0xff] %v4802
      %4807 = vst [vmem:[#allocation5 + $0x190] sm:$0xff] %v4803
      %4808 = vst [vmem:[#allocation5 + $0x1d8] sm:$0xff] %v4804
      %4809 = vst [vmem:[#allocation5 + $0x220] sm:$0xff] %v4805
      %v4810 = vld [vmem:[#allocation2 + $0x1c0] sm:$0xff]
      %v4811 = vld [vmem:[#allocation2 + $0x1d8] sm:$0xff]
      %v4812 = vld [vmem:[#allocation2 + $0x1f0] sm:$0xff]
      %v4813 = vld [vmem:[#allocation2 + $0x208] sm:$0xff]
      %4814 = vst [vmem:[#allocation5 + $0x150] sm:$0xff] %v4810
      %4815 = vst [vmem:[#allocation5 + $0x198] sm:$0xff] %v4811
      %4816 = vst [vmem:[#allocation5 + $0x1e0] sm:$0xff] %v4812
      %4817 = vst [vmem:[#allocation5 + $0x228] sm:$0xff] %v4813
      %v4818 = vld [vmem:[#allocation2 + $0x1d8] sm:$0xff]
      %v4819 = vld [vmem:[#allocation2 + $0x1f0] sm:$0xff]
      %v4820 = vld [vmem:[#allocation2 + $0x208] sm:$0xff]
      %v4821 = vld [vmem:[#allocation2 + $0x220] sm:$0xff]
      %4822 = vst [vmem:[#allocation5 + $0x158] sm:$0xff] %v4818
      %4823 = vst [vmem:[#allocation5 + $0x1a0] sm:$0xff] %v4819
      %4824 = vst [vmem:[#allocation5 + $0x1e8] sm:$0xff] %v4820
      %4825 = vst [vmem:[#allocation5 + $0x230] sm:$0xff] %v4821
      %v4826 = vld [vmem:[#allocation2 + $0x1f0] sm:$0xff]
      %v4827 = vld [vmem:[#allocation2 + $0x208] sm:$0xff]
      %v4828 = vld [vmem:[#allocation2 + $0x220] sm:$0xff]
      %v4829 = vld [vmem:[#allocation2 + $0x238] sm:$0xff]
      %4830 = vst [vmem:[#allocation5 + $0x160] sm:$0xff] %v4826
      %4831 = vst [vmem:[#allocation5 + $0x1a8] sm:$0xff] %v4827
      %4832 = vst [vmem:[#allocation5 + $0x1f0] sm:$0xff] %v4828
      %4833 = vst [vmem:[#allocation5 + $0x238] sm:$0xff] %v4829
      %v4834 = vld [vmem:[#allocation2 + $0x130] sm:$0xff]
      %v4835 = vld [vmem:[#allocation2 + $0x148] sm:$0xff]
      %v4836 = vld [vmem:[#allocation2 + $0x160] sm:$0xff]
      %v4837 = vld [vmem:[#allocation2 + $0x178] sm:$0xff]
      %4838 = vst [vmem:[#allocation5 + $0x240] sm:$0xff] %v4834
      %4839 = vst [vmem:[#allocation5 + $0x288] sm:$0xff] %v4835
      %4840 = vst [vmem:[#allocation5 + $0x2d0] sm:$0xff] %v4836
      %4841 = vst [vmem:[#allocation5 + $0x318] sm:$0xff] %v4837
      %v4842 = vld [vmem:[#allocation2 + $0x148] sm:$0xff]
      %v4843 = vld [vmem:[#allocation2 + $0x160] sm:$0xff]
      %v4844 = vld [vmem:[#allocation2 + $0x178] sm:$0xff]
      %v4845 = vld [vmem:[#allocation2 + $0x190] sm:$0xff]
      %4846 = vst [vmem:[#allocation5 + $0x248] sm:$0xff] %v4842
      %4847 = vst [vmem:[#allocation5 + $0x290] sm:$0xff] %v4843
      %4848 = vst [vmem:[#allocation5 + $0x2d8] sm:$0xff] %v4844
      %4849 = vst [vmem:[#allocation5 + $0x320] sm:$0xff] %v4845
      %v4850 = vld [vmem:[#allocation2 + $0x160] sm:$0xff]
      %v4851 = vld [vmem:[#allocation2 + $0x178] sm:$0xff]
      %v4852 = vld [vmem:[#allocation2 + $0x190] sm:$0xff]
      %v4853 = vld [vmem:[#allocation2 + $0x1a8] sm:$0xff]
      %4854 = vst [vmem:[#allocation5 + $0x250] sm:$0xff] %v4850
      %4855 = vst [vmem:[#allocation5 + $0x298] sm:$0xff] %v4851
      %4856 = vst [vmem:[#allocation5 + $0x2e0] sm:$0xff] %v4852
      %4857 = vst [vmem:[#allocation5 + $0x328] sm:$0xff] %v4853
      %v4858 = vld [vmem:[#allocation2 + $0x1c0] sm:$0xff]
      %v4859 = vld [vmem:[#allocation2 + $0x1d8] sm:$0xff]
      %v4860 = vld [vmem:[#allocation2 + $0x1f0] sm:$0xff]
      %v4861 = vld [vmem:[#allocation2 + $0x208] sm:$0xff]
      %4862 = vst [vmem:[#allocation5 + $0x258] sm:$0xff] %v4858
      %4863 = vst [vmem:[#allocation5 + $0x2a0] sm:$0xff] %v4859
      %4864 = vst [vmem:[#allocation5 + $0x2e8] sm:$0xff] %v4860
      %4865 = vst [vmem:[#allocation5 + $0x330] sm:$0xff] %v4861
      %v4866 = vld [vmem:[#allocation2 + $0x1d8] sm:$0xff]
      %v4867 = vld [vmem:[#allocation2 + $0x1f0] sm:$0xff]
      %v4868 = vld [vmem:[#allocation2 + $0x208] sm:$0xff]
      %v4869 = vld [vmem:[#allocation2 + $0x220] sm:$0xff]
      %4870 = vst [vmem:[#allocation5 + $0x260] sm:$0xff] %v4866
      %4871 = vst [vmem:[#allocation5 + $0x2a8] sm:$0xff] %v4867
      %4872 = vst [vmem:[#allocation5 + $0x2f0] sm:$0xff] %v4868
      %4873 = vst [vmem:[#allocation5 + $0x338] sm:$0xff] %v4869
      %v4874 = vld [vmem:[#allocation2 + $0x1f0] sm:$0xff]
      %v4875 = vld [vmem:[#allocation2 + $0x208] sm:$0xff]
      %v4876 = vld [vmem:[#allocation2 + $0x220] sm:$0xff]
      %v4877 = vld [vmem:[#allocation2 + $0x238] sm:$0xff]
      %4878 = vst [vmem:[#allocation5 + $0x268] sm:$0xff] %v4874
      %4879 = vst [vmem:[#allocation5 + $0x2b0] sm:$0xff] %v4875
      %4880 = vst [vmem:[#allocation5 + $0x2f8] sm:$0xff] %v4876
      %4881 = vst [vmem:[#allocation5 + $0x340] sm:$0xff] %v4877
      %v4882 = vld [vmem:[#allocation2 + $0x250] sm:$0xff]
      %v4883 = vld [vmem:[#allocation2 + $0x268] sm:$0xff]
      %v4884 = vld [vmem:[#allocation2 + $0x280] sm:$0xff]
      %v4885 = vld [vmem:[#allocation2 + $0x298] sm:$0xff]
      %4886 = vst [vmem:[#allocation5 + $0x270] sm:$0xff] %v4882
      %4887 = vst [vmem:[#allocation5 + $0x2b8] sm:$0xff] %v4883
      %4888 = vst [vmem:[#allocation5 + $0x300] sm:$0xff] %v4884
      %4889 = vst [vmem:[#allocation5 + $0x348] sm:$0xff] %v4885
      %v4890 = vld [vmem:[#allocation2 + $0x268] sm:$0xff]
      %v4891 = vld [vmem:[#allocation2 + $0x280] sm:$0xff]
      %v4892 = vld [vmem:[#allocation2 + $0x298] sm:$0xff]
      %v4893 = vld [vmem:[#allocation2 + $0x2b0] sm:$0xff]
      %4894 = vst [vmem:[#allocation5 + $0x278] sm:$0xff] %v4890
      %4895 = vst [vmem:[#allocation5 + $0x2c0] sm:$0xff] %v4891
      %4896 = vst [vmem:[#allocation5 + $0x308] sm:$0xff] %v4892
      %4897 = vst [vmem:[#allocation5 + $0x350] sm:$0xff] %v4893
      %v4898 = vld [vmem:[#allocation2 + $0x280] sm:$0xff]
      %v4899 = vld [vmem:[#allocation2 + $0x298] sm:$0xff]
      %v4900 = vld [vmem:[#allocation2 + $0x2b0] sm:$0xff]
      %v4901 = vld [vmem:[#allocation2 + $0x2c8] sm:$0xff]
      %4902 = vst [vmem:[#allocation5 + $0x280] sm:$0xff] %v4898
      %4903 = vst [vmem:[#allocation5 + $0x2c8] sm:$0xff] %v4899
      %4904 = vst [vmem:[#allocation5 + $0x310] sm:$0xff] %v4900
      %4905 = vst [vmem:[#allocation5 + $0x358] sm:$0xff] %v4901
      %v4906 = vld [vmem:[#allocation2 + $0x1c0] sm:$0xff]
      %v4907 = vld [vmem:[#allocation2 + $0x1d8] sm:$0xff]
      %v4908 = vld [vmem:[#allocation2 + $0x1f0] sm:$0xff]
      %v4909 = vld [vmem:[#allocation2 + $0x208] sm:$0xff]
      %4910 = vst [vmem:[#allocation5 + $0x360] sm:$0xff] %v4906
      %4911 = vst [vmem:[#allocation5 + $0x3a8] sm:$0xff] %v4907
      %4912 = vst [vmem:[#allocation5 + $0x3f0] sm:$0xff] %v4908
      %4913 = vst [vmem:[#allocation5 + $0x438] sm:$0xff] %v4909
      %v4914 = vld [vmem:[#allocation2 + $0x1d8] sm:$0xff]
      %v4915 = vld [vmem:[#allocation2 + $0x1f0] sm:$0xff]
      %v4916 = vld [vmem:[#allocation2 + $0x208] sm:$0xff]
      %v4917 = vld [vmem:[#allocation2 + $0x220] sm:$0xff]
      %4918 = vst [vmem:[#allocation5 + $0x368] sm:$0xff] %v4914
      %4919 = vst [vmem:[#allocation5 + $0x3b0] sm:$0xff] %v4915
      %4920 = vst [vmem:[#allocation5 + $0x3f8] sm:$0xff] %v4916
      %4921 = vst [vmem:[#allocation5 + $0x440] sm:$0xff] %v4917
      %v4922 = vld [vmem:[#allocation2 + $0x1f0] sm:$0xff]
      %v4923 = vld [vmem:[#allocation2 + $0x208] sm:$0xff]
      %v4924 = vld [vmem:[#allocation2 + $0x220] sm:$0xff]
      %v4925 = vld [vmem:[#allocation2 + $0x238] sm:$0xff]
      %4926 = vst [vmem:[#allocation5 + $0x370] sm:$0xff] %v4922
      %4927 = vst [vmem:[#allocation5 + $0x3b8] sm:$0xff] %v4923
      %4928 = vst [vmem:[#allocation5 + $0x400] sm:$0xff] %v4924
      %4929 = vst [vmem:[#allocation5 + $0x448] sm:$0xff] %v4925
      %v4930 = vld [vmem:[#allocation2 + $0x250] sm:$0xff]
      %v4931 = vld [vmem:[#allocation2 + $0x268] sm:$0xff]
      %v4932 = vld [vmem:[#allocation2 + $0x280] sm:$0xff]
      %v4933 = vld [vmem:[#allocation2 + $0x298] sm:$0xff]
      %4934 = vst [vmem:[#allocation5 + $0x378] sm:$0xff] %v4930
      %4935 = vst [vmem:[#allocation5 + $0x3c0] sm:$0xff] %v4931
      %4936 = vst [vmem:[#allocation5 + $0x408] sm:$0xff] %v4932
      %4937 = vst [vmem:[#allocation5 + $0x450] sm:$0xff] %v4933
      %v4938 = vld [vmem:[#allocation2 + $0x268] sm:$0xff]
      %v4939 = vld [vmem:[#allocation2 + $0x280] sm:$0xff]
      %v4940 = vld [vmem:[#allocation2 + $0x298] sm:$0xff]
      %v4941 = vld [vmem:[#allocation2 + $0x2b0] sm:$0xff]
      %4942 = vst [vmem:[#allocation5 + $0x380] sm:$0xff] %v4938
      %4943 = vst [vmem:[#allocation5 + $0x3c8] sm:$0xff] %v4939
      %4944 = vst [vmem:[#allocation5 + $0x410] sm:$0xff] %v4940
      %4945 = vst [vmem:[#allocation5 + $0x458] sm:$0xff] %v4941
      %v4946 = vld [vmem:[#allocation2 + $0x280] sm:$0xff]
      %v4947 = vld [vmem:[#allocation2 + $0x298] sm:$0xff]
      %v4948 = vld [vmem:[#allocation2 + $0x2b0] sm:$0xff]
      %v4949 = vld [vmem:[#allocation2 + $0x2c8] sm:$0xff]
      %4950 = vst [vmem:[#allocation5 + $0x388] sm:$0xff] %v4946
      %4951 = vst [vmem:[#allocation5 + $0x3d0] sm:$0xff] %v4947
      %4952 = vst [vmem:[#allocation5 + $0x418] sm:$0xff] %v4948
      %4953 = vst [vmem:[#allocation5 + $0x460] sm:$0xff] %v4949
      %v4954 = vld [vmem:[#allocation2 + $0x2e0] sm:$0xff]
      %v4955 = vld [vmem:[#allocation2 + $0x2f8] sm:$0xff]
      %v4956 = vld [vmem:[#allocation2 + $0x310] sm:$0xff]
      %v4957 = vld [vmem:[#allocation2 + $0x328] sm:$0xff]
      %4958 = vst [vmem:[#allocation5 + $0x390] sm:$0xff] %v4954
      %4959 = vst [vmem:[#allocation5 + $0x3d8] sm:$0xff] %v4955
      %4960 = vst [vmem:[#allocation5 + $0x420] sm:$0xff] %v4956
      %4961 = vst [vmem:[#allocation5 + $0x468] sm:$0xff] %v4957
      %v4962 = vld [vmem:[#allocation2 + $0x2f8] sm:$0xff]
      %v4963 = vld [vmem:[#allocation2 + $0x310] sm:$0xff]
      %v4964 = vld [vmem:[#allocation2 + $0x328] sm:$0xff]
      %v4965 = vld [vmem:[#allocation2 + $0x340] sm:$0xff]
      %4966 = vst [vmem:[#allocation5 + $0x398] sm:$0xff] %v4962
      %4967 = vst [vmem:[#allocation5 + $0x3e0] sm:$0xff] %v4963
      %4968 = vst [vmem:[#allocation5 + $0x428] sm:$0xff] %v4964
      %4969 = vst [vmem:[#allocation5 + $0x470] sm:$0xff] %v4965
      %v4970 = vld [vmem:[#allocation2 + $0x310] sm:$0xff]
      %v4971 = vld [vmem:[#allocation2 + $0x328] sm:$0xff]
      %v4972 = vld [vmem:[#allocation2 + $0x340] sm:$0xff]
      %v4973 = vld [vmem:[#allocation2 + $0x358] sm:$0xff]
      %4974 = vst [vmem:[#allocation5 + $0x3a0] sm:$0xff] %v4970
      %4975 = vst [vmem:[#allocation5 + $0x3e8] sm:$0xff] %v4971
      %4976 = vst [vmem:[#allocation5 + $0x430] sm:$0xff] %v4972
      %4977 = vst [vmem:[#allocation5 + $0x478] sm:$0xff] %v4973
      %v4978 = vld [vmem:[#allocation5] sm:$0xff]
      %v4979 = vld [vmem:[#allocation5 + $0x8] sm:$0xff]
      %v4980 = vld [vmem:[#allocation5 + $0x10] sm:$0xff]
      %v4981 = vld [vmem:[#allocation5 + $0x18] sm:$0xff]
      %v4982 = vld [vmem:[#allocation5 + $0x20] sm:$0xff]
      %v4983 = vld [vmem:[#allocation5 + $0x28] sm:$0xff]
      %v4984 = vld [vmem:[#allocation5 + $0x30] sm:$0xff]
      %v4985 = vld [vmem:[#allocation5 + $0x38] sm:$0xff]
      %v4986 = vld [vmem:[#allocation5 + $0x40] sm:$0xff]
      %v4987 = vld [vmem:[#allocation5 + $0x48] sm:$0xff]
      %v4988 = vld [vmem:[#allocation5 + $0x50] sm:$0xff]
      %v4989 = vld [vmem:[#allocation5 + $0x58] sm:$0xff]
      %v4990 = vld [vmem:[#allocation5 + $0x60] sm:$0xff]
      %v4991 = vld [vmem:[#allocation5 + $0x68] sm:$0xff]
      %v4992 = vld [vmem:[#allocation5 + $0x70] sm:$0xff]
      %v4993 = vld [vmem:[#allocation5 + $0x78] sm:$0xff]
      %v4994 = vld [vmem:[#allocation5 + $0x80] sm:$0xff]
      %v4995 = vld [vmem:[#allocation5 + $0x88] sm:$0xff]
      %v4996 = vld [vmem:[#allocation5 + $0x90] sm:$0xff]
      %v4997 = vld [vmem:[#allocation5 + $0x98] sm:$0xff]
      %v4998 = vld [vmem:[#allocation5 + $0xa0] sm:$0xff]
      %v4999 = vld [vmem:[#allocation5 + $0xa8] sm:$0xff]
      %v5000 = vld [vmem:[#allocation5 + $0xb0] sm:$0xff]
      %v5001 = vld [vmem:[#allocation5 + $0xb8] sm:$0xff]
      %v5002 = vld [vmem:[#allocation5 + $0xc0] sm:$0xff]
      %v5003 = vld [vmem:[#allocation5 + $0xc8] sm:$0xff]
      %v5004 = vld [vmem:[#allocation5 + $0xd0] sm:$0xff]
      %v5005 = vld [vmem:[#allocation5 + $0xd8] sm:$0xff]
      %v5006 = vld [vmem:[#allocation5 + $0xe0] sm:$0xff]
      %v5007 = vld [vmem:[#allocation5 + $0xe8] sm:$0xff]
      %v5008 = vld [vmem:[#allocation5 + $0xf0] sm:$0xff]
      %v5009 = vld [vmem:[#allocation5 + $0xf8] sm:$0xff]
      %v5010 = vld [vmem:[#allocation5 + $0x100] sm:$0xff]
      %v5011 = vld [vmem:[#allocation5 + $0x108] sm:$0xff]
      %v5012 = vld [vmem:[#allocation5 + $0x110] sm:$0xff]
      %v5013 = vld [vmem:[#allocation5 + $0x118] sm:$0xff]
      %v5014 = vld [vmem:[#allocation5 + $0x120] sm:$0xff]
      %v5015 = vld [vmem:[#allocation5 + $0x128] sm:$0xff]
      %v5016 = vld [vmem:[#allocation5 + $0x130] sm:$0xff]
      %v5017 = vld [vmem:[#allocation5 + $0x138] sm:$0xff]
      %v5018 = vld [vmem:[#allocation5 + $0x140] sm:$0xff]
      %v5019 = vld [vmem:[#allocation5 + $0x148] sm:$0xff]
      %v5020 = vld [vmem:[#allocation5 + $0x150] sm:$0xff]
      %v5021 = vld [vmem:[#allocation5 + $0x158] sm:$0xff]
      %v5022 = vld [vmem:[#allocation5 + $0x160] sm:$0xff]
      %v5023 = vld [vmem:[#allocation5 + $0x168] sm:$0xff]
      %v5024 = vld [vmem:[#allocation5 + $0x170] sm:$0xff]
      %v5025 = vld [vmem:[#allocation5 + $0x178] sm:$0xff]
      %v5026 = vld [vmem:[#allocation5 + $0x180] sm:$0xff]
      %v5027 = vld [vmem:[#allocation5 + $0x188] sm:$0xff]
      %v5028 = vld [vmem:[#allocation5 + $0x190] sm:$0xff]
      %v5029 = vld [vmem:[#allocation5 + $0x198] sm:$0xff]
      %v5030 = vld [vmem:[#allocation5 + $0x1a0] sm:$0xff]
      %v5031 = vld [vmem:[#allocation5 + $0x1a8] sm:$0xff]
      %v5032 = vld [vmem:[#allocation5 + $0x1b0] sm:$0xff]
      %v5033 = vld [vmem:[#allocation5 + $0x1b8] sm:$0xff]
      %v5034 = vld [vmem:[#allocation5 + $0x1c0] sm:$0xff]
      %v5035 = vld [vmem:[#allocation5 + $0x1c8] sm:$0xff]
      %v5036 = vld [vmem:[#allocation5 + $0x1d0] sm:$0xff]
      %v5037 = vld [vmem:[#allocation5 + $0x1d8] sm:$0xff]
      %v5038 = vld [vmem:[#allocation5 + $0x1e0] sm:$0xff]
      %v5039 = vld [vmem:[#allocation5 + $0x1e8] sm:$0xff]
      %v5040 = vld [vmem:[#allocation5 + $0x1f0] sm:$0xff]
      %v5041 = vld [vmem:[#allocation5 + $0x1f8] sm:$0xff]
      %v5042 = vld [vmem:[#allocation5 + $0x200] sm:$0xff]
      %v5043 = vld [vmem:[#allocation5 + $0x208] sm:$0xff]
      %v5044 = vld [vmem:[#allocation5 + $0x210] sm:$0xff]
      %v5045 = vld [vmem:[#allocation5 + $0x218] sm:$0xff]
      %v5046 = vld [vmem:[#allocation5 + $0x220] sm:$0xff]
      %v5047 = vld [vmem:[#allocation5 + $0x228] sm:$0xff]
      %v5048 = vld [vmem:[#allocation5 + $0x230] sm:$0xff]
      %v5049 = vld [vmem:[#allocation5 + $0x238] sm:$0xff]
      %v5050 = vld [vmem:[#allocation5 + $0x240] sm:$0xff]
      %v5051 = vld [vmem:[#allocation5 + $0x248] sm:$0xff]
      %v5052 = vld [vmem:[#allocation5 + $0x250] sm:$0xff]
      %v5053 = vld [vmem:[#allocation5 + $0x258] sm:$0xff]
      %v5054 = vld [vmem:[#allocation5 + $0x260] sm:$0xff]
      %v5055 = vld [vmem:[#allocation5 + $0x268] sm:$0xff]
      %v5056 = vld [vmem:[#allocation5 + $0x270] sm:$0xff]
      %v5057 = vld [vmem:[#allocation5 + $0x278] sm:$0xff]
      %v5058 = vld [vmem:[#allocation5 + $0x280] sm:$0xff]
      %v5059 = vld [vmem:[#allocation5 + $0x288] sm:$0xff]
      %v5060 = vld [vmem:[#allocation5 + $0x290] sm:$0xff]
      %v5061 = vld [vmem:[#allocation5 + $0x298] sm:$0xff]
      %v5062 = vld [vmem:[#allocation5 + $0x2a0] sm:$0xff]
      %v5063 = vld [vmem:[#allocation5 + $0x2a8] sm:$0xff]
      %v5064 = vld [vmem:[#allocation5 + $0x2b0] sm:$0xff]
      %v5065 = vld [vmem:[#allocation5 + $0x2b8] sm:$0xff]
      %v5066 = vld [vmem:[#allocation5 + $0x2c0] sm:$0xff]
      %v5067 = vld [vmem:[#allocation5 + $0x2c8] sm:$0xff]
      %v5068 = vld [vmem:[#allocation5 + $0x2d0] sm:$0xff]
      %v5069 = vld [vmem:[#allocation5 + $0x2d8] sm:$0xff]
      %v5070 = vld [vmem:[#allocation5 + $0x2e0] sm:$0xff]
      %v5071 = vld [vmem:[#allocation5 + $0x2e8] sm:$0xff]
      %v5072 = vld [vmem:[#allocation5 + $0x2f0] sm:$0xff]
      %v5073 = vld [vmem:[#allocation5 + $0x2f8] sm:$0xff]
      %v5074 = vld [vmem:[#allocation5 + $0x300] sm:$0xff]
      %v5075 = vld [vmem:[#allocation5 + $0x308] sm:$0xff]
      %v5076 = vld [vmem:[#allocation5 + $0x310] sm:$0xff]
      %v5077 = vld [vmem:[#allocation5 + $0x318] sm:$0xff]
      %v5078 = vld [vmem:[#allocation5 + $0x320] sm:$0xff]
      %v5079 = vld [vmem:[#allocation5 + $0x328] sm:$0xff]
      %v5080 = vld [vmem:[#allocation5 + $0x330] sm:$0xff]
      %v5081 = vld [vmem:[#allocation5 + $0x338] sm:$0xff]
      %v5082 = vld [vmem:[#allocation5 + $0x340] sm:$0xff]
      %v5083 = vld [vmem:[#allocation5 + $0x348] sm:$0xff]
      %v5084 = vld [vmem:[#allocation5 + $0x350] sm:$0xff]
      %v5085 = vld [vmem:[#allocation5 + $0x358] sm:$0xff]
      %v5086 = vld [vmem:[#allocation5 + $0x360] sm:$0xff]
      %v5087 = vld [vmem:[#allocation5 + $0x368] sm:$0xff]
      %v5088 = vld [vmem:[#allocation5 + $0x370] sm:$0xff]
      %v5089 = vld [vmem:[#allocation5 + $0x378] sm:$0xff]
      %v5090 = vld [vmem:[#allocation5 + $0x380] sm:$0xff]
      %v5091 = vld [vmem:[#allocation5 + $0x388] sm:$0xff]
      %v5092 = vld [vmem:[#allocation5 + $0x390] sm:$0xff]
      %v5093 = vld [vmem:[#allocation5 + $0x398] sm:$0xff]
      %v5094 = vld [vmem:[#allocation5 + $0x3a0] sm:$0xff]
      %v5095 = vld [vmem:[#allocation5 + $0x3a8] sm:$0xff]
      %v5096 = vld [vmem:[#allocation5 + $0x3b0] sm:$0xff]
      %v5097 = vld [vmem:[#allocation5 + $0x3b8] sm:$0xff]
      %v5098 = vld [vmem:[#allocation5 + $0x3c0] sm:$0xff]
      %v5099 = vld [vmem:[#allocation5 + $0x3c8] sm:$0xff]
      %v5100 = vld [vmem:[#allocation5 + $0x3d0] sm:$0xff]
      %v5101 = vld [vmem:[#allocation5 + $0x3d8] sm:$0xff]
      %v5102 = vld [vmem:[#allocation5 + $0x3e0] sm:$0xff]
      %v5103 = vld [vmem:[#allocation5 + $0x3e8] sm:$0xff]
      %v5104 = vld [vmem:[#allocation5 + $0x3f0] sm:$0xff]
      %v5105 = vld [vmem:[#allocation5 + $0x3f8] sm:$0xff]
      %v5106 = vld [vmem:[#allocation5 + $0x400] sm:$0xff]
      %v5107 = vld [vmem:[#allocation5 + $0x408] sm:$0xff]
      %v5108 = vld [vmem:[#allocation5 + $0x410] sm:$0xff]
      %v5109 = vld [vmem:[#allocation5 + $0x418] sm:$0xff]
      %v5110 = vld [vmem:[#allocation5 + $0x420] sm:$0xff]
      %v5111 = vld [vmem:[#allocation5 + $0x428] sm:$0xff]
      %v5112 = vld [vmem:[#allocation5 + $0x430] sm:$0xff]
      %v5113 = vld [vmem:[#allocation5 + $0x438] sm:$0xff]
      %v5114 = vld [vmem:[#allocation5 + $0x440] sm:$0xff]
      %v5115 = vld [vmem:[#allocation5 + $0x448] sm:$0xff]
      %v5116 = vld [vmem:[#allocation5 + $0x450] sm:$0xff]
      %v5117 = vld [vmem:[#allocation5 + $0x458] sm:$0xff]
      %v5118 = vld [vmem:[#allocation5 + $0x460] sm:$0xff]
      %v5119 = vld [vmem:[#allocation5 + $0x468] sm:$0xff]
      %v5120 = vld [vmem:[#allocation5 + $0x470] sm:$0xff]
      %v5121 = vld [vmem:[#allocation5 + $0x478] sm:$0xff]
      %v5122 = vpack.c.bf16 %v4987, %v4978
      %v5123 = vpack.c.bf16 %v4988, %v4979
      %v5124 = vpack.c.bf16 %v4989, %v4980
      %v5125 = vpack.c.bf16 %v4990, %v4981
      %v5126 = vpack.c.bf16 %v4991, %v4982
      %v5127 = vpack.c.bf16 %v4992, %v4983
      %v5128 = vpack.c.bf16 %v4993, %v4984
      %v5129 = vpack.c.bf16 %v4994, %v4985
      %v5130 = vpack.c.bf16 %v4995, %v4986
      %v5131 = vpack.c.bf16 %v5005, %v4996
      %v5132 = vpack.c.bf16 %v5006, %v4997
      %v5133 = vpack.c.bf16 %v5007, %v4998
      %v5134 = vpack.c.bf16 %v5008, %v4999
      %v5135 = vpack.c.bf16 %v5009, %v5000
      %v5136 = vpack.c.bf16 %v5010, %v5001
      %v5137 = vpack.c.bf16 %v5011, %v5002
      %v5138 = vpack.c.bf16 %v5012, %v5003
      %v5139 = vpack.c.bf16 %v5013, %v5004
      %v5140 = vpack.c.bf16 %v5023, %v5014
      %v5141 = vpack.c.bf16 %v5024, %v5015
      %v5142 = vpack.c.bf16 %v5025, %v5016
      %v5143 = vpack.c.bf16 %v5026, %v5017
      %v5144 = vpack.c.bf16 %v5027, %v5018
      %v5145 = vpack.c.bf16 %v5028, %v5019
      %v5146 = vpack.c.bf16 %v5029, %v5020
      %v5147 = vpack.c.bf16 %v5030, %v5021
      %v5148 = vpack.c.bf16 %v5031, %v5022
      %v5149 = vpack.c.bf16 %v5041, %v5032
      %v5150 = vpack.c.bf16 %v5042, %v5033
      %v5151 = vpack.c.bf16 %v5043, %v5034
      %v5152 = vpack.c.bf16 %v5044, %v5035
      %v5153 = vpack.c.bf16 %v5045, %v5036
      %v5154 = vpack.c.bf16 %v5046, %v5037
      %v5155 = vpack.c.bf16 %v5047, %v5038
      %v5156 = vpack.c.bf16 %v5048, %v5039
      %v5157 = vpack.c.bf16 %v5049, %v5040
      %v5158 = vpack.c.bf16 %v5059, %v5050
      %v5159 = vpack.c.bf16 %v5060, %v5051
      %v5160 = vpack.c.bf16 %v5061, %v5052
      %v5161 = vpack.c.bf16 %v5062, %v5053
      %v5162 = vpack.c.bf16 %v5063, %v5054
      %v5163 = vpack.c.bf16 %v5064, %v5055
      %v5164 = vpack.c.bf16 %v5065, %v5056
      %v5165 = vpack.c.bf16 %v5066, %v5057
      %v5166 = vpack.c.bf16 %v5067, %v5058
      %v5167 = vpack.c.bf16 %v5077, %v5068
      %v5168 = vpack.c.bf16 %v5078, %v5069
      %v5169 = vpack.c.bf16 %v5079, %v5070
      %v5170 = vpack.c.bf16 %v5080, %v5071
      %v5171 = vpack.c.bf16 %v5081, %v5072
      %v5172 = vpack.c.bf16 %v5082, %v5073
      %v5173 = vpack.c.bf16 %v5083, %v5074
      %v5174 = vpack.c.bf16 %v5084, %v5075
      %v5175 = vpack.c.bf16 %v5085, %v5076
      %v5176 = vpack.c.bf16 %v5095, %v5086
      %v5177 = vpack.c.bf16 %v5096, %v5087
      %v5178 = vpack.c.bf16 %v5097, %v5088
      %v5179 = vpack.c.bf16 %v5098, %v5089
      %v5180 = vpack.c.bf16 %v5099, %v5090
      %v5181 = vpack.c.bf16 %v5100, %v5091
      %v5182 = vpack.c.bf16 %v5101, %v5092
      %v5183 = vpack.c.bf16 %v5102, %v5093
      %v5184 = vpack.c.bf16 %v5103, %v5094
      %v5185 = vpack.c.bf16 %v5113, %v5104
      %v5186 = vpack.c.bf16 %v5114, %v5105
      %v5187 = vpack.c.bf16 %v5115, %v5106
      %v5188 = vpack.c.bf16 %v5116, %v5107
      %v5189 = vpack.c.bf16 %v5117, %v5108
      %v5190 = vpack.c.bf16 %v5118, %v5109
      %v5191 = vpack.c.bf16 %v5119, %v5110
      %v5192 = vpack.c.bf16 %v5120, %v5111
      %v5193 = vpack.c.bf16 %v5121, %v5112
      %v5194 = vld [vmem:[%s7] sm:$0xf]
      %v5195 = vld [vmem:[%s7 + $0x4] sm:$0xf]
      %v5196 = vld [vmem:[%s7 + $0x8] sm:$0xf]
      %v5197 = vld [vmem:[%s7 + $0xc] sm:$0xf]
      %v5198 = vld [vmem:[%s7 + $0x10] sm:$0xf]
      %v5199 = vld [vmem:[%s7 + $0x14] sm:$0xf]
      %v5200 = vld [vmem:[%s7 + $0x18] sm:$0xf]
      %v5201 = vld [vmem:[%s7 + $0x1c] sm:$0xf]
      %v5202 = vld [vmem:[%s7 + $0x20] sm:$0xf]
      %v5203 = vld [vmem:[%s7 + $0x24] sm:$0xf]
      %v5204 = vld [vmem:[%s7 + $0x28] sm:$0xf]
      %v5205 = vld [vmem:[%s7 + $0x2c] sm:$0xf]
      %v5206 = vld [vmem:[%s7 + $0x30] sm:$0xf]
      %v5207 = vld [vmem:[%s7 + $0x34] sm:$0xf]
      %v5208 = vld [vmem:[%s7 + $0x38] sm:$0xf]
      %v5209 = vld [vmem:[%s7 + $0x3c] sm:$0xf]
      %v5210 = vld [vmem:[%s7 + $0x40] sm:$0xf]
      %v5211 = vld [vmem:[%s7 + $0x44] sm:$0xf]
      %v5212 = vld [vmem:[%s7 + $0x48] sm:$0xf]
      %v5213 = vld [vmem:[%s7 + $0x4c] sm:$0xf]
      %v5214 = vld [vmem:[%s7 + $0x50] sm:$0xf]
      %v5215 = vld [vmem:[%s7 + $0x54] sm:$0xf]
      %v5216 = vld [vmem:[%s7 + $0x58] sm:$0xf]
      %v5217 = vld [vmem:[%s7 + $0x5c] sm:$0xf]
      %v5218 = vld [vmem:[%s7 + $0x60] sm:$0xf]
      %v5219 = vld [vmem:[%s7 + $0x64] sm:$0xf]
      %v5220 = vld [vmem:[%s7 + $0x68] sm:$0xf]
      %v5221 = vld [vmem:[%s7 + $0x6c] sm:$0xf]
      %v5222 = vld [vmem:[%s7 + $0x70] sm:$0xf]
      %v5223 = vld [vmem:[%s7 + $0x74] sm:$0xf]
      %v5224 = vld [vmem:[%s7 + $0x78] sm:$0xf]
      %v5225 = vld [vmem:[%s7 + $0x7c] sm:$0xf]
      %v5226 = vld [vmem:[%s7 + $0x80] sm:$0xf]
      %v5227 = vld [vmem:[%s7 + $0x84] sm:$0xf]
      %v5228 = vld [vmem:[%s7 + $0x88] sm:$0xf]
      %v5229 = vld [vmem:[%s7 + $0x8c] sm:$0xf]
      %v5230 = vld [vmem:[%s7 + $0x90] sm:$0xf]
      %v5231 = vld [vmem:[%s7 + $0x94] sm:$0xf]
      %v5232 = vld [vmem:[%s7 + $0x98] sm:$0xf]
      %v5233 = vld [vmem:[%s7 + $0x9c] sm:$0xf]
      %v5234 = vld [vmem:[%s7 + $0xa0] sm:$0xf]
      %v5235 = vld [vmem:[%s7 + $0xa4] sm:$0xf]
      %v5236 = vld [vmem:[%s7 + $0xa8] sm:$0xf]
      %v5237 = vld [vmem:[%s7 + $0xac] sm:$0xf]
      %v5238 = vld [vmem:[%s7 + $0xb0] sm:$0xf]
      %v5239 = vld [vmem:[%s7 + $0xb4] sm:$0xf]
      %v5240 = vld [vmem:[%s7 + $0xb8] sm:$0xf]
      %v5241 = vld [vmem:[%s7 + $0xbc] sm:$0xf]
      %v5242 = vld [vmem:[%s7 + $0xc0] sm:$0xf]
      %v5243 = vld [vmem:[%s7 + $0xc4] sm:$0xf]
      %v5244 = vld [vmem:[%s7 + $0xc8] sm:$0xf]
      %v5245 = vld [vmem:[%s7 + $0xcc] sm:$0xf]
      %v5246 = vld [vmem:[%s7 + $0xd0] sm:$0xf]
      %v5247 = vld [vmem:[%s7 + $0xd4] sm:$0xf]
      %v5248 = vld [vmem:[%s7 + $0xd8] sm:$0xf]
      %v5249 = vld [vmem:[%s7 + $0xdc] sm:$0xf]
      %v5250 = vld [vmem:[%s7 + $0xe0] sm:$0xf]
      %v5251 = vld [vmem:[%s7 + $0xe4] sm:$0xf]
      %v5252 = vld [vmem:[%s7 + $0xe8] sm:$0xf]
      %v5253 = vld [vmem:[%s7 + $0xec] sm:$0xf]
      %v5254 = vld [vmem:[%s7 + $0xf0] sm:$0xf]
      %v5255 = vld [vmem:[%s7 + $0xf4] sm:$0xf]
      %v5256 = vld [vmem:[%s7 + $0xf8] sm:$0xf]
      %v5257 = vld [vmem:[%s7 + $0xfc] sm:$0xf]
      %v5258 = vld [vmem:[%s7 + $0x100] sm:$0xf]
      %v5259 = vld [vmem:[%s7 + $0x104] sm:$0xf]
      %v5260 = vld [vmem:[%s7 + $0x108] sm:$0xf]
      %v5261 = vld [vmem:[%s7 + $0x10c] sm:$0xf]
      %v5262 = vld [vmem:[%s7 + $0x110] sm:$0xf]
      %v5263 = vld [vmem:[%s7 + $0x114] sm:$0xf]
      %v5264 = vld [vmem:[%s7 + $0x118] sm:$0xf]
      %v5265 = vld [vmem:[%s7 + $0x11c] sm:$0xf]
      %v5266 = vld [vmem:[%s7 + $0x120] sm:$0xf]
      %v5267 = vld [vmem:[%s7 + $0x124] sm:$0xf]
      %v5268 = vld [vmem:[%s7 + $0x128] sm:$0xf]
      %v5269 = vld [vmem:[%s7 + $0x12c] sm:$0xf]
      %v5270 = vld [vmem:[%s7 + $0x130] sm:$0xf]
      %v5271 = vld [vmem:[%s7 + $0x134] sm:$0xf]
      %v5272 = vld [vmem:[%s7 + $0x138] sm:$0xf]
      %v5273 = vld [vmem:[%s7 + $0x13c] sm:$0xf]
      %v5274 = vld [vmem:[%s7 + $0x140] sm:$0xf]
      %v5275 = vld [vmem:[%s7 + $0x144] sm:$0xf]
      %v5276 = vld [vmem:[%s7 + $0x148] sm:$0xf]
      %v5277 = vld [vmem:[%s7 + $0x14c] sm:$0xf]
      %v5278 = vld [vmem:[%s7 + $0x150] sm:$0xf]
      %v5279 = vld [vmem:[%s7 + $0x154] sm:$0xf]
      %v5280 = vld [vmem:[%s7 + $0x158] sm:$0xf]
      %v5281 = vld [vmem:[%s7 + $0x15c] sm:$0xf]
      %v5282 = vld [vmem:[%s7 + $0x160] sm:$0xf]
      %v5283 = vld [vmem:[%s7 + $0x164] sm:$0xf]
      %v5284 = vld [vmem:[%s7 + $0x168] sm:$0xf]
      %v5285 = vld [vmem:[%s7 + $0x16c] sm:$0xf]
      %v5286 = vld [vmem:[%s7 + $0x170] sm:$0xf]
      %v5287 = vld [vmem:[%s7 + $0x174] sm:$0xf]
      %v5288 = vld [vmem:[%s7 + $0x178] sm:$0xf]
      %v5289 = vld [vmem:[%s7 + $0x17c] sm:$0xf]
      %v5290 = vld [vmem:[%s7 + $0x180] sm:$0xf]
      %v5291 = vld [vmem:[%s7 + $0x184] sm:$0xf]
      %v5292 = vld [vmem:[%s7 + $0x188] sm:$0xf]
      %v5293 = vld [vmem:[%s7 + $0x18c] sm:$0xf]
      %v5294 = vld [vmem:[%s7 + $0x190] sm:$0xf]
      %v5295 = vld [vmem:[%s7 + $0x194] sm:$0xf]
      %v5296 = vld [vmem:[%s7 + $0x198] sm:$0xf]
      %v5297 = vld [vmem:[%s7 + $0x19c] sm:$0xf]
      %v5298 = vld [vmem:[%s7 + $0x1a0] sm:$0xf]
      %v5299 = vld [vmem:[%s7 + $0x1a4] sm:$0xf]
      %v5300 = vld [vmem:[%s7 + $0x1a8] sm:$0xf]
      %v5301 = vld [vmem:[%s7 + $0x1ac] sm:$0xf]
      %v5302 = vld [vmem:[%s7 + $0x1b0] sm:$0xf]
      %v5303 = vld [vmem:[%s7 + $0x1b4] sm:$0xf]
      %v5304 = vld [vmem:[%s7 + $0x1b8] sm:$0xf]
      %v5305 = vld [vmem:[%s7 + $0x1bc] sm:$0xf]
      %v5306 = vld [vmem:[%s7 + $0x1c0] sm:$0xf]
      %v5307 = vld [vmem:[%s7 + $0x1c4] sm:$0xf]
      %v5308 = vld [vmem:[%s7 + $0x1c8] sm:$0xf]
      %v5309 = vld [vmem:[%s7 + $0x1cc] sm:$0xf]
      %v5310 = vld [vmem:[%s7 + $0x1d0] sm:$0xf]
      %v5311 = vld [vmem:[%s7 + $0x1d4] sm:$0xf]
      %v5312 = vld [vmem:[%s7 + $0x1d8] sm:$0xf]
      %v5313 = vld [vmem:[%s7 + $0x1dc] sm:$0xf]
      %v5314 = vld [vmem:[%s7 + $0x1e0] sm:$0xf]
      %v5315 = vld [vmem:[%s7 + $0x1e4] sm:$0xf]
      %v5316 = vld [vmem:[%s7 + $0x1e8] sm:$0xf]
      %v5317 = vld [vmem:[%s7 + $0x1ec] sm:$0xf]
      %v5318 = vld [vmem:[%s7 + $0x1f0] sm:$0xf]
      %v5319 = vld [vmem:[%s7 + $0x1f4] sm:$0xf]
      %v5320 = vld [vmem:[%s7 + $0x1f8] sm:$0xf]
      %v5321 = vld [vmem:[%s7 + $0x1fc] sm:$0xf]
      %v5322 = vld [vmem:[%s7 + $0x200] sm:$0xf]
      %v5323 = vld [vmem:[%s7 + $0x204] sm:$0xf]
      %v5324 = vld [vmem:[%s7 + $0x208] sm:$0xf]
      %v5325 = vld [vmem:[%s7 + $0x20c] sm:$0xf]
      %v5326 = vld [vmem:[%s7 + $0x210] sm:$0xf]
      %v5327 = vld [vmem:[%s7 + $0x214] sm:$0xf]
      %v5328 = vld [vmem:[%s7 + $0x218] sm:$0xf]
      %v5329 = vld [vmem:[%s7 + $0x21c] sm:$0xf]
      %v5330 = vld [vmem:[%s7 + $0x220] sm:$0xf]
      %v5331 = vld [vmem:[%s7 + $0x224] sm:$0xf]
      %v5332 = vld [vmem:[%s7 + $0x228] sm:$0xf]
      %v5333 = vld [vmem:[%s7 + $0x22c] sm:$0xf]
      %v5334 = vld [vmem:[%s7 + $0x230] sm:$0xf]
      %v5335 = vld [vmem:[%s7 + $0x234] sm:$0xf]
      %v5336 = vld [vmem:[%s7 + $0x238] sm:$0xf]
      %v5337 = vld [vmem:[%s7 + $0x23c] sm:$0xf]
      %v5338 = vld [vmem:[%s8] sm:$0x1]
      %v5340 = vlaneseq
      %v5341 = vshrl.u32 %v5340, 7
      %v5342 = vsub.s32 0, %v5341
      %v5343 = vrot.slane %v5338, %v5342
      %v5489 = vunpack.c.l.b16 %v5194
      %v5490 = vunpack.c.l.b16 %v5195
      %v5491 = vunpack.c.l.b16 %v5196
      %v5492 = vunpack.c.l.b16 %v5197
      %v5493 = vunpack.c.l.b16 %v5198
      %v5494 = vunpack.c.l.b16 %v5199
      %v5495 = vunpack.c.l.b16 %v5200
      %v5496 = vunpack.c.l.b16 %v5201
      %v5497 = vunpack.c.l.b16 %v5202
      %v5498 = vunpack.c.l.b16 %v5203
      %v5499 = vunpack.c.l.b16 %v5204
      %v5500 = vunpack.c.l.b16 %v5205
      %v5501 = vunpack.c.l.b16 %v5206
      %v5502 = vunpack.c.l.b16 %v5207
      %v5503 = vunpack.c.l.b16 %v5208
      %v5504 = vunpack.c.l.b16 %v5209
      %v5505 = vunpack.c.l.b16 %v5210
      %v5506 = vunpack.c.l.b16 %v5211
      %v5507 = vunpack.c.l.b16 %v5212
      %v5508 = vunpack.c.l.b16 %v5213
      %v5509 = vunpack.c.l.b16 %v5214
      %v5510 = vunpack.c.l.b16 %v5215
      %v5511 = vunpack.c.l.b16 %v5216
      %v5512 = vunpack.c.l.b16 %v5217
      %v5513 = vunpack.c.l.b16 %v5218
      %v5514 = vunpack.c.l.b16 %v5219
      %v5515 = vunpack.c.l.b16 %v5220
      %v5516 = vunpack.c.l.b16 %v5221
      %v5517 = vunpack.c.l.b16 %v5222
      %v5518 = vunpack.c.l.b16 %v5223
      %v5519 = vunpack.c.l.b16 %v5224
      %v5520 = vunpack.c.l.b16 %v5225
      %v5521 = vunpack.c.l.b16 %v5226
      %v5522 = vunpack.c.l.b16 %v5227
      %v5523 = vunpack.c.l.b16 %v5228
      %v5524 = vunpack.c.l.b16 %v5229
      %v5525 = vunpack.c.l.b16 %v5230
      %v5526 = vunpack.c.l.b16 %v5231
      %v5527 = vunpack.c.l.b16 %v5232
      %v5528 = vunpack.c.l.b16 %v5233
      %v5529 = vunpack.c.l.b16 %v5234
      %v5530 = vunpack.c.l.b16 %v5235
      %v5531 = vunpack.c.l.b16 %v5236
      %v5532 = vunpack.c.l.b16 %v5237
      %v5533 = vunpack.c.l.b16 %v5238
      %v5534 = vunpack.c.l.b16 %v5239
      %v5535 = vunpack.c.l.b16 %v5240
      %v5536 = vunpack.c.l.b16 %v5241
      %v5537 = vunpack.c.l.b16 %v5242
      %v5538 = vunpack.c.l.b16 %v5243
      %v5539 = vunpack.c.l.b16 %v5244
      %v5540 = vunpack.c.l.b16 %v5245
      %v5541 = vunpack.c.l.b16 %v5246
      %v5542 = vunpack.c.l.b16 %v5247
      %v5543 = vunpack.c.l.b16 %v5248
      %v5544 = vunpack.c.l.b16 %v5249
      %v5545 = vunpack.c.l.b16 %v5250
      %v5546 = vunpack.c.l.b16 %v5251
      %v5547 = vunpack.c.l.b16 %v5252
      %v5548 = vunpack.c.l.b16 %v5253
      %v5549 = vunpack.c.l.b16 %v5254
      %v5550 = vunpack.c.l.b16 %v5255
      %v5551 = vunpack.c.l.b16 %v5256
      %v5552 = vunpack.c.l.b16 %v5257
      %v5553 = vunpack.c.l.b16 %v5258
      %v5554 = vunpack.c.l.b16 %v5259
      %v5555 = vunpack.c.l.b16 %v5260
      %v5556 = vunpack.c.l.b16 %v5261
      %v5557 = vunpack.c.l.b16 %v5262
      %v5558 = vunpack.c.l.b16 %v5263
      %v5559 = vunpack.c.l.b16 %v5264
      %v5560 = vunpack.c.l.b16 %v5265
      %v5561 = vunpack.c.l.b16 %v5266
      %v5562 = vunpack.c.l.b16 %v5267
      %v5563 = vunpack.c.l.b16 %v5268
      %v5564 = vunpack.c.l.b16 %v5269
      %v5565 = vunpack.c.l.b16 %v5270
      %v5566 = vunpack.c.l.b16 %v5271
      %v5567 = vunpack.c.l.b16 %v5272
      %v5568 = vunpack.c.l.b16 %v5273
      %v5569 = vunpack.c.l.b16 %v5274
      %v5570 = vunpack.c.l.b16 %v5275
      %v5571 = vunpack.c.l.b16 %v5276
      %v5572 = vunpack.c.l.b16 %v5277
      %v5573 = vunpack.c.l.b16 %v5278
      %v5574 = vunpack.c.l.b16 %v5279
      %v5575 = vunpack.c.l.b16 %v5280
      %v5576 = vunpack.c.l.b16 %v5281
      %v5577 = vunpack.c.l.b16 %v5282
      %v5578 = vunpack.c.l.b16 %v5283
      %v5579 = vunpack.c.l.b16 %v5284
      %v5580 = vunpack.c.l.b16 %v5285
      %v5581 = vunpack.c.l.b16 %v5286
      %v5582 = vunpack.c.l.b16 %v5287
      %v5583 = vunpack.c.l.b16 %v5288
      %v5584 = vunpack.c.l.b16 %v5289
      %v5585 = vunpack.c.l.b16 %v5290
      %v5586 = vunpack.c.l.b16 %v5291
      %v5587 = vunpack.c.l.b16 %v5292
      %v5588 = vunpack.c.l.b16 %v5293
      %v5589 = vunpack.c.l.b16 %v5294
      %v5590 = vunpack.c.l.b16 %v5295
      %v5591 = vunpack.c.l.b16 %v5296
      %v5592 = vunpack.c.l.b16 %v5297
      %v5593 = vunpack.c.l.b16 %v5298
      %v5594 = vunpack.c.l.b16 %v5299
      %v5595 = vunpack.c.l.b16 %v5300
      %v5596 = vunpack.c.l.b16 %v5301
      %v5597 = vunpack.c.l.b16 %v5302
      %v5598 = vunpack.c.l.b16 %v5303
      %v5599 = vunpack.c.l.b16 %v5304
      %v5600 = vunpack.c.l.b16 %v5305
      %v5601 = vunpack.c.l.b16 %v5306
      %v5602 = vunpack.c.l.b16 %v5307
      %v5603 = vunpack.c.l.b16 %v5308
      %v5604 = vunpack.c.l.b16 %v5309
      %v5605 = vunpack.c.l.b16 %v5310
      %v5606 = vunpack.c.l.b16 %v5311
      %v5607 = vunpack.c.l.b16 %v5312
      %v5608 = vunpack.c.l.b16 %v5313
      %v5609 = vunpack.c.l.b16 %v5314
      %v5610 = vunpack.c.l.b16 %v5315
      %v5611 = vunpack.c.l.b16 %v5316
      %v5612 = vunpack.c.l.b16 %v5317
      %v5613 = vunpack.c.l.b16 %v5318
      %v5614 = vunpack.c.l.b16 %v5319
      %v5615 = vunpack.c.l.b16 %v5320
      %v5616 = vunpack.c.l.b16 %v5321
      %v5617 = vunpack.c.l.b16 %v5322
      %v5618 = vunpack.c.l.b16 %v5323
      %v5619 = vunpack.c.l.b16 %v5324
      %v5620 = vunpack.c.l.b16 %v5325
      %v5621 = vunpack.c.l.b16 %v5326
      %v5622 = vunpack.c.l.b16 %v5327
      %v5623 = vunpack.c.l.b16 %v5328
      %v5624 = vunpack.c.l.b16 %v5329
      %v5625 = vunpack.c.l.b16 %v5330
      %v5626 = vunpack.c.l.b16 %v5331
      %v5627 = vunpack.c.l.b16 %v5332
      %v5628 = vunpack.c.l.b16 %v5333
      %v5629 = vunpack.c.l.b16 %v5334
      %v5630 = vunpack.c.l.b16 %v5335
      %v5631 = vunpack.c.l.b16 %v5336
      %v5632 = vunpack.c.l.b16 %v5337
      %v5633 = vpack.c.b16 %v5490, %v5489
      %v5634 = vpack.c.b16 %v5492, %v5491
      %v5635 = vpack.c.b16 %v5494, %v5493
      %v5636 = vpack.c.b16 %v5496, %v5495
      %v5637 = vpack.c.b16 %v5498, %v5497
      %v5638 = vpack.c.b16 %v5500, %v5499
      %v5639 = vpack.c.b16 %v5502, %v5501
      %v5640 = vpack.c.b16 %v5504, %v5503
      %v5641 = vpack.c.b16 %v5506, %v5505
      %v5642 = vpack.c.b16 %v5508, %v5507
      %v5643 = vpack.c.b16 %v5510, %v5509
      %v5644 = vpack.c.b16 %v5512, %v5511
      %v5645 = vpack.c.b16 %v5514, %v5513
      %v5646 = vpack.c.b16 %v5516, %v5515
      %v5647 = vpack.c.b16 %v5518, %v5517
      %v5648 = vpack.c.b16 %v5520, %v5519
      %v5649 = vpack.c.b16 %v5522, %v5521
      %v5650 = vpack.c.b16 %v5524, %v5523
      %v5651 = vpack.c.b16 %v5526, %v5525
      %v5652 = vpack.c.b16 %v5528, %v5527
      %v5653 = vpack.c.b16 %v5530, %v5529
      %v5654 = vpack.c.b16 %v5532, %v5531
      %v5655 = vpack.c.b16 %v5534, %v5533
      %v5656 = vpack.c.b16 %v5536, %v5535
      %v5657 = vpack.c.b16 %v5538, %v5537
      %v5658 = vpack.c.b16 %v5540, %v5539
      %v5659 = vpack.c.b16 %v5542, %v5541
      %v5660 = vpack.c.b16 %v5544, %v5543
      %v5661 = vpack.c.b16 %v5546, %v5545
      %v5662 = vpack.c.b16 %v5548, %v5547
      %v5663 = vpack.c.b16 %v5550, %v5549
      %v5664 = vpack.c.b16 %v5552, %v5551
      %v5665 = vpack.c.b16 %v5554, %v5553
      %v5666 = vpack.c.b16 %v5556, %v5555
      %v5667 = vpack.c.b16 %v5558, %v5557
      %v5668 = vpack.c.b16 %v5560, %v5559
      %v5669 = vpack.c.b16 %v5562, %v5561
      %v5670 = vpack.c.b16 %v5564, %v5563
      %v5671 = vpack.c.b16 %v5566, %v5565
      %v5672 = vpack.c.b16 %v5568, %v5567
      %v5673 = vpack.c.b16 %v5570, %v5569
      %v5674 = vpack.c.b16 %v5572, %v5571
      %v5675 = vpack.c.b16 %v5574, %v5573
      %v5676 = vpack.c.b16 %v5576, %v5575
      %v5677 = vpack.c.b16 %v5578, %v5577
      %v5678 = vpack.c.b16 %v5580, %v5579
      %v5679 = vpack.c.b16 %v5582, %v5581
      %v5680 = vpack.c.b16 %v5584, %v5583
      %v5681 = vpack.c.b16 %v5586, %v5585
      %v5682 = vpack.c.b16 %v5588, %v5587
      %v5683 = vpack.c.b16 %v5590, %v5589
      %v5684 = vpack.c.b16 %v5592, %v5591
      %v5685 = vpack.c.b16 %v5594, %v5593
      %v5686 = vpack.c.b16 %v5596, %v5595
      %v5687 = vpack.c.b16 %v5598, %v5597
      %v5688 = vpack.c.b16 %v5600, %v5599
      %v5689 = vpack.c.b16 %v5602, %v5601
      %v5690 = vpack.c.b16 %v5604, %v5603
      %v5691 = vpack.c.b16 %v5606, %v5605
      %v5692 = vpack.c.b16 %v5608, %v5607
      %v5693 = vpack.c.b16 %v5610, %v5609
      %v5694 = vpack.c.b16 %v5612, %v5611
      %v5695 = vpack.c.b16 %v5614, %v5613
      %v5696 = vpack.c.b16 %v5616, %v5615
      %v5697 = vpack.c.b16 %v5618, %v5617
      %v5698 = vpack.c.b16 %v5620, %v5619
      %v5699 = vpack.c.b16 %v5622, %v5621
      %v5700 = vpack.c.b16 %v5624, %v5623
      %v5701 = vpack.c.b16 %v5626, %v5625
      %v5702 = vpack.c.b16 %v5628, %v5627
      %v5703 = vpack.c.b16 %v5630, %v5629
      %v5704 = vpack.c.b16 %v5632, %v5631
      %5777 = vmatprep.subr.bf16.mxu0 0
      %5778 = vmatpush1.bf16.msra.mxu0 %v5640
      %5779 = vmatprep.subr.bf16.mxu0 0
      %5780 = vmatpush1.bf16.msra.mxu0 %v5639
      %5781 = vmatprep.subr.bf16.mxu0 0
      %5782 = vmatpush1.bf16.msra.mxu0 %v5638
      %5783 = vmatprep.subr.bf16.mxu0 0
      %5784 = vmatpush1.bf16.msra.mxu0 %v5637
      %5785 = vmatprep.subr.bf16.mxu0 0
      %5786 = vmatpush1.bf16.msra.mxu0 %v5636
      %5787 = vmatprep.subr.bf16.mxu0 0
      %5788 = vmatpush1.bf16.msra.mxu0 %v5635
      %5789 = vmatprep.subr.bf16.mxu0 0
      %5790 = vmatpush1.bf16.msra.mxu0 %v5634
      %5791 = vmatprep.subr.bf16.mxu0 0
      %5792 = vmatpush1.bf16.msra.mxu0 %v5633
      %5793 = vmatprep.subr.bf16.mxu0 0
      %5794 = vmatpush2.bf16.msra.mxu0 %v5648
      %5795 = vmatprep.subr.bf16.mxu0 0
      %5796 = vmatpush2.bf16.msra.mxu0 %v5647
      %5797 = vmatprep.subr.bf16.mxu0 0
      %5798 = vmatpush2.bf16.msra.mxu0 %v5646
      %5799 = vmatprep.subr.bf16.mxu0 0
      %5800 = vmatpush2.bf16.msra.mxu0 %v5645
      %5801 = vmatprep.subr.bf16.mxu0 0
      %5802 = vmatpush2.bf16.msra.mxu0 %v5644
      %5803 = vmatprep.subr.bf16.mxu0 0
      %5804 = vmatpush2.bf16.msra.mxu0 %v5643
      %5805 = vmatprep.subr.bf16.mxu0 0
      %5806 = vmatpush2.bf16.msra.mxu0 %v5642
      %5807 = vmatprep.subr.bf16.mxu0 0
      %5808 = vmatpush2.bf16.msra.mxu0 %v5641
      %5809 = vmatprep.mubr.bf16.mxu0 %v5123
      %5810 = vmatmul.mubr.bf16.gmra.mxu0 %v5122
      %v5811 = vpop.f32.mrf.mxu0
      %v5812 = vadd.f32 %v5343, %v5811
      %v5813 = vpop.f32.mrf.mxu0
      %v5814 = vpop.f32.mrf.mxu0
      %v5815 = vadd.f32 %v5343, %v5814
      %v5816 = vpop.f32.mrf.mxu0
      %5817 = vmatprep.mubr.bf16.mxu0 %v5132
      %5818 = vmatmul.mubr.bf16.gmra.mxu0 %v5131
      %v5819 = vpop.f32.mrf.mxu0
      %v5820 = vadd.f32 %v5343, %v5819
      %v5821 = vpop.f32.mrf.mxu0
      %v5822 = vpop.f32.mrf.mxu0
      %v5823 = vadd.f32 %v5343, %v5822
      %v5824 = vpop.f32.mrf.mxu0
      %5825 = vmatprep.mubr.bf16.mxu0 %v5141
      %5826 = vmatmul.mubr.bf16.gmra.mxu0 %v5140
      %v5827 = vpop.f32.mrf.mxu0
      %v5828 = vadd.f32 %v5343, %v5827
      %v5829 = vpop.f32.mrf.mxu0
      %v5830 = vpop.f32.mrf.mxu0
      %v5831 = vadd.f32 %v5343, %v5830
      %v5832 = vpop.f32.mrf.mxu0
      %5833 = vmatprep.mubr.bf16.mxu0 %v5150
      %5834 = vmatmul.mubr.bf16.gmra.mxu0 %v5149
      %v5835 = vpop.f32.mrf.mxu0
      %v5836 = vadd.f32 %v5343, %v5835
      %v5837 = vpop.f32.mrf.mxu0
      %v5838 = vpop.f32.mrf.mxu0
      %v5839 = vadd.f32 %v5343, %v5838
      %v5840 = vpop.f32.mrf.mxu0
      %5841 = vmatprep.mubr.bf16.mxu0 %v5159
      %5842 = vmatmul.mubr.bf16.gmra.mxu0 %v5158
      %v5843 = vpop.f32.mrf.mxu0
      %v5844 = vadd.f32 %v5343, %v5843
      %v5845 = vpop.f32.mrf.mxu0
      %v5846 = vpop.f32.mrf.mxu0
      %v5847 = vadd.f32 %v5343, %v5846
      %v5848 = vpop.f32.mrf.mxu0
      %5849 = vmatprep.mubr.bf16.mxu0 %v5168
      %5850 = vmatmul.mubr.bf16.gmra.mxu0 %v5167
      %v5851 = vpop.f32.mrf.mxu0
      %v5852 = vadd.f32 %v5343, %v5851
      %v5853 = vpop.f32.mrf.mxu0
      %v5854 = vpop.f32.mrf.mxu0
      %v5855 = vadd.f32 %v5343, %v5854
      %v5856 = vpop.f32.mrf.mxu0
      %5857 = vmatprep.mubr.bf16.mxu0 %v5177
      %5858 = vmatmul.mubr.bf16.gmra.mxu0 %v5176
      %v5859 = vpop.f32.mrf.mxu0
      %v5860 = vadd.f32 %v5343, %v5859
      %v5861 = vpop.f32.mrf.mxu0
      %v5862 = vpop.f32.mrf.mxu0
      %v5863 = vadd.f32 %v5343, %v5862
      %v5864 = vpop.f32.mrf.mxu0
      %5865 = vmatprep.mubr.bf16.mxu0 %v5186
      %5866 = vmatmul.mubr.bf16.gmra.mxu0 %v5185
      %v5867 = vpop.f32.mrf.mxu0
      %v5868 = vadd.f32 %v5343, %v5867
      %v5869 = vpop.f32.mrf.mxu0
      %v5870 = vpop.f32.mrf.mxu0
      %v5871 = vadd.f32 %v5343, %v5870
      %v5872 = vpop.f32.mrf.mxu0
      %5873 = vdwg.mxu0
      %5874 = vmatprep.subr.bf16.mxu0 0
      %5875 = vmatpush1.bf16.msra.mxu0 %v5656
      %5876 = vmatprep.subr.bf16.mxu0 0
      %5877 = vmatpush1.bf16.msra.mxu0 %v5655
      %5878 = vmatprep.subr.bf16.mxu0 0
      %5879 = vmatpush1.bf16.msra.mxu0 %v5654
      %5880 = vmatprep.subr.bf16.mxu0 0
      %5881 = vmatpush1.bf16.msra.mxu0 %v5653
      %5882 = vmatprep.subr.bf16.mxu0 0
      %5883 = vmatpush1.bf16.msra.mxu0 %v5652
      %5884 = vmatprep.subr.bf16.mxu0 0
      %5885 = vmatpush1.bf16.msra.mxu0 %v5651
      %5886 = vmatprep.subr.bf16.mxu0 0
      %5887 = vmatpush1.bf16.msra.mxu0 %v5650
      %5888 = vmatprep.subr.bf16.mxu0 0
      %5889 = vmatpush1.bf16.msra.mxu0 %v5649
      %5890 = vmatprep.subr.bf16.mxu0 0
      %5891 = vmatpush2.bf16.msra.mxu0 %v5664
      %5892 = vmatprep.subr.bf16.mxu0 0
      %5893 = vmatpush2.bf16.msra.mxu0 %v5663
      %5894 = vmatprep.subr.bf16.mxu0 0
      %5895 = vmatpush2.bf16.msra.mxu0 %v5662
      %5896 = vmatprep.subr.bf16.mxu0 0
      %5897 = vmatpush2.bf16.msra.mxu0 %v5661
      %5898 = vmatprep.subr.bf16.mxu0 0
      %5899 = vmatpush2.bf16.msra.mxu0 %v5660
      %5900 = vmatprep.subr.bf16.mxu0 0
      %5901 = vmatpush2.bf16.msra.mxu0 %v5659
      %5902 = vmatprep.subr.bf16.mxu0 0
      %5903 = vmatpush2.bf16.msra.mxu0 %v5658
      %5904 = vmatprep.subr.bf16.mxu0 0
      %5905 = vmatpush2.bf16.msra.mxu0 %v5657
      %5906 = vmatprep.mubr.bf16.mxu0 %v5125
      %5907 = vmatmul.mubr.bf16.gmra.mxu0 %v5124
      %v5908 = vpop.f32.mrf.mxu0
      %v5909 = vadd.f32 %v5812, %v5908
      %v5910 = vpop.f32.mrf.mxu0
      %v5911 = vpop.f32.mrf.mxu0
      %v5912 = vadd.f32 %v5815, %v5911
      %v5913 = vpop.f32.mrf.mxu0
      %5914 = vmatprep.mubr.bf16.mxu0 %v5134
      %5915 = vmatmul.mubr.bf16.gmra.mxu0 %v5133
      %v5916 = vpop.f32.mrf.mxu0
      %v5917 = vadd.f32 %v5820, %v5916
      %v5918 = vpop.f32.mrf.mxu0
      %v5919 = vpop.f32.mrf.mxu0
      %v5920 = vadd.f32 %v5823, %v5919
      %v5921 = vpop.f32.mrf.mxu0
      %5922 = vmatprep.mubr.bf16.mxu0 %v5143
      %5923 = vmatmul.mubr.bf16.gmra.mxu0 %v5142
      %v5924 = vpop.f32.mrf.mxu0
      %v5925 = vadd.f32 %v5828, %v5924
      %v5926 = vpop.f32.mrf.mxu0
      %v5927 = vpop.f32.mrf.mxu0
      %v5928 = vadd.f32 %v5831, %v5927
      %v5929 = vpop.f32.mrf.mxu0
      %5930 = vmatprep.mubr.bf16.mxu0 %v5152
      %5931 = vmatmul.mubr.bf16.gmra.mxu0 %v5151
      %v5932 = vpop.f32.mrf.mxu0
      %v5933 = vadd.f32 %v5836, %v5932
      %v5934 = vpop.f32.mrf.mxu0
      %v5935 = vpop.f32.mrf.mxu0
      %v5936 = vadd.f32 %v5839, %v5935
      %v5937 = vpop.f32.mrf.mxu0
      %5938 = vmatprep.mubr.bf16.mxu0 %v5161
      %5939 = vmatmul.mubr.bf16.gmra.mxu0 %v5160
      %v5940 = vpop.f32.mrf.mxu0
      %v5941 = vadd.f32 %v5844, %v5940
      %v5942 = vpop.f32.mrf.mxu0
      %v5943 = vpop.f32.mrf.mxu0
      %v5944 = vadd.f32 %v5847, %v5943
      %v5945 = vpop.f32.mrf.mxu0
      %5946 = vmatprep.mubr.bf16.mxu0 %v5170
      %5947 = vmatmul.mubr.bf16.gmra.mxu0 %v5169
      %v5948 = vpop.f32.mrf.mxu0
      %v5949 = vadd.f32 %v5852, %v5948
      %v5950 = vpop.f32.mrf.mxu0
      %v5951 = vpop.f32.mrf.mxu0
      %v5952 = vadd.f32 %v5855, %v5951
      %v5953 = vpop.f32.mrf.mxu0
      %5954 = vmatprep.mubr.bf16.mxu0 %v5179
      %5955 = vmatmul.mubr.bf16.gmra.mxu0 %v5178
      %v5956 = vpop.f32.mrf.mxu0
      %v5957 = vadd.f32 %v5860, %v5956
      %v5958 = vpop.f32.mrf.mxu0
      %v5959 = vpop.f32.mrf.mxu0
      %v5960 = vadd.f32 %v5863, %v5959
      %v5961 = vpop.f32.mrf.mxu0
      %5962 = vmatprep.mubr.bf16.mxu0 %v5188
      %5963 = vmatmul.mubr.bf16.gmra.mxu0 %v5187
      %v5964 = vpop.f32.mrf.mxu0
      %v5965 = vadd.f32 %v5868, %v5964
      %v5966 = vpop.f32.mrf.mxu0
      %v5967 = vpop.f32.mrf.mxu0
      %v5968 = vadd.f32 %v5871, %v5967
      %v5969 = vpop.f32.mrf.mxu0
      %5970 = vdwg.mxu0
      %5971 = vmatprep.subr.bf16.mxu0 0
      %5972 = vmatpush1.bf16.msra.mxu0 %v5672
      %5973 = vmatprep.subr.bf16.mxu0 0
      %5974 = vmatpush1.bf16.msra.mxu0 %v5671
      %5975 = vmatprep.subr.bf16.mxu0 0
      %5976 = vmatpush1.bf16.msra.mxu0 %v5670
      %5977 = vmatprep.subr.bf16.mxu0 0
      %5978 = vmatpush1.bf16.msra.mxu0 %v5669
      %5979 = vmatprep.subr.bf16.mxu0 0
      %5980 = vmatpush1.bf16.msra.mxu0 %v5668
      %5981 = vmatprep.subr.bf16.mxu0 0
      %5982 = vmatpush1.bf16.msra.mxu0 %v5667
      %5983 = vmatprep.subr.bf16.mxu0 0
      %5984 = vmatpush1.bf16.msra.mxu0 %v5666
      %5985 = vmatprep.subr.bf16.mxu0 0
      %5986 = vmatpush1.bf16.msra.mxu0 %v5665
      %5987 = vmatprep.subr.bf16.mxu0 0
      %5988 = vmatpush2.bf16.msra.mxu0 %v5680
      %5989 = vmatprep.subr.bf16.mxu0 0
      %5990 = vmatpush2.bf16.msra.mxu0 %v5679
      %5991 = vmatprep.subr.bf16.mxu0 0
      %5992 = vmatpush2.bf16.msra.mxu0 %v5678
      %5993 = vmatprep.subr.bf16.mxu0 0
      %5994 = vmatpush2.bf16.msra.mxu0 %v5677
      %5995 = vmatprep.subr.bf16.mxu0 0
      %5996 = vmatpush2.bf16.msra.mxu0 %v5676
      %5997 = vmatprep.subr.bf16.mxu0 0
      %5998 = vmatpush2.bf16.msra.mxu0 %v5675
      %5999 = vmatprep.subr.bf16.mxu0 0
      %6000 = vmatpush2.bf16.msra.mxu0 %v5674
      %6001 = vmatprep.subr.bf16.mxu0 0
      %6002 = vmatpush2.bf16.msra.mxu0 %v5673
      %6003 = vmatprep.mubr.bf16.mxu0 %v5127
      %6004 = vmatmul.mubr.bf16.gmra.mxu0 %v5126
      %v6005 = vpop.f32.mrf.mxu0
      %v6006 = vadd.f32 %v5909, %v6005
      %v6007 = vpop.f32.mrf.mxu0
      %v6008 = vpop.f32.mrf.mxu0
      %v6009 = vadd.f32 %v5912, %v6008
      %v6010 = vpop.f32.mrf.mxu0
      %6011 = vmatprep.mubr.bf16.mxu0 %v5136
      %6012 = vmatmul.mubr.bf16.gmra.mxu0 %v5135
      %v6013 = vpop.f32.mrf.mxu0
      %v6014 = vadd.f32 %v5917, %v6013
      %v6015 = vpop.f32.mrf.mxu0
      %v6016 = vpop.f32.mrf.mxu0
      %v6017 = vadd.f32 %v5920, %v6016
      %v6018 = vpop.f32.mrf.mxu0
      %6019 = vmatprep.mubr.bf16.mxu0 %v5145
      %6020 = vmatmul.mubr.bf16.gmra.mxu0 %v5144
      %v6021 = vpop.f32.mrf.mxu0
      %v6022 = vadd.f32 %v5925, %v6021
      %v6023 = vpop.f32.mrf.mxu0
      %v6024 = vpop.f32.mrf.mxu0
      %v6025 = vadd.f32 %v5928, %v6024
      %v6026 = vpop.f32.mrf.mxu0
      %6027 = vmatprep.mubr.bf16.mxu0 %v5154
      %6028 = vmatmul.mubr.bf16.gmra.mxu0 %v5153
      %v6029 = vpop.f32.mrf.mxu0
      %v6030 = vadd.f32 %v5933, %v6029
      %v6031 = vpop.f32.mrf.mxu0
      %v6032 = vpop.f32.mrf.mxu0
      %v6033 = vadd.f32 %v5936, %v6032
      %v6034 = vpop.f32.mrf.mxu0
      %6035 = vmatprep.mubr.bf16.mxu0 %v5163
      %6036 = vmatmul.mubr.bf16.gmra.mxu0 %v5162
      %v6037 = vpop.f32.mrf.mxu0
      %v6038 = vadd.f32 %v5941, %v6037
      %v6039 = vpop.f32.mrf.mxu0
      %v6040 = vpop.f32.mrf.mxu0
      %v6041 = vadd.f32 %v5944, %v6040
      %v6042 = vpop.f32.mrf.mxu0
      %6043 = vmatprep.mubr.bf16.mxu0 %v5172
      %6044 = vmatmul.mubr.bf16.gmra.mxu0 %v5171
      %v6045 = vpop.f32.mrf.mxu0
      %v6046 = vadd.f32 %v5949, %v6045
      %v6047 = vpop.f32.mrf.mxu0
      %v6048 = vpop.f32.mrf.mxu0
      %v6049 = vadd.f32 %v5952, %v6048
      %v6050 = vpop.f32.mrf.mxu0
      %6051 = vmatprep.mubr.bf16.mxu0 %v5181
      %6052 = vmatmul.mubr.bf16.gmra.mxu0 %v5180
      %v6053 = vpop.f32.mrf.mxu0
      %v6054 = vadd.f32 %v5957, %v6053
      %v6055 = vpop.f32.mrf.mxu0
      %v6056 = vpop.f32.mrf.mxu0
      %v6057 = vadd.f32 %v5960, %v6056
      %v6058 = vpop.f32.mrf.mxu0
      %6059 = vmatprep.mubr.bf16.mxu0 %v5190
      %6060 = vmatmul.mubr.bf16.gmra.mxu0 %v5189
      %v6061 = vpop.f32.mrf.mxu0
      %v6062 = vadd.f32 %v5965, %v6061
      %v6063 = vpop.f32.mrf.mxu0
      %v6064 = vpop.f32.mrf.mxu0
      %v6065 = vadd.f32 %v5968, %v6064
      %v6066 = vpop.f32.mrf.mxu0
      %6067 = vdwg.mxu0
      %6068 = vmatprep.subr.bf16.mxu0 0
      %6069 = vmatpush1.bf16.msra.mxu0 %v5688
      %6070 = vmatprep.subr.bf16.mxu0 0
      %6071 = vmatpush1.bf16.msra.mxu0 %v5687
      %6072 = vmatprep.subr.bf16.mxu0 0
      %6073 = vmatpush1.bf16.msra.mxu0 %v5686
      %6074 = vmatprep.subr.bf16.mxu0 0
      %6075 = vmatpush1.bf16.msra.mxu0 %v5685
      %6076 = vmatprep.subr.bf16.mxu0 0
      %6077 = vmatpush1.bf16.msra.mxu0 %v5684
      %6078 = vmatprep.subr.bf16.mxu0 0
      %6079 = vmatpush1.bf16.msra.mxu0 %v5683
      %6080 = vmatprep.subr.bf16.mxu0 0
      %6081 = vmatpush1.bf16.msra.mxu0 %v5682
      %6082 = vmatprep.subr.bf16.mxu0 0
      %6083 = vmatpush1.bf16.msra.mxu0 %v5681
      %6084 = vmatprep.subr.bf16.mxu0 0
      %6085 = vmatpush2.bf16.msra.mxu0 %v5696
      %6086 = vmatprep.subr.bf16.mxu0 0
      %6087 = vmatpush2.bf16.msra.mxu0 %v5695
      %6088 = vmatprep.subr.bf16.mxu0 0
      %6089 = vmatpush2.bf16.msra.mxu0 %v5694
      %6090 = vmatprep.subr.bf16.mxu0 0
      %6091 = vmatpush2.bf16.msra.mxu0 %v5693
      %6092 = vmatprep.subr.bf16.mxu0 0
      %6093 = vmatpush2.bf16.msra.mxu0 %v5692
      %6094 = vmatprep.subr.bf16.mxu0 0
      %6095 = vmatpush2.bf16.msra.mxu0 %v5691
      %6096 = vmatprep.subr.bf16.mxu0 0
      %6097 = vmatpush2.bf16.msra.mxu0 %v5690
      %6098 = vmatprep.subr.bf16.mxu0 0
      %6099 = vmatpush2.bf16.msra.mxu0 %v5689
      %6100 = vmatprep.mubr.bf16.mxu0 %v5129
      %6101 = vmatmul.mubr.bf16.gmra.mxu0 %v5128
      %v6102 = vpop.f32.mrf.mxu0
      %v6103 = vadd.f32 %v6006, %v6102
      %v6104 = vpop.f32.mrf.mxu0
      %v6105 = vpop.f32.mrf.mxu0
      %v6106 = vadd.f32 %v6009, %v6105
      %v6107 = vpop.f32.mrf.mxu0
      %6108 = vmatprep.mubr.bf16.mxu0 %v5138
      %6109 = vmatmul.mubr.bf16.gmra.mxu0 %v5137
      %v6110 = vpop.f32.mrf.mxu0
      %v6111 = vadd.f32 %v6014, %v6110
      %v6112 = vpop.f32.mrf.mxu0
      %v6113 = vpop.f32.mrf.mxu0
      %v6114 = vadd.f32 %v6017, %v6113
      %v6115 = vpop.f32.mrf.mxu0
      %6116 = vmatprep.mubr.bf16.mxu0 %v5147
      %6117 = vmatmul.mubr.bf16.gmra.mxu0 %v5146
      %v6118 = vpop.f32.mrf.mxu0
      %v6119 = vadd.f32 %v6022, %v6118
      %v6120 = vpop.f32.mrf.mxu0
      %v6121 = vpop.f32.mrf.mxu0
      %v6122 = vadd.f32 %v6025, %v6121
      %v6123 = vpop.f32.mrf.mxu0
      %6124 = vmatprep.mubr.bf16.mxu0 %v5156
      %6125 = vmatmul.mubr.bf16.gmra.mxu0 %v5155
      %v6126 = vpop.f32.mrf.mxu0
      %v6127 = vadd.f32 %v6030, %v6126
      %v6128 = vpop.f32.mrf.mxu0
      %v6129 = vpop.f32.mrf.mxu0
      %v6130 = vadd.f32 %v6033, %v6129
      %v6131 = vpop.f32.mrf.mxu0
      %6132 = vmatprep.mubr.bf16.mxu0 %v5165
      %6133 = vmatmul.mubr.bf16.gmra.mxu0 %v5164
      %v6134 = vpop.f32.mrf.mxu0
      %v6135 = vadd.f32 %v6038, %v6134
      %v6136 = vpop.f32.mrf.mxu0
      %v6137 = vpop.f32.mrf.mxu0
      %v6138 = vadd.f32 %v6041, %v6137
      %v6139 = vpop.f32.mrf.mxu0
      %6140 = vmatprep.mubr.bf16.mxu0 %v5174
      %6141 = vmatmul.mubr.bf16.gmra.mxu0 %v5173
      %v6142 = vpop.f32.mrf.mxu0
      %v6143 = vadd.f32 %v6046, %v6142
      %v6144 = vpop.f32.mrf.mxu0
      %v6145 = vpop.f32.mrf.mxu0
      %v6146 = vadd.f32 %v6049, %v6145
      %v6147 = vpop.f32.mrf.mxu0
      %6148 = vmatprep.mubr.bf16.mxu0 %v5183
      %6149 = vmatmul.mubr.bf16.gmra.mxu0 %v5182
      %v6150 = vpop.f32.mrf.mxu0
      %v6151 = vadd.f32 %v6054, %v6150
      %v6152 = vpop.f32.mrf.mxu0
      %v6153 = vpop.f32.mrf.mxu0
      %v6154 = vadd.f32 %v6057, %v6153
      %v6155 = vpop.f32.mrf.mxu0
      %6156 = vmatprep.mubr.bf16.mxu0 %v5192
      %6157 = vmatmul.mubr.bf16.gmra.mxu0 %v5191
      %v6158 = vpop.f32.mrf.mxu0
      %v6159 = vadd.f32 %v6062, %v6158
      %v6160 = vpop.f32.mrf.mxu0
      %v6161 = vpop.f32.mrf.mxu0
      %v6162 = vadd.f32 %v6065, %v6161
      %v6163 = vpop.f32.mrf.mxu0
      %6164 = vdwg.mxu0
      %6165 = vmatprep.subr.bf16.mxu0 0
      %6166 = vmatpush1.bf16.msra.mxu0 %v5704
      %6167 = vmatprep.subr.bf16.mxu0 0
      %6168 = vmatpush1.bf16.msra.mxu0 %v5703
      %6169 = vmatprep.subr.bf16.mxu0 0
      %6170 = vmatpush1.bf16.msra.mxu0 %v5702
      %6171 = vmatprep.subr.bf16.mxu0 0
      %6172 = vmatpush1.bf16.msra.mxu0 %v5701
      %6173 = vmatprep.subr.bf16.mxu0 0
      %6174 = vmatpush1.bf16.msra.mxu0 %v5700
      %6175 = vmatprep.subr.bf16.mxu0 0
      %6176 = vmatpush1.bf16.msra.mxu0 %v5699
      %6177 = vmatprep.subr.bf16.mxu0 0
      %6178 = vmatpush1.bf16.msra.mxu0 %v5698
      %6179 = vmatprep.subr.bf16.mxu0 0
      %6180 = vmatpush1.bf16.msra.mxu0 %v5697
      %6181 = vmatprep.subr.bf16.mxu0 0
      %6182 = vmatpush2.bf16.msra.mxu0 0
      %6183 = vmatprep.subr.bf16.mxu0 0
      %6184 = vmatpush2.bf16.msra.mxu0 0
      %6185 = vmatprep.subr.bf16.mxu0 0
      %6186 = vmatpush2.bf16.msra.mxu0 0
      %6187 = vmatprep.subr.bf16.mxu0 0
      %6188 = vmatpush2.bf16.msra.mxu0 0
      %6189 = vmatprep.subr.bf16.mxu0 0
      %6190 = vmatpush2.bf16.msra.mxu0 0
      %6191 = vmatprep.subr.bf16.mxu0 0
      %6192 = vmatpush2.bf16.msra.mxu0 0
      %6193 = vmatprep.subr.bf16.mxu0 0
      %6194 = vmatpush2.bf16.msra.mxu0 0
      %6195 = vmatprep.subr.bf16.mxu0 0
      %6196 = vmatpush2.bf16.msra.mxu0 0
      %6197 = vmatprep.mubr.bf16.mxu0 0
      %6198 = vmatmul.mubr.bf16.gmra.mxu0 %v5130
      %v6199 = vpop.f32.mrf.mxu0
      %v6200 = vadd.f32 %v6103, %v6199
      %v6201 = vpop.f32.mrf.mxu0
      %v6202 = vpop.f32.mrf.mxu0
      %v6203 = vadd.f32 %v6106, %v6202
      %v6204 = vpop.f32.mrf.mxu0
      %6205 = vmatprep.mubr.bf16.mxu0 0
      %6206 = vmatmul.mubr.bf16.gmra.mxu0 %v5139
      %v6207 = vpop.f32.mrf.mxu0
      %v6208 = vadd.f32 %v6111, %v6207
      %v6209 = vpop.f32.mrf.mxu0
      %v6210 = vpop.f32.mrf.mxu0
      %v6211 = vadd.f32 %v6114, %v6210
      %v6212 = vpop.f32.mrf.mxu0
      %6213 = vmatprep.mubr.bf16.mxu0 0
      %6214 = vmatmul.mubr.bf16.gmra.mxu0 %v5148
      %v6215 = vpop.f32.mrf.mxu0
      %v6216 = vadd.f32 %v6119, %v6215
      %v6217 = vpop.f32.mrf.mxu0
      %v6218 = vpop.f32.mrf.mxu0
      %v6219 = vadd.f32 %v6122, %v6218
      %v6220 = vpop.f32.mrf.mxu0
      %6221 = vmatprep.mubr.bf16.mxu0 0
      %6222 = vmatmul.mubr.bf16.gmra.mxu0 %v5157
      %v6223 = vpop.f32.mrf.mxu0
      %v6224 = vadd.f32 %v6127, %v6223
      %v6225 = vpop.f32.mrf.mxu0
      %v6226 = vpop.f32.mrf.mxu0
      %v6227 = vadd.f32 %v6130, %v6226
      %v6228 = vpop.f32.mrf.mxu0
      %6229 = vmatprep.mubr.bf16.mxu0 0
      %6230 = vmatmul.mubr.bf16.gmra.mxu0 %v5166
      %v6231 = vpop.f32.mrf.mxu0
      %v6232 = vadd.f32 %v6135, %v6231
      %v6233 = vpop.f32.mrf.mxu0
      %v6234 = vpop.f32.mrf.mxu0
      %v6235 = vadd.f32 %v6138, %v6234
      %v6236 = vpop.f32.mrf.mxu0
      %6237 = vmatprep.mubr.bf16.mxu0 0
      %6238 = vmatmul.mubr.bf16.gmra.mxu0 %v5175
      %v6239 = vpop.f32.mrf.mxu0
      %v6240 = vadd.f32 %v6143, %v6239
      %v6241 = vpop.f32.mrf.mxu0
      %v6242 = vpop.f32.mrf.mxu0
      %v6243 = vadd.f32 %v6146, %v6242
      %v6244 = vpop.f32.mrf.mxu0
      %6245 = vmatprep.mubr.bf16.mxu0 0
      %6246 = vmatmul.mubr.bf16.gmra.mxu0 %v5184
      %v6247 = vpop.f32.mrf.mxu0
      %v6248 = vadd.f32 %v6151, %v6247
      %v6249 = vpop.f32.mrf.mxu0
      %v6250 = vpop.f32.mrf.mxu0
      %v6251 = vadd.f32 %v6154, %v6250
      %v6252 = vpop.f32.mrf.mxu0
      %6253 = vmatprep.mubr.bf16.mxu0 0
      %6254 = vmatmul.mubr.bf16.gmra.mxu0 %v5193
      %v6255 = vpop.f32.mrf.mxu0
      %v6256 = vadd.f32 %v6159, %v6255
      %v6257 = vpop.f32.mrf.mxu0
      %v6258 = vpop.f32.mrf.mxu0
      %v6259 = vadd.f32 %v6162, %v6258
      %v6260 = vpop.f32.mrf.mxu0
      %6261 = vdwg.mxu0
      %6262 = vst [vmem:[#allocation6] sm:$0xff] %v6200
      %6263 = vst [vmem:[#allocation6 + $0x8] sm:$0xff] %v6203
      %6264 = vst [vmem:[#allocation6 + $0x10] sm:$0xff] %v6208
      %6265 = vst [vmem:[#allocation6 + $0x18] sm:$0xff] %v6211
      %6266 = vst [vmem:[#allocation6 + $0x20] sm:$0xff] %v6216
      %6267 = vst [vmem:[#allocation6 + $0x28] sm:$0xff] %v6219
      %6268 = vst [vmem:[#allocation6 + $0x30] sm:$0xff] %v6224
      %6269 = vst [vmem:[#allocation6 + $0x38] sm:$0xff] %v6227
      %6270 = vst [vmem:[#allocation6 + $0x40] sm:$0xff] %v6232
      %6271 = vst [vmem:[#allocation6 + $0x48] sm:$0xff] %v6235
      %6272 = vst [vmem:[#allocation6 + $0x50] sm:$0xff] %v6240
      %6273 = vst [vmem:[#allocation6 + $0x58] sm:$0xff] %v6243
      %6274 = vst [vmem:[#allocation6 + $0x60] sm:$0xff] %v6248
      %6275 = vst [vmem:[#allocation6 + $0x68] sm:$0xff] %v6251
      %6276 = vst [vmem:[#allocation6 + $0x70] sm:$0xff] %v6256
      %6277 = vst [vmem:[#allocation6 + $0x78] sm:$0xff] %v6259
      %v6278 = vld [vmem:[#allocation6] sm:$0xff]
      %v6279 = vld [vmem:[#allocation6 + $0x8] sm:$0xff]
      %6280 = vst [vmem:[#allocation7] sm:$0xff] %v6278
      %6281 = vst [vmem:[#allocation7 + $0x48] sm:$0xff] %v6279
      %v6282 = vld [vmem:[#allocation6 + $0x8] sm:$0xff]
      %v6283 = vld [vmem:[#allocation6 + $0x10] sm:$0xff]
      %6284 = vst [vmem:[#allocation7 + $0x8] sm:$0xff] %v6282
      %6285 = vst [vmem:[#allocation7 + $0x50] sm:$0xff] %v6283
      %v6286 = vld [vmem:[#allocation6 + $0x10] sm:$0xff]
      %v6287 = vld [vmem:[#allocation6 + $0x18] sm:$0xff]
      %6288 = vst [vmem:[#allocation7 + $0x10] sm:$0xff] %v6286
      %6289 = vst [vmem:[#allocation7 + $0x58] sm:$0xff] %v6287
      %v6290 = vld [vmem:[#allocation6 + $0x20] sm:$0xff]
      %v6291 = vld [vmem:[#allocation6 + $0x28] sm:$0xff]
      %6292 = vst [vmem:[#allocation7 + $0x18] sm:$0xff] %v6290
      %6293 = vst [vmem:[#allocation7 + $0x60] sm:$0xff] %v6291
      %v6294 = vld [vmem:[#allocation6 + $0x28] sm:$0xff]
      %v6295 = vld [vmem:[#allocation6 + $0x30] sm:$0xff]
      %6296 = vst [vmem:[#allocation7 + $0x20] sm:$0xff] %v6294
      %6297 = vst [vmem:[#allocation7 + $0x68] sm:$0xff] %v6295
      %v6298 = vld [vmem:[#allocation6 + $0x30] sm:$0xff]
      %v6299 = vld [vmem:[#allocation6 + $0x38] sm:$0xff]
      %6300 = vst [vmem:[#allocation7 + $0x28] sm:$0xff] %v6298
      %6301 = vst [vmem:[#allocation7 + $0x70] sm:$0xff] %v6299
      %v6302 = vld [vmem:[#allocation6 + $0x40] sm:$0xff]
      %v6303 = vld [vmem:[#allocation6 + $0x48] sm:$0xff]
      %6304 = vst [vmem:[#allocation7 + $0x30] sm:$0xff] %v6302
      %6305 = vst [vmem:[#allocation7 + $0x78] sm:$0xff] %v6303
      %v6306 = vld [vmem:[#allocation6 + $0x48] sm:$0xff]
      %v6307 = vld [vmem:[#allocation6 + $0x50] sm:$0xff]
      %6308 = vst [vmem:[#allocation7 + $0x38] sm:$0xff] %v6306
      %6309 = vst [vmem:[#allocation7 + $0x80] sm:$0xff] %v6307
      %v6310 = vld [vmem:[#allocation6 + $0x50] sm:$0xff]
      %v6311 = vld [vmem:[#allocation6 + $0x58] sm:$0xff]
      %6312 = vst [vmem:[#allocation7 + $0x40] sm:$0xff] %v6310
      %6313 = vst [vmem:[#allocation7 + $0x88] sm:$0xff] %v6311
      %v6314 = vld [vmem:[#allocation6 + $0x20] sm:$0xff]
      %v6315 = vld [vmem:[#allocation6 + $0x28] sm:$0xff]
      %6316 = vst [vmem:[#allocation7 + $0x90] sm:$0xff] %v6314
      %6317 = vst [vmem:[#allocation7 + $0xd8] sm:$0xff] %v6315
      %v6318 = vld [vmem:[#allocation6 + $0x28] sm:$0xff]
      %v6319 = vld [vmem:[#allocation6 + $0x30] sm:$0xff]
      %6320 = vst [vmem:[#allocation7 + $0x98] sm:$0xff] %v6318
      %6321 = vst [vmem:[#allocation7 + $0xe0] sm:$0xff] %v6319
      %v6322 = vld [vmem:[#allocation6 + $0x30] sm:$0xff]
      %v6323 = vld [vmem:[#allocation6 + $0x38] sm:$0xff]
      %6324 = vst [vmem:[#allocation7 + $0xa0] sm:$0xff] %v6322
      %6325 = vst [vmem:[#allocation7 + $0xe8] sm:$0xff] %v6323
      %v6326 = vld [vmem:[#allocation6 + $0x40] sm:$0xff]
      %v6327 = vld [vmem:[#allocation6 + $0x48] sm:$0xff]
      %6328 = vst [vmem:[#allocation7 + $0xa8] sm:$0xff] %v6326
      %6329 = vst [vmem:[#allocation7 + $0xf0] sm:$0xff] %v6327
      %v6330 = vld [vmem:[#allocation6 + $0x48] sm:$0xff]
      %v6331 = vld [vmem:[#allocation6 + $0x50] sm:$0xff]
      %6332 = vst [vmem:[#allocation7 + $0xb0] sm:$0xff] %v6330
      %6333 = vst [vmem:[#allocation7 + $0xf8] sm:$0xff] %v6331
      %v6334 = vld [vmem:[#allocation6 + $0x50] sm:$0xff]
      %v6335 = vld [vmem:[#allocation6 + $0x58] sm:$0xff]
      %6336 = vst [vmem:[#allocation7 + $0xb8] sm:$0xff] %v6334
      %6337 = vst [vmem:[#allocation7 + $0x100] sm:$0xff] %v6335
      %v6338 = vld [vmem:[#allocation6 + $0x60] sm:$0xff]
      %v6339 = vld [vmem:[#allocation6 + $0x68] sm:$0xff]
      %6340 = vst [vmem:[#allocation7 + $0xc0] sm:$0xff] %v6338
      %6341 = vst [vmem:[#allocation7 + $0x108] sm:$0xff] %v6339
      %v6342 = vld [vmem:[#allocation6 + $0x68] sm:$0xff]
      %v6343 = vld [vmem:[#allocation6 + $0x70] sm:$0xff]
      %6344 = vst [vmem:[#allocation7 + $0xc8] sm:$0xff] %v6342
      %6345 = vst [vmem:[#allocation7 + $0x110] sm:$0xff] %v6343
      %v6346 = vld [vmem:[#allocation6 + $0x70] sm:$0xff]
      %v6347 = vld [vmem:[#allocation6 + $0x78] sm:$0xff]
      %6348 = vst [vmem:[#allocation7 + $0xd0] sm:$0xff] %v6346
      %6349 = vst [vmem:[#allocation7 + $0x118] sm:$0xff] %v6347
      %v6350 = vld [vmem:[#allocation7] sm:$0xff]
      %v6351 = vld [vmem:[#allocation7 + $0x8] sm:$0xff]
      %v6352 = vld [vmem:[#allocation7 + $0x10] sm:$0xff]
      %v6353 = vld [vmem:[#allocation7 + $0x18] sm:$0xff]
      %v6354 = vld [vmem:[#allocation7 + $0x20] sm:$0xff]
      %v6355 = vld [vmem:[#allocation7 + $0x28] sm:$0xff]
      %v6356 = vld [vmem:[#allocation7 + $0x30] sm:$0xff]
      %v6357 = vld [vmem:[#allocation7 + $0x38] sm:$0xff]
      %v6358 = vld [vmem:[#allocation7 + $0x40] sm:$0xff]
      %v6359 = vld [vmem:[#allocation7 + $0x48] sm:$0xff]
      %v6360 = vld [vmem:[#allocation7 + $0x50] sm:$0xff]
      %v6361 = vld [vmem:[#allocation7 + $0x58] sm:$0xff]
      %v6362 = vld [vmem:[#allocation7 + $0x60] sm:$0xff]
      %v6363 = vld [vmem:[#allocation7 + $0x68] sm:$0xff]
      %v6364 = vld [vmem:[#allocation7 + $0x70] sm:$0xff]
      %v6365 = vld [vmem:[#allocation7 + $0x78] sm:$0xff]
      %v6366 = vld [vmem:[#allocation7 + $0x80] sm:$0xff]
      %v6367 = vld [vmem:[#allocation7 + $0x88] sm:$0xff]
      %v6368 = vld [vmem:[#allocation7 + $0x90] sm:$0xff]
      %v6369 = vld [vmem:[#allocation7 + $0x98] sm:$0xff]
      %v6370 = vld [vmem:[#allocation7 + $0xa0] sm:$0xff]
      %v6371 = vld [vmem:[#allocation7 + $0xa8] sm:$0xff]
      %v6372 = vld [vmem:[#allocation7 + $0xb0] sm:$0xff]
      %v6373 = vld [vmem:[#allocation7 + $0xb8] sm:$0xff]
      %v6374 = vld [vmem:[#allocation7 + $0xc0] sm:$0xff]
      %v6375 = vld [vmem:[#allocation7 + $0xc8] sm:$0xff]
      %v6376 = vld [vmem:[#allocation7 + $0xd0] sm:$0xff]
      %v6377 = vld [vmem:[#allocation7 + $0xd8] sm:$0xff]
      %v6378 = vld [vmem:[#allocation7 + $0xe0] sm:$0xff]
      %v6379 = vld [vmem:[#allocation7 + $0xe8] sm:$0xff]
      %v6380 = vld [vmem:[#allocation7 + $0xf0] sm:$0xff]
      %v6381 = vld [vmem:[#allocation7 + $0xf8] sm:$0xff]
      %v6382 = vld [vmem:[#allocation7 + $0x100] sm:$0xff]
      %v6383 = vld [vmem:[#allocation7 + $0x108] sm:$0xff]
      %v6384 = vld [vmem:[#allocation7 + $0x110] sm:$0xff]
      %v6385 = vld [vmem:[#allocation7 + $0x118] sm:$0xff]
      %v6386 = vpack.c.bf16 %v6359, %v6350
      %v6387 = vpack.c.bf16 %v6360, %v6351
      %v6388 = vpack.c.bf16 %v6361, %v6352
      %v6389 = vpack.c.bf16 %v6362, %v6353
      %v6390 = vpack.c.bf16 %v6363, %v6354
      %v6391 = vpack.c.bf16 %v6364, %v6355
      %v6392 = vpack.c.bf16 %v6365, %v6356
      %v6393 = vpack.c.bf16 %v6366, %v6357
      %v6394 = vpack.c.bf16 %v6367, %v6358
      %v6395 = vpack.c.bf16 %v6377, %v6368
      %v6396 = vpack.c.bf16 %v6378, %v6369
      %v6397 = vpack.c.bf16 %v6379, %v6370
      %v6398 = vpack.c.bf16 %v6380, %v6371
      %v6399 = vpack.c.bf16 %v6381, %v6372
      %v6400 = vpack.c.bf16 %v6382, %v6373
      %v6401 = vpack.c.bf16 %v6383, %v6374
      %v6402 = vpack.c.bf16 %v6384, %v6375
      %v6403 = vpack.c.bf16 %v6385, %v6376
      %v6404 = vld [vmem:[%s9] sm:$0xf]
      %v6405 = vld [vmem:[%s9 + $0x4] sm:$0xf]
      %v6406 = vld [vmem:[%s9 + $0x8] sm:$0xf]
      %v6407 = vld [vmem:[%s9 + $0xc] sm:$0xf]
      %v6408 = vld [vmem:[%s9 + $0x10] sm:$0xf]
      %v6409 = vld [vmem:[%s9 + $0x14] sm:$0xf]
      %v6410 = vld [vmem:[%s9 + $0x18] sm:$0xf]
      %v6411 = vld [vmem:[%s9 + $0x1c] sm:$0xf]
      %v6412 = vld [vmem:[%s9 + $0x20] sm:$0xf]
      %v6413 = vld [vmem:[%s9 + $0x24] sm:$0xf]
      %v6414 = vld [vmem:[%s9 + $0x28] sm:$0xf]
      %v6415 = vld [vmem:[%s9 + $0x2c] sm:$0xf]
      %v6416 = vld [vmem:[%s9 + $0x30] sm:$0xf]
      %v6417 = vld [vmem:[%s9 + $0x34] sm:$0xf]
      %v6418 = vld [vmem:[%s9 + $0x38] sm:$0xf]
      %v6419 = vld [vmem:[%s9 + $0x3c] sm:$0xf]
      %v6420 = vld [vmem:[%s9 + $0x40] sm:$0xf]
      %v6421 = vld [vmem:[%s9 + $0x44] sm:$0xf]
      %v6422 = vld [vmem:[%s9 + $0x48] sm:$0xf]
      %v6423 = vld [vmem:[%s9 + $0x4c] sm:$0xf]
      %v6424 = vld [vmem:[%s9 + $0x50] sm:$0xf]
      %v6425 = vld [vmem:[%s9 + $0x54] sm:$0xf]
      %v6426 = vld [vmem:[%s9 + $0x58] sm:$0xf]
      %v6427 = vld [vmem:[%s9 + $0x5c] sm:$0xf]
      %v6428 = vld [vmem:[%s9 + $0x60] sm:$0xf]
      %v6429 = vld [vmem:[%s9 + $0x64] sm:$0xf]
      %v6430 = vld [vmem:[%s9 + $0x68] sm:$0xf]
      %v6431 = vld [vmem:[%s9 + $0x6c] sm:$0xf]
      %v6432 = vld [vmem:[%s9 + $0x70] sm:$0xf]
      %v6433 = vld [vmem:[%s9 + $0x74] sm:$0xf]
      %v6434 = vld [vmem:[%s9 + $0x78] sm:$0xf]
      %v6435 = vld [vmem:[%s9 + $0x7c] sm:$0xf]
      %v6436 = vld [vmem:[%s9 + $0x80] sm:$0xf]
      %v6437 = vld [vmem:[%s9 + $0x84] sm:$0xf]
      %v6438 = vld [vmem:[%s9 + $0x88] sm:$0xf]
      %v6439 = vld [vmem:[%s9 + $0x8c] sm:$0xf]
      %v6440 = vld [vmem:[%s9 + $0x90] sm:$0xf]
      %v6441 = vld [vmem:[%s9 + $0x94] sm:$0xf]
      %v6442 = vld [vmem:[%s9 + $0x98] sm:$0xf]
      %v6443 = vld [vmem:[%s9 + $0x9c] sm:$0xf]
      %v6444 = vld [vmem:[%s9 + $0xa0] sm:$0xf]
      %v6445 = vld [vmem:[%s9 + $0xa4] sm:$0xf]
      %v6446 = vld [vmem:[%s9 + $0xa8] sm:$0xf]
      %v6447 = vld [vmem:[%s9 + $0xac] sm:$0xf]
      %v6448 = vld [vmem:[%s9 + $0xb0] sm:$0xf]
      %v6449 = vld [vmem:[%s9 + $0xb4] sm:$0xf]
      %v6450 = vld [vmem:[%s9 + $0xb8] sm:$0xf]
      %v6451 = vld [vmem:[%s9 + $0xbc] sm:$0xf]
      %v6452 = vld [vmem:[%s9 + $0xc0] sm:$0xf]
      %v6453 = vld [vmem:[%s9 + $0xc4] sm:$0xf]
      %v6454 = vld [vmem:[%s9 + $0xc8] sm:$0xf]
      %v6455 = vld [vmem:[%s9 + $0xcc] sm:$0xf]
      %v6456 = vld [vmem:[%s9 + $0xd0] sm:$0xf]
      %v6457 = vld [vmem:[%s9 + $0xd4] sm:$0xf]
      %v6458 = vld [vmem:[%s9 + $0xd8] sm:$0xf]
      %v6459 = vld [vmem:[%s9 + $0xdc] sm:$0xf]
      %v6460 = vld [vmem:[%s9 + $0xe0] sm:$0xf]
      %v6461 = vld [vmem:[%s9 + $0xe4] sm:$0xf]
      %v6462 = vld [vmem:[%s9 + $0xe8] sm:$0xf]
      %v6463 = vld [vmem:[%s9 + $0xec] sm:$0xf]
      %v6464 = vld [vmem:[%s9 + $0xf0] sm:$0xf]
      %v6465 = vld [vmem:[%s9 + $0xf4] sm:$0xf]
      %v6466 = vld [vmem:[%s9 + $0xf8] sm:$0xf]
      %v6467 = vld [vmem:[%s9 + $0xfc] sm:$0xf]
      %v6468 = vld [vmem:[%s9 + $0x100] sm:$0xf]
      %v6469 = vld [vmem:[%s9 + $0x104] sm:$0xf]
      %v6470 = vld [vmem:[%s9 + $0x108] sm:$0xf]
      %v6471 = vld [vmem:[%s9 + $0x10c] sm:$0xf]
      %v6472 = vld [vmem:[%s9 + $0x110] sm:$0xf]
      %v6473 = vld [vmem:[%s9 + $0x114] sm:$0xf]
      %v6474 = vld [vmem:[%s9 + $0x118] sm:$0xf]
      %v6475 = vld [vmem:[%s9 + $0x11c] sm:$0xf]
      %v6476 = vld [vmem:[%s9 + $0x120] sm:$0xf]
      %v6477 = vld [vmem:[%s9 + $0x124] sm:$0xf]
      %v6478 = vld [vmem:[%s9 + $0x128] sm:$0xf]
      %v6479 = vld [vmem:[%s9 + $0x12c] sm:$0xf]
      %v6480 = vld [vmem:[%s9 + $0x130] sm:$0xf]
      %v6481 = vld [vmem:[%s9 + $0x134] sm:$0xf]
      %v6482 = vld [vmem:[%s9 + $0x138] sm:$0xf]
      %v6483 = vld [vmem:[%s9 + $0x13c] sm:$0xf]
      %v6484 = vld [vmem:[%s9 + $0x140] sm:$0xf]
      %v6485 = vld [vmem:[%s9 + $0x144] sm:$0xf]
      %v6486 = vld [vmem:[%s9 + $0x148] sm:$0xf]
      %v6487 = vld [vmem:[%s9 + $0x14c] sm:$0xf]
      %v6488 = vld [vmem:[%s9 + $0x150] sm:$0xf]
      %v6489 = vld [vmem:[%s9 + $0x154] sm:$0xf]
      %v6490 = vld [vmem:[%s9 + $0x158] sm:$0xf]
      %v6491 = vld [vmem:[%s9 + $0x15c] sm:$0xf]
      %v6492 = vld [vmem:[%s9 + $0x160] sm:$0xf]
      %v6493 = vld [vmem:[%s9 + $0x164] sm:$0xf]
      %v6494 = vld [vmem:[%s9 + $0x168] sm:$0xf]
      %v6495 = vld [vmem:[%s9 + $0x16c] sm:$0xf]
      %v6496 = vld [vmem:[%s9 + $0x170] sm:$0xf]
      %v6497 = vld [vmem:[%s9 + $0x174] sm:$0xf]
      %v6498 = vld [vmem:[%s9 + $0x178] sm:$0xf]
      %v6499 = vld [vmem:[%s9 + $0x17c] sm:$0xf]
      %v6500 = vld [vmem:[%s9 + $0x180] sm:$0xf]
      %v6501 = vld [vmem:[%s9 + $0x184] sm:$0xf]
      %v6502 = vld [vmem:[%s9 + $0x188] sm:$0xf]
      %v6503 = vld [vmem:[%s9 + $0x18c] sm:$0xf]
      %v6504 = vld [vmem:[%s9 + $0x190] sm:$0xf]
      %v6505 = vld [vmem:[%s9 + $0x194] sm:$0xf]
      %v6506 = vld [vmem:[%s9 + $0x198] sm:$0xf]
      %v6507 = vld [vmem:[%s9 + $0x19c] sm:$0xf]
      %v6508 = vld [vmem:[%s9 + $0x1a0] sm:$0xf]
      %v6509 = vld [vmem:[%s9 + $0x1a4] sm:$0xf]
      %v6510 = vld [vmem:[%s9 + $0x1a8] sm:$0xf]
      %v6511 = vld [vmem:[%s9 + $0x1ac] sm:$0xf]
      %v6512 = vld [vmem:[%s9 + $0x1b0] sm:$0xf]
      %v6513 = vld [vmem:[%s9 + $0x1b4] sm:$0xf]
      %v6514 = vld [vmem:[%s9 + $0x1b8] sm:$0xf]
      %v6515 = vld [vmem:[%s9 + $0x1bc] sm:$0xf]
      %v6516 = vld [vmem:[%s9 + $0x1c0] sm:$0xf]
      %v6517 = vld [vmem:[%s9 + $0x1c4] sm:$0xf]
      %v6518 = vld [vmem:[%s9 + $0x1c8] sm:$0xf]
      %v6519 = vld [vmem:[%s9 + $0x1cc] sm:$0xf]
      %v6520 = vld [vmem:[%s9 + $0x1d0] sm:$0xf]
      %v6521 = vld [vmem:[%s9 + $0x1d4] sm:$0xf]
      %v6522 = vld [vmem:[%s9 + $0x1d8] sm:$0xf]
      %v6523 = vld [vmem:[%s9 + $0x1dc] sm:$0xf]
      %v6524 = vld [vmem:[%s9 + $0x1e0] sm:$0xf]
      %v6525 = vld [vmem:[%s9 + $0x1e4] sm:$0xf]
      %v6526 = vld [vmem:[%s9 + $0x1e8] sm:$0xf]
      %v6527 = vld [vmem:[%s9 + $0x1ec] sm:$0xf]
      %v6528 = vld [vmem:[%s9 + $0x1f0] sm:$0xf]
      %v6529 = vld [vmem:[%s9 + $0x1f4] sm:$0xf]
      %v6530 = vld [vmem:[%s9 + $0x1f8] sm:$0xf]
      %v6531 = vld [vmem:[%s9 + $0x1fc] sm:$0xf]
      %v6532 = vld [vmem:[%s9 + $0x200] sm:$0xf]
      %v6533 = vld [vmem:[%s9 + $0x204] sm:$0xf]
      %v6534 = vld [vmem:[%s9 + $0x208] sm:$0xf]
      %v6535 = vld [vmem:[%s9 + $0x20c] sm:$0xf]
      %v6536 = vld [vmem:[%s9 + $0x210] sm:$0xf]
      %v6537 = vld [vmem:[%s9 + $0x214] sm:$0xf]
      %v6538 = vld [vmem:[%s9 + $0x218] sm:$0xf]
      %v6539 = vld [vmem:[%s9 + $0x21c] sm:$0xf]
      %v6540 = vld [vmem:[%s9 + $0x220] sm:$0xf]
      %v6541 = vld [vmem:[%s9 + $0x224] sm:$0xf]
      %v6542 = vld [vmem:[%s9 + $0x228] sm:$0xf]
      %v6543 = vld [vmem:[%s9 + $0x22c] sm:$0xf]
      %v6544 = vld [vmem:[%s9 + $0x230] sm:$0xf]
      %v6545 = vld [vmem:[%s9 + $0x234] sm:$0xf]
      %v6546 = vld [vmem:[%s9 + $0x238] sm:$0xf]
      %v6547 = vld [vmem:[%s9 + $0x23c] sm:$0xf]
      %v6548 = vld [vmem:[%s10] sm:$0x1]
      %v6550 = vlaneseq
      %v6551 = vshrl.u32 %v6550, 7
      %v6552 = vsub.s32 0, %v6551
      %v6553 = vrot.slane %v6548, %v6552
      %v6699 = vunpack.c.l.b16 %v6404
      %v6700 = vunpack.c.l.b16 %v6405
      %v6701 = vunpack.c.l.b16 %v6406
      %v6702 = vunpack.c.l.b16 %v6407
      %v6703 = vunpack.c.l.b16 %v6408
      %v6704 = vunpack.c.l.b16 %v6409
      %v6705 = vunpack.c.l.b16 %v6410
      %v6706 = vunpack.c.l.b16 %v6411
      %v6707 = vunpack.c.l.b16 %v6412
      %v6708 = vunpack.c.l.b16 %v6413
      %v6709 = vunpack.c.l.b16 %v6414
      %v6710 = vunpack.c.l.b16 %v6415
      %v6711 = vunpack.c.l.b16 %v6416
      %v6712 = vunpack.c.l.b16 %v6417
      %v6713 = vunpack.c.l.b16 %v6418
      %v6714 = vunpack.c.l.b16 %v6419
      %v6715 = vunpack.c.l.b16 %v6420
      %v6716 = vunpack.c.l.b16 %v6421
      %v6717 = vunpack.c.l.b16 %v6422
      %v6718 = vunpack.c.l.b16 %v6423
      %v6719 = vunpack.c.l.b16 %v6424
      %v6720 = vunpack.c.l.b16 %v6425
      %v6721 = vunpack.c.l.b16 %v6426
      %v6722 = vunpack.c.l.b16 %v6427
      %v6723 = vunpack.c.l.b16 %v6428
      %v6724 = vunpack.c.l.b16 %v6429
      %v6725 = vunpack.c.l.b16 %v6430
      %v6726 = vunpack.c.l.b16 %v6431
      %v6727 = vunpack.c.l.b16 %v6432
      %v6728 = vunpack.c.l.b16 %v6433
      %v6729 = vunpack.c.l.b16 %v6434
      %v6730 = vunpack.c.l.b16 %v6435
      %v6731 = vunpack.c.l.b16 %v6436
      %v6732 = vunpack.c.l.b16 %v6437
      %v6733 = vunpack.c.l.b16 %v6438
      %v6734 = vunpack.c.l.b16 %v6439
      %v6735 = vunpack.c.l.b16 %v6440
      %v6736 = vunpack.c.l.b16 %v6441
      %v6737 = vunpack.c.l.b16 %v6442
      %v6738 = vunpack.c.l.b16 %v6443
      %v6739 = vunpack.c.l.b16 %v6444
      %v6740 = vunpack.c.l.b16 %v6445
      %v6741 = vunpack.c.l.b16 %v6446
      %v6742 = vunpack.c.l.b16 %v6447
      %v6743 = vunpack.c.l.b16 %v6448
      %v6744 = vunpack.c.l.b16 %v6449
      %v6745 = vunpack.c.l.b16 %v6450
      %v6746 = vunpack.c.l.b16 %v6451
      %v6747 = vunpack.c.l.b16 %v6452
      %v6748 = vunpack.c.l.b16 %v6453
      %v6749 = vunpack.c.l.b16 %v6454
      %v6750 = vunpack.c.l.b16 %v6455
      %v6751 = vunpack.c.l.b16 %v6456
      %v6752 = vunpack.c.l.b16 %v6457
      %v6753 = vunpack.c.l.b16 %v6458
      %v6754 = vunpack.c.l.b16 %v6459
      %v6755 = vunpack.c.l.b16 %v6460
      %v6756 = vunpack.c.l.b16 %v6461
      %v6757 = vunpack.c.l.b16 %v6462
      %v6758 = vunpack.c.l.b16 %v6463
      %v6759 = vunpack.c.l.b16 %v6464
      %v6760 = vunpack.c.l.b16 %v6465
      %v6761 = vunpack.c.l.b16 %v6466
      %v6762 = vunpack.c.l.b16 %v6467
      %v6763 = vunpack.c.l.b16 %v6468
      %v6764 = vunpack.c.l.b16 %v6469
      %v6765 = vunpack.c.l.b16 %v6470
      %v6766 = vunpack.c.l.b16 %v6471
      %v6767 = vunpack.c.l.b16 %v6472
      %v6768 = vunpack.c.l.b16 %v6473
      %v6769 = vunpack.c.l.b16 %v6474
      %v6770 = vunpack.c.l.b16 %v6475
      %v6771 = vunpack.c.l.b16 %v6476
      %v6772 = vunpack.c.l.b16 %v6477
      %v6773 = vunpack.c.l.b16 %v6478
      %v6774 = vunpack.c.l.b16 %v6479
      %v6775 = vunpack.c.l.b16 %v6480
      %v6776 = vunpack.c.l.b16 %v6481
      %v6777 = vunpack.c.l.b16 %v6482
      %v6778 = vunpack.c.l.b16 %v6483
      %v6779 = vunpack.c.l.b16 %v6484
      %v6780 = vunpack.c.l.b16 %v6485
      %v6781 = vunpack.c.l.b16 %v6486
      %v6782 = vunpack.c.l.b16 %v6487
      %v6783 = vunpack.c.l.b16 %v6488
      %v6784 = vunpack.c.l.b16 %v6489
      %v6785 = vunpack.c.l.b16 %v6490
      %v6786 = vunpack.c.l.b16 %v6491
      %v6787 = vunpack.c.l.b16 %v6492
      %v6788 = vunpack.c.l.b16 %v6493
      %v6789 = vunpack.c.l.b16 %v6494
      %v6790 = vunpack.c.l.b16 %v6495
      %v6791 = vunpack.c.l.b16 %v6496
      %v6792 = vunpack.c.l.b16 %v6497
      %v6793 = vunpack.c.l.b16 %v6498
      %v6794 = vunpack.c.l.b16 %v6499
      %v6795 = vunpack.c.l.b16 %v6500
      %v6796 = vunpack.c.l.b16 %v6501
      %v6797 = vunpack.c.l.b16 %v6502
      %v6798 = vunpack.c.l.b16 %v6503
      %v6799 = vunpack.c.l.b16 %v6504
      %v6800 = vunpack.c.l.b16 %v6505
      %v6801 = vunpack.c.l.b16 %v6506
      %v6802 = vunpack.c.l.b16 %v6507
      %v6803 = vunpack.c.l.b16 %v6508
      %v6804 = vunpack.c.l.b16 %v6509
      %v6805 = vunpack.c.l.b16 %v6510
      %v6806 = vunpack.c.l.b16 %v6511
      %v6807 = vunpack.c.l.b16 %v6512
      %v6808 = vunpack.c.l.b16 %v6513
      %v6809 = vunpack.c.l.b16 %v6514
      %v6810 = vunpack.c.l.b16 %v6515
      %v6811 = vunpack.c.l.b16 %v6516
      %v6812 = vunpack.c.l.b16 %v6517
      %v6813 = vunpack.c.l.b16 %v6518
      %v6814 = vunpack.c.l.b16 %v6519
      %v6815 = vunpack.c.l.b16 %v6520
      %v6816 = vunpack.c.l.b16 %v6521
      %v6817 = vunpack.c.l.b16 %v6522
      %v6818 = vunpack.c.l.b16 %v6523
      %v6819 = vunpack.c.l.b16 %v6524
      %v6820 = vunpack.c.l.b16 %v6525
      %v6821 = vunpack.c.l.b16 %v6526
      %v6822 = vunpack.c.l.b16 %v6527
      %v6823 = vunpack.c.l.b16 %v6528
      %v6824 = vunpack.c.l.b16 %v6529
      %v6825 = vunpack.c.l.b16 %v6530
      %v6826 = vunpack.c.l.b16 %v6531
      %v6827 = vunpack.c.l.b16 %v6532
      %v6828 = vunpack.c.l.b16 %v6533
      %v6829 = vunpack.c.l.b16 %v6534
      %v6830 = vunpack.c.l.b16 %v6535
      %v6831 = vunpack.c.l.b16 %v6536
      %v6832 = vunpack.c.l.b16 %v6537
      %v6833 = vunpack.c.l.b16 %v6538
      %v6834 = vunpack.c.l.b16 %v6539
      %v6835 = vunpack.c.l.b16 %v6540
      %v6836 = vunpack.c.l.b16 %v6541
      %v6837 = vunpack.c.l.b16 %v6542
      %v6838 = vunpack.c.l.b16 %v6543
      %v6839 = vunpack.c.l.b16 %v6544
      %v6840 = vunpack.c.l.b16 %v6545
      %v6841 = vunpack.c.l.b16 %v6546
      %v6842 = vunpack.c.l.b16 %v6547
      %v6843 = vpack.c.b16 %v6700, %v6699
      %v6844 = vpack.c.b16 %v6702, %v6701
      %v6845 = vpack.c.b16 %v6704, %v6703
      %v6846 = vpack.c.b16 %v6706, %v6705
      %v6847 = vpack.c.b16 %v6708, %v6707
      %v6848 = vpack.c.b16 %v6710, %v6709
      %v6849 = vpack.c.b16 %v6712, %v6711
      %v6850 = vpack.c.b16 %v6714, %v6713
      %v6851 = vpack.c.b16 %v6716, %v6715
      %v6852 = vpack.c.b16 %v6718, %v6717
      %v6853 = vpack.c.b16 %v6720, %v6719
      %v6854 = vpack.c.b16 %v6722, %v6721
      %v6855 = vpack.c.b16 %v6724, %v6723
      %v6856 = vpack.c.b16 %v6726, %v6725
      %v6857 = vpack.c.b16 %v6728, %v6727
      %v6858 = vpack.c.b16 %v6730, %v6729
      %v6859 = vpack.c.b16 %v6732, %v6731
      %v6860 = vpack.c.b16 %v6734, %v6733
      %v6861 = vpack.c.b16 %v6736, %v6735
      %v6862 = vpack.c.b16 %v6738, %v6737
      %v6863 = vpack.c.b16 %v6740, %v6739
      %v6864 = vpack.c.b16 %v6742, %v6741
      %v6865 = vpack.c.b16 %v6744, %v6743
      %v6866 = vpack.c.b16 %v6746, %v6745
      %v6867 = vpack.c.b16 %v6748, %v6747
      %v6868 = vpack.c.b16 %v6750, %v6749
      %v6869 = vpack.c.b16 %v6752, %v6751
      %v6870 = vpack.c.b16 %v6754, %v6753
      %v6871 = vpack.c.b16 %v6756, %v6755
      %v6872 = vpack.c.b16 %v6758, %v6757
      %v6873 = vpack.c.b16 %v6760, %v6759
      %v6874 = vpack.c.b16 %v6762, %v6761
      %v6875 = vpack.c.b16 %v6764, %v6763
      %v6876 = vpack.c.b16 %v6766, %v6765
      %v6877 = vpack.c.b16 %v6768, %v6767
      %v6878 = vpack.c.b16 %v6770, %v6769
      %v6879 = vpack.c.b16 %v6772, %v6771
      %v6880 = vpack.c.b16 %v6774, %v6773
      %v6881 = vpack.c.b16 %v6776, %v6775
      %v6882 = vpack.c.b16 %v6778, %v6777
      %v6883 = vpack.c.b16 %v6780, %v6779
      %v6884 = vpack.c.b16 %v6782, %v6781
      %v6885 = vpack.c.b16 %v6784, %v6783
      %v6886 = vpack.c.b16 %v6786, %v6785
      %v6887 = vpack.c.b16 %v6788, %v6787
      %v6888 = vpack.c.b16 %v6790, %v6789
      %v6889 = vpack.c.b16 %v6792, %v6791
      %v6890 = vpack.c.b16 %v6794, %v6793
      %v6891 = vpack.c.b16 %v6796, %v6795
      %v6892 = vpack.c.b16 %v6798, %v6797
      %v6893 = vpack.c.b16 %v6800, %v6799
      %v6894 = vpack.c.b16 %v6802, %v6801
      %v6895 = vpack.c.b16 %v6804, %v6803
      %v6896 = vpack.c.b16 %v6806, %v6805
      %v6897 = vpack.c.b16 %v6808, %v6807
      %v6898 = vpack.c.b16 %v6810, %v6809
      %v6899 = vpack.c.b16 %v6812, %v6811
      %v6900 = vpack.c.b16 %v6814, %v6813
      %v6901 = vpack.c.b16 %v6816, %v6815
      %v6902 = vpack.c.b16 %v6818, %v6817
      %v6903 = vpack.c.b16 %v6820, %v6819
      %v6904 = vpack.c.b16 %v6822, %v6821
      %v6905 = vpack.c.b16 %v6824, %v6823
      %v6906 = vpack.c.b16 %v6826, %v6825
      %v6907 = vpack.c.b16 %v6828, %v6827
      %v6908 = vpack.c.b16 %v6830, %v6829
      %v6909 = vpack.c.b16 %v6832, %v6831
      %v6910 = vpack.c.b16 %v6834, %v6833
      %v6911 = vpack.c.b16 %v6836, %v6835
      %v6912 = vpack.c.b16 %v6838, %v6837
      %v6913 = vpack.c.b16 %v6840, %v6839
      %v6914 = vpack.c.b16 %v6842, %v6841
      %6987 = vmatprep.subr.bf16.mxu0 0
      %6988 = vmatpush1.bf16.msra.mxu0 %v6850
      %6989 = vmatprep.subr.bf16.mxu0 0
      %6990 = vmatpush1.bf16.msra.mxu0 %v6849
      %6991 = vmatprep.subr.bf16.mxu0 0
      %6992 = vmatpush1.bf16.msra.mxu0 %v6848
      %6993 = vmatprep.subr.bf16.mxu0 0
      %6994 = vmatpush1.bf16.msra.mxu0 %v6847
      %6995 = vmatprep.subr.bf16.mxu0 0
      %6996 = vmatpush1.bf16.msra.mxu0 %v6846
      %6997 = vmatprep.subr.bf16.mxu0 0
      %6998 = vmatpush1.bf16.msra.mxu0 %v6845
      %6999 = vmatprep.subr.bf16.mxu0 0
      %7000 = vmatpush1.bf16.msra.mxu0 %v6844
      %7001 = vmatprep.subr.bf16.mxu0 0
      %7002 = vmatpush1.bf16.msra.mxu0 %v6843
      %7003 = vmatprep.subr.bf16.mxu0 0
      %7004 = vmatpush2.bf16.msra.mxu0 %v6858
      %7005 = vmatprep.subr.bf16.mxu0 0
      %7006 = vmatpush2.bf16.msra.mxu0 %v6857
      %7007 = vmatprep.subr.bf16.mxu0 0
      %7008 = vmatpush2.bf16.msra.mxu0 %v6856
      %7009 = vmatprep.subr.bf16.mxu0 0
      %7010 = vmatpush2.bf16.msra.mxu0 %v6855
      %7011 = vmatprep.subr.bf16.mxu0 0
      %7012 = vmatpush2.bf16.msra.mxu0 %v6854
      %7013 = vmatprep.subr.bf16.mxu0 0
      %7014 = vmatpush2.bf16.msra.mxu0 %v6853
      %7015 = vmatprep.subr.bf16.mxu0 0
      %7016 = vmatpush2.bf16.msra.mxu0 %v6852
      %7017 = vmatprep.subr.bf16.mxu0 0
      %7018 = vmatpush2.bf16.msra.mxu0 %v6851
      %7019 = vmatprep.mubr.bf16.mxu0 %v6387
      %7020 = vmatmul.mubr.bf16.gmra.mxu0 %v6386
      %v7021 = vpop.f32.mrf.mxu0
      %v7022 = vadd.f32 %v6553, %v7021
      %v7023 = vpop.f32.mrf.mxu0
      %v7024 = vpop.f32.mrf.mxu0
      %v7025 = vadd.f32 %v6553, %v7024
      %v7026 = vpop.f32.mrf.mxu0
      %7027 = vmatprep.mubr.bf16.mxu0 %v6396
      %7028 = vmatmul.mubr.bf16.gmra.mxu0 %v6395
      %v7029 = vpop.f32.mrf.mxu0
      %v7030 = vadd.f32 %v6553, %v7029
      %v7031 = vpop.f32.mrf.mxu0
      %v7032 = vpop.f32.mrf.mxu0
      %v7033 = vadd.f32 %v6553, %v7032
      %v7034 = vpop.f32.mrf.mxu0
      %7035 = vdwg.mxu0
      %7036 = vmatprep.subr.bf16.mxu0 0
      %7037 = vmatpush1.bf16.msra.mxu0 %v6866
      %7038 = vmatprep.subr.bf16.mxu0 0
      %7039 = vmatpush1.bf16.msra.mxu0 %v6865
      %7040 = vmatprep.subr.bf16.mxu0 0
      %7041 = vmatpush1.bf16.msra.mxu0 %v6864
      %7042 = vmatprep.subr.bf16.mxu0 0
      %7043 = vmatpush1.bf16.msra.mxu0 %v6863
      %7044 = vmatprep.subr.bf16.mxu0 0
      %7045 = vmatpush1.bf16.msra.mxu0 %v6862
      %7046 = vmatprep.subr.bf16.mxu0 0
      %7047 = vmatpush1.bf16.msra.mxu0 %v6861
      %7048 = vmatprep.subr.bf16.mxu0 0
      %7049 = vmatpush1.bf16.msra.mxu0 %v6860
      %7050 = vmatprep.subr.bf16.mxu0 0
      %7051 = vmatpush1.bf16.msra.mxu0 %v6859
      %7052 = vmatprep.subr.bf16.mxu0 0
      %7053 = vmatpush2.bf16.msra.mxu0 %v6874
      %7054 = vmatprep.subr.bf16.mxu0 0
      %7055 = vmatpush2.bf16.msra.mxu0 %v6873
      %7056 = vmatprep.subr.bf16.mxu0 0
      %7057 = vmatpush2.bf16.msra.mxu0 %v6872
      %7058 = vmatprep.subr.bf16.mxu0 0
      %7059 = vmatpush2.bf16.msra.mxu0 %v6871
      %7060 = vmatprep.subr.bf16.mxu0 0
      %7061 = vmatpush2.bf16.msra.mxu0 %v6870
      %7062 = vmatprep.subr.bf16.mxu0 0
      %7063 = vmatpush2.bf16.msra.mxu0 %v6869
      %7064 = vmatprep.subr.bf16.mxu0 0
      %7065 = vmatpush2.bf16.msra.mxu0 %v6868
      %7066 = vmatprep.subr.bf16.mxu0 0
      %7067 = vmatpush2.bf16.msra.mxu0 %v6867
      %7068 = vmatprep.mubr.bf16.mxu0 %v6389
      %7069 = vmatmul.mubr.bf16.gmra.mxu0 %v6388
      %v7070 = vpop.f32.mrf.mxu0
      %v7071 = vadd.f32 %v7022, %v7070
      %v7072 = vpop.f32.mrf.mxu0
      %v7073 = vpop.f32.mrf.mxu0
      %v7074 = vadd.f32 %v7025, %v7073
      %v7075 = vpop.f32.mrf.mxu0
      %7076 = vmatprep.mubr.bf16.mxu0 %v6398
      %7077 = vmatmul.mubr.bf16.gmra.mxu0 %v6397
      %v7078 = vpop.f32.mrf.mxu0
      %v7079 = vadd.f32 %v7030, %v7078
      %v7080 = vpop.f32.mrf.mxu0
      %v7081 = vpop.f32.mrf.mxu0
      %v7082 = vadd.f32 %v7033, %v7081
      %v7083 = vpop.f32.mrf.mxu0
      %7084 = vdwg.mxu0
      %7085 = vmatprep.subr.bf16.mxu0 0
      %7086 = vmatpush1.bf16.msra.mxu0 %v6882
      %7087 = vmatprep.subr.bf16.mxu0 0
      %7088 = vmatpush1.bf16.msra.mxu0 %v6881
      %7089 = vmatprep.subr.bf16.mxu0 0
      %7090 = vmatpush1.bf16.msra.mxu0 %v6880
      %7091 = vmatprep.subr.bf16.mxu0 0
      %7092 = vmatpush1.bf16.msra.mxu0 %v6879
      %7093 = vmatprep.subr.bf16.mxu0 0
      %7094 = vmatpush1.bf16.msra.mxu0 %v6878
      %7095 = vmatprep.subr.bf16.mxu0 0
      %7096 = vmatpush1.bf16.msra.mxu0 %v6877
      %7097 = vmatprep.subr.bf16.mxu0 0
      %7098 = vmatpush1.bf16.msra.mxu0 %v6876
      %7099 = vmatprep.subr.bf16.mxu0 0
      %7100 = vmatpush1.bf16.msra.mxu0 %v6875
      %7101 = vmatprep.subr.bf16.mxu0 0
      %7102 = vmatpush2.bf16.msra.mxu0 %v6890
      %7103 = vmatprep.subr.bf16.mxu0 0
      %7104 = vmatpush2.bf16.msra.mxu0 %v6889
      %7105 = vmatprep.subr.bf16.mxu0 0
      %7106 = vmatpush2.bf16.msra.mxu0 %v6888
      %7107 = vmatprep.subr.bf16.mxu0 0
      %7108 = vmatpush2.bf16.msra.mxu0 %v6887
      %7109 = vmatprep.subr.bf16.mxu0 0
      %7110 = vmatpush2.bf16.msra.mxu0 %v6886
      %7111 = vmatprep.subr.bf16.mxu0 0
      %7112 = vmatpush2.bf16.msra.mxu0 %v6885
      %7113 = vmatprep.subr.bf16.mxu0 0
      %7114 = vmatpush2.bf16.msra.mxu0 %v6884
      %7115 = vmatprep.subr.bf16.mxu0 0
      %7116 = vmatpush2.bf16.msra.mxu0 %v6883
      %7117 = vmatprep.mubr.bf16.mxu0 %v6391
      %7118 = vmatmul.mubr.bf16.gmra.mxu0 %v6390
      %v7119 = vpop.f32.mrf.mxu0
      %v7120 = vadd.f32 %v7071, %v7119
      %v7121 = vpop.f32.mrf.mxu0
      %v7122 = vpop.f32.mrf.mxu0
      %v7123 = vadd.f32 %v7074, %v7122
      %v7124 = vpop.f32.mrf.mxu0
      %7125 = vmatprep.mubr.bf16.mxu0 %v6400
      %7126 = vmatmul.mubr.bf16.gmra.mxu0 %v6399
      %v7127 = vpop.f32.mrf.mxu0
      %v7128 = vadd.f32 %v7079, %v7127
      %v7129 = vpop.f32.mrf.mxu0
      %v7130 = vpop.f32.mrf.mxu0
      %v7131 = vadd.f32 %v7082, %v7130
      %v7132 = vpop.f32.mrf.mxu0
      %7133 = vdwg.mxu0
      %7134 = vmatprep.subr.bf16.mxu0 0
      %7135 = vmatpush1.bf16.msra.mxu0 %v6898
      %7136 = vmatprep.subr.bf16.mxu0 0
      %7137 = vmatpush1.bf16.msra.mxu0 %v6897
      %7138 = vmatprep.subr.bf16.mxu0 0
      %7139 = vmatpush1.bf16.msra.mxu0 %v6896
      %7140 = vmatprep.subr.bf16.mxu0 0
      %7141 = vmatpush1.bf16.msra.mxu0 %v6895
      %7142 = vmatprep.subr.bf16.mxu0 0
      %7143 = vmatpush1.bf16.msra.mxu0 %v6894
      %7144 = vmatprep.subr.bf16.mxu0 0
      %7145 = vmatpush1.bf16.msra.mxu0 %v6893
      %7146 = vmatprep.subr.bf16.mxu0 0
      %7147 = vmatpush1.bf16.msra.mxu0 %v6892
      %7148 = vmatprep.subr.bf16.mxu0 0
      %7149 = vmatpush1.bf16.msra.mxu0 %v6891
      %7150 = vmatprep.subr.bf16.mxu0 0
      %7151 = vmatpush2.bf16.msra.mxu0 %v6906
      %7152 = vmatprep.subr.bf16.mxu0 0
      %7153 = vmatpush2.bf16.msra.mxu0 %v6905
      %7154 = vmatprep.subr.bf16.mxu0 0
      %7155 = vmatpush2.bf16.msra.mxu0 %v6904
      %7156 = vmatprep.subr.bf16.mxu0 0
      %7157 = vmatpush2.bf16.msra.mxu0 %v6903
      %7158 = vmatprep.subr.bf16.mxu0 0
      %7159 = vmatpush2.bf16.msra.mxu0 %v6902
      %7160 = vmatprep.subr.bf16.mxu0 0
      %7161 = vmatpush2.bf16.msra.mxu0 %v6901
      %7162 = vmatprep.subr.bf16.mxu0 0
      %7163 = vmatpush2.bf16.msra.mxu0 %v6900
      %7164 = vmatprep.subr.bf16.mxu0 0
      %7165 = vmatpush2.bf16.msra.mxu0 %v6899
      %7166 = vmatprep.mubr.bf16.mxu0 %v6393
      %7167 = vmatmul.mubr.bf16.gmra.mxu0 %v6392
      %v7168 = vpop.f32.mrf.mxu0
      %v7169 = vadd.f32 %v7120, %v7168
      %v7170 = vpop.f32.mrf.mxu0
      %v7171 = vpop.f32.mrf.mxu0
      %v7172 = vadd.f32 %v7123, %v7171
      %v7173 = vpop.f32.mrf.mxu0
      %7174 = vmatprep.mubr.bf16.mxu0 %v6402
      %7175 = vmatmul.mubr.bf16.gmra.mxu0 %v6401
      %v7176 = vpop.f32.mrf.mxu0
      %v7177 = vadd.f32 %v7128, %v7176
      %v7178 = vpop.f32.mrf.mxu0
      %v7179 = vpop.f32.mrf.mxu0
      %v7180 = vadd.f32 %v7131, %v7179
      %v7181 = vpop.f32.mrf.mxu0
      %7182 = vdwg.mxu0
      %7183 = vmatprep.subr.bf16.mxu0 0
      %7184 = vmatpush1.bf16.msra.mxu0 %v6914
      %7185 = vmatprep.subr.bf16.mxu0 0
      %7186 = vmatpush1.bf16.msra.mxu0 %v6913
      %7187 = vmatprep.subr.bf16.mxu0 0
      %7188 = vmatpush1.bf16.msra.mxu0 %v6912
      %7189 = vmatprep.subr.bf16.mxu0 0
      %7190 = vmatpush1.bf16.msra.mxu0 %v6911
      %7191 = vmatprep.subr.bf16.mxu0 0
      %7192 = vmatpush1.bf16.msra.mxu0 %v6910
      %7193 = vmatprep.subr.bf16.mxu0 0
      %7194 = vmatpush1.bf16.msra.mxu0 %v6909
      %7195 = vmatprep.subr.bf16.mxu0 0
      %7196 = vmatpush1.bf16.msra.mxu0 %v6908
      %7197 = vmatprep.subr.bf16.mxu0 0
      %7198 = vmatpush1.bf16.msra.mxu0 %v6907
      %7199 = vmatprep.subr.bf16.mxu0 0
      %7200 = vmatpush2.bf16.msra.mxu0 0
      %7201 = vmatprep.subr.bf16.mxu0 0
      %7202 = vmatpush2.bf16.msra.mxu0 0
      %7203 = vmatprep.subr.bf16.mxu0 0
      %7204 = vmatpush2.bf16.msra.mxu0 0
      %7205 = vmatprep.subr.bf16.mxu0 0
      %7206 = vmatpush2.bf16.msra.mxu0 0
      %7207 = vmatprep.subr.bf16.mxu0 0
      %7208 = vmatpush2.bf16.msra.mxu0 0
      %7209 = vmatprep.subr.bf16.mxu0 0
      %7210 = vmatpush2.bf16.msra.mxu0 0
      %7211 = vmatprep.subr.bf16.mxu0 0
      %7212 = vmatpush2.bf16.msra.mxu0 0
      %7213 = vmatprep.subr.bf16.mxu0 0
      %7214 = vmatpush2.bf16.msra.mxu0 0
      %7215 = vmatprep.mubr.bf16.mxu0 0
      %7216 = vmatmul.mubr.bf16.gmra.mxu0 %v6394
      %v7217 = vpop.f32.mrf.mxu0
      %v7218 = vadd.f32 %v7169, %v7217
      %v7219 = vpop.f32.mrf.mxu0
      %v7220 = vpop.f32.mrf.mxu0
      %v7221 = vadd.f32 %v7172, %v7220
      %v7222 = vpop.f32.mrf.mxu0
      %7223 = vmatprep.mubr.bf16.mxu0 0
      %7224 = vmatmul.mubr.bf16.gmra.mxu0 %v6403
      %v7225 = vpop.f32.mrf.mxu0
      %v7226 = vadd.f32 %v7177, %v7225
      %v7227 = vpop.f32.mrf.mxu0
      %v7228 = vpop.f32.mrf.mxu0
      %v7229 = vadd.f32 %v7180, %v7228
      %v7230 = vpop.f32.mrf.mxu0
      %7231 = vdwg.mxu0
      %7232 = vst [vmem:[%s393 + $0x30] sm:$0xff] %v7218
      %7233 = vst [vmem:[%s393 + $0x68] sm:$0xff] %v7221
      %7234 = vst [vmem:[%s393 + $0xa0] sm:$0xff] %v7226
      %7235 = vst [vmem:[%s393 + $0xd8] sm:$0xff] %v7229
      %s7236 = smul.u32 4, %s22
      %p7237 = scmp.lt.s32.totalorder %s7236, 7
      %s7238 = scalar_select %p7237, %s7236, 7
      %s7239 = smul.addr %s7238, 7
      %s7240 = smul.addr %s7239, 8
      %s7241 = scalar_lea.vmem %s11, %s7240
      // Predicated region
      $region65: #{reduction_b.1} parent=63 // pred_check
        %p7242 = pneg %p276
      $region66: #{reduction_b.1} parent=63 // pred_check_branch
        %7244 = sbr.rel (%p7242) target = $region68
      $region67: #{reduction_b.1} parent=63 // pred_region
        %s7245 = smul.u32 4, %s22
      $region68: #{reduction_b.1} parent=63 // pred_fallthru
        _
    $region64: #{reduction_b.1} parent=5 // pred_fallthru
      _
    %p7246 = scmp.le.s32.totalorder 2, %s17
    // Predicated region
    $region69: #{reduction_b.1} parent=5 // pred_check
      %p7247 = pneg %p7246
    $region70: #{reduction_b.1} parent=5 // pred_check_branch
      %7249 = sbr.rel (%p7247) target = $region72
    $region71: #{reduction_b.1} parent=5 // pred_region
      %s7250 = ssub.s32 %s17, 2
      // Predicated region
      $region73: #{reduction_b.1} parent=71 // pred_check
        %p7251 = pneg %p282
      $region74: #{reduction_b.1} parent=71 // pred_check_branch
        %7253 = sbr.rel (%p7251) target = $region76
      $region75: #{reduction_b.1} parent=71 // pred_region
        %s7254 = smul.u32 4, %s23
        %p7255 = scmp.lt.s32.totalorder %s7254, 7
        %s7256 = scalar_select %p7255, %s7254, 7
        %s7257 = smul.addr %s7256, 7
        %s7258 = smul.addr %s7257, 8
        %s7259 = scalar_lea.vmem %s11, %s7258
      $region76: #{reduction_b.1} parent=71 // pred_fallthru
        _
    $region72: #{reduction_b.1} parent=5 // pred_fallthru
      _
  $region6: #{reduction_b.1} parent=0 // loop_footer
    %s21 = sadd.s32 1, %s17
  $region7: #{reduction_b.1} parent=0 // loop_footer_branch
    %16 = sbr.rel target = $region3
  $region8: #{reduction_b.1} parent=0 // loop_exit
    _

</llo_original>
